<compile_context>
chip_gen: v7x
topology: tpu7x:2x2x1
jax: 0.10.0
libtpu: 0.0.40
codegen_flags: <defaults>
</compile_context>

<pallas_src>
import functools

import jax
import jax.numpy as jnp
from jax.experimental import pallas as pl
from jax.experimental.pallas import tpu as pltpu


def _fused_conv_bn_relu_pool_kernel(
        x_ref, w_ref, scale_ref, shift_ref, o_ref, *,
        H, Wo, Cin, Cout, KH, KW, pad, QE):
    """Fused k x k 'same' conv + folded BN (eval) + ReLU + 2x2 max-pool, one image.

    x_ref:     (2, H, Wo, Cin)    bf16   x_ref[p, r, q] = img[r, 2q + p]
    w_ref:     (KH*KW*Cin, Cout)  bf16   rows ordered (ky, kx, cin)
    scale_ref: (1, Cout)          f32    folded BN scale
    shift_ref: (1, Cout)          f32    folded BN shift (incl. conv bias)
    o_ref:     (H//2, Wo, Cout)   f32    pooled output for this image (NHWC-ish)
    """
    HW = H * Wo
    KWC = KW * Cin

    # -------- zero-padded (along q) copy of both input-column parities --------
    xv = x_ref[...]                                      # (2, H, Wo, Cin)
    zq = jnp.zeros((2, H, QE, Cin), xv.dtype)
    xq = jnp.concatenate([zq, xv, zq], axis=2)           # (2, H, Wo + 2*QE, Cin)

    # -------- dedup'd column-shifted slabs: only 8 unique (parity, shift) --------
    slab_cache = {}

    def shifted_slab(pp, m):
        # slab[r, q, c] = img[r, 2*(q+m) + pp, c], zero outside the image.
        if (pp, m) not in slab_cache:
            slab_cache[(pp, m)] = xq[pp, :, QE + m:QE + m + Wo, :]   # (H, Wo, Cin)
        return slab_cache[(pp, m)]

    # -------- full im2col: K = KH*KW*Cin, both column parities stacked along M --------
    zrow = jnp.zeros((pad, Wo, KWC), xv.dtype)
    lhs_parts = []
    for cp in range(2):                                  # output-column parity
        taps = []
        for kx in range(KW):
            t = cp + kx - pad                            # image col = 2q + t
            taps.append(shifted_slab(t % 2, t // 2))
        xcat = jnp.concatenate(taps, axis=-1)            # (H, Wo, KW*Cin)
        xcatp = jnp.concatenate([zrow, xcat, zrow], axis=0)   # row-padded (leading dim)
        chunks = [xcatp[ky:ky + H] for ky in range(KH)]  # free leading-dim slices
        lhs_cp = jnp.concatenate(chunks, axis=-1)        # (H, Wo, KH*KW*Cin)
        lhs_parts.append(lhs_cp.reshape(HW, KH * KWC))
    lhs = jnp.concatenate(lhs_parts, axis=0)             # (2*H*Wo, K)

    # -------- one MXU matmul for the whole image (bf16 operands, f32 acc) --------
    acc = jnp.dot(lhs, w_ref[...], preferred_element_type=jnp.float32)   # (2*HW, Cout)

    # -------- folded BN affine, maxpool over W then H, single ReLU last --------
    scale = scale_ref[...]
    shift = shift_ref[...]
    y0 = acc[:HW] * scale + shift                        # conv columns 2q
    y1 = acc[HW:] * scale + shift                        # conv columns 2q + 1
    yw = jnp.maximum(y0, y1)                             # MaxPool over W
    yw = yw.reshape(H // 2, 2 * Wo, Cout)
    yh = jnp.maximum(yw[:, :Wo, :], yw[:, Wo:, :])       # MaxPool over H
    o_ref[...] = jnp.maximum(yh, 0.0).astype(o_ref.dtype)   # relu(max) == max(relu)


def convtraction_unit_forward(x_nchw, params):
    """Conv2d(k, pad=k//2, stride=1) + BatchNorm2d(eval) + ReLU + MaxPool2d(2).

    x_nchw: (N, Cin, H, W) float32  ->  (N, Cout, H//2, W//2) float32.
    """
    N, Cin, H, W = x_nchw.shape
    k, pad = params["k"], params["pad"]
    KH = KW = k
    w2, scale, shift = params["w2"], params["scale"], params["shift"]
    Cout = w2.shape[-1]
    assert k == 2 * pad + 1, "kernel assumes a 'same' (stride-1) convolution"
    assert H % 2 == 0 and W % 2 == 0, "MaxPool2d(2) needs even spatial dims"
    Ho, Wo = H // 2, W // 2

    # Column-parity split fused into the NCHW -> (N, 2, H, Wo, Cin) transpose
    # (one XLA copy): x_split[n, p, r, q, c] = x[n, c, r, 2q + p].
    x_split = jnp.transpose(x_nchw.reshape(N, Cin, H, Wo, 2), (0, 4, 2, 3, 1))
    x_split = x_split.astype(jnp.bfloat16)

    QE = (((pad + 1) // 2) + 7) // 8 * 8      # 8-aligned q-padding covering all kx taps

    kern = functools.partial(
        _fused_conv_bn_relu_pool_kernel,
        H=H, Wo=Wo, Cin=Cin, Cout=Cout, KH=KH, KW=KW, pad=pad, QE=QE)

    flops = 2 * N * H * W * Cout * KH * KW * Cin
    bytes_accessed = (x_split.size * 2 + w2.size * 2
                      + (scale.size + shift.size) * 4 + N * Ho * Wo * Cout * 4)

    out = pl.pallas_call(
        kern,
        out_shape=jax.ShapeDtypeStruct((N, Ho, Wo, Cout), jnp.float32),
        grid=(N,),                                        # one step per image
        in_specs=[
            pl.BlockSpec((None, 2, H, Wo, Cin), lambda n: (n, 0, 0, 0, 0)),
            pl.BlockSpec((KH * KW * Cin, Cout), lambda n: (0, 0)),
            pl.BlockSpec((1, Cout), lambda n: (0, 0)),
            pl.BlockSpec((1, Cout), lambda n: (0, 0)),
        ],
        out_specs=pl.BlockSpec((None, Ho, Wo, Cout), lambda n: (n, 0, 0, 0)),
        compiler_params=pltpu.CompilerParams(
            dimension_semantics=("parallel",),            # megacore over batch
            vmem_limit_bytes=32 * 1024 * 1024),           # safe on v5e/v6e/v7x; ~5 MiB used
        cost_estimate=pl.CostEstimate(
            flops=flops, transcendentals=0, bytes_accessed=bytes_accessed),
    )(x_split, w2, scale, shift)

    # NCHW is required by the module contract; this transpose is the only extra XLA
    # pass over the (small) output.
    return jnp.transpose(out, (0, 3, 1, 2))


def init_convtraction_unit(key, in_ch, out_ch, k=7):
    """Deterministic Conv2d(in_ch, out_ch, k, pad=k//2) + BatchNorm2d(out_ch) params.

    BatchNorm (eval mode) and the conv bias are folded into per-channel scale/shift.
    """
    kw_, kb_, kg_, kbt_, km_, kv_ = jax.random.split(key, 6)
    fan_in = in_ch * k * k
    w = jax.random.normal(kw_, (out_ch, in_ch, k, k), jnp.float32) / jnp.sqrt(fan_in)
    b = 0.1 * jax.random.normal(kb_, (out_ch,), jnp.float32)
    gamma = 1.0 + 0.1 * jax.random.normal(kg_, (out_ch,), jnp.float32)
    beta = 0.1 * jax.random.normal(kbt_, (out_ch,), jnp.float32)
    mean = 0.1 * jax.random.normal(km_, (out_ch,), jnp.float32)
    var = 1.0 + 0.1 * jnp.abs(jax.random.normal(kv_, (out_ch,), jnp.float32))
    eps = 1e-5
    scale = gamma / jnp.sqrt(var + eps)
    shift = (b - mean) * scale + beta
    # PyTorch (Cout, Cin, KH, KW) -> (KH, KW, Cin, Cout) -> (KH*KW*Cin, Cout);
    # row order (ky, kx, cin) matches the kernel's im2col lane order.
    w2 = jnp.transpose(w, (2, 3, 1, 0)).reshape(k * k * in_ch, out_ch)
    return {
        "w_oihw": w,                                     # kept for the pure-JAX reference
        "w2": w2.astype(jnp.bfloat16),
        "scale": scale.reshape(1, out_ch),
        "shift": shift.reshape(1, out_ch),
        "k": k,
        "pad": k // 2,
    }


def convtraction_unit_reference(x_nchw, params):
    """Pure-JAX reference (same bf16 operand rounding, f32 accumulation)."""
    p = params["pad"]
    x = jnp.transpose(x_nchw, (0, 2, 3, 1)).astype(jnp.bfloat16)
    w = jnp.transpose(params["w_oihw"], (2, 3, 1, 0)).astype(jnp.bfloat16)   # HWIO
    y = jax.lax.conv_general_dilated(
        x, w, (1, 1), ((p, p), (p, p)),
        dimension_numbers=("NHWC", "HWIO", "NHWC"),
        preferred_element_type=jnp.float32)
    y = y * params["scale"].reshape(1, 1, 1, -1) + params["shift"].reshape(1, 1, 1, -1)
    y = jnp.maximum(y, 0.0)
    N, H, W, C = y.shape
    y = y.reshape(N, H // 2, 2, W // 2, 2, C).max(axis=(2, 4))
    return jnp.transpose(y, (0, 3, 1, 2))


if __name__ == "__main__":
    key = jax.random.PRNGKey(0)
    k_params, k_x = jax.random.split(key)
    in_ch, out_ch = 4, 64
    N, H, W = 2, 32, 32

    params = init_convtraction_unit(k_params, in_ch, out_ch, k=7)
    x = jax.random.normal(k_x, (N, in_ch, H, W), jnp.float32)

    fwd = jax.jit(lambda xx: convtraction_unit_forward(xx, params))
    out = jax.block_until_ready(fwd(x))

    assert out.shape == (N, out_ch, H // 2, W // 2), out.shape
    assert bool(jnp.all(jnp.isfinite(out)))

    ref = jax.block_until_ready(convtraction_unit_reference(x, params))
    max_err = float(jnp.max(jnp.abs(out - ref)))
    assert max_err < 2e-2, f"mismatch vs reference: max abs err = {max_err}"

    print("KERNEL_OK")
</pallas_src>

<mosaic_0001>
module attributes {stable_mosaic.version = 11 : i64} {
  func.func @_fused_conv_bn_relu_pool_kernel(%arg0: i32, %arg1: memref<1x2x32x16x4xbf16, #tpu.memory_space<vmem>>, %arg2: memref<196x64xbf16, #tpu.memory_space<vmem>>, %arg3: memref<1x64xf32, #tpu.memory_space<vmem>>, %arg4: memref<1x64xf32, #tpu.memory_space<vmem>>, %arg5: memref<1x16x16x64xf32, #tpu.memory_space<vmem>>) attributes {dimension_semantics = [#tpu.dimension_semantics<parallel>], iteration_bounds = array<i64: 2>, scalar_prefetch = 0 : i64, scratch_operands = 0 : i64, tpu.core_type = #tpu.core_type<tc>, window_params = [{transform_indices = @transform_0, window_bounds = array<i64: 1, 2, 32, 16, 4>}, {pipeline_mode = #tpu.pipeline_mode<synchronous>, transform_indices = @transform_1, window_bounds = array<i64: 196, 64>}, {pipeline_mode = #tpu.pipeline_mode<synchronous>, transform_indices = @transform_2, window_bounds = array<i64: 1, 64>}, {pipeline_mode = #tpu.pipeline_mode<synchronous>, transform_indices = @transform_3, window_bounds = array<i64: 1, 64>}, {transform_indices = @transform_4, window_bounds = array<i64: 1, 16, 16, 64>}]} {
    %c0 = arith.constant 0 : index
    %c0_0 = arith.constant 0 : index
    %c0_1 = arith.constant 0 : index
    %c0_2 = arith.constant 0 : index
    %c0_3 = arith.constant 0 : index
    %0 = vector.load %arg1[%c0, %c0_0, %c0_1, %c0_2, %c0_3] : memref<1x2x32x16x4xbf16, #tpu.memory_space<vmem>>, vector<1x2x32x16x4xbf16>
    %1 = vector.shape_cast %0 : vector<1x2x32x16x4xbf16> to vector<2x32x16x4xbf16>
    %cst = arith.constant 0.000000e+00 : bf16
    %2 = vector.broadcast %cst : bf16 to vector<2x32x8x4xbf16>
    %3 = tpu.concatenate %2, %1, %2 in 2 : vector<2x32x8x4xbf16>, vector<2x32x16x4xbf16>, vector<2x32x8x4xbf16> -> vector<2x32x32x4xbf16>
    %cst_4 = arith.constant 0.000000e+00 : bf16
    %4 = vector.broadcast %cst_4 : bf16 to vector<3x16x28xbf16>
    %5 = vector.extract_strided_slice %3 {offsets = [1, 0, 6, 0], sizes = [1, 32, 16, 4], strides = [1, 1, 1, 1]} : vector<2x32x32x4xbf16> to vector<1x32x16x4xbf16>
    %6 = vector.shape_cast %5 : vector<1x32x16x4xbf16> to vector<32x16x4xbf16>
    %7 = vector.extract_strided_slice %3 {offsets = [0, 0, 7, 0], sizes = [1, 32, 16, 4], strides = [1, 1, 1, 1]} : vector<2x32x32x4xbf16> to vector<1x32x16x4xbf16>
    %8 = vector.shape_cast %7 : vector<1x32x16x4xbf16> to vector<32x16x4xbf16>
    %9 = vector.extract_strided_slice %3 {offsets = [1, 0, 7, 0], sizes = [1, 32, 16, 4], strides = [1, 1, 1, 1]} : vector<2x32x32x4xbf16> to vector<1x32x16x4xbf16>
    %10 = vector.shape_cast %9 : vector<1x32x16x4xbf16> to vector<32x16x4xbf16>
    %11 = vector.extract_strided_slice %3 {offsets = [0, 0, 8, 0], sizes = [1, 32, 16, 4], strides = [1, 1, 1, 1]} : vector<2x32x32x4xbf16> to vector<1x32x16x4xbf16>
    %12 = vector.shape_cast %11 : vector<1x32x16x4xbf16> to vector<32x16x4xbf16>
    %13 = vector.extract_strided_slice %3 {offsets = [1, 0, 8, 0], sizes = [1, 32, 16, 4], strides = [1, 1, 1, 1]} : vector<2x32x32x4xbf16> to vector<1x32x16x4xbf16>
    %14 = vector.shape_cast %13 : vector<1x32x16x4xbf16> to vector<32x16x4xbf16>
    %15 = vector.extract_strided_slice %3 {offsets = [0, 0, 9, 0], sizes = [1, 32, 16, 4], strides = [1, 1, 1, 1]} : vector<2x32x32x4xbf16> to vector<1x32x16x4xbf16>
    %16 = vector.shape_cast %15 : vector<1x32x16x4xbf16> to vector<32x16x4xbf16>
    %17 = vector.extract_strided_slice %3 {offsets = [1, 0, 9, 0], sizes = [1, 32, 16, 4], strides = [1, 1, 1, 1]} : vector<2x32x32x4xbf16> to vector<1x32x16x4xbf16>
    %18 = vector.shape_cast %17 : vector<1x32x16x4xbf16> to vector<32x16x4xbf16>
    %19 = tpu.concatenate %6, %8, %10, %12, %14, %16, %18 in 2 : vector<32x16x4xbf16>, vector<32x16x4xbf16>, vector<32x16x4xbf16>, vector<32x16x4xbf16>, vector<32x16x4xbf16>, vector<32x16x4xbf16>, vector<32x16x4xbf16> -> vector<32x16x28xbf16>
    %20 = tpu.concatenate %4, %19, %4 in 0 : vector<3x16x28xbf16>, vector<32x16x28xbf16>, vector<3x16x28xbf16> -> vector<38x16x28xbf16>
    %21 = vector.extract_strided_slice %20 {offsets = [0, 0, 0], sizes = [32, 16, 28], strides = [1, 1, 1]} : vector<38x16x28xbf16> to vector<32x16x28xbf16>
    %22 = vector.extract_strided_slice %20 {offsets = [1, 0, 0], sizes = [32, 16, 28], strides = [1, 1, 1]} : vector<38x16x28xbf16> to vector<32x16x28xbf16>
    %23 = vector.extract_strided_slice %20 {offsets = [2, 0, 0], sizes = [32, 16, 28], strides = [1, 1, 1]} : vector<38x16x28xbf16> to vector<32x16x28xbf16>
    %24 = vector.extract_strided_slice %20 {offsets = [3, 0, 0], sizes = [32, 16, 28], strides = [1, 1, 1]} : vector<38x16x28xbf16> to vector<32x16x28xbf16>
    %25 = vector.extract_strided_slice %20 {offsets = [4, 0, 0], sizes = [32, 16, 28], strides = [1, 1, 1]} : vector<38x16x28xbf16> to vector<32x16x28xbf16>
    %26 = vector.extract_strided_slice %20 {offsets = [5, 0, 0], sizes = [32, 16, 28], strides = [1, 1, 1]} : vector<38x16x28xbf16> to vector<32x16x28xbf16>
    %27 = vector.extract_strided_slice %20 {offsets = [6, 0, 0], sizes = [32, 16, 28], strides = [1, 1, 1]} : vector<38x16x28xbf16> to vector<32x16x28xbf16>
    %28 = tpu.concatenate %21, %22, %23, %24, %25, %26, %27 in 2 : vector<32x16x28xbf16>, vector<32x16x28xbf16>, vector<32x16x28xbf16>, vector<32x16x28xbf16>, vector<32x16x28xbf16>, vector<32x16x28xbf16>, vector<32x16x28xbf16> -> vector<32x16x196xbf16>
    %29 = vector.shape_cast %28 : vector<32x16x196xbf16> to vector<512x196xbf16>
    %30 = vector.extract_strided_slice %3 {offsets = [0, 0, 10, 0], sizes = [1, 32, 16, 4], strides = [1, 1, 1, 1]} : vector<2x32x32x4xbf16> to vector<1x32x16x4xbf16>
    %31 = vector.shape_cast %30 : vector<1x32x16x4xbf16> to vector<32x16x4xbf16>
    %32 = tpu.concatenate %8, %10, %12, %14, %16, %18, %31 in 2 : vector<32x16x4xbf16>, vector<32x16x4xbf16>, vector<32x16x4xbf16>, vector<32x16x4xbf16>, vector<32x16x4xbf16>, vector<32x16x4xbf16>, vector<32x16x4xbf16> -> vector<32x16x28xbf16>
    %33 = tpu.concatenate %4, %32, %4 in 0 : vector<3x16x28xbf16>, vector<32x16x28xbf16>, vector<3x16x28xbf16> -> vector<38x16x28xbf16>
    %34 = vector.extract_strided_slice %33 {offsets = [0, 0, 0], sizes = [32, 16, 28], strides = [1, 1, 1]} : vector<38x16x28xbf16> to vector<32x16x28xbf16>
    %35 = vector.extract_strided_slice %33 {offsets = [1, 0, 0], sizes = [32, 16, 28], strides = [1, 1, 1]} : vector<38x16x28xbf16> to vector<32x16x28xbf16>
    %36 = vector.extract_strided_slice %33 {offsets = [2, 0, 0], sizes = [32, 16, 28], strides = [1, 1, 1]} : vector<38x16x28xbf16> to vector<32x16x28xbf16>
    %37 = vector.extract_strided_slice %33 {offsets = [3, 0, 0], sizes = [32, 16, 28], strides = [1, 1, 1]} : vector<38x16x28xbf16> to vector<32x16x28xbf16>
    %38 = vector.extract_strided_slice %33 {offsets = [4, 0, 0], sizes = [32, 16, 28], strides = [1, 1, 1]} : vector<38x16x28xbf16> to vector<32x16x28xbf16>
    %39 = vector.extract_strided_slice %33 {offsets = [5, 0, 0], sizes = [32, 16, 28], strides = [1, 1, 1]} : vector<38x16x28xbf16> to vector<32x16x28xbf16>
    %40 = vector.extract_strided_slice %33 {offsets = [6, 0, 0], sizes = [32, 16, 28], strides = [1, 1, 1]} : vector<38x16x28xbf16> to vector<32x16x28xbf16>
    %41 = tpu.concatenate %34, %35, %36, %37, %38, %39, %40 in 2 : vector<32x16x28xbf16>, vector<32x16x28xbf16>, vector<32x16x28xbf16>, vector<32x16x28xbf16>, vector<32x16x28xbf16>, vector<32x16x28xbf16>, vector<32x16x28xbf16> -> vector<32x16x196xbf16>
    %42 = vector.shape_cast %41 : vector<32x16x196xbf16> to vector<512x196xbf16>
    %43 = tpu.concatenate %29, %42 in 0 : vector<512x196xbf16>, vector<512x196xbf16> -> vector<1024x196xbf16>
    %c0_5 = arith.constant 0 : index
    %c0_6 = arith.constant 0 : index
    %44 = vector.load %arg2[%c0_5, %c0_6] : memref<196x64xbf16, #tpu.memory_space<vmem>>, vector<196x64xbf16>
    %cst_7 = arith.constant dense<0.000000e+00> : vector<1024x64xf32>
    %45 = tpu.matmul %43, %44, %cst_7 {dimension_numbers = #tpu.dot_dimension_numbers<[1], [0], [0], [1], [0, 0, 1, 1], [], []>} : vector<1024x196xbf16>, vector<196x64xbf16>, vector<1024x64xf32> -> vector<1024x64xf32>
    %c0_8 = arith.constant 0 : index
    %c0_9 = arith.constant 0 : index
    %46 = vector.load %arg3[%c0_8, %c0_9] : memref<1x64xf32, #tpu.memory_space<vmem>>, vector<1x64xf32>
    %c0_10 = arith.constant 0 : index
    %c0_11 = arith.constant 0 : index
    %47 = vector.load %arg4[%c0_10, %c0_11] : memref<1x64xf32, #tpu.memory_space<vmem>>, vector<1x64xf32>
    %48 = vector.extract_strided_slice %45 {offsets = [0, 0], sizes = [512, 64], strides = [1, 1]} : vector<1024x64xf32> to vector<512x64xf32>
    %49 = vector.broadcast %46 : vector<1x64xf32> to vector<512x64xf32>
    %50 = arith.mulf %48, %49 : vector<512x64xf32>
    %51 = vector.broadcast %47 : vector<1x64xf32> to vector<512x64xf32>
    %52 = arith.addf %50, %51 : vector<512x64xf32>
    %53 = vector.extract_strided_slice %45 {offsets = [512, 0], sizes = [512, 64], strides = [1, 1]} : vector<1024x64xf32> to vector<512x64xf32>
    %54 = vector.broadcast %46 : vector<1x64xf32> to vector<512x64xf32>
    %55 = arith.mulf %53, %54 : vector<512x64xf32>
    %56 = vector.broadcast %47 : vector<1x64xf32> to vector<512x64xf32>
    %57 = arith.addf %55, %56 : vector<512x64xf32>
    %58 = arith.maximumf %52, %57 : vector<512x64xf32>
    %59 = vector.shape_cast %58 : vector<512x64xf32> to vector<16x32x64xf32>
    %60 = vector.extract_strided_slice %59 {offsets = [0, 0, 0], sizes = [16, 16, 64], strides = [1, 1, 1]} : vector<16x32x64xf32> to vector<16x16x64xf32>
    %61 = vector.extract_strided_slice %59 {offsets = [0, 16, 0], sizes = [16, 16, 64], strides = [1, 1, 1]} : vector<16x32x64xf32> to vector<16x16x64xf32>
    %62 = arith.maximumf %60, %61 : vector<16x16x64xf32>
    %cst_12 = arith.constant 0.000000e+00 : f32
    %63 = vector.broadcast %cst_12 : f32 to vector<16x16x64xf32>
    %64 = arith.maximumf %62, %63 : vector<16x16x64xf32>
    %c0_13 = arith.constant 0 : index
    %c0_14 = arith.constant 0 : index
    %c0_15 = arith.constant 0 : index
    %c0_16 = arith.constant 0 : index
    %65 = vector.load %arg5[%c0_13, %c0_14, %c0_15, %c0_16] : memref<1x16x16x64xf32, #tpu.memory_space<vmem>>, vector<1x16x16x64xf32>
    %66 = vector.shape_cast %65 : vector<1x16x16x64xf32> to vector<16x16x64xf32>
    %67 = vector.shape_cast %64 : vector<16x16x64xf32> to vector<1x16x16x64xf32>
    tpu.vector_store %arg5[%c0_13, %c0_14, %c0_15, %c0_16], %67 {strides = array<i32>} : memref<1x16x16x64xf32, #tpu.memory_space<vmem>>, vector<1x16x16x64xf32>,
    return
  }
  func.func @transform_0(%arg0: i32) -> (i32, i32, i32, i32, i32) {
    %c0_i32 = arith.constant 0 : i32
    %c0_i32_0 = arith.constant 0 : i32
    %c0_i32_1 = arith.constant 0 : i32
    %c0_i32_2 = arith.constant 0 : i32
    %c0_i32_3 = arith.constant 0 : i32
    return %arg0, %c0_i32, %c0_i32_0, %c0_i32_1, %c0_i32_2 : i32, i32, i32, i32, i32
  }
  func.func @transform_1(%arg0: i32) -> (i32, i32) {
    %c0_i32 = arith.constant 0 : i32
    %c0_i32_0 = arith.constant 0 : i32
    %c0_i32_1 = arith.constant 0 : i32
    return %c0_i32, %c0_i32_0 : i32, i32
  }
  func.func @transform_2(%arg0: i32) -> (i32, i32) {
    %c0_i32 = arith.constant 0 : i32
    %c0_i32_0 = arith.constant 0 : i32
    %c0_i32_1 = arith.constant 0 : i32
    return %c0_i32, %c0_i32_0 : i32, i32
  }
  func.func @transform_3(%arg0: i32) -> (i32, i32) {
    %c0_i32 = arith.constant 0 : i32
    %c0_i32_0 = arith.constant 0 : i32
    %c0_i32_1 = arith.constant 0 : i32
    return %c0_i32, %c0_i32_0 : i32, i32
  }
  func.func @transform_4(%arg0: i32) -> (i32, i32, i32, i32) {
    %c0_i32 = arith.constant 0 : i32
    %c0_i32_0 = arith.constant 0 : i32
    %c0_i32_1 = arith.constant 0 : i32
    %c0_i32_2 = arith.constant 0 : i32
    return %arg0, %c0_i32, %c0_i32_0, %c0_i32_1 : i32, i32, i32, i32
  }
}

</mosaic_0001>

<llo_original>
// kernel: _lambda_.1
$region0: #{_lambda_.1}
  #allocation0 [shape = 'u32[]', space=smem, size = 0x4, offset = 0x4, fixed_abs, tag = 'smem constant byte address 0x4 - core index']
  #allocation1 [shape = 'u32[144,128]{1,0:T(1,128)}', space=vmem, size = 0x12000, scoped, tag = 'internal scratch']
  %s0 = inlined_call_operand.vmem [shape: bf16[2,2,32,16,4], index: 0, kind: input, shape index: {}]
  %s1 = inlined_call_operand.vmem [shape: bf16[196,64], index: 1, kind: input, shape index: {}]
  %s2 = inlined_call_operand.vmem [shape: f32[1,64], index: 2, kind: input, shape index: {}]
  %s3 = inlined_call_operand.vmem [shape: f32[1,64], index: 3, kind: input, shape index: {}]
  %s4 = inlined_call_operand.hbm [shape: f32[2,16,16,64], index: 4, kind: output, shape index: {}]
  %s5 = sld [smem:[#allocation0]]
  $region49: #{_lambda_.1} parent=0
    _
  %s7 = ssub.s32 1, %s5
  %s8 = scalar_select 0, %s7, %s5
  $region1: #{_lambda_.1} parent=0
    #allocation2 [shape = 'u8[262144]{0}', space=vmem, size = 0x40000, scoped, tag = 'output window, operand 0']
    #allocation3 [shape = 's32[2]{0}', space=sflag, size = 0x8, scoped, tag = 'scoped memory for _lambda_.1']
    %9 = vsyncpa [#allocation3], 0
    %s10 = scalar_lea.sflag [#allocation3], 1
    %11 = vsyncpa %s10, 0
    loop: start=0, step=1, limit=4
    $region2: #{_lambda_.1} parent=1 // loop_pre_header
      _
    $region3: #{_lambda_.1} parent=1 // loop_header
      %s13 = sphi 0, %s17
      %p14 = scmp.ge.s32.totalorder %s13, 4
      %s23 = sphi 0, %s25
      %s26 = sphi 0, %s23
      %s27 = sphi 0, %s26
      %s43 = sphi 0, %s27
      %s47 = sphi 0, %s47
      %s49 = sphi 0, %s47
      %s50 = sphi 0, %s49
      %s64 = sphi 0, %s50
      %s68 = sphi 0, %s68
      %s70 = sphi 0, %s68
      %s71 = sphi 0, %s70
      %s85 = sphi 0, %s71
      %s89 = sphi 0, %s89
      %s91 = sphi 0, %s89
      %s92 = sphi 0, %s91
      %s106 = sphi 0, %s92
      %s112 = sphi 0, %s114
      %s115 = sphi 0, %s112
      %s116 = sphi 0, %s115
      %s132 = sphi 0, %s116
    $region4: #{_lambda_.1} parent=1 // loop_header_branch
      %16 = sbr.rel (%p14) target = $region8
    $region5: #{_lambda_.1} parent=1 // loop_body
      %s18 = ssub.s32 %s13, 1
      %s19 = ssub.s32 %s13, 2
      %s20 = sadd.s32 %s13, 1
      %s21 = ssub.s32 %s13, %s20
      %p22 = scmp.eq.s32.totalorder %s21, 0
      %s24 = sadd.s32 %s23, 1
      %s25 = scalar_select %p22, %s23, %s24
      %p28 = pneg %p22
      %p29 = scmp.eq.s32.totalorder %s13, 1
      %p30 = por %p28, %p29
      %p31 = scmp.ne.s32.totalorder %s23, %s26
      %p32 = scmp.eq.s32.totalorder %s13, 0
      %p33 = por %p31, %p32
      %p34 = scmp.ne.s32.totalorder %s23, %s26
      %p35 = scmp.eq.s32.totalorder %s18, 1
      %p36 = por %p34, %p35
      %p37 = scmp.ne.s32.totalorder %s26, %s27
      %p38 = scmp.eq.s32.totalorder %s18, 0
      %p39 = por %p37, %p38
      %p40 = scmp.ne.s32.totalorder %s26, %s27
      %p41 = scmp.eq.s32.totalorder %s19, 1
      %p42 = por %p40, %p41
      %p44 = scmp.ne.s32.totalorder %s27, %s43
      %p45 = scmp.eq.s32.totalorder %s19, 0
      %p46 = por %p44, %p45
      %s48 = sadd.s32 %s47, 1
      %p51 = scmp.eq.s32.totalorder %s13, 1
      %p52 = scmp.ne.s32.totalorder %s47, %s49
      %p53 = scmp.eq.s32.totalorder %s13, 0
      %p54 = por %p52, %p53
      %p55 = scmp.ne.s32.totalorder %s47, %s49
      %p56 = scmp.eq.s32.totalorder %s18, 1
      %p57 = por %p55, %p56
      %p58 = scmp.ne.s32.totalorder %s49, %s50
      %p59 = scmp.eq.s32.totalorder %s18, 0
      %p60 = por %p58, %p59
      %p61 = scmp.ne.s32.totalorder %s49, %s50
      %p62 = scmp.eq.s32.totalorder %s19, 1
      %p63 = por %p61, %p62
      %p65 = scmp.ne.s32.totalorder %s50, %s64
      %p66 = scmp.eq.s32.totalorder %s19, 0
      %p67 = por %p65, %p66
      %s69 = sadd.s32 %s68, 1
      %p72 = scmp.eq.s32.totalorder %s13, 1
      %p73 = scmp.ne.s32.totalorder %s68, %s70
      %p74 = scmp.eq.s32.totalorder %s13, 0
      %p75 = por %p73, %p74
      %p76 = scmp.ne.s32.totalorder %s68, %s70
      %p77 = scmp.eq.s32.totalorder %s18, 1
      %p78 = por %p76, %p77
      %p79 = scmp.ne.s32.totalorder %s70, %s71
      %p80 = scmp.eq.s32.totalorder %s18, 0
      %p81 = por %p79, %p80
      %p82 = scmp.ne.s32.totalorder %s70, %s71
      %p83 = scmp.eq.s32.totalorder %s19, 1
      %p84 = por %p82, %p83
      %p86 = scmp.ne.s32.totalorder %s71, %s85
      %p87 = scmp.eq.s32.totalorder %s19, 0
      %p88 = por %p86, %p87
      %s90 = sadd.s32 %s89, 1
      %p93 = scmp.eq.s32.totalorder %s13, 1
      %p94 = scmp.ne.s32.totalorder %s89, %s91
      %p95 = scmp.eq.s32.totalorder %s13, 0
      %p96 = por %p94, %p95
      %p97 = scmp.ne.s32.totalorder %s89, %s91
      %p98 = scmp.eq.s32.totalorder %s18, 1
      %p99 = por %p97, %p98
      %p100 = scmp.ne.s32.totalorder %s91, %s92
      %p101 = scmp.eq.s32.totalorder %s18, 0
      %p102 = por %p100, %p101
      %p103 = scmp.ne.s32.totalorder %s91, %s92
      %p104 = scmp.eq.s32.totalorder %s19, 1
      %p105 = por %p103, %p104
      %p107 = scmp.ne.s32.totalorder %s92, %s106
      %p108 = scmp.eq.s32.totalorder %s19, 0
      %p109 = por %p107, %p108
      %s110 = ssub.s32 %s13, %s20
      %p111 = scmp.eq.s32.totalorder %s110, 0
      %s113 = sadd.s32 %s112, 1
      %s114 = scalar_select %p111, %s112, %s113
      %p117 = pneg %p111
      %p118 = scmp.eq.s32.totalorder %s13, 1
      %p119 = por %p117, %p118
      %p120 = scmp.ne.s32.totalorder %s112, %s115
      %p121 = scmp.eq.s32.totalorder %s13, 0
      %p122 = por %p120, %p121
      %p123 = scmp.ne.s32.totalorder %s112, %s115
      %p124 = scmp.eq.s32.totalorder %s18, 1
      %p125 = por %p123, %p124
      %p126 = scmp.ne.s32.totalorder %s115, %s116
      %p127 = scmp.eq.s32.totalorder %s18, 0
      %p128 = por %p126, %p127
      %p129 = scmp.ne.s32.totalorder %s115, %s116
      %p130 = scmp.eq.s32.totalorder %s19, 1
      %p131 = por %p129, %p130
      %p133 = scmp.ne.s32.totalorder %s116, %s132
      %p134 = scmp.eq.s32.totalorder %s19, 0
      %p135 = por %p133, %p134
      %p136 = scmp.le.s32.totalorder 1, %s13
      %p137 = scmp.lt.s32.totalorder %s13, 3
      %p138 = pnand %p136, %p137
      %p139 = pneg %p138
      // Predicated region
      $region9: #{_lambda_.1} parent=5 // pred_check
        _
      $region10: #{_lambda_.1} parent=5 // pred_check_branch
        %141 = sbr.rel (%p138) target = $region12
      $region11: #{_lambda_.1} parent=5 // pred_region
        %s142 = ssub.s32 %s13, 1
        // Predicated region
        $region13: #{_lambda_.1} parent=11 // pred_check
          %p143 = pneg %p60
        $region14: #{_lambda_.1} parent=11 // pred_check_branch
          %145 = sbr.rel (%p143) target = $region16
        $region15: #{_lambda_.1} parent=11 // pred_region
          _
        $region16: #{_lambda_.1} parent=11 // pred_fallthru
          _
        // Predicated region
        $region17: #{_lambda_.1} parent=11 // pred_check
          %p146 = pneg %p81
        $region18: #{_lambda_.1} parent=11 // pred_check_branch
          %148 = sbr.rel (%p146) target = $region20
        $region19: #{_lambda_.1} parent=11 // pred_region
          _
        $region20: #{_lambda_.1} parent=11 // pred_fallthru
          _
        // Predicated region
        $region21: #{_lambda_.1} parent=11 // pred_check
          %p149 = pneg %p102
        $region22: #{_lambda_.1} parent=11 // pred_check_branch
          %151 = sbr.rel (%p149) target = $region24
        $region23: #{_lambda_.1} parent=11 // pred_region
          _
        $region24: #{_lambda_.1} parent=11 // pred_fallthru
          _
      $region12: #{_lambda_.1} parent=5 // pred_fallthru
        _
      %p152 = scmp.lt.s32.totalorder %s13, 2
      // Predicated region
      $region25: #{_lambda_.1} parent=5 // pred_check
        %p153 = pneg %p152
      $region26: #{_lambda_.1} parent=5 // pred_check_branch
        %155 = sbr.rel (%p153) target = $region28
      $region27: #{_lambda_.1} parent=5 // pred_region
        // Predicated region
        $region29: #{_lambda_.1} parent=27 // pred_check
          %p156 = pneg %p33
        $region30: #{_lambda_.1} parent=27 // pred_check_branch
          %158 = sbr.rel (%p156) target = $region32
        $region31: #{_lambda_.1} parent=27 // pred_region
          %p159 = scmp.lt.s32.totalorder %s13, 1
          %s160 = scalar_select %p159, %s13, 1
          %s161 = smul.addr %s160, 128
          %s162 = smul.addr %s161, 4
          %s163 = scalar_lea.vmem %s0, %s162
        $region32: #{_lambda_.1} parent=27 // pred_fallthru
          _
      $region28: #{_lambda_.1} parent=5 // pred_fallthru
        _
      %p164 = scmp.le.s32.totalorder 1, %s13
      %p165 = scmp.lt.s32.totalorder %s13, 3
      %p166 = pnand %p164, %p165
      %p167 = pneg %p166
      // Predicated region
      $region33: #{_lambda_.1} parent=5 // pred_check
        _
      $region34: #{_lambda_.1} parent=5 // pred_check_branch
        %169 = sbr.rel (%p166) target = $region36
      $region35: #{_lambda_.1} parent=5 // pred_region
        %s170 = ssub.s32 %s13, 1
        %p171 = scmp.lt.s32.totalorder %s18, 1
        %s172 = scalar_select %p171, %s18, 1
        %s173 = smul.addr %s172, 128
        %s174 = smul.addr %s173, 4
        %s175 = scalar_lea.vmem %s0, %s174
        %p176 = pneg %p39
        %p177 = pneg %p36
        %p178 = pneg %p60
        %p179 = pneg %p57
        %p180 = pneg %p81
        %p181 = pneg %p78
        %p182 = pneg %p102
        %p183 = pneg %p99
        %p184 = pneg %p128
        %p185 = pneg %p125
        %s186 = sand.u32 %s115, 1
        %s187 = scalar_lea.sflag [#allocation3], %s186
        %s188 = sand.u32 %s115, 1
        %s189 = smul.addr %s188, 256
        %s190 = scalar_lea.vmem [#allocation2], %s189
        %p191 = scmp.lt.s32.totalorder %s18, 1
        %s192 = scalar_select %p191, %s18, 1
        %s193 = smul.addr %s192, 128
        %s194 = smul.addr %s193, 4
        %s195 = scalar_lea.vmem %s0, %s194
        %v197 = vld [vmem:[%s195] sm:$0xf]
        %v198 = vld [vmem:[%s195 + $0x4] sm:$0xf]
        %v199 = vld [vmem:[%s195 + $0x8] sm:$0xf]
        %v200 = vld [vmem:[%s195 + $0xc] sm:$0xf]
        %v201 = vld [vmem:[%s195 + $0x10] sm:$0xf]
        %v202 = vld [vmem:[%s195 + $0x14] sm:$0xf]
        %v203 = vld [vmem:[%s195 + $0x18] sm:$0xf]
        %v204 = vld [vmem:[%s195 + $0x1c] sm:$0xf]
        %v205 = vld [vmem:[%s195 + $0x20] sm:$0xf]
        %v206 = vld [vmem:[%s195 + $0x24] sm:$0xf]
        %v207 = vld [vmem:[%s195 + $0x28] sm:$0xf]
        %v208 = vld [vmem:[%s195 + $0x2c] sm:$0xf]
        %v209 = vld [vmem:[%s195 + $0x30] sm:$0xf]
        %v210 = vld [vmem:[%s195 + $0x34] sm:$0xf]
        %v211 = vld [vmem:[%s195 + $0x38] sm:$0xf]
        %v212 = vld [vmem:[%s195 + $0x3c] sm:$0xf]
        %v213 = vld [vmem:[%s195 + $0x40] sm:$0xf]
        %v214 = vld [vmem:[%s195 + $0x44] sm:$0xf]
        %v215 = vld [vmem:[%s195 + $0x48] sm:$0xf]
        %v216 = vld [vmem:[%s195 + $0x4c] sm:$0xf]
        %v217 = vld [vmem:[%s195 + $0x50] sm:$0xf]
        %v218 = vld [vmem:[%s195 + $0x54] sm:$0xf]
        %v219 = vld [vmem:[%s195 + $0x58] sm:$0xf]
        %v220 = vld [vmem:[%s195 + $0x5c] sm:$0xf]
        %v221 = vld [vmem:[%s195 + $0x60] sm:$0xf]
        %v222 = vld [vmem:[%s195 + $0x64] sm:$0xf]
        %v223 = vld [vmem:[%s195 + $0x68] sm:$0xf]
        %v224 = vld [vmem:[%s195 + $0x6c] sm:$0xf]
        %v225 = vld [vmem:[%s195 + $0x70] sm:$0xf]
        %v226 = vld [vmem:[%s195 + $0x74] sm:$0xf]
        %v227 = vld [vmem:[%s195 + $0x78] sm:$0xf]
        %v228 = vld [vmem:[%s195 + $0x7c] sm:$0xf]
        %v229 = vld [vmem:[%s195 + $0x80] sm:$0xf]
        %v230 = vld [vmem:[%s195 + $0x84] sm:$0xf]
        %v231 = vld [vmem:[%s195 + $0x88] sm:$0xf]
        %v232 = vld [vmem:[%s195 + $0x8c] sm:$0xf]
        %v233 = vld [vmem:[%s195 + $0x90] sm:$0xf]
        %v234 = vld [vmem:[%s195 + $0x94] sm:$0xf]
        %v235 = vld [vmem:[%s195 + $0x98] sm:$0xf]
        %v236 = vld [vmem:[%s195 + $0x9c] sm:$0xf]
        %v237 = vld [vmem:[%s195 + $0xa0] sm:$0xf]
        %v238 = vld [vmem:[%s195 + $0xa4] sm:$0xf]
        %v239 = vld [vmem:[%s195 + $0xa8] sm:$0xf]
        %v240 = vld [vmem:[%s195 + $0xac] sm:$0xf]
        %v241 = vld [vmem:[%s195 + $0xb0] sm:$0xf]
        %v242 = vld [vmem:[%s195 + $0xb4] sm:$0xf]
        %v243 = vld [vmem:[%s195 + $0xb8] sm:$0xf]
        %v244 = vld [vmem:[%s195 + $0xbc] sm:$0xf]
        %v245 = vld [vmem:[%s195 + $0xc0] sm:$0xf]
        %v246 = vld [vmem:[%s195 + $0xc4] sm:$0xf]
        %v247 = vld [vmem:[%s195 + $0xc8] sm:$0xf]
        %v248 = vld [vmem:[%s195 + $0xcc] sm:$0xf]
        %v249 = vld [vmem:[%s195 + $0xd0] sm:$0xf]
        %v250 = vld [vmem:[%s195 + $0xd4] sm:$0xf]
        %v251 = vld [vmem:[%s195 + $0xd8] sm:$0xf]
        %v252 = vld [vmem:[%s195 + $0xdc] sm:$0xf]
        %v253 = vld [vmem:[%s195 + $0xe0] sm:$0xf]
        %v254 = vld [vmem:[%s195 + $0xe4] sm:$0xf]
        %v255 = vld [vmem:[%s195 + $0xe8] sm:$0xf]
        %v256 = vld [vmem:[%s195 + $0xec] sm:$0xf]
        %v257 = vld [vmem:[%s195 + $0xf0] sm:$0xf]
        %v258 = vld [vmem:[%s195 + $0xf4] sm:$0xf]
        %v259 = vld [vmem:[%s195 + $0xf8] sm:$0xf]
        %v260 = vld [vmem:[%s195 + $0xfc] sm:$0xf]
        %v261 = vld [vmem:[%s195 + $0x100] sm:$0xf]
        %v262 = vld [vmem:[%s195 + $0x104] sm:$0xf]
        %v263 = vld [vmem:[%s195 + $0x108] sm:$0xf]
        %v264 = vld [vmem:[%s195 + $0x10c] sm:$0xf]
        %v265 = vld [vmem:[%s195 + $0x110] sm:$0xf]
        %v266 = vld [vmem:[%s195 + $0x114] sm:$0xf]
        %v267 = vld [vmem:[%s195 + $0x118] sm:$0xf]
        %v268 = vld [vmem:[%s195 + $0x11c] sm:$0xf]
        %v269 = vld [vmem:[%s195 + $0x120] sm:$0xf]
        %v270 = vld [vmem:[%s195 + $0x124] sm:$0xf]
        %v271 = vld [vmem:[%s195 + $0x128] sm:$0xf]
        %v272 = vld [vmem:[%s195 + $0x12c] sm:$0xf]
        %v273 = vld [vmem:[%s195 + $0x130] sm:$0xf]
        %v274 = vld [vmem:[%s195 + $0x134] sm:$0xf]
        %v275 = vld [vmem:[%s195 + $0x138] sm:$0xf]
        %v276 = vld [vmem:[%s195 + $0x13c] sm:$0xf]
        %v277 = vld [vmem:[%s195 + $0x140] sm:$0xf]
        %v278 = vld [vmem:[%s195 + $0x144] sm:$0xf]
        %v279 = vld [vmem:[%s195 + $0x148] sm:$0xf]
        %v280 = vld [vmem:[%s195 + $0x14c] sm:$0xf]
        %v281 = vld [vmem:[%s195 + $0x150] sm:$0xf]
        %v282 = vld [vmem:[%s195 + $0x154] sm:$0xf]
        %v283 = vld [vmem:[%s195 + $0x158] sm:$0xf]
        %v284 = vld [vmem:[%s195 + $0x15c] sm:$0xf]
        %v285 = vld [vmem:[%s195 + $0x160] sm:$0xf]
        %v286 = vld [vmem:[%s195 + $0x164] sm:$0xf]
        %v287 = vld [vmem:[%s195 + $0x168] sm:$0xf]
        %v288 = vld [vmem:[%s195 + $0x16c] sm:$0xf]
        %v289 = vld [vmem:[%s195 + $0x170] sm:$0xf]
        %v290 = vld [vmem:[%s195 + $0x174] sm:$0xf]
        %v291 = vld [vmem:[%s195 + $0x178] sm:$0xf]
        %v292 = vld [vmem:[%s195 + $0x17c] sm:$0xf]
        %v293 = vld [vmem:[%s195 + $0x180] sm:$0xf]
        %v294 = vld [vmem:[%s195 + $0x184] sm:$0xf]
        %v295 = vld [vmem:[%s195 + $0x188] sm:$0xf]
        %v296 = vld [vmem:[%s195 + $0x18c] sm:$0xf]
        %v297 = vld [vmem:[%s195 + $0x190] sm:$0xf]
        %v298 = vld [vmem:[%s195 + $0x194] sm:$0xf]
        %v299 = vld [vmem:[%s195 + $0x198] sm:$0xf]
        %v300 = vld [vmem:[%s195 + $0x19c] sm:$0xf]
        %v301 = vld [vmem:[%s195 + $0x1a0] sm:$0xf]
        %v302 = vld [vmem:[%s195 + $0x1a4] sm:$0xf]
        %v303 = vld [vmem:[%s195 + $0x1a8] sm:$0xf]
        %v304 = vld [vmem:[%s195 + $0x1ac] sm:$0xf]
        %v305 = vld [vmem:[%s195 + $0x1b0] sm:$0xf]
        %v306 = vld [vmem:[%s195 + $0x1b4] sm:$0xf]
        %v307 = vld [vmem:[%s195 + $0x1b8] sm:$0xf]
        %v308 = vld [vmem:[%s195 + $0x1bc] sm:$0xf]
        %v309 = vld [vmem:[%s195 + $0x1c0] sm:$0xf]
        %v310 = vld [vmem:[%s195 + $0x1c4] sm:$0xf]
        %v311 = vld [vmem:[%s195 + $0x1c8] sm:$0xf]
        %v312 = vld [vmem:[%s195 + $0x1cc] sm:$0xf]
        %v313 = vld [vmem:[%s195 + $0x1d0] sm:$0xf]
        %v314 = vld [vmem:[%s195 + $0x1d4] sm:$0xf]
        %v315 = vld [vmem:[%s195 + $0x1d8] sm:$0xf]
        %v316 = vld [vmem:[%s195 + $0x1dc] sm:$0xf]
        %v317 = vld [vmem:[%s195 + $0x1e0] sm:$0xf]
        %v318 = vld [vmem:[%s195 + $0x1e4] sm:$0xf]
        %v319 = vld [vmem:[%s195 + $0x1e8] sm:$0xf]
        %v320 = vld [vmem:[%s195 + $0x1ec] sm:$0xf]
        %v321 = vld [vmem:[%s195 + $0x1f0] sm:$0xf]
        %v322 = vld [vmem:[%s195 + $0x1f4] sm:$0xf]
        %v323 = vld [vmem:[%s195 + $0x1f8] sm:$0xf]
        %v324 = vld [vmem:[%s195 + $0x1fc] sm:$0xf]
        %v453 = vunpack.c.l.b16 %v197
        %v454 = vunpack.c.l.b16 %v198
        %v455 = vunpack.c.l.b16 %v199
        %v456 = vunpack.c.l.b16 %v200
        %v457 = vunpack.c.l.b16 %v201
        %v458 = vunpack.c.l.b16 %v202
        %v459 = vunpack.c.l.b16 %v203
        %v460 = vunpack.c.l.b16 %v204
        %v461 = vunpack.c.l.b16 %v205
        %v462 = vunpack.c.l.b16 %v206
        %v463 = vunpack.c.l.b16 %v207
        %v464 = vunpack.c.l.b16 %v208
        %v465 = vunpack.c.l.b16 %v209
        %v466 = vunpack.c.l.b16 %v210
        %v467 = vunpack.c.l.b16 %v211
        %v468 = vunpack.c.l.b16 %v212
        %v469 = vunpack.c.l.b16 %v213
        %v470 = vunpack.c.l.b16 %v214
        %v471 = vunpack.c.l.b16 %v215
        %v472 = vunpack.c.l.b16 %v216
        %v473 = vunpack.c.l.b16 %v217
        %v474 = vunpack.c.l.b16 %v218
        %v475 = vunpack.c.l.b16 %v219
        %v476 = vunpack.c.l.b16 %v220
        %v477 = vunpack.c.l.b16 %v221
        %v478 = vunpack.c.l.b16 %v222
        %v479 = vunpack.c.l.b16 %v223
        %v480 = vunpack.c.l.b16 %v224
        %v481 = vunpack.c.l.b16 %v225
        %v482 = vunpack.c.l.b16 %v226
        %v483 = vunpack.c.l.b16 %v227
        %v484 = vunpack.c.l.b16 %v228
        %v485 = vunpack.c.l.b16 %v229
        %v486 = vunpack.c.l.b16 %v230
        %v487 = vunpack.c.l.b16 %v231
        %v488 = vunpack.c.l.b16 %v232
        %v489 = vunpack.c.l.b16 %v233
        %v490 = vunpack.c.l.b16 %v234
        %v491 = vunpack.c.l.b16 %v235
        %v492 = vunpack.c.l.b16 %v236
        %v493 = vunpack.c.l.b16 %v237
        %v494 = vunpack.c.l.b16 %v238
        %v495 = vunpack.c.l.b16 %v239
        %v496 = vunpack.c.l.b16 %v240
        %v497 = vunpack.c.l.b16 %v241
        %v498 = vunpack.c.l.b16 %v242
        %v499 = vunpack.c.l.b16 %v243
        %v500 = vunpack.c.l.b16 %v244
        %v501 = vunpack.c.l.b16 %v245
        %v502 = vunpack.c.l.b16 %v246
        %v503 = vunpack.c.l.b16 %v247
        %v504 = vunpack.c.l.b16 %v248
        %v505 = vunpack.c.l.b16 %v249
        %v506 = vunpack.c.l.b16 %v250
        %v507 = vunpack.c.l.b16 %v251
        %v508 = vunpack.c.l.b16 %v252
        %v509 = vunpack.c.l.b16 %v253
        %v510 = vunpack.c.l.b16 %v254
        %v511 = vunpack.c.l.b16 %v255
        %v512 = vunpack.c.l.b16 %v256
        %v513 = vunpack.c.l.b16 %v257
        %v514 = vunpack.c.l.b16 %v258
        %v515 = vunpack.c.l.b16 %v259
        %v516 = vunpack.c.l.b16 %v260
        %v517 = vunpack.c.l.b16 %v261
        %v518 = vunpack.c.l.b16 %v262
        %v519 = vunpack.c.l.b16 %v263
        %v520 = vunpack.c.l.b16 %v264
        %v521 = vunpack.c.l.b16 %v265
        %v522 = vunpack.c.l.b16 %v266
        %v523 = vunpack.c.l.b16 %v267
        %v524 = vunpack.c.l.b16 %v268
        %v525 = vunpack.c.l.b16 %v269
        %v526 = vunpack.c.l.b16 %v270
        %v527 = vunpack.c.l.b16 %v271
        %v528 = vunpack.c.l.b16 %v272
        %v529 = vunpack.c.l.b16 %v273
        %v530 = vunpack.c.l.b16 %v274
        %v531 = vunpack.c.l.b16 %v275
        %v532 = vunpack.c.l.b16 %v276
        %v533 = vunpack.c.l.b16 %v277
        %v534 = vunpack.c.l.b16 %v278
        %v535 = vunpack.c.l.b16 %v279
        %v536 = vunpack.c.l.b16 %v280
        %v537 = vunpack.c.l.b16 %v281
        %v538 = vunpack.c.l.b16 %v282
        %v539 = vunpack.c.l.b16 %v283
        %v540 = vunpack.c.l.b16 %v284
        %v541 = vunpack.c.l.b16 %v285
        %v542 = vunpack.c.l.b16 %v286
        %v543 = vunpack.c.l.b16 %v287
        %v544 = vunpack.c.l.b16 %v288
        %v545 = vunpack.c.l.b16 %v289
        %v546 = vunpack.c.l.b16 %v290
        %v547 = vunpack.c.l.b16 %v291
        %v548 = vunpack.c.l.b16 %v292
        %v549 = vunpack.c.l.b16 %v293
        %v550 = vunpack.c.l.b16 %v294
        %v551 = vunpack.c.l.b16 %v295
        %v552 = vunpack.c.l.b16 %v296
        %v553 = vunpack.c.l.b16 %v297
        %v554 = vunpack.c.l.b16 %v298
        %v555 = vunpack.c.l.b16 %v299
        %v556 = vunpack.c.l.b16 %v300
        %v557 = vunpack.c.l.b16 %v301
        %v558 = vunpack.c.l.b16 %v302
        %v559 = vunpack.c.l.b16 %v303
        %v560 = vunpack.c.l.b16 %v304
        %v561 = vunpack.c.l.b16 %v305
        %v562 = vunpack.c.l.b16 %v306
        %v563 = vunpack.c.l.b16 %v307
        %v564 = vunpack.c.l.b16 %v308
        %v565 = vunpack.c.l.b16 %v309
        %v566 = vunpack.c.l.b16 %v310
        %v567 = vunpack.c.l.b16 %v311
        %v568 = vunpack.c.l.b16 %v312
        %v569 = vunpack.c.l.b16 %v313
        %v570 = vunpack.c.l.b16 %v314
        %v571 = vunpack.c.l.b16 %v315
        %v572 = vunpack.c.l.b16 %v316
        %v573 = vunpack.c.l.b16 %v317
        %v574 = vunpack.c.l.b16 %v318
        %v575 = vunpack.c.l.b16 %v319
        %v576 = vunpack.c.l.b16 %v320
        %v577 = vunpack.c.l.b16 %v321
        %v578 = vunpack.c.l.b16 %v322
        %v579 = vunpack.c.l.b16 %v323
        %v580 = vunpack.c.l.b16 %v324
        %v581 = vpack.c.b16 %v453, %v453
        %v582 = vpack.c.b16 %v454, %v454
        %v583 = vpack.c.b16 %v455, %v455
        %v584 = vpack.c.b16 %v456, %v456
        %v585 = vpack.c.b16 %v457, %v457
        %v586 = vpack.c.b16 %v458, %v458
        %v587 = vpack.c.b16 %v459, %v459
        %v588 = vpack.c.b16 %v460, %v460
        %v589 = vpack.c.b16 %v461, %v461
        %v590 = vpack.c.b16 %v462, %v462
        %v591 = vpack.c.b16 %v463, %v463
        %v592 = vpack.c.b16 %v464, %v464
        %v593 = vpack.c.b16 %v465, %v465
        %v594 = vpack.c.b16 %v466, %v466
        %v595 = vpack.c.b16 %v467, %v467
        %v596 = vpack.c.b16 %v468, %v468
        %v597 = vpack.c.b16 %v469, %v469
        %v598 = vpack.c.b16 %v470, %v470
        %v599 = vpack.c.b16 %v471, %v471
        %v600 = vpack.c.b16 %v472, %v472
        %v601 = vpack.c.b16 %v473, %v473
        %v602 = vpack.c.b16 %v474, %v474
        %v603 = vpack.c.b16 %v475, %v475
        %v604 = vpack.c.b16 %v476, %v476
        %v605 = vpack.c.b16 %v477, %v477
        %v606 = vpack.c.b16 %v478, %v478
        %v607 = vpack.c.b16 %v479, %v479
        %v608 = vpack.c.b16 %v480, %v480
        %v609 = vpack.c.b16 %v481, %v481
        %v610 = vpack.c.b16 %v482, %v482
        %v611 = vpack.c.b16 %v483, %v483
        %v612 = vpack.c.b16 %v484, %v484
        %v613 = vpack.c.b16 %v485, %v485
        %v614 = vpack.c.b16 %v486, %v486
        %v615 = vpack.c.b16 %v487, %v487
        %v616 = vpack.c.b16 %v488, %v488
        %v617 = vpack.c.b16 %v489, %v489
        %v618 = vpack.c.b16 %v490, %v490
        %v619 = vpack.c.b16 %v491, %v491
        %v620 = vpack.c.b16 %v492, %v492
        %v621 = vpack.c.b16 %v493, %v493
        %v622 = vpack.c.b16 %v494, %v494
        %v623 = vpack.c.b16 %v495, %v495
        %v624 = vpack.c.b16 %v496, %v496
        %v625 = vpack.c.b16 %v497, %v497
        %v626 = vpack.c.b16 %v498, %v498
        %v627 = vpack.c.b16 %v499, %v499
        %v628 = vpack.c.b16 %v500, %v500
        %v629 = vpack.c.b16 %v501, %v501
        %v630 = vpack.c.b16 %v502, %v502
        %v631 = vpack.c.b16 %v503, %v503
        %v632 = vpack.c.b16 %v504, %v504
        %v633 = vpack.c.b16 %v505, %v505
        %v634 = vpack.c.b16 %v506, %v506
        %v635 = vpack.c.b16 %v507, %v507
        %v636 = vpack.c.b16 %v508, %v508
        %v637 = vpack.c.b16 %v509, %v509
        %v638 = vpack.c.b16 %v510, %v510
        %v639 = vpack.c.b16 %v511, %v511
        %v640 = vpack.c.b16 %v512, %v512
        %v641 = vpack.c.b16 %v513, %v513
        %v642 = vpack.c.b16 %v514, %v514
        %v643 = vpack.c.b16 %v515, %v515
        %v644 = vpack.c.b16 %v516, %v516
        %v645 = vpack.c.b16 %v517, %v517
        %v646 = vpack.c.b16 %v518, %v518
        %v647 = vpack.c.b16 %v519, %v519
        %v648 = vpack.c.b16 %v520, %v520
        %v649 = vpack.c.b16 %v521, %v521
        %v650 = vpack.c.b16 %v522, %v522
        %v651 = vpack.c.b16 %v523, %v523
        %v652 = vpack.c.b16 %v524, %v524
        %v653 = vpack.c.b16 %v525, %v525
        %v654 = vpack.c.b16 %v526, %v526
        %v655 = vpack.c.b16 %v527, %v527
        %v656 = vpack.c.b16 %v528, %v528
        %v657 = vpack.c.b16 %v529, %v529
        %v658 = vpack.c.b16 %v530, %v530
        %v659 = vpack.c.b16 %v531, %v531
        %v660 = vpack.c.b16 %v532, %v532
        %v661 = vpack.c.b16 %v533, %v533
        %v662 = vpack.c.b16 %v534, %v534
        %v663 = vpack.c.b16 %v535, %v535
        %v664 = vpack.c.b16 %v536, %v536
        %v665 = vpack.c.b16 %v537, %v537
        %v666 = vpack.c.b16 %v538, %v538
        %v667 = vpack.c.b16 %v539, %v539
        %v668 = vpack.c.b16 %v540, %v540
        %v669 = vpack.c.b16 %v541, %v541
        %v670 = vpack.c.b16 %v542, %v542
        %v671 = vpack.c.b16 %v543, %v543
        %v672 = vpack.c.b16 %v544, %v544
        %v673 = vpack.c.b16 %v545, %v545
        %v674 = vpack.c.b16 %v546, %v546
        %v675 = vpack.c.b16 %v547, %v547
        %v676 = vpack.c.b16 %v548, %v548
        %v677 = vpack.c.b16 %v549, %v549
        %v678 = vpack.c.b16 %v550, %v550
        %v679 = vpack.c.b16 %v551, %v551
        %v680 = vpack.c.b16 %v552, %v552
        %v681 = vpack.c.b16 %v553, %v553
        %v682 = vpack.c.b16 %v554, %v554
        %v683 = vpack.c.b16 %v555, %v555
        %v684 = vpack.c.b16 %v556, %v556
        %v685 = vpack.c.b16 %v557, %v557
        %v686 = vpack.c.b16 %v558, %v558
        %v687 = vpack.c.b16 %v559, %v559
        %v688 = vpack.c.b16 %v560, %v560
        %v689 = vpack.c.b16 %v561, %v561
        %v690 = vpack.c.b16 %v562, %v562
        %v691 = vpack.c.b16 %v563, %v563
        %v692 = vpack.c.b16 %v564, %v564
        %v693 = vpack.c.b16 %v565, %v565
        %v694 = vpack.c.b16 %v566, %v566
        %v695 = vpack.c.b16 %v567, %v567
        %v696 = vpack.c.b16 %v568, %v568
        %v697 = vpack.c.b16 %v569, %v569
        %v698 = vpack.c.b16 %v570, %v570
        %v699 = vpack.c.b16 %v571, %v571
        %v700 = vpack.c.b16 %v572, %v572
        %v701 = vpack.c.b16 %v573, %v573
        %v702 = vpack.c.b16 %v574, %v574
        %v703 = vpack.c.b16 %v575, %v575
        %v704 = vpack.c.b16 %v576, %v576
        %v705 = vpack.c.b16 %v577, %v577
        %v706 = vpack.c.b16 %v578, %v578
        %v707 = vpack.c.b16 %v579, %v579
        %v708 = vpack.c.b16 %v580, %v580
        %vm709 = vcmask 1043456
        %v712 = vsel %vm709, 0, %v581
        %v714 = vsel %vm709, 0, %v583
        %v716 = vsel %vm709, 0, %v585
        %v718 = vsel %vm709, 0, %v587
        %v720 = vsel %vm709, 0, %v589
        %v722 = vsel %vm709, 0, %v591
        %v724 = vsel %vm709, 0, %v593
        %v726 = vsel %vm709, 0, %v595
        %v728 = vsel %vm709, 0, %v597
        %v730 = vsel %vm709, 0, %v599
        %v732 = vsel %vm709, 0, %v601
        %v734 = vsel %vm709, 0, %v603
        %v736 = vsel %vm709, 0, %v605
        %v738 = vsel %vm709, 0, %v607
        %v740 = vsel %vm709, 0, %v609
        %v742 = vsel %vm709, 0, %v611
        %v744 = vsel %vm709, 0, %v613
        %v746 = vsel %vm709, 0, %v615
        %v748 = vsel %vm709, 0, %v617
        %v750 = vsel %vm709, 0, %v619
        %v752 = vsel %vm709, 0, %v621
        %v754 = vsel %vm709, 0, %v623
        %v756 = vsel %vm709, 0, %v625
        %v758 = vsel %vm709, 0, %v627
        %v760 = vsel %vm709, 0, %v629
        %v762 = vsel %vm709, 0, %v631
        %v764 = vsel %vm709, 0, %v633
        %v766 = vsel %vm709, 0, %v635
        %v768 = vsel %vm709, 0, %v637
        %v770 = vsel %vm709, 0, %v639
        %v772 = vsel %vm709, 0, %v641
        %v774 = vsel %vm709, 0, %v643
        %v776 = vsel %vm709, 0, %v645
        %v778 = vsel %vm709, 0, %v647
        %v780 = vsel %vm709, 0, %v649
        %v782 = vsel %vm709, 0, %v651
        %v784 = vsel %vm709, 0, %v653
        %v786 = vsel %vm709, 0, %v655
        %v788 = vsel %vm709, 0, %v657
        %v790 = vsel %vm709, 0, %v659
        %v792 = vsel %vm709, 0, %v661
        %v794 = vsel %vm709, 0, %v663
        %v796 = vsel %vm709, 0, %v665
        %v798 = vsel %vm709, 0, %v667
        %v800 = vsel %vm709, 0, %v669
        %v802 = vsel %vm709, 0, %v671
        %v804 = vsel %vm709, 0, %v673
        %v806 = vsel %vm709, 0, %v675
        %v808 = vsel %vm709, 0, %v677
        %v810 = vsel %vm709, 0, %v679
        %v812 = vsel %vm709, 0, %v681
        %v814 = vsel %vm709, 0, %v683
        %v816 = vsel %vm709, 0, %v685
        %v818 = vsel %vm709, 0, %v687
        %v820 = vsel %vm709, 0, %v689
        %v822 = vsel %vm709, 0, %v691
        %v824 = vsel %vm709, 0, %v693
        %v826 = vsel %vm709, 0, %v695
        %v828 = vsel %vm709, 0, %v697
        %v830 = vsel %vm709, 0, %v699
        %v832 = vsel %vm709, 0, %v701
        %v834 = vsel %vm709, 0, %v703
        %v836 = vsel %vm709, 0, %v705
        %v838 = vsel %vm709, 0, %v707
        %v840 = vsel %vm709, %v582, 0
        %v842 = vsel %vm709, %v584, 0
        %v844 = vsel %vm709, %v586, 0
        %v846 = vsel %vm709, %v588, 0
        %v848 = vsel %vm709, %v590, 0
        %v850 = vsel %vm709, %v592, 0
        %v852 = vsel %vm709, %v594, 0
        %v854 = vsel %vm709, %v596, 0
        %v856 = vsel %vm709, %v598, 0
        %v858 = vsel %vm709, %v600, 0
        %v860 = vsel %vm709, %v602, 0
        %v862 = vsel %vm709, %v604, 0
        %v864 = vsel %vm709, %v606, 0
        %v866 = vsel %vm709, %v608, 0
        %v868 = vsel %vm709, %v610, 0
        %v870 = vsel %vm709, %v612, 0
        %v872 = vsel %vm709, %v614, 0
        %v874 = vsel %vm709, %v616, 0
        %v876 = vsel %vm709, %v618, 0
        %v878 = vsel %vm709, %v620, 0
        %v880 = vsel %vm709, %v622, 0
        %v882 = vsel %vm709, %v624, 0
        %v884 = vsel %vm709, %v626, 0
        %v886 = vsel %vm709, %v628, 0
        %v888 = vsel %vm709, %v630, 0
        %v890 = vsel %vm709, %v632, 0
        %v892 = vsel %vm709, %v634, 0
        %v894 = vsel %vm709, %v636, 0
        %v896 = vsel %vm709, %v638, 0
        %v898 = vsel %vm709, %v640, 0
        %v900 = vsel %vm709, %v642, 0
        %v902 = vsel %vm709, %v644, 0
        %v904 = vsel %vm709, %v646, 0
        %v906 = vsel %vm709, %v648, 0
        %v908 = vsel %vm709, %v650, 0
        %v910 = vsel %vm709, %v652, 0
        %v912 = vsel %vm709, %v654, 0
        %v914 = vsel %vm709, %v656, 0
        %v916 = vsel %vm709, %v658, 0
        %v918 = vsel %vm709, %v660, 0
        %v920 = vsel %vm709, %v662, 0
        %v922 = vsel %vm709, %v664, 0
        %v924 = vsel %vm709, %v666, 0
        %v926 = vsel %vm709, %v668, 0
        %v928 = vsel %vm709, %v670, 0
        %v930 = vsel %vm709, %v672, 0
        %v932 = vsel %vm709, %v674, 0
        %v934 = vsel %vm709, %v676, 0
        %v936 = vsel %vm709, %v678, 0
        %v938 = vsel %vm709, %v680, 0
        %v940 = vsel %vm709, %v682, 0
        %v942 = vsel %vm709, %v684, 0
        %v944 = vsel %vm709, %v686, 0
        %v946 = vsel %vm709, %v688, 0
        %v948 = vsel %vm709, %v690, 0
        %v950 = vsel %vm709, %v692, 0
        %v952 = vsel %vm709, %v694, 0
        %v954 = vsel %vm709, %v696, 0
        %v956 = vsel %vm709, %v698, 0
        %v958 = vsel %vm709, %v700, 0
        %v960 = vsel %vm709, %v702, 0
        %v962 = vsel %vm709, %v704, 0
        %v964 = vsel %vm709, %v706, 0
        %v966 = vsel %vm709, %v708, 0
        %vm967 = vsmask.f32 7424
        %v968 = vshrl.u32 %v712, 16
        %v970 = vshll.u32 %v712, 16
        %v972 = vrot.slane %v970, 1
        %v973 = vor.u32 %v968, %v972
        %v974 = vshll.u32 %v840, 16
        %v976 = vrot.slane %v974, 1
        %v977 = vsel %vm967, %v973, %v976
        %v978 = vshrl.u32 %v840, 16
        %v980 = vor.u32 %v978, %v976
        %v981 = vshrl.u32 %v714, 16
        %v983 = vshll.u32 %v714, 16
        %v985 = vrot.slane %v983, 1
        %v986 = vor.u32 %v981, %v985
        %v987 = vshll.u32 %v842, 16
        %v989 = vrot.slane %v987, 1
        %v990 = vsel %vm967, %v986, %v989
        %v991 = vshrl.u32 %v842, 16
        %v993 = vor.u32 %v991, %v989
        %v994 = vshrl.u32 %v716, 16
        %v996 = vshll.u32 %v716, 16
        %v998 = vrot.slane %v996, 1
        %v999 = vor.u32 %v994, %v998
        %v1000 = vshll.u32 %v844, 16
        %v1002 = vrot.slane %v1000, 1
        %v1003 = vsel %vm967, %v999, %v1002
        %v1004 = vshrl.u32 %v844, 16
        %v1006 = vor.u32 %v1004, %v1002
        %v1007 = vshrl.u32 %v718, 16
        %v1009 = vshll.u32 %v718, 16
        %v1011 = vrot.slane %v1009, 1
        %v1012 = vor.u32 %v1007, %v1011
        %v1013 = vshll.u32 %v846, 16
        %v1015 = vrot.slane %v1013, 1
        %v1016 = vsel %vm967, %v1012, %v1015
        %v1017 = vshrl.u32 %v846, 16
        %v1019 = vor.u32 %v1017, %v1015
        %v1020 = vshrl.u32 %v720, 16
        %v1022 = vshll.u32 %v720, 16
        %v1024 = vrot.slane %v1022, 1
        %v1025 = vor.u32 %v1020, %v1024
        %v1026 = vshll.u32 %v848, 16
        %v1028 = vrot.slane %v1026, 1
        %v1029 = vsel %vm967, %v1025, %v1028
        %v1030 = vshrl.u32 %v848, 16
        %v1032 = vor.u32 %v1030, %v1028
        %v1033 = vshrl.u32 %v722, 16
        %v1035 = vshll.u32 %v722, 16
        %v1037 = vrot.slane %v1035, 1
        %v1038 = vor.u32 %v1033, %v1037
        %v1039 = vshll.u32 %v850, 16
        %v1041 = vrot.slane %v1039, 1
        %v1042 = vsel %vm967, %v1038, %v1041
        %v1043 = vshrl.u32 %v850, 16
        %v1045 = vor.u32 %v1043, %v1041
        %v1046 = vshrl.u32 %v724, 16
        %v1048 = vshll.u32 %v724, 16
        %v1050 = vrot.slane %v1048, 1
        %v1051 = vor.u32 %v1046, %v1050
        %v1052 = vshll.u32 %v852, 16
        %v1054 = vrot.slane %v1052, 1
        %v1055 = vsel %vm967, %v1051, %v1054
        %v1056 = vshrl.u32 %v852, 16
        %v1058 = vor.u32 %v1056, %v1054
        %v1059 = vshrl.u32 %v726, 16
        %v1061 = vshll.u32 %v726, 16
        %v1063 = vrot.slane %v1061, 1
        %v1064 = vor.u32 %v1059, %v1063
        %v1065 = vshll.u32 %v854, 16
        %v1067 = vrot.slane %v1065, 1
        %v1068 = vsel %vm967, %v1064, %v1067
        %v1069 = vshrl.u32 %v854, 16
        %v1071 = vor.u32 %v1069, %v1067
        %v1072 = vshrl.u32 %v728, 16
        %v1074 = vshll.u32 %v728, 16
        %v1076 = vrot.slane %v1074, 1
        %v1077 = vor.u32 %v1072, %v1076
        %v1078 = vshll.u32 %v856, 16
        %v1080 = vrot.slane %v1078, 1
        %v1081 = vsel %vm967, %v1077, %v1080
        %v1082 = vshrl.u32 %v856, 16
        %v1084 = vor.u32 %v1082, %v1080
        %v1085 = vshrl.u32 %v730, 16
        %v1087 = vshll.u32 %v730, 16
        %v1089 = vrot.slane %v1087, 1
        %v1090 = vor.u32 %v1085, %v1089
        %v1091 = vshll.u32 %v858, 16
        %v1093 = vrot.slane %v1091, 1
        %v1094 = vsel %vm967, %v1090, %v1093
        %v1095 = vshrl.u32 %v858, 16
        %v1097 = vor.u32 %v1095, %v1093
        %v1098 = vshrl.u32 %v732, 16
        %v1100 = vshll.u32 %v732, 16
        %v1102 = vrot.slane %v1100, 1
        %v1103 = vor.u32 %v1098, %v1102
        %v1104 = vshll.u32 %v860, 16
        %v1106 = vrot.slane %v1104, 1
        %v1107 = vsel %vm967, %v1103, %v1106
        %v1108 = vshrl.u32 %v860, 16
        %v1110 = vor.u32 %v1108, %v1106
        %v1111 = vshrl.u32 %v734, 16
        %v1113 = vshll.u32 %v734, 16
        %v1115 = vrot.slane %v1113, 1
        %v1116 = vor.u32 %v1111, %v1115
        %v1117 = vshll.u32 %v862, 16
        %v1119 = vrot.slane %v1117, 1
        %v1120 = vsel %vm967, %v1116, %v1119
        %v1121 = vshrl.u32 %v862, 16
        %v1123 = vor.u32 %v1121, %v1119
        %v1124 = vshrl.u32 %v736, 16
        %v1126 = vshll.u32 %v736, 16
        %v1128 = vrot.slane %v1126, 1
        %v1129 = vor.u32 %v1124, %v1128
        %v1130 = vshll.u32 %v864, 16
        %v1132 = vrot.slane %v1130, 1
        %v1133 = vsel %vm967, %v1129, %v1132
        %v1134 = vshrl.u32 %v864, 16
        %v1136 = vor.u32 %v1134, %v1132
        %v1137 = vshrl.u32 %v738, 16
        %v1139 = vshll.u32 %v738, 16
        %v1141 = vrot.slane %v1139, 1
        %v1142 = vor.u32 %v1137, %v1141
        %v1143 = vshll.u32 %v866, 16
        %v1145 = vrot.slane %v1143, 1
        %v1146 = vsel %vm967, %v1142, %v1145
        %v1147 = vshrl.u32 %v866, 16
        %v1149 = vor.u32 %v1147, %v1145
        %v1150 = vshrl.u32 %v740, 16
        %v1152 = vshll.u32 %v740, 16
        %v1154 = vrot.slane %v1152, 1
        %v1155 = vor.u32 %v1150, %v1154
        %v1156 = vshll.u32 %v868, 16
        %v1158 = vrot.slane %v1156, 1
        %v1159 = vsel %vm967, %v1155, %v1158
        %v1160 = vshrl.u32 %v868, 16
        %v1162 = vor.u32 %v1160, %v1158
        %v1163 = vshrl.u32 %v742, 16
        %v1165 = vshll.u32 %v742, 16
        %v1167 = vrot.slane %v1165, 1
        %v1168 = vor.u32 %v1163, %v1167
        %v1169 = vshll.u32 %v870, 16
        %v1171 = vrot.slane %v1169, 1
        %v1172 = vsel %vm967, %v1168, %v1171
        %v1173 = vshrl.u32 %v870, 16
        %v1175 = vor.u32 %v1173, %v1171
        %v1176 = vshrl.u32 %v744, 16
        %v1178 = vshll.u32 %v744, 16
        %v1180 = vrot.slane %v1178, 1
        %v1181 = vor.u32 %v1176, %v1180
        %v1182 = vshll.u32 %v872, 16
        %v1184 = vrot.slane %v1182, 1
        %v1185 = vsel %vm967, %v1181, %v1184
        %v1186 = vshrl.u32 %v872, 16
        %v1188 = vor.u32 %v1186, %v1184
        %v1189 = vshrl.u32 %v746, 16
        %v1191 = vshll.u32 %v746, 16
        %v1193 = vrot.slane %v1191, 1
        %v1194 = vor.u32 %v1189, %v1193
        %v1195 = vshll.u32 %v874, 16
        %v1197 = vrot.slane %v1195, 1
        %v1198 = vsel %vm967, %v1194, %v1197
        %v1199 = vshrl.u32 %v874, 16
        %v1201 = vor.u32 %v1199, %v1197
        %v1202 = vshrl.u32 %v748, 16
        %v1204 = vshll.u32 %v748, 16
        %v1206 = vrot.slane %v1204, 1
        %v1207 = vor.u32 %v1202, %v1206
        %v1208 = vshll.u32 %v876, 16
        %v1210 = vrot.slane %v1208, 1
        %v1211 = vsel %vm967, %v1207, %v1210
        %v1212 = vshrl.u32 %v876, 16
        %v1214 = vor.u32 %v1212, %v1210
        %v1215 = vshrl.u32 %v750, 16
        %v1217 = vshll.u32 %v750, 16
        %v1219 = vrot.slane %v1217, 1
        %v1220 = vor.u32 %v1215, %v1219
        %v1221 = vshll.u32 %v878, 16
        %v1223 = vrot.slane %v1221, 1
        %v1224 = vsel %vm967, %v1220, %v1223
        %v1225 = vshrl.u32 %v878, 16
        %v1227 = vor.u32 %v1225, %v1223
        %v1228 = vshrl.u32 %v752, 16
        %v1230 = vshll.u32 %v752, 16
        %v1232 = vrot.slane %v1230, 1
        %v1233 = vor.u32 %v1228, %v1232
        %v1234 = vshll.u32 %v880, 16
        %v1236 = vrot.slane %v1234, 1
        %v1237 = vsel %vm967, %v1233, %v1236
        %v1238 = vshrl.u32 %v880, 16
        %v1240 = vor.u32 %v1238, %v1236
        %v1241 = vshrl.u32 %v754, 16
        %v1243 = vshll.u32 %v754, 16
        %v1245 = vrot.slane %v1243, 1
        %v1246 = vor.u32 %v1241, %v1245
        %v1247 = vshll.u32 %v882, 16
        %v1249 = vrot.slane %v1247, 1
        %v1250 = vsel %vm967, %v1246, %v1249
        %v1251 = vshrl.u32 %v882, 16
        %v1253 = vor.u32 %v1251, %v1249
        %v1254 = vshrl.u32 %v756, 16
        %v1256 = vshll.u32 %v756, 16
        %v1258 = vrot.slane %v1256, 1
        %v1259 = vor.u32 %v1254, %v1258
        %v1260 = vshll.u32 %v884, 16
        %v1262 = vrot.slane %v1260, 1
        %v1263 = vsel %vm967, %v1259, %v1262
        %v1264 = vshrl.u32 %v884, 16
        %v1266 = vor.u32 %v1264, %v1262
        %v1267 = vshrl.u32 %v758, 16
        %v1269 = vshll.u32 %v758, 16
        %v1271 = vrot.slane %v1269, 1
        %v1272 = vor.u32 %v1267, %v1271
        %v1273 = vshll.u32 %v886, 16
        %v1275 = vrot.slane %v1273, 1
        %v1276 = vsel %vm967, %v1272, %v1275
        %v1277 = vshrl.u32 %v886, 16
        %v1279 = vor.u32 %v1277, %v1275
        %v1280 = vshrl.u32 %v760, 16
        %v1282 = vshll.u32 %v760, 16
        %v1284 = vrot.slane %v1282, 1
        %v1285 = vor.u32 %v1280, %v1284
        %v1286 = vshll.u32 %v888, 16
        %v1288 = vrot.slane %v1286, 1
        %v1289 = vsel %vm967, %v1285, %v1288
        %v1290 = vshrl.u32 %v888, 16
        %v1292 = vor.u32 %v1290, %v1288
        %v1293 = vshrl.u32 %v762, 16
        %v1295 = vshll.u32 %v762, 16
        %v1297 = vrot.slane %v1295, 1
        %v1298 = vor.u32 %v1293, %v1297
        %v1299 = vshll.u32 %v890, 16
        %v1301 = vrot.slane %v1299, 1
        %v1302 = vsel %vm967, %v1298, %v1301
        %v1303 = vshrl.u32 %v890, 16
        %v1305 = vor.u32 %v1303, %v1301
        %v1306 = vshrl.u32 %v764, 16
        %v1308 = vshll.u32 %v764, 16
        %v1310 = vrot.slane %v1308, 1
        %v1311 = vor.u32 %v1306, %v1310
        %v1312 = vshll.u32 %v892, 16
        %v1314 = vrot.slane %v1312, 1
        %v1315 = vsel %vm967, %v1311, %v1314
        %v1316 = vshrl.u32 %v892, 16
        %v1318 = vor.u32 %v1316, %v1314
        %v1319 = vshrl.u32 %v766, 16
        %v1321 = vshll.u32 %v766, 16
        %v1323 = vrot.slane %v1321, 1
        %v1324 = vor.u32 %v1319, %v1323
        %v1325 = vshll.u32 %v894, 16
        %v1327 = vrot.slane %v1325, 1
        %v1328 = vsel %vm967, %v1324, %v1327
        %v1329 = vshrl.u32 %v894, 16
        %v1331 = vor.u32 %v1329, %v1327
        %v1332 = vshrl.u32 %v768, 16
        %v1334 = vshll.u32 %v768, 16
        %v1336 = vrot.slane %v1334, 1
        %v1337 = vor.u32 %v1332, %v1336
        %v1338 = vshll.u32 %v896, 16
        %v1340 = vrot.slane %v1338, 1
        %v1341 = vsel %vm967, %v1337, %v1340
        %v1342 = vshrl.u32 %v896, 16
        %v1344 = vor.u32 %v1342, %v1340
        %v1345 = vshrl.u32 %v770, 16
        %v1347 = vshll.u32 %v770, 16
        %v1349 = vrot.slane %v1347, 1
        %v1350 = vor.u32 %v1345, %v1349
        %v1351 = vshll.u32 %v898, 16
        %v1353 = vrot.slane %v1351, 1
        %v1354 = vsel %vm967, %v1350, %v1353
        %v1355 = vshrl.u32 %v898, 16
        %v1357 = vor.u32 %v1355, %v1353
        %v1358 = vshrl.u32 %v772, 16
        %v1360 = vshll.u32 %v772, 16
        %v1362 = vrot.slane %v1360, 1
        %v1363 = vor.u32 %v1358, %v1362
        %v1364 = vshll.u32 %v900, 16
        %v1366 = vrot.slane %v1364, 1
        %v1367 = vsel %vm967, %v1363, %v1366
        %v1368 = vshrl.u32 %v900, 16
        %v1370 = vor.u32 %v1368, %v1366
        %v1371 = vshrl.u32 %v774, 16
        %v1373 = vshll.u32 %v774, 16
        %v1375 = vrot.slane %v1373, 1
        %v1376 = vor.u32 %v1371, %v1375
        %v1377 = vshll.u32 %v902, 16
        %v1379 = vrot.slane %v1377, 1
        %v1380 = vsel %vm967, %v1376, %v1379
        %v1381 = vshrl.u32 %v902, 16
        %v1383 = vor.u32 %v1381, %v1379
        %1384 = vrot.lane.b32.xlu0 %v977, 4
        %v1385 = vpop.permute.xlu0 %1384
        %1386 = vrot.lane.b32.xlu0 %v980, 4
        %v1387 = vpop.permute.xlu0 %1386
        %1388 = vrot.lane.b32.xlu0 %v990, 4
        %v1389 = vpop.permute.xlu0 %1388
        %1390 = vrot.lane.b32.xlu0 %v993, 4
        %v1391 = vpop.permute.xlu0 %1390
        %1392 = vrot.lane.b32.xlu0 %v1003, 4
        %v1393 = vpop.permute.xlu0 %1392
        %1394 = vrot.lane.b32.xlu0 %v1006, 4
        %v1395 = vpop.permute.xlu0 %1394
        %1396 = vrot.lane.b32.xlu0 %v1016, 4
        %v1397 = vpop.permute.xlu0 %1396
        %1398 = vrot.lane.b32.xlu0 %v1019, 4
        %v1399 = vpop.permute.xlu0 %1398
        %1400 = vrot.lane.b32.xlu0 %v1029, 4
        %v1401 = vpop.permute.xlu0 %1400
        %1402 = vrot.lane.b32.xlu0 %v1032, 4
        %v1403 = vpop.permute.xlu0 %1402
        %1404 = vrot.lane.b32.xlu0 %v1042, 4
        %v1405 = vpop.permute.xlu0 %1404
        %1406 = vrot.lane.b32.xlu0 %v1045, 4
        %v1407 = vpop.permute.xlu0 %1406
        %1408 = vrot.lane.b32.xlu0 %v1055, 4
        %v1409 = vpop.permute.xlu0 %1408
        %1410 = vrot.lane.b32.xlu0 %v1058, 4
        %v1411 = vpop.permute.xlu0 %1410
        %1412 = vrot.lane.b32.xlu0 %v1068, 4
        %v1413 = vpop.permute.xlu0 %1412
        %1414 = vrot.lane.b32.xlu0 %v1071, 4
        %v1415 = vpop.permute.xlu0 %1414
        %1416 = vrot.lane.b32.xlu0 %v1081, 4
        %v1417 = vpop.permute.xlu0 %1416
        %1418 = vrot.lane.b32.xlu0 %v1084, 4
        %v1419 = vpop.permute.xlu0 %1418
        %1420 = vrot.lane.b32.xlu0 %v1094, 4
        %v1421 = vpop.permute.xlu0 %1420
        %1422 = vrot.lane.b32.xlu0 %v1097, 4
        %v1423 = vpop.permute.xlu0 %1422
        %1424 = vrot.lane.b32.xlu0 %v1107, 4
        %v1425 = vpop.permute.xlu0 %1424
        %1426 = vrot.lane.b32.xlu0 %v1110, 4
        %v1427 = vpop.permute.xlu0 %1426
        %1428 = vrot.lane.b32.xlu0 %v1120, 4
        %v1429 = vpop.permute.xlu0 %1428
        %1430 = vrot.lane.b32.xlu0 %v1123, 4
        %v1431 = vpop.permute.xlu0 %1430
        %1432 = vrot.lane.b32.xlu0 %v1133, 4
        %v1433 = vpop.permute.xlu0 %1432
        %1434 = vrot.lane.b32.xlu0 %v1136, 4
        %v1435 = vpop.permute.xlu0 %1434
        %1436 = vrot.lane.b32.xlu0 %v1146, 4
        %v1437 = vpop.permute.xlu0 %1436
        %1438 = vrot.lane.b32.xlu0 %v1149, 4
        %v1439 = vpop.permute.xlu0 %1438
        %1440 = vrot.lane.b32.xlu0 %v1159, 4
        %v1441 = vpop.permute.xlu0 %1440
        %1442 = vrot.lane.b32.xlu0 %v1162, 4
        %v1443 = vpop.permute.xlu0 %1442
        %1444 = vrot.lane.b32.xlu0 %v1172, 4
        %v1445 = vpop.permute.xlu0 %1444
        %1446 = vrot.lane.b32.xlu0 %v1175, 4
        %v1447 = vpop.permute.xlu0 %1446
        %1448 = vrot.lane.b32.xlu0 %v1185, 4
        %v1449 = vpop.permute.xlu0 %1448
        %1450 = vrot.lane.b32.xlu0 %v1188, 4
        %v1451 = vpop.permute.xlu0 %1450
        %1452 = vrot.lane.b32.xlu0 %v1198, 4
        %v1453 = vpop.permute.xlu0 %1452
        %1454 = vrot.lane.b32.xlu0 %v1201, 4
        %v1455 = vpop.permute.xlu0 %1454
        %1456 = vrot.lane.b32.xlu0 %v1211, 4
        %v1457 = vpop.permute.xlu0 %1456
        %1458 = vrot.lane.b32.xlu0 %v1214, 4
        %v1459 = vpop.permute.xlu0 %1458
        %1460 = vrot.lane.b32.xlu0 %v1224, 4
        %v1461 = vpop.permute.xlu0 %1460
        %1462 = vrot.lane.b32.xlu0 %v1227, 4
        %v1463 = vpop.permute.xlu0 %1462
        %1464 = vrot.lane.b32.xlu0 %v1237, 4
        %v1465 = vpop.permute.xlu0 %1464
        %1466 = vrot.lane.b32.xlu0 %v1240, 4
        %v1467 = vpop.permute.xlu0 %1466
        %1468 = vrot.lane.b32.xlu0 %v1250, 4
        %v1469 = vpop.permute.xlu0 %1468
        %1470 = vrot.lane.b32.xlu0 %v1253, 4
        %v1471 = vpop.permute.xlu0 %1470
        %1472 = vrot.lane.b32.xlu0 %v1263, 4
        %v1473 = vpop.permute.xlu0 %1472
        %1474 = vrot.lane.b32.xlu0 %v1266, 4
        %v1475 = vpop.permute.xlu0 %1474
        %1476 = vrot.lane.b32.xlu0 %v1276, 4
        %v1477 = vpop.permute.xlu0 %1476
        %1478 = vrot.lane.b32.xlu0 %v1279, 4
        %v1479 = vpop.permute.xlu0 %1478
        %1480 = vrot.lane.b32.xlu0 %v1289, 4
        %v1481 = vpop.permute.xlu0 %1480
        %1482 = vrot.lane.b32.xlu0 %v1292, 4
        %v1483 = vpop.permute.xlu0 %1482
        %1484 = vrot.lane.b32.xlu0 %v1302, 4
        %v1485 = vpop.permute.xlu0 %1484
        %1486 = vrot.lane.b32.xlu0 %v1305, 4
        %v1487 = vpop.permute.xlu0 %1486
        %1488 = vrot.lane.b32.xlu0 %v1315, 4
        %v1489 = vpop.permute.xlu0 %1488
        %1490 = vrot.lane.b32.xlu0 %v1318, 4
        %v1491 = vpop.permute.xlu0 %1490
        %1492 = vrot.lane.b32.xlu0 %v1328, 4
        %v1493 = vpop.permute.xlu0 %1492
        %1494 = vrot.lane.b32.xlu0 %v1331, 4
        %v1495 = vpop.permute.xlu0 %1494
        %1496 = vrot.lane.b32.xlu0 %v1341, 4
        %v1497 = vpop.permute.xlu0 %1496
        %1498 = vrot.lane.b32.xlu0 %v1344, 4
        %v1499 = vpop.permute.xlu0 %1498
        %1500 = vrot.lane.b32.xlu0 %v1354, 4
        %v1501 = vpop.permute.xlu0 %1500
        %1502 = vrot.lane.b32.xlu0 %v1357, 4
        %v1503 = vpop.permute.xlu0 %1502
        %1504 = vrot.lane.b32.xlu0 %v1367, 4
        %v1505 = vpop.permute.xlu0 %1504
        %1506 = vrot.lane.b32.xlu0 %v1370, 4
        %v1507 = vpop.permute.xlu0 %1506
        %1508 = vrot.lane.b32.xlu0 %v1380, 4
        %v1509 = vpop.permute.xlu0 %1508
        %1510 = vrot.lane.b32.xlu0 %v1383, 4
        %v1511 = vpop.permute.xlu0 %1510
        %v1512 = vshrl.u32 %v776, 16
        %v1514 = vshll.u32 %v776, 16
        %v1516 = vrot.slane %v1514, 1
        %v1517 = vor.u32 %v1512, %v1516
        %v1518 = vshll.u32 %v904, 16
        %v1520 = vrot.slane %v1518, 1
        %v1521 = vsel %vm967, %v1517, %v1520
        %v1522 = vshrl.u32 %v904, 16
        %v1524 = vor.u32 %v1522, %v1520
        %v1525 = vshrl.u32 %v778, 16
        %v1527 = vshll.u32 %v778, 16
        %v1529 = vrot.slane %v1527, 1
        %v1530 = vor.u32 %v1525, %v1529
        %v1531 = vshll.u32 %v906, 16
        %v1533 = vrot.slane %v1531, 1
        %v1534 = vsel %vm967, %v1530, %v1533
        %v1535 = vshrl.u32 %v906, 16
        %v1537 = vor.u32 %v1535, %v1533
        %v1538 = vshrl.u32 %v780, 16
        %v1540 = vshll.u32 %v780, 16
        %v1542 = vrot.slane %v1540, 1
        %v1543 = vor.u32 %v1538, %v1542
        %v1544 = vshll.u32 %v908, 16
        %v1546 = vrot.slane %v1544, 1
        %v1547 = vsel %vm967, %v1543, %v1546
        %v1548 = vshrl.u32 %v908, 16
        %v1550 = vor.u32 %v1548, %v1546
        %v1551 = vshrl.u32 %v782, 16
        %v1553 = vshll.u32 %v782, 16
        %v1555 = vrot.slane %v1553, 1
        %v1556 = vor.u32 %v1551, %v1555
        %v1557 = vshll.u32 %v910, 16
        %v1559 = vrot.slane %v1557, 1
        %v1560 = vsel %vm967, %v1556, %v1559
        %v1561 = vshrl.u32 %v910, 16
        %v1563 = vor.u32 %v1561, %v1559
        %v1564 = vshrl.u32 %v784, 16
        %v1566 = vshll.u32 %v784, 16
        %v1568 = vrot.slane %v1566, 1
        %v1569 = vor.u32 %v1564, %v1568
        %v1570 = vshll.u32 %v912, 16
        %v1572 = vrot.slane %v1570, 1
        %v1573 = vsel %vm967, %v1569, %v1572
        %v1574 = vshrl.u32 %v912, 16
        %v1576 = vor.u32 %v1574, %v1572
        %v1577 = vshrl.u32 %v786, 16
        %v1579 = vshll.u32 %v786, 16
        %v1581 = vrot.slane %v1579, 1
        %v1582 = vor.u32 %v1577, %v1581
        %v1583 = vshll.u32 %v914, 16
        %v1585 = vrot.slane %v1583, 1
        %v1586 = vsel %vm967, %v1582, %v1585
        %v1587 = vshrl.u32 %v914, 16
        %v1589 = vor.u32 %v1587, %v1585
        %v1590 = vshrl.u32 %v788, 16
        %v1592 = vshll.u32 %v788, 16
        %v1594 = vrot.slane %v1592, 1
        %v1595 = vor.u32 %v1590, %v1594
        %v1596 = vshll.u32 %v916, 16
        %v1598 = vrot.slane %v1596, 1
        %v1599 = vsel %vm967, %v1595, %v1598
        %v1600 = vshrl.u32 %v916, 16
        %v1602 = vor.u32 %v1600, %v1598
        %v1603 = vshrl.u32 %v790, 16
        %v1605 = vshll.u32 %v790, 16
        %v1607 = vrot.slane %v1605, 1
        %v1608 = vor.u32 %v1603, %v1607
        %v1609 = vshll.u32 %v918, 16
        %v1611 = vrot.slane %v1609, 1
        %v1612 = vsel %vm967, %v1608, %v1611
        %v1613 = vshrl.u32 %v918, 16
        %v1615 = vor.u32 %v1613, %v1611
        %v1616 = vshrl.u32 %v792, 16
        %v1618 = vshll.u32 %v792, 16
        %v1620 = vrot.slane %v1618, 1
        %v1621 = vor.u32 %v1616, %v1620
        %v1622 = vshll.u32 %v920, 16
        %v1624 = vrot.slane %v1622, 1
        %v1625 = vsel %vm967, %v1621, %v1624
        %v1626 = vshrl.u32 %v920, 16
        %v1628 = vor.u32 %v1626, %v1624
        %v1629 = vshrl.u32 %v794, 16
        %v1631 = vshll.u32 %v794, 16
        %v1633 = vrot.slane %v1631, 1
        %v1634 = vor.u32 %v1629, %v1633
        %v1635 = vshll.u32 %v922, 16
        %v1637 = vrot.slane %v1635, 1
        %v1638 = vsel %vm967, %v1634, %v1637
        %v1639 = vshrl.u32 %v922, 16
        %v1641 = vor.u32 %v1639, %v1637
        %v1642 = vshrl.u32 %v796, 16
        %v1644 = vshll.u32 %v796, 16
        %v1646 = vrot.slane %v1644, 1
        %v1647 = vor.u32 %v1642, %v1646
        %v1648 = vshll.u32 %v924, 16
        %v1650 = vrot.slane %v1648, 1
        %v1651 = vsel %vm967, %v1647, %v1650
        %v1652 = vshrl.u32 %v924, 16
        %v1654 = vor.u32 %v1652, %v1650
        %v1655 = vshrl.u32 %v798, 16
        %v1657 = vshll.u32 %v798, 16
        %v1659 = vrot.slane %v1657, 1
        %v1660 = vor.u32 %v1655, %v1659
        %v1661 = vshll.u32 %v926, 16
        %v1663 = vrot.slane %v1661, 1
        %v1664 = vsel %vm967, %v1660, %v1663
        %v1665 = vshrl.u32 %v926, 16
        %v1667 = vor.u32 %v1665, %v1663
        %v1668 = vshrl.u32 %v800, 16
        %v1670 = vshll.u32 %v800, 16
        %v1672 = vrot.slane %v1670, 1
        %v1673 = vor.u32 %v1668, %v1672
        %v1674 = vshll.u32 %v928, 16
        %v1676 = vrot.slane %v1674, 1
        %v1677 = vsel %vm967, %v1673, %v1676
        %v1678 = vshrl.u32 %v928, 16
        %v1680 = vor.u32 %v1678, %v1676
        %v1681 = vshrl.u32 %v802, 16
        %v1683 = vshll.u32 %v802, 16
        %v1685 = vrot.slane %v1683, 1
        %v1686 = vor.u32 %v1681, %v1685
        %v1687 = vshll.u32 %v930, 16
        %v1689 = vrot.slane %v1687, 1
        %v1690 = vsel %vm967, %v1686, %v1689
        %v1691 = vshrl.u32 %v930, 16
        %v1693 = vor.u32 %v1691, %v1689
        %v1694 = vshrl.u32 %v804, 16
        %v1696 = vshll.u32 %v804, 16
        %v1698 = vrot.slane %v1696, 1
        %v1699 = vor.u32 %v1694, %v1698
        %v1700 = vshll.u32 %v932, 16
        %v1702 = vrot.slane %v1700, 1
        %v1703 = vsel %vm967, %v1699, %v1702
        %v1704 = vshrl.u32 %v932, 16
        %v1706 = vor.u32 %v1704, %v1702
        %v1707 = vshrl.u32 %v806, 16
        %v1709 = vshll.u32 %v806, 16
        %v1711 = vrot.slane %v1709, 1
        %v1712 = vor.u32 %v1707, %v1711
        %v1713 = vshll.u32 %v934, 16
        %v1715 = vrot.slane %v1713, 1
        %v1716 = vsel %vm967, %v1712, %v1715
        %v1717 = vshrl.u32 %v934, 16
        %v1719 = vor.u32 %v1717, %v1715
        %v1720 = vshrl.u32 %v808, 16
        %v1722 = vshll.u32 %v808, 16
        %v1724 = vrot.slane %v1722, 1
        %v1725 = vor.u32 %v1720, %v1724
        %v1726 = vshll.u32 %v936, 16
        %v1728 = vrot.slane %v1726, 1
        %v1729 = vsel %vm967, %v1725, %v1728
        %v1730 = vshrl.u32 %v936, 16
        %v1732 = vor.u32 %v1730, %v1728
        %v1733 = vshrl.u32 %v810, 16
        %v1735 = vshll.u32 %v810, 16
        %v1737 = vrot.slane %v1735, 1
        %v1738 = vor.u32 %v1733, %v1737
        %v1739 = vshll.u32 %v938, 16
        %v1741 = vrot.slane %v1739, 1
        %v1742 = vsel %vm967, %v1738, %v1741
        %v1743 = vshrl.u32 %v938, 16
        %v1745 = vor.u32 %v1743, %v1741
        %v1746 = vshrl.u32 %v812, 16
        %v1748 = vshll.u32 %v812, 16
        %v1750 = vrot.slane %v1748, 1
        %v1751 = vor.u32 %v1746, %v1750
        %v1752 = vshll.u32 %v940, 16
        %v1754 = vrot.slane %v1752, 1
        %v1755 = vsel %vm967, %v1751, %v1754
        %v1756 = vshrl.u32 %v940, 16
        %v1758 = vor.u32 %v1756, %v1754
        %v1759 = vshrl.u32 %v814, 16
        %v1761 = vshll.u32 %v814, 16
        %v1763 = vrot.slane %v1761, 1
        %v1764 = vor.u32 %v1759, %v1763
        %v1765 = vshll.u32 %v942, 16
        %v1767 = vrot.slane %v1765, 1
        %v1768 = vsel %vm967, %v1764, %v1767
        %v1769 = vshrl.u32 %v942, 16
        %v1771 = vor.u32 %v1769, %v1767
        %v1772 = vshrl.u32 %v816, 16
        %v1774 = vshll.u32 %v816, 16
        %v1776 = vrot.slane %v1774, 1
        %v1777 = vor.u32 %v1772, %v1776
        %v1778 = vshll.u32 %v944, 16
        %v1780 = vrot.slane %v1778, 1
        %v1781 = vsel %vm967, %v1777, %v1780
        %v1782 = vshrl.u32 %v944, 16
        %v1784 = vor.u32 %v1782, %v1780
        %v1785 = vshrl.u32 %v818, 16
        %v1787 = vshll.u32 %v818, 16
        %v1789 = vrot.slane %v1787, 1
        %v1790 = vor.u32 %v1785, %v1789
        %v1791 = vshll.u32 %v946, 16
        %v1793 = vrot.slane %v1791, 1
        %v1794 = vsel %vm967, %v1790, %v1793
        %v1795 = vshrl.u32 %v946, 16
        %v1797 = vor.u32 %v1795, %v1793
        %v1798 = vshrl.u32 %v820, 16
        %v1800 = vshll.u32 %v820, 16
        %v1802 = vrot.slane %v1800, 1
        %v1803 = vor.u32 %v1798, %v1802
        %v1804 = vshll.u32 %v948, 16
        %v1806 = vrot.slane %v1804, 1
        %v1807 = vsel %vm967, %v1803, %v1806
        %v1808 = vshrl.u32 %v948, 16
        %v1810 = vor.u32 %v1808, %v1806
        %v1811 = vshrl.u32 %v822, 16
        %v1813 = vshll.u32 %v822, 16
        %v1815 = vrot.slane %v1813, 1
        %v1816 = vor.u32 %v1811, %v1815
        %v1817 = vshll.u32 %v950, 16
        %v1819 = vrot.slane %v1817, 1
        %v1820 = vsel %vm967, %v1816, %v1819
        %v1821 = vshrl.u32 %v950, 16
        %v1823 = vor.u32 %v1821, %v1819
        %v1824 = vshrl.u32 %v824, 16
        %v1826 = vshll.u32 %v824, 16
        %v1828 = vrot.slane %v1826, 1
        %v1829 = vor.u32 %v1824, %v1828
        %v1830 = vshll.u32 %v952, 16
        %v1832 = vrot.slane %v1830, 1
        %v1833 = vsel %vm967, %v1829, %v1832
        %v1834 = vshrl.u32 %v952, 16
        %v1836 = vor.u32 %v1834, %v1832
        %v1837 = vshrl.u32 %v826, 16
        %v1839 = vshll.u32 %v826, 16
        %v1841 = vrot.slane %v1839, 1
        %v1842 = vor.u32 %v1837, %v1841
        %v1843 = vshll.u32 %v954, 16
        %v1845 = vrot.slane %v1843, 1
        %v1846 = vsel %vm967, %v1842, %v1845
        %v1847 = vshrl.u32 %v954, 16
        %v1849 = vor.u32 %v1847, %v1845
        %v1850 = vshrl.u32 %v828, 16
        %v1852 = vshll.u32 %v828, 16
        %v1854 = vrot.slane %v1852, 1
        %v1855 = vor.u32 %v1850, %v1854
        %v1856 = vshll.u32 %v956, 16
        %v1858 = vrot.slane %v1856, 1
        %v1859 = vsel %vm967, %v1855, %v1858
        %v1860 = vshrl.u32 %v956, 16
        %v1862 = vor.u32 %v1860, %v1858
        %v1863 = vshrl.u32 %v830, 16
        %v1865 = vshll.u32 %v830, 16
        %v1867 = vrot.slane %v1865, 1
        %v1868 = vor.u32 %v1863, %v1867
        %v1869 = vshll.u32 %v958, 16
        %v1871 = vrot.slane %v1869, 1
        %v1872 = vsel %vm967, %v1868, %v1871
        %v1873 = vshrl.u32 %v958, 16
        %v1875 = vor.u32 %v1873, %v1871
        %v1876 = vshrl.u32 %v832, 16
        %v1878 = vshll.u32 %v832, 16
        %v1880 = vrot.slane %v1878, 1
        %v1881 = vor.u32 %v1876, %v1880
        %v1882 = vshll.u32 %v960, 16
        %v1884 = vrot.slane %v1882, 1
        %v1885 = vsel %vm967, %v1881, %v1884
        %v1886 = vshrl.u32 %v960, 16
        %v1888 = vor.u32 %v1886, %v1884
        %v1889 = vshrl.u32 %v834, 16
        %v1891 = vshll.u32 %v834, 16
        %v1893 = vrot.slane %v1891, 1
        %v1894 = vor.u32 %v1889, %v1893
        %v1895 = vshll.u32 %v962, 16
        %v1897 = vrot.slane %v1895, 1
        %v1898 = vsel %vm967, %v1894, %v1897
        %v1899 = vshrl.u32 %v962, 16
        %v1901 = vor.u32 %v1899, %v1897
        %v1902 = vshrl.u32 %v836, 16
        %v1904 = vshll.u32 %v836, 16
        %v1906 = vrot.slane %v1904, 1
        %v1907 = vor.u32 %v1902, %v1906
        %v1908 = vshll.u32 %v964, 16
        %v1910 = vrot.slane %v1908, 1
        %v1911 = vsel %vm967, %v1907, %v1910
        %v1912 = vshrl.u32 %v964, 16
        %v1914 = vor.u32 %v1912, %v1910
        %v1915 = vshrl.u32 %v838, 16
        %v1917 = vshll.u32 %v838, 16
        %v1919 = vrot.slane %v1917, 1
        %v1920 = vor.u32 %v1915, %v1919
        %v1921 = vshll.u32 %v966, 16
        %v1923 = vrot.slane %v1921, 1
        %v1924 = vsel %vm967, %v1920, %v1923
        %v1925 = vshrl.u32 %v966, 16
        %v1927 = vor.u32 %v1925, %v1923
        %1928 = vrot.lane.b32.xlu0 %v1521, 8
        %v1929 = vpop.permute.xlu0 %1928
        %1930 = vrot.lane.b32.xlu0 %v1524, 8
        %v1931 = vpop.permute.xlu0 %1930
        %1932 = vrot.lane.b32.xlu0 %v1534, 8
        %v1933 = vpop.permute.xlu0 %1932
        %1934 = vrot.lane.b32.xlu0 %v1537, 8
        %v1935 = vpop.permute.xlu0 %1934
        %1936 = vrot.lane.b32.xlu0 %v1547, 8
        %v1937 = vpop.permute.xlu0 %1936
        %1938 = vrot.lane.b32.xlu0 %v1550, 8
        %v1939 = vpop.permute.xlu0 %1938
        %1940 = vrot.lane.b32.xlu0 %v1560, 8
        %v1941 = vpop.permute.xlu0 %1940
        %1942 = vrot.lane.b32.xlu0 %v1563, 8
        %v1943 = vpop.permute.xlu0 %1942
        %1944 = vrot.lane.b32.xlu0 %v1573, 8
        %v1945 = vpop.permute.xlu0 %1944
        %1946 = vrot.lane.b32.xlu0 %v1576, 8
        %v1947 = vpop.permute.xlu0 %1946
        %1948 = vrot.lane.b32.xlu0 %v1586, 8
        %v1949 = vpop.permute.xlu0 %1948
        %1950 = vrot.lane.b32.xlu0 %v1589, 8
        %v1951 = vpop.permute.xlu0 %1950
        %1952 = vrot.lane.b32.xlu0 %v1599, 8
        %v1953 = vpop.permute.xlu0 %1952
        %1954 = vrot.lane.b32.xlu0 %v1602, 8
        %v1955 = vpop.permute.xlu0 %1954
        %1956 = vrot.lane.b32.xlu0 %v1612, 8
        %v1957 = vpop.permute.xlu0 %1956
        %1958 = vrot.lane.b32.xlu0 %v1615, 8
        %v1959 = vpop.permute.xlu0 %1958
        %1960 = vrot.lane.b32.xlu0 %v1625, 8
        %v1961 = vpop.permute.xlu0 %1960
        %1962 = vrot.lane.b32.xlu0 %v1628, 8
        %v1963 = vpop.permute.xlu0 %1962
        %1964 = vrot.lane.b32.xlu0 %v1638, 8
        %v1965 = vpop.permute.xlu0 %1964
        %1966 = vrot.lane.b32.xlu0 %v1641, 8
        %v1967 = vpop.permute.xlu0 %1966
        %1968 = vrot.lane.b32.xlu0 %v1651, 8
        %v1969 = vpop.permute.xlu0 %1968
        %1970 = vrot.lane.b32.xlu0 %v1654, 8
        %v1971 = vpop.permute.xlu0 %1970
        %1972 = vrot.lane.b32.xlu0 %v1664, 8
        %v1973 = vpop.permute.xlu0 %1972
        %1974 = vrot.lane.b32.xlu0 %v1667, 8
        %v1975 = vpop.permute.xlu0 %1974
        %1976 = vrot.lane.b32.xlu0 %v1677, 8
        %v1977 = vpop.permute.xlu0 %1976
        %1978 = vrot.lane.b32.xlu0 %v1680, 8
        %v1979 = vpop.permute.xlu0 %1978
        %1980 = vrot.lane.b32.xlu0 %v1690, 8
        %v1981 = vpop.permute.xlu0 %1980
        %1982 = vrot.lane.b32.xlu0 %v1693, 8
        %v1983 = vpop.permute.xlu0 %1982
        %1984 = vrot.lane.b32.xlu0 %v1703, 8
        %v1985 = vpop.permute.xlu0 %1984
        %1986 = vrot.lane.b32.xlu0 %v1706, 8
        %v1987 = vpop.permute.xlu0 %1986
        %1988 = vrot.lane.b32.xlu0 %v1716, 8
        %v1989 = vpop.permute.xlu0 %1988
        %1990 = vrot.lane.b32.xlu0 %v1719, 8
        %v1991 = vpop.permute.xlu0 %1990
        %1992 = vrot.lane.b32.xlu0 %v1729, 8
        %v1993 = vpop.permute.xlu0 %1992
        %1994 = vrot.lane.b32.xlu0 %v1732, 8
        %v1995 = vpop.permute.xlu0 %1994
        %1996 = vrot.lane.b32.xlu0 %v1742, 8
        %v1997 = vpop.permute.xlu0 %1996
        %1998 = vrot.lane.b32.xlu0 %v1745, 8
        %v1999 = vpop.permute.xlu0 %1998
        %2000 = vrot.lane.b32.xlu0 %v1755, 8
        %v2001 = vpop.permute.xlu0 %2000
        %2002 = vrot.lane.b32.xlu0 %v1758, 8
        %v2003 = vpop.permute.xlu0 %2002
        %2004 = vrot.lane.b32.xlu0 %v1768, 8
        %v2005 = vpop.permute.xlu0 %2004
        %2006 = vrot.lane.b32.xlu0 %v1771, 8
        %v2007 = vpop.permute.xlu0 %2006
        %2008 = vrot.lane.b32.xlu0 %v1781, 8
        %v2009 = vpop.permute.xlu0 %2008
        %2010 = vrot.lane.b32.xlu0 %v1784, 8
        %v2011 = vpop.permute.xlu0 %2010
        %2012 = vrot.lane.b32.xlu0 %v1794, 8
        %v2013 = vpop.permute.xlu0 %2012
        %2014 = vrot.lane.b32.xlu0 %v1797, 8
        %v2015 = vpop.permute.xlu0 %2014
        %2016 = vrot.lane.b32.xlu0 %v1807, 8
        %v2017 = vpop.permute.xlu0 %2016
        %2018 = vrot.lane.b32.xlu0 %v1810, 8
        %v2019 = vpop.permute.xlu0 %2018
        %2020 = vrot.lane.b32.xlu0 %v1820, 8
        %v2021 = vpop.permute.xlu0 %2020
        %2022 = vrot.lane.b32.xlu0 %v1823, 8
        %v2023 = vpop.permute.xlu0 %2022
        %2024 = vrot.lane.b32.xlu0 %v1833, 8
        %v2025 = vpop.permute.xlu0 %2024
        %2026 = vrot.lane.b32.xlu0 %v1836, 8
        %v2027 = vpop.permute.xlu0 %2026
        %2028 = vrot.lane.b32.xlu0 %v1846, 8
        %v2029 = vpop.permute.xlu0 %2028
        %2030 = vrot.lane.b32.xlu0 %v1849, 8
        %v2031 = vpop.permute.xlu0 %2030
        %2032 = vrot.lane.b32.xlu0 %v1859, 8
        %v2033 = vpop.permute.xlu0 %2032
        %2034 = vrot.lane.b32.xlu0 %v1862, 8
        %v2035 = vpop.permute.xlu0 %2034
        %2036 = vrot.lane.b32.xlu0 %v1872, 8
        %v2037 = vpop.permute.xlu0 %2036
        %2038 = vrot.lane.b32.xlu0 %v1875, 8
        %v2039 = vpop.permute.xlu0 %2038
        %2040 = vrot.lane.b32.xlu0 %v1885, 8
        %v2041 = vpop.permute.xlu0 %2040
        %2042 = vrot.lane.b32.xlu0 %v1888, 8
        %v2043 = vpop.permute.xlu0 %2042
        %2044 = vrot.lane.b32.xlu0 %v1898, 8
        %v2045 = vpop.permute.xlu0 %2044
        %2046 = vrot.lane.b32.xlu0 %v1901, 8
        %v2047 = vpop.permute.xlu0 %2046
        %2048 = vrot.lane.b32.xlu0 %v1911, 8
        %v2049 = vpop.permute.xlu0 %2048
        %2050 = vrot.lane.b32.xlu0 %v1914, 8
        %v2051 = vpop.permute.xlu0 %2050
        %2052 = vrot.lane.b32.xlu0 %v1924, 8
        %v2053 = vpop.permute.xlu0 %2052
        %2054 = vrot.lane.b32.xlu0 %v1927, 8
        %v2055 = vpop.permute.xlu0 %2054
        %vm2120 = vcmask 1046528
        %v2121 = vrot.slane %v712, 1
        %v2122 = vrot.slane %v840, 1
        %v2123 = vsel %vm2120, %v2121, %v2122
        %v2124 = vrot.slane %v714, 1
        %v2125 = vrot.slane %v842, 1
        %v2126 = vsel %vm2120, %v2124, %v2125
        %v2127 = vrot.slane %v716, 1
        %v2128 = vrot.slane %v844, 1
        %v2129 = vsel %vm2120, %v2127, %v2128
        %v2130 = vrot.slane %v718, 1
        %v2131 = vrot.slane %v846, 1
        %v2132 = vsel %vm2120, %v2130, %v2131
        %v2133 = vrot.slane %v720, 1
        %v2134 = vrot.slane %v848, 1
        %v2135 = vsel %vm2120, %v2133, %v2134
        %v2136 = vrot.slane %v722, 1
        %v2137 = vrot.slane %v850, 1
        %v2138 = vsel %vm2120, %v2136, %v2137
        %v2139 = vrot.slane %v724, 1
        %v2140 = vrot.slane %v852, 1
        %v2141 = vsel %vm2120, %v2139, %v2140
        %v2142 = vrot.slane %v726, 1
        %v2143 = vrot.slane %v854, 1
        %v2144 = vsel %vm2120, %v2142, %v2143
        %v2145 = vrot.slane %v728, 1
        %v2146 = vrot.slane %v856, 1
        %v2147 = vsel %vm2120, %v2145, %v2146
        %v2148 = vrot.slane %v730, 1
        %v2149 = vrot.slane %v858, 1
        %v2150 = vsel %vm2120, %v2148, %v2149
        %v2151 = vrot.slane %v732, 1
        %v2152 = vrot.slane %v860, 1
        %v2153 = vsel %vm2120, %v2151, %v2152
        %v2154 = vrot.slane %v734, 1
        %v2155 = vrot.slane %v862, 1
        %v2156 = vsel %vm2120, %v2154, %v2155
        %v2157 = vrot.slane %v736, 1
        %v2158 = vrot.slane %v864, 1
        %v2159 = vsel %vm2120, %v2157, %v2158
        %v2160 = vrot.slane %v738, 1
        %v2161 = vrot.slane %v866, 1
        %v2162 = vsel %vm2120, %v2160, %v2161
        %v2163 = vrot.slane %v740, 1
        %v2164 = vrot.slane %v868, 1
        %v2165 = vsel %vm2120, %v2163, %v2164
        %v2166 = vrot.slane %v742, 1
        %v2167 = vrot.slane %v870, 1
        %v2168 = vsel %vm2120, %v2166, %v2167
        %v2169 = vrot.slane %v744, 1
        %v2170 = vrot.slane %v872, 1
        %v2171 = vsel %vm2120, %v2169, %v2170
        %v2172 = vrot.slane %v746, 1
        %v2173 = vrot.slane %v874, 1
        %v2174 = vsel %vm2120, %v2172, %v2173
        %v2175 = vrot.slane %v748, 1
        %v2176 = vrot.slane %v876, 1
        %v2177 = vsel %vm2120, %v2175, %v2176
        %v2178 = vrot.slane %v750, 1
        %v2179 = vrot.slane %v878, 1
        %v2180 = vsel %vm2120, %v2178, %v2179
        %v2181 = vrot.slane %v752, 1
        %v2182 = vrot.slane %v880, 1
        %v2183 = vsel %vm2120, %v2181, %v2182
        %v2184 = vrot.slane %v754, 1
        %v2185 = vrot.slane %v882, 1
        %v2186 = vsel %vm2120, %v2184, %v2185
        %v2187 = vrot.slane %v756, 1
        %v2188 = vrot.slane %v884, 1
        %v2189 = vsel %vm2120, %v2187, %v2188
        %v2190 = vrot.slane %v758, 1
        %v2191 = vrot.slane %v886, 1
        %v2192 = vsel %vm2120, %v2190, %v2191
        %v2193 = vrot.slane %v760, 1
        %v2194 = vrot.slane %v888, 1
        %v2195 = vsel %vm2120, %v2193, %v2194
        %v2196 = vrot.slane %v762, 1
        %v2197 = vrot.slane %v890, 1
        %v2198 = vsel %vm2120, %v2196, %v2197
        %v2199 = vrot.slane %v764, 1
        %v2200 = vrot.slane %v892, 1
        %v2201 = vsel %vm2120, %v2199, %v2200
        %v2202 = vrot.slane %v766, 1
        %v2203 = vrot.slane %v894, 1
        %v2204 = vsel %vm2120, %v2202, %v2203
        %v2205 = vrot.slane %v768, 1
        %v2206 = vrot.slane %v896, 1
        %v2207 = vsel %vm2120, %v2205, %v2206
        %v2208 = vrot.slane %v770, 1
        %v2209 = vrot.slane %v898, 1
        %v2210 = vsel %vm2120, %v2208, %v2209
        %v2211 = vrot.slane %v772, 1
        %v2212 = vrot.slane %v900, 1
        %v2213 = vsel %vm2120, %v2211, %v2212
        %v2214 = vrot.slane %v774, 1
        %v2215 = vrot.slane %v902, 1
        %v2216 = vsel %vm2120, %v2214, %v2215
        %2217 = vrot.lane.b32.xlu0 %v2123, 12
        %v2218 = vpop.permute.xlu0 %2217
        %2219 = vrot.lane.b32.xlu0 %v2122, 12
        %v2220 = vpop.permute.xlu0 %2219
        %2221 = vrot.lane.b32.xlu0 %v2126, 12
        %v2222 = vpop.permute.xlu0 %2221
        %2223 = vrot.lane.b32.xlu0 %v2125, 12
        %v2224 = vpop.permute.xlu0 %2223
        %2225 = vrot.lane.b32.xlu0 %v2129, 12
        %v2226 = vpop.permute.xlu0 %2225
        %2227 = vrot.lane.b32.xlu0 %v2128, 12
        %v2228 = vpop.permute.xlu0 %2227
        %2229 = vrot.lane.b32.xlu0 %v2132, 12
        %v2230 = vpop.permute.xlu0 %2229
        %2231 = vrot.lane.b32.xlu0 %v2131, 12
        %v2232 = vpop.permute.xlu0 %2231
        %2233 = vrot.lane.b32.xlu0 %v2135, 12
        %v2234 = vpop.permute.xlu0 %2233
        %2235 = vrot.lane.b32.xlu0 %v2134, 12
        %v2236 = vpop.permute.xlu0 %2235
        %2237 = vrot.lane.b32.xlu0 %v2138, 12
        %v2238 = vpop.permute.xlu0 %2237
        %2239 = vrot.lane.b32.xlu0 %v2137, 12
        %v2240 = vpop.permute.xlu0 %2239
        %2241 = vrot.lane.b32.xlu0 %v2141, 12
        %v2242 = vpop.permute.xlu0 %2241
        %2243 = vrot.lane.b32.xlu0 %v2140, 12
        %v2244 = vpop.permute.xlu0 %2243
        %2245 = vrot.lane.b32.xlu0 %v2144, 12
        %v2246 = vpop.permute.xlu0 %2245
        %2247 = vrot.lane.b32.xlu0 %v2143, 12
        %v2248 = vpop.permute.xlu0 %2247
        %2249 = vrot.lane.b32.xlu0 %v2147, 12
        %v2250 = vpop.permute.xlu0 %2249
        %2251 = vrot.lane.b32.xlu0 %v2146, 12
        %v2252 = vpop.permute.xlu0 %2251
        %2253 = vrot.lane.b32.xlu0 %v2150, 12
        %v2254 = vpop.permute.xlu0 %2253
        %2255 = vrot.lane.b32.xlu0 %v2149, 12
        %v2256 = vpop.permute.xlu0 %2255
        %2257 = vrot.lane.b32.xlu0 %v2153, 12
        %v2258 = vpop.permute.xlu0 %2257
        %2259 = vrot.lane.b32.xlu0 %v2152, 12
        %v2260 = vpop.permute.xlu0 %2259
        %2261 = vrot.lane.b32.xlu0 %v2156, 12
        %v2262 = vpop.permute.xlu0 %2261
        %2263 = vrot.lane.b32.xlu0 %v2155, 12
        %v2264 = vpop.permute.xlu0 %2263
        %2265 = vrot.lane.b32.xlu0 %v2159, 12
        %v2266 = vpop.permute.xlu0 %2265
        %2267 = vrot.lane.b32.xlu0 %v2158, 12
        %v2268 = vpop.permute.xlu0 %2267
        %2269 = vrot.lane.b32.xlu0 %v2162, 12
        %v2270 = vpop.permute.xlu0 %2269
        %2271 = vrot.lane.b32.xlu0 %v2161, 12
        %v2272 = vpop.permute.xlu0 %2271
        %2273 = vrot.lane.b32.xlu0 %v2165, 12
        %v2274 = vpop.permute.xlu0 %2273
        %2275 = vrot.lane.b32.xlu0 %v2164, 12
        %v2276 = vpop.permute.xlu0 %2275
        %2277 = vrot.lane.b32.xlu0 %v2168, 12
        %v2278 = vpop.permute.xlu0 %2277
        %2279 = vrot.lane.b32.xlu0 %v2167, 12
        %v2280 = vpop.permute.xlu0 %2279
        %2281 = vrot.lane.b32.xlu0 %v2171, 12
        %v2282 = vpop.permute.xlu0 %2281
        %2283 = vrot.lane.b32.xlu0 %v2170, 12
        %v2284 = vpop.permute.xlu0 %2283
        %2285 = vrot.lane.b32.xlu0 %v2174, 12
        %v2286 = vpop.permute.xlu0 %2285
        %2287 = vrot.lane.b32.xlu0 %v2173, 12
        %v2288 = vpop.permute.xlu0 %2287
        %2289 = vrot.lane.b32.xlu0 %v2177, 12
        %v2290 = vpop.permute.xlu0 %2289
        %2291 = vrot.lane.b32.xlu0 %v2176, 12
        %v2292 = vpop.permute.xlu0 %2291
        %2293 = vrot.lane.b32.xlu0 %v2180, 12
        %v2294 = vpop.permute.xlu0 %2293
        %2295 = vrot.lane.b32.xlu0 %v2179, 12
        %v2296 = vpop.permute.xlu0 %2295
        %2297 = vrot.lane.b32.xlu0 %v2183, 12
        %v2298 = vpop.permute.xlu0 %2297
        %2299 = vrot.lane.b32.xlu0 %v2182, 12
        %v2300 = vpop.permute.xlu0 %2299
        %2301 = vrot.lane.b32.xlu0 %v2186, 12
        %v2302 = vpop.permute.xlu0 %2301
        %2303 = vrot.lane.b32.xlu0 %v2185, 12
        %v2304 = vpop.permute.xlu0 %2303
        %2305 = vrot.lane.b32.xlu0 %v2189, 12
        %v2306 = vpop.permute.xlu0 %2305
        %2307 = vrot.lane.b32.xlu0 %v2188, 12
        %v2308 = vpop.permute.xlu0 %2307
        %2309 = vrot.lane.b32.xlu0 %v2192, 12
        %v2310 = vpop.permute.xlu0 %2309
        %2311 = vrot.lane.b32.xlu0 %v2191, 12
        %v2312 = vpop.permute.xlu0 %2311
        %2313 = vrot.lane.b32.xlu0 %v2195, 12
        %v2314 = vpop.permute.xlu0 %2313
        %2315 = vrot.lane.b32.xlu0 %v2194, 12
        %v2316 = vpop.permute.xlu0 %2315
        %2317 = vrot.lane.b32.xlu0 %v2198, 12
        %v2318 = vpop.permute.xlu0 %2317
        %2319 = vrot.lane.b32.xlu0 %v2197, 12
        %v2320 = vpop.permute.xlu0 %2319
        %2321 = vrot.lane.b32.xlu0 %v2201, 12
        %v2322 = vpop.permute.xlu0 %2321
        %2323 = vrot.lane.b32.xlu0 %v2200, 12
        %v2324 = vpop.permute.xlu0 %2323
        %2325 = vrot.lane.b32.xlu0 %v2204, 12
        %v2326 = vpop.permute.xlu0 %2325
        %2327 = vrot.lane.b32.xlu0 %v2203, 12
        %v2328 = vpop.permute.xlu0 %2327
        %2329 = vrot.lane.b32.xlu0 %v2207, 12
        %v2330 = vpop.permute.xlu0 %2329
        %2331 = vrot.lane.b32.xlu0 %v2206, 12
        %v2332 = vpop.permute.xlu0 %2331
        %2333 = vrot.lane.b32.xlu0 %v2210, 12
        %v2334 = vpop.permute.xlu0 %2333
        %2335 = vrot.lane.b32.xlu0 %v2209, 12
        %v2336 = vpop.permute.xlu0 %2335
        %2337 = vrot.lane.b32.xlu0 %v2213, 12
        %v2338 = vpop.permute.xlu0 %2337
        %2339 = vrot.lane.b32.xlu0 %v2212, 12
        %v2340 = vpop.permute.xlu0 %2339
        %2341 = vrot.lane.b32.xlu0 %v2216, 12
        %v2342 = vpop.permute.xlu0 %2341
        %2343 = vrot.lane.b32.xlu0 %v2215, 12
        %v2344 = vpop.permute.xlu0 %2343
        %v2409 = vrot.slane %v776, 1
        %v2410 = vrot.slane %v904, 1
        %v2411 = vsel %vm2120, %v2409, %v2410
        %v2412 = vrot.slane %v778, 1
        %v2413 = vrot.slane %v906, 1
        %v2414 = vsel %vm2120, %v2412, %v2413
        %v2415 = vrot.slane %v780, 1
        %v2416 = vrot.slane %v908, 1
        %v2417 = vsel %vm2120, %v2415, %v2416
        %v2418 = vrot.slane %v782, 1
        %v2419 = vrot.slane %v910, 1
        %v2420 = vsel %vm2120, %v2418, %v2419
        %v2421 = vrot.slane %v784, 1
        %v2422 = vrot.slane %v912, 1
        %v2423 = vsel %vm2120, %v2421, %v2422
        %v2424 = vrot.slane %v786, 1
        %v2425 = vrot.slane %v914, 1
        %v2426 = vsel %vm2120, %v2424, %v2425
        %v2427 = vrot.slane %v788, 1
        %v2428 = vrot.slane %v916, 1
        %v2429 = vsel %vm2120, %v2427, %v2428
        %v2430 = vrot.slane %v790, 1
        %v2431 = vrot.slane %v918, 1
        %v2432 = vsel %vm2120, %v2430, %v2431
        %v2433 = vrot.slane %v792, 1
        %v2434 = vrot.slane %v920, 1
        %v2435 = vsel %vm2120, %v2433, %v2434
        %v2436 = vrot.slane %v794, 1
        %v2437 = vrot.slane %v922, 1
        %v2438 = vsel %vm2120, %v2436, %v2437
        %v2439 = vrot.slane %v796, 1
        %v2440 = vrot.slane %v924, 1
        %v2441 = vsel %vm2120, %v2439, %v2440
        %v2442 = vrot.slane %v798, 1
        %v2443 = vrot.slane %v926, 1
        %v2444 = vsel %vm2120, %v2442, %v2443
        %v2445 = vrot.slane %v800, 1
        %v2446 = vrot.slane %v928, 1
        %v2447 = vsel %vm2120, %v2445, %v2446
        %v2448 = vrot.slane %v802, 1
        %v2449 = vrot.slane %v930, 1
        %v2450 = vsel %vm2120, %v2448, %v2449
        %v2451 = vrot.slane %v804, 1
        %v2452 = vrot.slane %v932, 1
        %v2453 = vsel %vm2120, %v2451, %v2452
        %v2454 = vrot.slane %v806, 1
        %v2455 = vrot.slane %v934, 1
        %v2456 = vsel %vm2120, %v2454, %v2455
        %v2457 = vrot.slane %v808, 1
        %v2458 = vrot.slane %v936, 1
        %v2459 = vsel %vm2120, %v2457, %v2458
        %v2460 = vrot.slane %v810, 1
        %v2461 = vrot.slane %v938, 1
        %v2462 = vsel %vm2120, %v2460, %v2461
        %v2463 = vrot.slane %v812, 1
        %v2464 = vrot.slane %v940, 1
        %v2465 = vsel %vm2120, %v2463, %v2464
        %v2466 = vrot.slane %v814, 1
        %v2467 = vrot.slane %v942, 1
        %v2468 = vsel %vm2120, %v2466, %v2467
        %v2469 = vrot.slane %v816, 1
        %v2470 = vrot.slane %v944, 1
        %v2471 = vsel %vm2120, %v2469, %v2470
        %v2472 = vrot.slane %v818, 1
        %v2473 = vrot.slane %v946, 1
        %v2474 = vsel %vm2120, %v2472, %v2473
        %v2475 = vrot.slane %v820, 1
        %v2476 = vrot.slane %v948, 1
        %v2477 = vsel %vm2120, %v2475, %v2476
        %v2478 = vrot.slane %v822, 1
        %v2479 = vrot.slane %v950, 1
        %v2480 = vsel %vm2120, %v2478, %v2479
        %v2481 = vrot.slane %v824, 1
        %v2482 = vrot.slane %v952, 1
        %v2483 = vsel %vm2120, %v2481, %v2482
        %v2484 = vrot.slane %v826, 1
        %v2485 = vrot.slane %v954, 1
        %v2486 = vsel %vm2120, %v2484, %v2485
        %v2487 = vrot.slane %v828, 1
        %v2488 = vrot.slane %v956, 1
        %v2489 = vsel %vm2120, %v2487, %v2488
        %v2490 = vrot.slane %v830, 1
        %v2491 = vrot.slane %v958, 1
        %v2492 = vsel %vm2120, %v2490, %v2491
        %v2493 = vrot.slane %v832, 1
        %v2494 = vrot.slane %v960, 1
        %v2495 = vsel %vm2120, %v2493, %v2494
        %v2496 = vrot.slane %v834, 1
        %v2497 = vrot.slane %v962, 1
        %v2498 = vsel %vm2120, %v2496, %v2497
        %v2499 = vrot.slane %v836, 1
        %v2500 = vrot.slane %v964, 1
        %v2501 = vsel %vm2120, %v2499, %v2500
        %v2502 = vrot.slane %v838, 1
        %v2503 = vrot.slane %v966, 1
        %v2504 = vsel %vm2120, %v2502, %v2503
        %2505 = vrot.lane.b32.xlu0 %v2411, 16
        %v2506 = vpop.permute.xlu0 %2505
        %2507 = vrot.lane.b32.xlu0 %v2410, 16
        %v2508 = vpop.permute.xlu0 %2507
        %2509 = vrot.lane.b32.xlu0 %v2414, 16
        %v2510 = vpop.permute.xlu0 %2509
        %2511 = vrot.lane.b32.xlu0 %v2413, 16
        %v2512 = vpop.permute.xlu0 %2511
        %2513 = vrot.lane.b32.xlu0 %v2417, 16
        %v2514 = vpop.permute.xlu0 %2513
        %2515 = vrot.lane.b32.xlu0 %v2416, 16
        %v2516 = vpop.permute.xlu0 %2515
        %2517 = vrot.lane.b32.xlu0 %v2420, 16
        %v2518 = vpop.permute.xlu0 %2517
        %2519 = vrot.lane.b32.xlu0 %v2419, 16
        %v2520 = vpop.permute.xlu0 %2519
        %2521 = vrot.lane.b32.xlu0 %v2423, 16
        %v2522 = vpop.permute.xlu0 %2521
        %2523 = vrot.lane.b32.xlu0 %v2422, 16
        %v2524 = vpop.permute.xlu0 %2523
        %2525 = vrot.lane.b32.xlu0 %v2426, 16
        %v2526 = vpop.permute.xlu0 %2525
        %2527 = vrot.lane.b32.xlu0 %v2425, 16
        %v2528 = vpop.permute.xlu0 %2527
        %2529 = vrot.lane.b32.xlu0 %v2429, 16
        %v2530 = vpop.permute.xlu0 %2529
        %2531 = vrot.lane.b32.xlu0 %v2428, 16
        %v2532 = vpop.permute.xlu0 %2531
        %2533 = vrot.lane.b32.xlu0 %v2432, 16
        %v2534 = vpop.permute.xlu0 %2533
        %2535 = vrot.lane.b32.xlu0 %v2431, 16
        %v2536 = vpop.permute.xlu0 %2535
        %2537 = vrot.lane.b32.xlu0 %v2435, 16
        %v2538 = vpop.permute.xlu0 %2537
        %2539 = vrot.lane.b32.xlu0 %v2434, 16
        %v2540 = vpop.permute.xlu0 %2539
        %2541 = vrot.lane.b32.xlu0 %v2438, 16
        %v2542 = vpop.permute.xlu0 %2541
        %2543 = vrot.lane.b32.xlu0 %v2437, 16
        %v2544 = vpop.permute.xlu0 %2543
        %2545 = vrot.lane.b32.xlu0 %v2441, 16
        %v2546 = vpop.permute.xlu0 %2545
        %2547 = vrot.lane.b32.xlu0 %v2440, 16
        %v2548 = vpop.permute.xlu0 %2547
        %2549 = vrot.lane.b32.xlu0 %v2444, 16
        %v2550 = vpop.permute.xlu0 %2549
        %2551 = vrot.lane.b32.xlu0 %v2443, 16
        %v2552 = vpop.permute.xlu0 %2551
        %2553 = vrot.lane.b32.xlu0 %v2447, 16
        %v2554 = vpop.permute.xlu0 %2553
        %2555 = vrot.lane.b32.xlu0 %v2446, 16
        %v2556 = vpop.permute.xlu0 %2555
        %2557 = vrot.lane.b32.xlu0 %v2450, 16
        %v2558 = vpop.permute.xlu0 %2557
        %2559 = vrot.lane.b32.xlu0 %v2449, 16
        %v2560 = vpop.permute.xlu0 %2559
        %2561 = vrot.lane.b32.xlu0 %v2453, 16
        %v2562 = vpop.permute.xlu0 %2561
        %2563 = vrot.lane.b32.xlu0 %v2452, 16
        %v2564 = vpop.permute.xlu0 %2563
        %2565 = vrot.lane.b32.xlu0 %v2456, 16
        %v2566 = vpop.permute.xlu0 %2565
        %2567 = vrot.lane.b32.xlu0 %v2455, 16
        %v2568 = vpop.permute.xlu0 %2567
        %2569 = vrot.lane.b32.xlu0 %v2459, 16
        %v2570 = vpop.permute.xlu0 %2569
        %2571 = vrot.lane.b32.xlu0 %v2458, 16
        %v2572 = vpop.permute.xlu0 %2571
        %2573 = vrot.lane.b32.xlu0 %v2462, 16
        %v2574 = vpop.permute.xlu0 %2573
        %2575 = vrot.lane.b32.xlu0 %v2461, 16
        %v2576 = vpop.permute.xlu0 %2575
        %2577 = vrot.lane.b32.xlu0 %v2465, 16
        %v2578 = vpop.permute.xlu0 %2577
        %2579 = vrot.lane.b32.xlu0 %v2464, 16
        %v2580 = vpop.permute.xlu0 %2579
        %2581 = vrot.lane.b32.xlu0 %v2468, 16
        %v2582 = vpop.permute.xlu0 %2581
        %2583 = vrot.lane.b32.xlu0 %v2467, 16
        %v2584 = vpop.permute.xlu0 %2583
        %2585 = vrot.lane.b32.xlu0 %v2471, 16
        %v2586 = vpop.permute.xlu0 %2585
        %2587 = vrot.lane.b32.xlu0 %v2470, 16
        %v2588 = vpop.permute.xlu0 %2587
        %2589 = vrot.lane.b32.xlu0 %v2474, 16
        %v2590 = vpop.permute.xlu0 %2589
        %2591 = vrot.lane.b32.xlu0 %v2473, 16
        %v2592 = vpop.permute.xlu0 %2591
        %2593 = vrot.lane.b32.xlu0 %v2477, 16
        %v2594 = vpop.permute.xlu0 %2593
        %2595 = vrot.lane.b32.xlu0 %v2476, 16
        %v2596 = vpop.permute.xlu0 %2595
        %2597 = vrot.lane.b32.xlu0 %v2480, 16
        %v2598 = vpop.permute.xlu0 %2597
        %2599 = vrot.lane.b32.xlu0 %v2479, 16
        %v2600 = vpop.permute.xlu0 %2599
        %2601 = vrot.lane.b32.xlu0 %v2483, 16
        %v2602 = vpop.permute.xlu0 %2601
        %2603 = vrot.lane.b32.xlu0 %v2482, 16
        %v2604 = vpop.permute.xlu0 %2603
        %2605 = vrot.lane.b32.xlu0 %v2486, 16
        %v2606 = vpop.permute.xlu0 %2605
        %2607 = vrot.lane.b32.xlu0 %v2485, 16
        %v2608 = vpop.permute.xlu0 %2607
        %2609 = vrot.lane.b32.xlu0 %v2489, 16
        %v2610 = vpop.permute.xlu0 %2609
        %2611 = vrot.lane.b32.xlu0 %v2488, 16
        %v2612 = vpop.permute.xlu0 %2611
        %2613 = vrot.lane.b32.xlu0 %v2492, 16
        %v2614 = vpop.permute.xlu0 %2613
        %2615 = vrot.lane.b32.xlu0 %v2491, 16
        %v2616 = vpop.permute.xlu0 %2615
        %2617 = vrot.lane.b32.xlu0 %v2495, 16
        %v2618 = vpop.permute.xlu0 %2617
        %2619 = vrot.lane.b32.xlu0 %v2494, 16
        %v2620 = vpop.permute.xlu0 %2619
        %2621 = vrot.lane.b32.xlu0 %v2498, 16
        %v2622 = vpop.permute.xlu0 %2621
        %2623 = vrot.lane.b32.xlu0 %v2497, 16
        %v2624 = vpop.permute.xlu0 %2623
        %2625 = vrot.lane.b32.xlu0 %v2501, 16
        %v2626 = vpop.permute.xlu0 %2625
        %2627 = vrot.lane.b32.xlu0 %v2500, 16
        %v2628 = vpop.permute.xlu0 %2627
        %2629 = vrot.lane.b32.xlu0 %v2504, 16
        %v2630 = vpop.permute.xlu0 %2629
        %2631 = vrot.lane.b32.xlu0 %v2503, 16
        %v2632 = vpop.permute.xlu0 %2631
        %vm2633 = vsmask.f32 6400
        %v2634 = vrot.slane %v968, 1
        %v2635 = vrot.slane %v970, 2
        %v2636 = vor.u32 %v2634, %v2635
        %v2637 = vrot.slane %v978, 1
        %v2638 = vrot.slane %v974, 2
        %v2639 = vor.u32 %v2637, %v2638
        %v2640 = vsel %vm2633, %v2636, %v2639
        %v2641 = vrot.slane %v981, 1
        %v2642 = vrot.slane %v983, 2
        %v2643 = vor.u32 %v2641, %v2642
        %v2644 = vrot.slane %v991, 1
        %v2645 = vrot.slane %v987, 2
        %v2646 = vor.u32 %v2644, %v2645
        %v2647 = vsel %vm2633, %v2643, %v2646
        %v2648 = vrot.slane %v994, 1
        %v2649 = vrot.slane %v996, 2
        %v2650 = vor.u32 %v2648, %v2649
        %v2651 = vrot.slane %v1004, 1
        %v2652 = vrot.slane %v1000, 2
        %v2653 = vor.u32 %v2651, %v2652
        %v2654 = vsel %vm2633, %v2650, %v2653
        %v2655 = vrot.slane %v1007, 1
        %v2656 = vrot.slane %v1009, 2
        %v2657 = vor.u32 %v2655, %v2656
        %v2658 = vrot.slane %v1017, 1
        %v2659 = vrot.slane %v1013, 2
        %v2660 = vor.u32 %v2658, %v2659
        %v2661 = vsel %vm2633, %v2657, %v2660
        %v2662 = vrot.slane %v1020, 1
        %v2663 = vrot.slane %v1022, 2
        %v2664 = vor.u32 %v2662, %v2663
        %v2665 = vrot.slane %v1030, 1
        %v2666 = vrot.slane %v1026, 2
        %v2667 = vor.u32 %v2665, %v2666
        %v2668 = vsel %vm2633, %v2664, %v2667
        %v2669 = vrot.slane %v1033, 1
        %v2670 = vrot.slane %v1035, 2
        %v2671 = vor.u32 %v2669, %v2670
        %v2672 = vrot.slane %v1043, 1
        %v2673 = vrot.slane %v1039, 2
        %v2674 = vor.u32 %v2672, %v2673
        %v2675 = vsel %vm2633, %v2671, %v2674
        %v2676 = vrot.slane %v1046, 1
        %v2677 = vrot.slane %v1048, 2
        %v2678 = vor.u32 %v2676, %v2677
        %v2679 = vrot.slane %v1056, 1
        %v2680 = vrot.slane %v1052, 2
        %v2681 = vor.u32 %v2679, %v2680
        %v2682 = vsel %vm2633, %v2678, %v2681
        %v2683 = vrot.slane %v1059, 1
        %v2684 = vrot.slane %v1061, 2
        %v2685 = vor.u32 %v2683, %v2684
        %v2686 = vrot.slane %v1069, 1
        %v2687 = vrot.slane %v1065, 2
        %v2688 = vor.u32 %v2686, %v2687
        %v2689 = vsel %vm2633, %v2685, %v2688
        %v2690 = vrot.slane %v1072, 1
        %v2691 = vrot.slane %v1074, 2
        %v2692 = vor.u32 %v2690, %v2691
        %v2693 = vrot.slane %v1082, 1
        %v2694 = vrot.slane %v1078, 2
        %v2695 = vor.u32 %v2693, %v2694
        %v2696 = vsel %vm2633, %v2692, %v2695
        %v2697 = vrot.slane %v1085, 1
        %v2698 = vrot.slane %v1087, 2
        %v2699 = vor.u32 %v2697, %v2698
        %v2700 = vrot.slane %v1095, 1
        %v2701 = vrot.slane %v1091, 2
        %v2702 = vor.u32 %v2700, %v2701
        %v2703 = vsel %vm2633, %v2699, %v2702
        %v2704 = vrot.slane %v1098, 1
        %v2705 = vrot.slane %v1100, 2
        %v2706 = vor.u32 %v2704, %v2705
        %v2707 = vrot.slane %v1108, 1
        %v2708 = vrot.slane %v1104, 2
        %v2709 = vor.u32 %v2707, %v2708
        %v2710 = vsel %vm2633, %v2706, %v2709
        %v2711 = vrot.slane %v1111, 1
        %v2712 = vrot.slane %v1113, 2
        %v2713 = vor.u32 %v2711, %v2712
        %v2714 = vrot.slane %v1121, 1
        %v2715 = vrot.slane %v1117, 2
        %v2716 = vor.u32 %v2714, %v2715
        %v2717 = vsel %vm2633, %v2713, %v2716
        %v2718 = vrot.slane %v1124, 1
        %v2719 = vrot.slane %v1126, 2
        %v2720 = vor.u32 %v2718, %v2719
        %v2721 = vrot.slane %v1134, 1
        %v2722 = vrot.slane %v1130, 2
        %v2723 = vor.u32 %v2721, %v2722
        %v2724 = vsel %vm2633, %v2720, %v2723
        %v2725 = vrot.slane %v1137, 1
        %v2726 = vrot.slane %v1139, 2
        %v2727 = vor.u32 %v2725, %v2726
        %v2728 = vrot.slane %v1147, 1
        %v2729 = vrot.slane %v1143, 2
        %v2730 = vor.u32 %v2728, %v2729
        %v2731 = vsel %vm2633, %v2727, %v2730
        %v2732 = vrot.slane %v1150, 1
        %v2733 = vrot.slane %v1152, 2
        %v2734 = vor.u32 %v2732, %v2733
        %v2735 = vrot.slane %v1160, 1
        %v2736 = vrot.slane %v1156, 2
        %v2737 = vor.u32 %v2735, %v2736
        %v2738 = vsel %vm2633, %v2734, %v2737
        %v2739 = vrot.slane %v1163, 1
        %v2740 = vrot.slane %v1165, 2
        %v2741 = vor.u32 %v2739, %v2740
        %v2742 = vrot.slane %v1173, 1
        %v2743 = vrot.slane %v1169, 2
        %v2744 = vor.u32 %v2742, %v2743
        %v2745 = vsel %vm2633, %v2741, %v2744
        %v2746 = vrot.slane %v1176, 1
        %v2747 = vrot.slane %v1178, 2
        %v2748 = vor.u32 %v2746, %v2747
        %v2749 = vrot.slane %v1186, 1
        %v2750 = vrot.slane %v1182, 2
        %v2751 = vor.u32 %v2749, %v2750
        %v2752 = vsel %vm2633, %v2748, %v2751
        %v2753 = vrot.slane %v1189, 1
        %v2754 = vrot.slane %v1191, 2
        %v2755 = vor.u32 %v2753, %v2754
        %v2756 = vrot.slane %v1199, 1
        %v2757 = vrot.slane %v1195, 2
        %v2758 = vor.u32 %v2756, %v2757
        %v2759 = vsel %vm2633, %v2755, %v2758
        %v2760 = vrot.slane %v1202, 1
        %v2761 = vrot.slane %v1204, 2
        %v2762 = vor.u32 %v2760, %v2761
        %v2763 = vrot.slane %v1212, 1
        %v2764 = vrot.slane %v1208, 2
        %v2765 = vor.u32 %v2763, %v2764
        %v2766 = vsel %vm2633, %v2762, %v2765
        %v2767 = vrot.slane %v1215, 1
        %v2768 = vrot.slane %v1217, 2
        %v2769 = vor.u32 %v2767, %v2768
        %v2770 = vrot.slane %v1225, 1
        %v2771 = vrot.slane %v1221, 2
        %v2772 = vor.u32 %v2770, %v2771
        %v2773 = vsel %vm2633, %v2769, %v2772
        %v2774 = vrot.slane %v1228, 1
        %v2775 = vrot.slane %v1230, 2
        %v2776 = vor.u32 %v2774, %v2775
        %v2777 = vrot.slane %v1238, 1
        %v2778 = vrot.slane %v1234, 2
        %v2779 = vor.u32 %v2777, %v2778
        %v2780 = vsel %vm2633, %v2776, %v2779
        %v2781 = vrot.slane %v1241, 1
        %v2782 = vrot.slane %v1243, 2
        %v2783 = vor.u32 %v2781, %v2782
        %v2784 = vrot.slane %v1251, 1
        %v2785 = vrot.slane %v1247, 2
        %v2786 = vor.u32 %v2784, %v2785
        %v2787 = vsel %vm2633, %v2783, %v2786
        %v2788 = vrot.slane %v1254, 1
        %v2789 = vrot.slane %v1256, 2
        %v2790 = vor.u32 %v2788, %v2789
        %v2791 = vrot.slane %v1264, 1
        %v2792 = vrot.slane %v1260, 2
        %v2793 = vor.u32 %v2791, %v2792
        %v2794 = vsel %vm2633, %v2790, %v2793
        %v2795 = vrot.slane %v1267, 1
        %v2796 = vrot.slane %v1269, 2
        %v2797 = vor.u32 %v2795, %v2796
        %v2798 = vrot.slane %v1277, 1
        %v2799 = vrot.slane %v1273, 2
        %v2800 = vor.u32 %v2798, %v2799
        %v2801 = vsel %vm2633, %v2797, %v2800
        %v2802 = vrot.slane %v1280, 1
        %v2803 = vrot.slane %v1282, 2
        %v2804 = vor.u32 %v2802, %v2803
        %v2805 = vrot.slane %v1290, 1
        %v2806 = vrot.slane %v1286, 2
        %v2807 = vor.u32 %v2805, %v2806
        %v2808 = vsel %vm2633, %v2804, %v2807
        %v2809 = vrot.slane %v1293, 1
        %v2810 = vrot.slane %v1295, 2
        %v2811 = vor.u32 %v2809, %v2810
        %v2812 = vrot.slane %v1303, 1
        %v2813 = vrot.slane %v1299, 2
        %v2814 = vor.u32 %v2812, %v2813
        %v2815 = vsel %vm2633, %v2811, %v2814
        %v2816 = vrot.slane %v1306, 1
        %v2817 = vrot.slane %v1308, 2
        %v2818 = vor.u32 %v2816, %v2817
        %v2819 = vrot.slane %v1316, 1
        %v2820 = vrot.slane %v1312, 2
        %v2821 = vor.u32 %v2819, %v2820
        %v2822 = vsel %vm2633, %v2818, %v2821
        %v2823 = vrot.slane %v1319, 1
        %v2824 = vrot.slane %v1321, 2
        %v2825 = vor.u32 %v2823, %v2824
        %v2826 = vrot.slane %v1329, 1
        %v2827 = vrot.slane %v1325, 2
        %v2828 = vor.u32 %v2826, %v2827
        %v2829 = vsel %vm2633, %v2825, %v2828
        %v2830 = vrot.slane %v1332, 1
        %v2831 = vrot.slane %v1334, 2
        %v2832 = vor.u32 %v2830, %v2831
        %v2833 = vrot.slane %v1342, 1
        %v2834 = vrot.slane %v1338, 2
        %v2835 = vor.u32 %v2833, %v2834
        %v2836 = vsel %vm2633, %v2832, %v2835
        %v2837 = vrot.slane %v1345, 1
        %v2838 = vrot.slane %v1347, 2
        %v2839 = vor.u32 %v2837, %v2838
        %v2840 = vrot.slane %v1355, 1
        %v2841 = vrot.slane %v1351, 2
        %v2842 = vor.u32 %v2840, %v2841
        %v2843 = vsel %vm2633, %v2839, %v2842
        %v2844 = vrot.slane %v1358, 1
        %v2845 = vrot.slane %v1360, 2
        %v2846 = vor.u32 %v2844, %v2845
        %v2847 = vrot.slane %v1368, 1
        %v2848 = vrot.slane %v1364, 2
        %v2849 = vor.u32 %v2847, %v2848
        %v2850 = vsel %vm2633, %v2846, %v2849
        %v2851 = vrot.slane %v1371, 1
        %v2852 = vrot.slane %v1373, 2
        %v2853 = vor.u32 %v2851, %v2852
        %v2854 = vrot.slane %v1381, 1
        %v2855 = vrot.slane %v1377, 2
        %v2856 = vor.u32 %v2854, %v2855
        %v2857 = vsel %vm2633, %v2853, %v2856
        %2858 = vrot.lane.b32.xlu0 %v2640, 20
        %v2859 = vpop.permute.xlu0 %2858
        %2860 = vrot.lane.b32.xlu0 %v2639, 20
        %v2861 = vpop.permute.xlu0 %2860
        %2862 = vrot.lane.b32.xlu0 %v2647, 20
        %v2863 = vpop.permute.xlu0 %2862
        %2864 = vrot.lane.b32.xlu0 %v2646, 20
        %v2865 = vpop.permute.xlu0 %2864
        %2866 = vrot.lane.b32.xlu0 %v2654, 20
        %v2867 = vpop.permute.xlu0 %2866
        %2868 = vrot.lane.b32.xlu0 %v2653, 20
        %v2869 = vpop.permute.xlu0 %2868
        %2870 = vrot.lane.b32.xlu0 %v2661, 20
        %v2871 = vpop.permute.xlu0 %2870
        %2872 = vrot.lane.b32.xlu0 %v2660, 20
        %v2873 = vpop.permute.xlu0 %2872
        %2874 = vrot.lane.b32.xlu0 %v2668, 20
        %v2875 = vpop.permute.xlu0 %2874
        %2876 = vrot.lane.b32.xlu0 %v2667, 20
        %v2877 = vpop.permute.xlu0 %2876
        %2878 = vrot.lane.b32.xlu0 %v2675, 20
        %v2879 = vpop.permute.xlu0 %2878
        %2880 = vrot.lane.b32.xlu0 %v2674, 20
        %v2881 = vpop.permute.xlu0 %2880
        %2882 = vrot.lane.b32.xlu0 %v2682, 20
        %v2883 = vpop.permute.xlu0 %2882
        %2884 = vrot.lane.b32.xlu0 %v2681, 20
        %v2885 = vpop.permute.xlu0 %2884
        %2886 = vrot.lane.b32.xlu0 %v2689, 20
        %v2887 = vpop.permute.xlu0 %2886
        %2888 = vrot.lane.b32.xlu0 %v2688, 20
        %v2889 = vpop.permute.xlu0 %2888
        %2890 = vrot.lane.b32.xlu0 %v2696, 20
        %v2891 = vpop.permute.xlu0 %2890
        %2892 = vrot.lane.b32.xlu0 %v2695, 20
        %v2893 = vpop.permute.xlu0 %2892
        %2894 = vrot.lane.b32.xlu0 %v2703, 20
        %v2895 = vpop.permute.xlu0 %2894
        %2896 = vrot.lane.b32.xlu0 %v2702, 20
        %v2897 = vpop.permute.xlu0 %2896
        %2898 = vrot.lane.b32.xlu0 %v2710, 20
        %v2899 = vpop.permute.xlu0 %2898
        %2900 = vrot.lane.b32.xlu0 %v2709, 20
        %v2901 = vpop.permute.xlu0 %2900
        %2902 = vrot.lane.b32.xlu0 %v2717, 20
        %v2903 = vpop.permute.xlu0 %2902
        %2904 = vrot.lane.b32.xlu0 %v2716, 20
        %v2905 = vpop.permute.xlu0 %2904
        %2906 = vrot.lane.b32.xlu0 %v2724, 20
        %v2907 = vpop.permute.xlu0 %2906
        %2908 = vrot.lane.b32.xlu0 %v2723, 20
        %v2909 = vpop.permute.xlu0 %2908
        %2910 = vrot.lane.b32.xlu0 %v2731, 20
        %v2911 = vpop.permute.xlu0 %2910
        %2912 = vrot.lane.b32.xlu0 %v2730, 20
        %v2913 = vpop.permute.xlu0 %2912
        %2914 = vrot.lane.b32.xlu0 %v2738, 20
        %v2915 = vpop.permute.xlu0 %2914
        %2916 = vrot.lane.b32.xlu0 %v2737, 20
        %v2917 = vpop.permute.xlu0 %2916
        %2918 = vrot.lane.b32.xlu0 %v2745, 20
        %v2919 = vpop.permute.xlu0 %2918
        %2920 = vrot.lane.b32.xlu0 %v2744, 20
        %v2921 = vpop.permute.xlu0 %2920
        %2922 = vrot.lane.b32.xlu0 %v2752, 20
        %v2923 = vpop.permute.xlu0 %2922
        %2924 = vrot.lane.b32.xlu0 %v2751, 20
        %v2925 = vpop.permute.xlu0 %2924
        %2926 = vrot.lane.b32.xlu0 %v2759, 20
        %v2927 = vpop.permute.xlu0 %2926
        %2928 = vrot.lane.b32.xlu0 %v2758, 20
        %v2929 = vpop.permute.xlu0 %2928
        %2930 = vrot.lane.b32.xlu0 %v2766, 20
        %v2931 = vpop.permute.xlu0 %2930
        %2932 = vrot.lane.b32.xlu0 %v2765, 20
        %v2933 = vpop.permute.xlu0 %2932
        %2934 = vrot.lane.b32.xlu0 %v2773, 20
        %v2935 = vpop.permute.xlu0 %2934
        %2936 = vrot.lane.b32.xlu0 %v2772, 20
        %v2937 = vpop.permute.xlu0 %2936
        %2938 = vrot.lane.b32.xlu0 %v2780, 20
        %v2939 = vpop.permute.xlu0 %2938
        %2940 = vrot.lane.b32.xlu0 %v2779, 20
        %v2941 = vpop.permute.xlu0 %2940
        %2942 = vrot.lane.b32.xlu0 %v2787, 20
        %v2943 = vpop.permute.xlu0 %2942
        %2944 = vrot.lane.b32.xlu0 %v2786, 20
        %v2945 = vpop.permute.xlu0 %2944
        %2946 = vrot.lane.b32.xlu0 %v2794, 20
        %v2947 = vpop.permute.xlu0 %2946
        %2948 = vrot.lane.b32.xlu0 %v2793, 20
        %v2949 = vpop.permute.xlu0 %2948
        %2950 = vrot.lane.b32.xlu0 %v2801, 20
        %v2951 = vpop.permute.xlu0 %2950
        %2952 = vrot.lane.b32.xlu0 %v2800, 20
        %v2953 = vpop.permute.xlu0 %2952
        %2954 = vrot.lane.b32.xlu0 %v2808, 20
        %v2955 = vpop.permute.xlu0 %2954
        %2956 = vrot.lane.b32.xlu0 %v2807, 20
        %v2957 = vpop.permute.xlu0 %2956
        %2958 = vrot.lane.b32.xlu0 %v2815, 20
        %v2959 = vpop.permute.xlu0 %2958
        %2960 = vrot.lane.b32.xlu0 %v2814, 20
        %v2961 = vpop.permute.xlu0 %2960
        %2962 = vrot.lane.b32.xlu0 %v2822, 20
        %v2963 = vpop.permute.xlu0 %2962
        %2964 = vrot.lane.b32.xlu0 %v2821, 20
        %v2965 = vpop.permute.xlu0 %2964
        %2966 = vrot.lane.b32.xlu0 %v2829, 20
        %v2967 = vpop.permute.xlu0 %2966
        %2968 = vrot.lane.b32.xlu0 %v2828, 20
        %v2969 = vpop.permute.xlu0 %2968
        %2970 = vrot.lane.b32.xlu0 %v2836, 20
        %v2971 = vpop.permute.xlu0 %2970
        %2972 = vrot.lane.b32.xlu0 %v2835, 20
        %v2973 = vpop.permute.xlu0 %2972
        %2974 = vrot.lane.b32.xlu0 %v2843, 20
        %v2975 = vpop.permute.xlu0 %2974
        %2976 = vrot.lane.b32.xlu0 %v2842, 20
        %v2977 = vpop.permute.xlu0 %2976
        %2978 = vrot.lane.b32.xlu0 %v2850, 20
        %v2979 = vpop.permute.xlu0 %2978
        %2980 = vrot.lane.b32.xlu0 %v2849, 20
        %v2981 = vpop.permute.xlu0 %2980
        %2982 = vrot.lane.b32.xlu0 %v2857, 20
        %v2983 = vpop.permute.xlu0 %2982
        %2984 = vrot.lane.b32.xlu0 %v2856, 20
        %v2985 = vpop.permute.xlu0 %2984
        %v2986 = vrot.slane %v1512, 1
        %v2987 = vrot.slane %v1514, 2
        %v2988 = vor.u32 %v2986, %v2987
        %v2989 = vrot.slane %v1522, 1
        %v2990 = vrot.slane %v1518, 2
        %v2991 = vor.u32 %v2989, %v2990
        %v2992 = vsel %vm2633, %v2988, %v2991
        %v2993 = vrot.slane %v1525, 1
        %v2994 = vrot.slane %v1527, 2
        %v2995 = vor.u32 %v2993, %v2994
        %v2996 = vrot.slane %v1535, 1
        %v2997 = vrot.slane %v1531, 2
        %v2998 = vor.u32 %v2996, %v2997
        %v2999 = vsel %vm2633, %v2995, %v2998
        %v3000 = vrot.slane %v1538, 1
        %v3001 = vrot.slane %v1540, 2
        %v3002 = vor.u32 %v3000, %v3001
        %v3003 = vrot.slane %v1548, 1
        %v3004 = vrot.slane %v1544, 2
        %v3005 = vor.u32 %v3003, %v3004
        %v3006 = vsel %vm2633, %v3002, %v3005
        %v3007 = vrot.slane %v1551, 1
        %v3008 = vrot.slane %v1553, 2
        %v3009 = vor.u32 %v3007, %v3008
        %v3010 = vrot.slane %v1561, 1
        %v3011 = vrot.slane %v1557, 2
        %v3012 = vor.u32 %v3010, %v3011
        %v3013 = vsel %vm2633, %v3009, %v3012
        %v3014 = vrot.slane %v1564, 1
        %v3015 = vrot.slane %v1566, 2
        %v3016 = vor.u32 %v3014, %v3015
        %v3017 = vrot.slane %v1574, 1
        %v3018 = vrot.slane %v1570, 2
        %v3019 = vor.u32 %v3017, %v3018
        %v3020 = vsel %vm2633, %v3016, %v3019
        %v3021 = vrot.slane %v1577, 1
        %v3022 = vrot.slane %v1579, 2
        %v3023 = vor.u32 %v3021, %v3022
        %v3024 = vrot.slane %v1587, 1
        %v3025 = vrot.slane %v1583, 2
        %v3026 = vor.u32 %v3024, %v3025
        %v3027 = vsel %vm2633, %v3023, %v3026
        %v3028 = vrot.slane %v1590, 1
        %v3029 = vrot.slane %v1592, 2
        %v3030 = vor.u32 %v3028, %v3029
        %v3031 = vrot.slane %v1600, 1
        %v3032 = vrot.slane %v1596, 2
        %v3033 = vor.u32 %v3031, %v3032
        %v3034 = vsel %vm2633, %v3030, %v3033
        %v3035 = vrot.slane %v1603, 1
        %v3036 = vrot.slane %v1605, 2
        %v3037 = vor.u32 %v3035, %v3036
        %v3038 = vrot.slane %v1613, 1
        %v3039 = vrot.slane %v1609, 2
        %v3040 = vor.u32 %v3038, %v3039
        %v3041 = vsel %vm2633, %v3037, %v3040
        %v3042 = vrot.slane %v1616, 1
        %v3043 = vrot.slane %v1618, 2
        %v3044 = vor.u32 %v3042, %v3043
        %v3045 = vrot.slane %v1626, 1
        %v3046 = vrot.slane %v1622, 2
        %v3047 = vor.u32 %v3045, %v3046
        %v3048 = vsel %vm2633, %v3044, %v3047
        %v3049 = vrot.slane %v1629, 1
        %v3050 = vrot.slane %v1631, 2
        %v3051 = vor.u32 %v3049, %v3050
        %v3052 = vrot.slane %v1639, 1
        %v3053 = vrot.slane %v1635, 2
        %v3054 = vor.u32 %v3052, %v3053
        %v3055 = vsel %vm2633, %v3051, %v3054
        %v3056 = vrot.slane %v1642, 1
        %v3057 = vrot.slane %v1644, 2
        %v3058 = vor.u32 %v3056, %v3057
        %v3059 = vrot.slane %v1652, 1
        %v3060 = vrot.slane %v1648, 2
        %v3061 = vor.u32 %v3059, %v3060
        %v3062 = vsel %vm2633, %v3058, %v3061
        %v3063 = vrot.slane %v1655, 1
        %v3064 = vrot.slane %v1657, 2
        %v3065 = vor.u32 %v3063, %v3064
        %v3066 = vrot.slane %v1665, 1
        %v3067 = vrot.slane %v1661, 2
        %v3068 = vor.u32 %v3066, %v3067
        %v3069 = vsel %vm2633, %v3065, %v3068
        %v3070 = vrot.slane %v1668, 1
        %v3071 = vrot.slane %v1670, 2
        %v3072 = vor.u32 %v3070, %v3071
        %v3073 = vrot.slane %v1678, 1
        %v3074 = vrot.slane %v1674, 2
        %v3075 = vor.u32 %v3073, %v3074
        %v3076 = vsel %vm2633, %v3072, %v3075
        %v3077 = vrot.slane %v1681, 1
        %v3078 = vrot.slane %v1683, 2
        %v3079 = vor.u32 %v3077, %v3078
        %v3080 = vrot.slane %v1691, 1
        %v3081 = vrot.slane %v1687, 2
        %v3082 = vor.u32 %v3080, %v3081
        %v3083 = vsel %vm2633, %v3079, %v3082
        %v3084 = vrot.slane %v1694, 1
        %v3085 = vrot.slane %v1696, 2
        %v3086 = vor.u32 %v3084, %v3085
        %v3087 = vrot.slane %v1704, 1
        %v3088 = vrot.slane %v1700, 2
        %v3089 = vor.u32 %v3087, %v3088
        %v3090 = vsel %vm2633, %v3086, %v3089
        %v3091 = vrot.slane %v1707, 1
        %v3092 = vrot.slane %v1709, 2
        %v3093 = vor.u32 %v3091, %v3092
        %v3094 = vrot.slane %v1717, 1
        %v3095 = vrot.slane %v1713, 2
        %v3096 = vor.u32 %v3094, %v3095
        %v3097 = vsel %vm2633, %v3093, %v3096
        %v3098 = vrot.slane %v1720, 1
        %v3099 = vrot.slane %v1722, 2
        %v3100 = vor.u32 %v3098, %v3099
        %v3101 = vrot.slane %v1730, 1
        %v3102 = vrot.slane %v1726, 2
        %v3103 = vor.u32 %v3101, %v3102
        %v3104 = vsel %vm2633, %v3100, %v3103
        %v3105 = vrot.slane %v1733, 1
        %v3106 = vrot.slane %v1735, 2
        %v3107 = vor.u32 %v3105, %v3106
        %v3108 = vrot.slane %v1743, 1
        %v3109 = vrot.slane %v1739, 2
        %v3110 = vor.u32 %v3108, %v3109
        %v3111 = vsel %vm2633, %v3107, %v3110
        %v3112 = vrot.slane %v1746, 1
        %v3113 = vrot.slane %v1748, 2
        %v3114 = vor.u32 %v3112, %v3113
        %v3115 = vrot.slane %v1756, 1
        %v3116 = vrot.slane %v1752, 2
        %v3117 = vor.u32 %v3115, %v3116
        %v3118 = vsel %vm2633, %v3114, %v3117
        %v3119 = vrot.slane %v1759, 1
        %v3120 = vrot.slane %v1761, 2
        %v3121 = vor.u32 %v3119, %v3120
        %v3122 = vrot.slane %v1769, 1
        %v3123 = vrot.slane %v1765, 2
        %v3124 = vor.u32 %v3122, %v3123
        %v3125 = vsel %vm2633, %v3121, %v3124
        %v3126 = vrot.slane %v1772, 1
        %v3127 = vrot.slane %v1774, 2
        %v3128 = vor.u32 %v3126, %v3127
        %v3129 = vrot.slane %v1782, 1
        %v3130 = vrot.slane %v1778, 2
        %v3131 = vor.u32 %v3129, %v3130
        %v3132 = vsel %vm2633, %v3128, %v3131
        %v3133 = vrot.slane %v1785, 1
        %v3134 = vrot.slane %v1787, 2
        %v3135 = vor.u32 %v3133, %v3134
        %v3136 = vrot.slane %v1795, 1
        %v3137 = vrot.slane %v1791, 2
        %v3138 = vor.u32 %v3136, %v3137
        %v3139 = vsel %vm2633, %v3135, %v3138
        %v3140 = vrot.slane %v1798, 1
        %v3141 = vrot.slane %v1800, 2
        %v3142 = vor.u32 %v3140, %v3141
        %v3143 = vrot.slane %v1808, 1
        %v3144 = vrot.slane %v1804, 2
        %v3145 = vor.u32 %v3143, %v3144
        %v3146 = vsel %vm2633, %v3142, %v3145
        %v3147 = vrot.slane %v1811, 1
        %v3148 = vrot.slane %v1813, 2
        %v3149 = vor.u32 %v3147, %v3148
        %v3150 = vrot.slane %v1821, 1
        %v3151 = vrot.slane %v1817, 2
        %v3152 = vor.u32 %v3150, %v3151
        %v3153 = vsel %vm2633, %v3149, %v3152
        %v3154 = vrot.slane %v1824, 1
        %v3155 = vrot.slane %v1826, 2
        %v3156 = vor.u32 %v3154, %v3155
        %v3157 = vrot.slane %v1834, 1
        %v3158 = vrot.slane %v1830, 2
        %v3159 = vor.u32 %v3157, %v3158
        %v3160 = vsel %vm2633, %v3156, %v3159
        %v3161 = vrot.slane %v1837, 1
        %v3162 = vrot.slane %v1839, 2
        %v3163 = vor.u32 %v3161, %v3162
        %v3164 = vrot.slane %v1847, 1
        %v3165 = vrot.slane %v1843, 2
        %v3166 = vor.u32 %v3164, %v3165
        %v3167 = vsel %vm2633, %v3163, %v3166
        %v3168 = vrot.slane %v1850, 1
        %v3169 = vrot.slane %v1852, 2
        %v3170 = vor.u32 %v3168, %v3169
        %v3171 = vrot.slane %v1860, 1
        %v3172 = vrot.slane %v1856, 2
        %v3173 = vor.u32 %v3171, %v3172
        %v3174 = vsel %vm2633, %v3170, %v3173
        %v3175 = vrot.slane %v1863, 1
        %v3176 = vrot.slane %v1865, 2
        %v3177 = vor.u32 %v3175, %v3176
        %v3178 = vrot.slane %v1873, 1
        %v3179 = vrot.slane %v1869, 2
        %v3180 = vor.u32 %v3178, %v3179
        %v3181 = vsel %vm2633, %v3177, %v3180
        %v3182 = vrot.slane %v1876, 1
        %v3183 = vrot.slane %v1878, 2
        %v3184 = vor.u32 %v3182, %v3183
        %v3185 = vrot.slane %v1886, 1
        %v3186 = vrot.slane %v1882, 2
        %v3187 = vor.u32 %v3185, %v3186
        %v3188 = vsel %vm2633, %v3184, %v3187
        %v3189 = vrot.slane %v1889, 1
        %v3190 = vrot.slane %v1891, 2
        %v3191 = vor.u32 %v3189, %v3190
        %v3192 = vrot.slane %v1899, 1
        %v3193 = vrot.slane %v1895, 2
        %v3194 = vor.u32 %v3192, %v3193
        %v3195 = vsel %vm2633, %v3191, %v3194
        %v3196 = vrot.slane %v1902, 1
        %v3197 = vrot.slane %v1904, 2
        %v3198 = vor.u32 %v3196, %v3197
        %v3199 = vrot.slane %v1912, 1
        %v3200 = vrot.slane %v1908, 2
        %v3201 = vor.u32 %v3199, %v3200
        %v3202 = vsel %vm2633, %v3198, %v3201
        %v3203 = vrot.slane %v1915, 1
        %v3204 = vrot.slane %v1917, 2
        %v3205 = vor.u32 %v3203, %v3204
        %v3206 = vrot.slane %v1925, 1
        %v3207 = vrot.slane %v1921, 2
        %v3208 = vor.u32 %v3206, %v3207
        %v3209 = vsel %vm2633, %v3205, %v3208
        %3210 = vrot.lane.b32.xlu0 %v2992, 24
        %v3211 = vpop.permute.xlu0 %3210
        %3212 = vrot.lane.b32.xlu0 %v2991, 24
        %v3213 = vpop.permute.xlu0 %3212
        %3214 = vrot.lane.b32.xlu0 %v2999, 24
        %v3215 = vpop.permute.xlu0 %3214
        %3216 = vrot.lane.b32.xlu0 %v2998, 24
        %v3217 = vpop.permute.xlu0 %3216
        %3218 = vrot.lane.b32.xlu0 %v3006, 24
        %v3219 = vpop.permute.xlu0 %3218
        %3220 = vrot.lane.b32.xlu0 %v3005, 24
        %v3221 = vpop.permute.xlu0 %3220
        %3222 = vrot.lane.b32.xlu0 %v3013, 24
        %v3223 = vpop.permute.xlu0 %3222
        %3224 = vrot.lane.b32.xlu0 %v3012, 24
        %v3225 = vpop.permute.xlu0 %3224
        %3226 = vrot.lane.b32.xlu0 %v3020, 24
        %v3227 = vpop.permute.xlu0 %3226
        %3228 = vrot.lane.b32.xlu0 %v3019, 24
        %v3229 = vpop.permute.xlu0 %3228
        %3230 = vrot.lane.b32.xlu0 %v3027, 24
        %v3231 = vpop.permute.xlu0 %3230
        %3232 = vrot.lane.b32.xlu0 %v3026, 24
        %v3233 = vpop.permute.xlu0 %3232
        %3234 = vrot.lane.b32.xlu0 %v3034, 24
        %v3235 = vpop.permute.xlu0 %3234
        %3236 = vrot.lane.b32.xlu0 %v3033, 24
        %v3237 = vpop.permute.xlu0 %3236
        %3238 = vrot.lane.b32.xlu0 %v3041, 24
        %v3239 = vpop.permute.xlu0 %3238
        %3240 = vrot.lane.b32.xlu0 %v3040, 24
        %v3241 = vpop.permute.xlu0 %3240
        %3242 = vrot.lane.b32.xlu0 %v3048, 24
        %v3243 = vpop.permute.xlu0 %3242
        %3244 = vrot.lane.b32.xlu0 %v3047, 24
        %v3245 = vpop.permute.xlu0 %3244
        %3246 = vrot.lane.b32.xlu0 %v3055, 24
        %v3247 = vpop.permute.xlu0 %3246
        %3248 = vrot.lane.b32.xlu0 %v3054, 24
        %v3249 = vpop.permute.xlu0 %3248
        %3250 = vrot.lane.b32.xlu0 %v3062, 24
        %v3251 = vpop.permute.xlu0 %3250
        %3252 = vrot.lane.b32.xlu0 %v3061, 24
        %v3253 = vpop.permute.xlu0 %3252
        %3254 = vrot.lane.b32.xlu0 %v3069, 24
        %v3255 = vpop.permute.xlu0 %3254
        %3256 = vrot.lane.b32.xlu0 %v3068, 24
        %v3257 = vpop.permute.xlu0 %3256
        %3258 = vrot.lane.b32.xlu0 %v3076, 24
        %v3259 = vpop.permute.xlu0 %3258
        %3260 = vrot.lane.b32.xlu0 %v3075, 24
        %v3261 = vpop.permute.xlu0 %3260
        %3262 = vrot.lane.b32.xlu0 %v3083, 24
        %v3263 = vpop.permute.xlu0 %3262
        %3264 = vrot.lane.b32.xlu0 %v3082, 24
        %v3265 = vpop.permute.xlu0 %3264
        %3266 = vrot.lane.b32.xlu0 %v3090, 24
        %v3267 = vpop.permute.xlu0 %3266
        %3268 = vrot.lane.b32.xlu0 %v3089, 24
        %v3269 = vpop.permute.xlu0 %3268
        %3270 = vrot.lane.b32.xlu0 %v3097, 24
        %v3271 = vpop.permute.xlu0 %3270
        %3272 = vrot.lane.b32.xlu0 %v3096, 24
        %v3273 = vpop.permute.xlu0 %3272
        %3274 = vrot.lane.b32.xlu0 %v3104, 24
        %v3275 = vpop.permute.xlu0 %3274
        %3276 = vrot.lane.b32.xlu0 %v3103, 24
        %v3277 = vpop.permute.xlu0 %3276
        %3278 = vrot.lane.b32.xlu0 %v3111, 24
        %v3279 = vpop.permute.xlu0 %3278
        %3280 = vrot.lane.b32.xlu0 %v3110, 24
        %v3281 = vpop.permute.xlu0 %3280
        %3282 = vrot.lane.b32.xlu0 %v3118, 24
        %v3283 = vpop.permute.xlu0 %3282
        %3284 = vrot.lane.b32.xlu0 %v3117, 24
        %v3285 = vpop.permute.xlu0 %3284
        %3286 = vrot.lane.b32.xlu0 %v3125, 24
        %v3287 = vpop.permute.xlu0 %3286
        %3288 = vrot.lane.b32.xlu0 %v3124, 24
        %v3289 = vpop.permute.xlu0 %3288
        %3290 = vrot.lane.b32.xlu0 %v3132, 24
        %v3291 = vpop.permute.xlu0 %3290
        %3292 = vrot.lane.b32.xlu0 %v3131, 24
        %v3293 = vpop.permute.xlu0 %3292
        %3294 = vrot.lane.b32.xlu0 %v3139, 24
        %v3295 = vpop.permute.xlu0 %3294
        %3296 = vrot.lane.b32.xlu0 %v3138, 24
        %v3297 = vpop.permute.xlu0 %3296
        %3298 = vrot.lane.b32.xlu0 %v3146, 24
        %v3299 = vpop.permute.xlu0 %3298
        %3300 = vrot.lane.b32.xlu0 %v3145, 24
        %v3301 = vpop.permute.xlu0 %3300
        %3302 = vrot.lane.b32.xlu0 %v3153, 24
        %v3303 = vpop.permute.xlu0 %3302
        %3304 = vrot.lane.b32.xlu0 %v3152, 24
        %v3305 = vpop.permute.xlu0 %3304
        %3306 = vrot.lane.b32.xlu0 %v3160, 24
        %v3307 = vpop.permute.xlu0 %3306
        %3308 = vrot.lane.b32.xlu0 %v3159, 24
        %v3309 = vpop.permute.xlu0 %3308
        %3310 = vrot.lane.b32.xlu0 %v3167, 24
        %v3311 = vpop.permute.xlu0 %3310
        %3312 = vrot.lane.b32.xlu0 %v3166, 24
        %v3313 = vpop.permute.xlu0 %3312
        %3314 = vrot.lane.b32.xlu0 %v3174, 24
        %v3315 = vpop.permute.xlu0 %3314
        %3316 = vrot.lane.b32.xlu0 %v3173, 24
        %v3317 = vpop.permute.xlu0 %3316
        %3318 = vrot.lane.b32.xlu0 %v3181, 24
        %v3319 = vpop.permute.xlu0 %3318
        %3320 = vrot.lane.b32.xlu0 %v3180, 24
        %v3321 = vpop.permute.xlu0 %3320
        %3322 = vrot.lane.b32.xlu0 %v3188, 24
        %v3323 = vpop.permute.xlu0 %3322
        %3324 = vrot.lane.b32.xlu0 %v3187, 24
        %v3325 = vpop.permute.xlu0 %3324
        %3326 = vrot.lane.b32.xlu0 %v3195, 24
        %v3327 = vpop.permute.xlu0 %3326
        %3328 = vrot.lane.b32.xlu0 %v3194, 24
        %v3329 = vpop.permute.xlu0 %3328
        %3330 = vrot.lane.b32.xlu0 %v3202, 24
        %v3331 = vpop.permute.xlu0 %3330
        %3332 = vrot.lane.b32.xlu0 %v3201, 24
        %v3333 = vpop.permute.xlu0 %3332
        %3334 = vrot.lane.b32.xlu0 %v3209, 24
        %v3335 = vpop.permute.xlu0 %3334
        %3336 = vrot.lane.b32.xlu0 %v3208, 24
        %v3337 = vpop.permute.xlu0 %3336
        %vm3338 = vcmask 31744
        %v3340 = vsel %vm3338, %v776, %v1385
        %v3342 = vsel %vm3338, %v904, %v1387
        %v3344 = vsel %vm3338, %v778, %v1389
        %v3346 = vsel %vm3338, %v906, %v1391
        %v3348 = vsel %vm3338, %v780, %v1393
        %v3350 = vsel %vm3338, %v908, %v1395
        %v3352 = vsel %vm3338, %v782, %v1397
        %v3354 = vsel %vm3338, %v910, %v1399
        %v3356 = vsel %vm3338, %v784, %v1401
        %v3358 = vsel %vm3338, %v912, %v1403
        %v3360 = vsel %vm3338, %v786, %v1405
        %v3362 = vsel %vm3338, %v914, %v1407
        %v3364 = vsel %vm3338, %v788, %v1409
        %v3366 = vsel %vm3338, %v916, %v1411
        %v3368 = vsel %vm3338, %v790, %v1413
        %v3370 = vsel %vm3338, %v918, %v1415
        %v3372 = vsel %vm3338, %v792, %v1417
        %v3374 = vsel %vm3338, %v920, %v1419
        %v3376 = vsel %vm3338, %v794, %v1421
        %v3378 = vsel %vm3338, %v922, %v1423
        %v3380 = vsel %vm3338, %v796, %v1425
        %v3382 = vsel %vm3338, %v924, %v1427
        %v3384 = vsel %vm3338, %v798, %v1429
        %v3386 = vsel %vm3338, %v926, %v1431
        %v3388 = vsel %vm3338, %v800, %v1433
        %v3390 = vsel %vm3338, %v928, %v1435
        %v3392 = vsel %vm3338, %v802, %v1437
        %v3394 = vsel %vm3338, %v930, %v1439
        %v3396 = vsel %vm3338, %v804, %v1441
        %v3398 = vsel %vm3338, %v932, %v1443
        %v3400 = vsel %vm3338, %v806, %v1445
        %v3402 = vsel %vm3338, %v934, %v1447
        %v3404 = vsel %vm3338, %v808, %v1449
        %v3406 = vsel %vm3338, %v936, %v1451
        %v3408 = vsel %vm3338, %v810, %v1453
        %v3410 = vsel %vm3338, %v938, %v1455
        %v3412 = vsel %vm3338, %v812, %v1457
        %v3414 = vsel %vm3338, %v940, %v1459
        %v3416 = vsel %vm3338, %v814, %v1461
        %v3418 = vsel %vm3338, %v942, %v1463
        %v3420 = vsel %vm3338, %v816, %v1465
        %v3422 = vsel %vm3338, %v944, %v1467
        %v3424 = vsel %vm3338, %v818, %v1469
        %v3426 = vsel %vm3338, %v946, %v1471
        %v3428 = vsel %vm3338, %v820, %v1473
        %v3430 = vsel %vm3338, %v948, %v1475
        %v3432 = vsel %vm3338, %v822, %v1477
        %v3434 = vsel %vm3338, %v950, %v1479
        %v3436 = vsel %vm3338, %v824, %v1481
        %v3438 = vsel %vm3338, %v952, %v1483
        %v3440 = vsel %vm3338, %v826, %v1485
        %v3442 = vsel %vm3338, %v954, %v1487
        %v3444 = vsel %vm3338, %v828, %v1489
        %v3446 = vsel %vm3338, %v956, %v1491
        %v3448 = vsel %vm3338, %v830, %v1493
        %v3450 = vsel %vm3338, %v958, %v1495
        %v3452 = vsel %vm3338, %v832, %v1497
        %v3454 = vsel %vm3338, %v960, %v1499
        %v3456 = vsel %vm3338, %v834, %v1501
        %v3458 = vsel %vm3338, %v962, %v1503
        %v3460 = vsel %vm3338, %v836, %v1505
        %v3462 = vsel %vm3338, %v964, %v1507
        %v3464 = vsel %vm3338, %v838, %v1509
        %v3466 = vsel %vm3338, %v966, %v1511
        %vm3467 = vcmask 64512
        %v3469 = vsel %vm3467, %v3340, %v1929
        %v3471 = vsel %vm3467, %v3342, %v1931
        %v3473 = vsel %vm3467, %v3344, %v1933
        %v3475 = vsel %vm3467, %v3346, %v1935
        %v3477 = vsel %vm3467, %v3348, %v1937
        %v3479 = vsel %vm3467, %v3350, %v1939
        %v3481 = vsel %vm3467, %v3352, %v1941
        %v3483 = vsel %vm3467, %v3354, %v1943
        %v3485 = vsel %vm3467, %v3356, %v1945
        %v3487 = vsel %vm3467, %v3358, %v1947
        %v3489 = vsel %vm3467, %v3360, %v1949
        %v3491 = vsel %vm3467, %v3362, %v1951
        %v3493 = vsel %vm3467, %v3364, %v1953
        %v3495 = vsel %vm3467, %v3366, %v1955
        %v3497 = vsel %vm3467, %v3368, %v1957
        %v3499 = vsel %vm3467, %v3370, %v1959
        %v3501 = vsel %vm3467, %v3372, %v1961
        %v3503 = vsel %vm3467, %v3374, %v1963
        %v3505 = vsel %vm3467, %v3376, %v1965
        %v3507 = vsel %vm3467, %v3378, %v1967
        %v3509 = vsel %vm3467, %v3380, %v1969
        %v3511 = vsel %vm3467, %v3382, %v1971
        %v3513 = vsel %vm3467, %v3384, %v1973
        %v3515 = vsel %vm3467, %v3386, %v1975
        %v3517 = vsel %vm3467, %v3388, %v1977
        %v3519 = vsel %vm3467, %v3390, %v1979
        %v3521 = vsel %vm3467, %v3392, %v1981
        %v3523 = vsel %vm3467, %v3394, %v1983
        %v3525 = vsel %vm3467, %v3396, %v1985
        %v3527 = vsel %vm3467, %v3398, %v1987
        %v3529 = vsel %vm3467, %v3400, %v1989
        %v3531 = vsel %vm3467, %v3402, %v1991
        %v3533 = vsel %vm3467, %v3404, %v1993
        %v3535 = vsel %vm3467, %v3406, %v1995
        %v3537 = vsel %vm3467, %v3408, %v1997
        %v3539 = vsel %vm3467, %v3410, %v1999
        %v3541 = vsel %vm3467, %v3412, %v2001
        %v3543 = vsel %vm3467, %v3414, %v2003
        %v3545 = vsel %vm3467, %v3416, %v2005
        %v3547 = vsel %vm3467, %v3418, %v2007
        %v3549 = vsel %vm3467, %v3420, %v2009
        %v3551 = vsel %vm3467, %v3422, %v2011
        %v3553 = vsel %vm3467, %v3424, %v2013
        %v3555 = vsel %vm3467, %v3426, %v2015
        %v3557 = vsel %vm3467, %v3428, %v2017
        %v3559 = vsel %vm3467, %v3430, %v2019
        %v3561 = vsel %vm3467, %v3432, %v2021
        %v3563 = vsel %vm3467, %v3434, %v2023
        %v3565 = vsel %vm3467, %v3436, %v2025
        %v3567 = vsel %vm3467, %v3438, %v2027
        %v3569 = vsel %vm3467, %v3440, %v2029
        %v3571 = vsel %vm3467, %v3442, %v2031
        %v3573 = vsel %vm3467, %v3444, %v2033
        %v3575 = vsel %vm3467, %v3446, %v2035
        %v3577 = vsel %vm3467, %v3448, %v2037
        %v3579 = vsel %vm3467, %v3450, %v2039
        %v3581 = vsel %vm3467, %v3452, %v2041
        %v3583 = vsel %vm3467, %v3454, %v2043
        %v3585 = vsel %vm3467, %v3456, %v2045
        %v3587 = vsel %vm3467, %v3458, %v2047
        %v3589 = vsel %vm3467, %v3460, %v2049
        %v3591 = vsel %vm3467, %v3462, %v2051
        %v3593 = vsel %vm3467, %v3464, %v2053
        %v3595 = vsel %vm3467, %v3466, %v2055
        %vm3596 = vcmask 97280
        %v3598 = vsel %vm3596, %v3469, %v2218
        %v3600 = vsel %vm3596, %v3471, %v2220
        %v3602 = vsel %vm3596, %v3473, %v2222
        %v3604 = vsel %vm3596, %v3475, %v2224
        %v3606 = vsel %vm3596, %v3477, %v2226
        %v3608 = vsel %vm3596, %v3479, %v2228
        %v3610 = vsel %vm3596, %v3481, %v2230
        %v3612 = vsel %vm3596, %v3483, %v2232
        %v3614 = vsel %vm3596, %v3485, %v2234
        %v3616 = vsel %vm3596, %v3487, %v2236
        %v3618 = vsel %vm3596, %v3489, %v2238
        %v3620 = vsel %vm3596, %v3491, %v2240
        %v3622 = vsel %vm3596, %v3493, %v2242
        %v3624 = vsel %vm3596, %v3495, %v2244
        %v3626 = vsel %vm3596, %v3497, %v2246
        %v3628 = vsel %vm3596, %v3499, %v2248
        %v3630 = vsel %vm3596, %v3501, %v2250
        %v3632 = vsel %vm3596, %v3503, %v2252
        %v3634 = vsel %vm3596, %v3505, %v2254
        %v3636 = vsel %vm3596, %v3507, %v2256
        %v3638 = vsel %vm3596, %v3509, %v2258
        %v3640 = vsel %vm3596, %v3511, %v2260
        %v3642 = vsel %vm3596, %v3513, %v2262
        %v3644 = vsel %vm3596, %v3515, %v2264
        %v3646 = vsel %vm3596, %v3517, %v2266
        %v3648 = vsel %vm3596, %v3519, %v2268
        %v3650 = vsel %vm3596, %v3521, %v2270
        %v3652 = vsel %vm3596, %v3523, %v2272
        %v3654 = vsel %vm3596, %v3525, %v2274
        %v3656 = vsel %vm3596, %v3527, %v2276
        %v3658 = vsel %vm3596, %v3529, %v2278
        %v3660 = vsel %vm3596, %v3531, %v2280
        %v3662 = vsel %vm3596, %v3533, %v2282
        %v3664 = vsel %vm3596, %v3535, %v2284
        %v3666 = vsel %vm3596, %v3537, %v2286
        %v3668 = vsel %vm3596, %v3539, %v2288
        %v3670 = vsel %vm3596, %v3541, %v2290
        %v3672 = vsel %vm3596, %v3543, %v2292
        %v3674 = vsel %vm3596, %v3545, %v2294
        %v3676 = vsel %vm3596, %v3547, %v2296
        %v3678 = vsel %vm3596, %v3549, %v2298
        %v3680 = vsel %vm3596, %v3551, %v2300
        %v3682 = vsel %vm3596, %v3553, %v2302
        %v3684 = vsel %vm3596, %v3555, %v2304
        %v3686 = vsel %vm3596, %v3557, %v2306
        %v3688 = vsel %vm3596, %v3559, %v2308
        %v3690 = vsel %vm3596, %v3561, %v2310
        %v3692 = vsel %vm3596, %v3563, %v2312
        %v3694 = vsel %vm3596, %v3565, %v2314
        %v3696 = vsel %vm3596, %v3567, %v2316
        %v3698 = vsel %vm3596, %v3569, %v2318
        %v3700 = vsel %vm3596, %v3571, %v2320
        %v3702 = vsel %vm3596, %v3573, %v2322
        %v3704 = vsel %vm3596, %v3575, %v2324
        %v3706 = vsel %vm3596, %v3577, %v2326
        %v3708 = vsel %vm3596, %v3579, %v2328
        %v3710 = vsel %vm3596, %v3581, %v2330
        %v3712 = vsel %vm3596, %v3583, %v2332
        %v3714 = vsel %vm3596, %v3585, %v2334
        %v3716 = vsel %vm3596, %v3587, %v2336
        %v3718 = vsel %vm3596, %v3589, %v2338
        %v3720 = vsel %vm3596, %v3591, %v2340
        %v3722 = vsel %vm3596, %v3593, %v2342
        %v3724 = vsel %vm3596, %v3595, %v2344
        %vm3725 = vcmask 130048
        %v3727 = vsel %vm3725, %v3598, %v2506
        %v3729 = vsel %vm3725, %v3600, %v2508
        %v3731 = vsel %vm3725, %v3602, %v2510
        %v3733 = vsel %vm3725, %v3604, %v2512
        %v3735 = vsel %vm3725, %v3606, %v2514
        %v3737 = vsel %vm3725, %v3608, %v2516
        %v3739 = vsel %vm3725, %v3610, %v2518
        %v3741 = vsel %vm3725, %v3612, %v2520
        %v3743 = vsel %vm3725, %v3614, %v2522
        %v3745 = vsel %vm3725, %v3616, %v2524
        %v3747 = vsel %vm3725, %v3618, %v2526
        %v3749 = vsel %vm3725, %v3620, %v2528
        %v3751 = vsel %vm3725, %v3622, %v2530
        %v3753 = vsel %vm3725, %v3624, %v2532
        %v3755 = vsel %vm3725, %v3626, %v2534
        %v3757 = vsel %vm3725, %v3628, %v2536
        %v3759 = vsel %vm3725, %v3630, %v2538
        %v3761 = vsel %vm3725, %v3632, %v2540
        %v3763 = vsel %vm3725, %v3634, %v2542
        %v3765 = vsel %vm3725, %v3636, %v2544
        %v3767 = vsel %vm3725, %v3638, %v2546
        %v3769 = vsel %vm3725, %v3640, %v2548
        %v3771 = vsel %vm3725, %v3642, %v2550
        %v3773 = vsel %vm3725, %v3644, %v2552
        %v3775 = vsel %vm3725, %v3646, %v2554
        %v3777 = vsel %vm3725, %v3648, %v2556
        %v3779 = vsel %vm3725, %v3650, %v2558
        %v3781 = vsel %vm3725, %v3652, %v2560
        %v3783 = vsel %vm3725, %v3654, %v2562
        %v3785 = vsel %vm3725, %v3656, %v2564
        %v3787 = vsel %vm3725, %v3658, %v2566
        %v3789 = vsel %vm3725, %v3660, %v2568
        %v3791 = vsel %vm3725, %v3662, %v2570
        %v3793 = vsel %vm3725, %v3664, %v2572
        %v3795 = vsel %vm3725, %v3666, %v2574
        %v3797 = vsel %vm3725, %v3668, %v2576
        %v3799 = vsel %vm3725, %v3670, %v2578
        %v3801 = vsel %vm3725, %v3672, %v2580
        %v3803 = vsel %vm3725, %v3674, %v2582
        %v3805 = vsel %vm3725, %v3676, %v2584
        %v3807 = vsel %vm3725, %v3678, %v2586
        %v3809 = vsel %vm3725, %v3680, %v2588
        %v3811 = vsel %vm3725, %v3682, %v2590
        %v3813 = vsel %vm3725, %v3684, %v2592
        %v3815 = vsel %vm3725, %v3686, %v2594
        %v3817 = vsel %vm3725, %v3688, %v2596
        %v3819 = vsel %vm3725, %v3690, %v2598
        %v3821 = vsel %vm3725, %v3692, %v2600
        %v3823 = vsel %vm3725, %v3694, %v2602
        %v3825 = vsel %vm3725, %v3696, %v2604
        %v3827 = vsel %vm3725, %v3698, %v2606
        %v3829 = vsel %vm3725, %v3700, %v2608
        %v3831 = vsel %vm3725, %v3702, %v2610
        %v3833 = vsel %vm3725, %v3704, %v2612
        %v3835 = vsel %vm3725, %v3706, %v2614
        %v3837 = vsel %vm3725, %v3708, %v2616
        %v3839 = vsel %vm3725, %v3710, %v2618
        %v3841 = vsel %vm3725, %v3712, %v2620
        %v3843 = vsel %vm3725, %v3714, %v2622
        %v3845 = vsel %vm3725, %v3716, %v2624
        %v3847 = vsel %vm3725, %v3718, %v2626
        %v3849 = vsel %vm3725, %v3720, %v2628
        %v3851 = vsel %vm3725, %v3722, %v2630
        %v3853 = vsel %vm3725, %v3724, %v2632
        %vm3854 = vcmask 162816
        %v3856 = vsel %vm3854, %v3727, %v2859
        %v3858 = vsel %vm3854, %v3729, %v2861
        %v3860 = vsel %vm3854, %v3731, %v2863
        %v3862 = vsel %vm3854, %v3733, %v2865
        %v3864 = vsel %vm3854, %v3735, %v2867
        %v3866 = vsel %vm3854, %v3737, %v2869
        %v3868 = vsel %vm3854, %v3739, %v2871
        %v3870 = vsel %vm3854, %v3741, %v2873
        %v3872 = vsel %vm3854, %v3743, %v2875
        %v3874 = vsel %vm3854, %v3745, %v2877
        %v3876 = vsel %vm3854, %v3747, %v2879
        %v3878 = vsel %vm3854, %v3749, %v2881
        %v3880 = vsel %vm3854, %v3751, %v2883
        %v3882 = vsel %vm3854, %v3753, %v2885
        %v3884 = vsel %vm3854, %v3755, %v2887
        %v3886 = vsel %vm3854, %v3757, %v2889
        %v3888 = vsel %vm3854, %v3759, %v2891
        %v3890 = vsel %vm3854, %v3761, %v2893
        %v3892 = vsel %vm3854, %v3763, %v2895
        %v3894 = vsel %vm3854, %v3765, %v2897
        %v3896 = vsel %vm3854, %v3767, %v2899
        %v3898 = vsel %vm3854, %v3769, %v2901
        %v3900 = vsel %vm3854, %v3771, %v2903
        %v3902 = vsel %vm3854, %v3773, %v2905
        %v3904 = vsel %vm3854, %v3775, %v2907
        %v3906 = vsel %vm3854, %v3777, %v2909
        %v3908 = vsel %vm3854, %v3779, %v2911
        %v3910 = vsel %vm3854, %v3781, %v2913
        %v3912 = vsel %vm3854, %v3783, %v2915
        %v3914 = vsel %vm3854, %v3785, %v2917
        %v3916 = vsel %vm3854, %v3787, %v2919
        %v3918 = vsel %vm3854, %v3789, %v2921
        %v3920 = vsel %vm3854, %v3791, %v2923
        %v3922 = vsel %vm3854, %v3793, %v2925
        %v3924 = vsel %vm3854, %v3795, %v2927
        %v3926 = vsel %vm3854, %v3797, %v2929
        %v3928 = vsel %vm3854, %v3799, %v2931
        %v3930 = vsel %vm3854, %v3801, %v2933
        %v3932 = vsel %vm3854, %v3803, %v2935
        %v3934 = vsel %vm3854, %v3805, %v2937
        %v3936 = vsel %vm3854, %v3807, %v2939
        %v3938 = vsel %vm3854, %v3809, %v2941
        %v3940 = vsel %vm3854, %v3811, %v2943
        %v3942 = vsel %vm3854, %v3813, %v2945
        %v3944 = vsel %vm3854, %v3815, %v2947
        %v3946 = vsel %vm3854, %v3817, %v2949
        %v3948 = vsel %vm3854, %v3819, %v2951
        %v3950 = vsel %vm3854, %v3821, %v2953
        %v3952 = vsel %vm3854, %v3823, %v2955
        %v3954 = vsel %vm3854, %v3825, %v2957
        %v3956 = vsel %vm3854, %v3827, %v2959
        %v3958 = vsel %vm3854, %v3829, %v2961
        %v3960 = vsel %vm3854, %v3831, %v2963
        %v3962 = vsel %vm3854, %v3833, %v2965
        %v3964 = vsel %vm3854, %v3835, %v2967
        %v3966 = vsel %vm3854, %v3837, %v2969
        %v3968 = vsel %vm3854, %v3839, %v2971
        %v3970 = vsel %vm3854, %v3841, %v2973
        %v3972 = vsel %vm3854, %v3843, %v2975
        %v3974 = vsel %vm3854, %v3845, %v2977
        %v3976 = vsel %vm3854, %v3847, %v2979
        %v3978 = vsel %vm3854, %v3849, %v2981
        %v3980 = vsel %vm3854, %v3851, %v2983
        %v3982 = vsel %vm3854, %v3853, %v2985
        %vm3983 = vcmask 195584
        %v3985 = vsel %vm3983, %v3856, %v3211
        %v3987 = vsel %vm3983, %v3858, %v3213
        %v3989 = vsel %vm3983, %v3860, %v3215
        %v3991 = vsel %vm3983, %v3862, %v3217
        %v3993 = vsel %vm3983, %v3864, %v3219
        %v3995 = vsel %vm3983, %v3866, %v3221
        %v3997 = vsel %vm3983, %v3868, %v3223
        %v3999 = vsel %vm3983, %v3870, %v3225
        %v4001 = vsel %vm3983, %v3872, %v3227
        %v4003 = vsel %vm3983, %v3874, %v3229
        %v4005 = vsel %vm3983, %v3876, %v3231
        %v4007 = vsel %vm3983, %v3878, %v3233
        %v4009 = vsel %vm3983, %v3880, %v3235
        %v4011 = vsel %vm3983, %v3882, %v3237
        %v4013 = vsel %vm3983, %v3884, %v3239
        %v4015 = vsel %vm3983, %v3886, %v3241
        %v4017 = vsel %vm3983, %v3888, %v3243
        %v4019 = vsel %vm3983, %v3890, %v3245
        %v4021 = vsel %vm3983, %v3892, %v3247
        %v4023 = vsel %vm3983, %v3894, %v3249
        %v4025 = vsel %vm3983, %v3896, %v3251
        %v4027 = vsel %vm3983, %v3898, %v3253
        %v4029 = vsel %vm3983, %v3900, %v3255
        %v4031 = vsel %vm3983, %v3902, %v3257
        %v4033 = vsel %vm3983, %v3904, %v3259
        %v4035 = vsel %vm3983, %v3906, %v3261
        %v4037 = vsel %vm3983, %v3908, %v3263
        %v4039 = vsel %vm3983, %v3910, %v3265
        %v4041 = vsel %vm3983, %v3912, %v3267
        %v4043 = vsel %vm3983, %v3914, %v3269
        %v4045 = vsel %vm3983, %v3916, %v3271
        %v4047 = vsel %vm3983, %v3918, %v3273
        %v4049 = vsel %vm3983, %v3920, %v3275
        %v4051 = vsel %vm3983, %v3922, %v3277
        %v4053 = vsel %vm3983, %v3924, %v3279
        %v4055 = vsel %vm3983, %v3926, %v3281
        %v4057 = vsel %vm3983, %v3928, %v3283
        %v4059 = vsel %vm3983, %v3930, %v3285
        %v4061 = vsel %vm3983, %v3932, %v3287
        %v4063 = vsel %vm3983, %v3934, %v3289
        %v4065 = vsel %vm3983, %v3936, %v3291
        %v4067 = vsel %vm3983, %v3938, %v3293
        %v4069 = vsel %vm3983, %v3940, %v3295
        %v4071 = vsel %vm3983, %v3942, %v3297
        %v4073 = vsel %vm3983, %v3944, %v3299
        %v4075 = vsel %vm3983, %v3946, %v3301
        %v4077 = vsel %vm3983, %v3948, %v3303
        %v4079 = vsel %vm3983, %v3950, %v3305
        %v4081 = vsel %vm3983, %v3952, %v3307
        %v4083 = vsel %vm3983, %v3954, %v3309
        %v4085 = vsel %vm3983, %v3956, %v3311
        %v4087 = vsel %vm3983, %v3958, %v3313
        %v4089 = vsel %vm3983, %v3960, %v3315
        %v4091 = vsel %vm3983, %v3962, %v3317
        %v4093 = vsel %vm3983, %v3964, %v3319
        %v4095 = vsel %vm3983, %v3966, %v3321
        %v4097 = vsel %vm3983, %v3968, %v3323
        %v4099 = vsel %vm3983, %v3970, %v3325
        %v4101 = vsel %vm3983, %v3972, %v3327
        %v4103 = vsel %vm3983, %v3974, %v3329
        %v4105 = vsel %vm3983, %v3976, %v3331
        %v4107 = vsel %vm3983, %v3978, %v3333
        %v4109 = vsel %vm3983, %v3980, %v3335
        %v4111 = vsel %vm3983, %v3982, %v3337
        %vm4176 = vcmask 1044480
        %v4177 = vrot.slane %v3985, 3
        %v4178 = vrot.slane %v3987, 3
        %v4179 = vsel %vm4176, %v4177, %v4178
        %v4180 = vrot.slane %v3989, 3
        %v4181 = vrot.slane %v3991, 3
        %v4182 = vsel %vm4176, %v4180, %v4181
        %v4183 = vrot.slane %v3993, 3
        %v4184 = vrot.slane %v3995, 3
        %v4185 = vsel %vm4176, %v4183, %v4184
        %v4186 = vrot.slane %v3997, 3
        %v4187 = vrot.slane %v3999, 3
        %v4188 = vsel %vm4176, %v4186, %v4187
        %v4189 = vrot.slane %v4001, 3
        %v4190 = vrot.slane %v4003, 3
        %v4191 = vsel %vm4176, %v4189, %v4190
        %v4192 = vrot.slane %v4005, 3
        %v4193 = vrot.slane %v4007, 3
        %v4194 = vsel %vm4176, %v4192, %v4193
        %v4195 = vrot.slane %v4009, 3
        %v4196 = vrot.slane %v4011, 3
        %v4197 = vsel %vm4176, %v4195, %v4196
        %v4198 = vrot.slane %v4013, 3
        %v4199 = vrot.slane %v4015, 3
        %v4200 = vsel %vm4176, %v4198, %v4199
        %v4201 = vrot.slane %v4017, 3
        %v4202 = vrot.slane %v4019, 3
        %v4203 = vsel %vm4176, %v4201, %v4202
        %v4204 = vrot.slane %v4021, 3
        %v4205 = vrot.slane %v4023, 3
        %v4206 = vsel %vm4176, %v4204, %v4205
        %v4207 = vrot.slane %v4025, 3
        %v4208 = vrot.slane %v4027, 3
        %v4209 = vsel %vm4176, %v4207, %v4208
        %v4210 = vrot.slane %v4029, 3
        %v4211 = vrot.slane %v4031, 3
        %v4212 = vsel %vm4176, %v4210, %v4211
        %v4213 = vrot.slane %v4033, 3
        %v4214 = vrot.slane %v4035, 3
        %v4215 = vsel %vm4176, %v4213, %v4214
        %v4216 = vrot.slane %v4037, 3
        %v4217 = vrot.slane %v4039, 3
        %v4218 = vsel %vm4176, %v4216, %v4217
        %v4219 = vrot.slane %v4041, 3
        %v4220 = vrot.slane %v4043, 3
        %v4221 = vsel %vm4176, %v4219, %v4220
        %v4222 = vrot.slane %v4045, 3
        %v4223 = vrot.slane %v4047, 3
        %v4224 = vsel %vm4176, %v4222, %v4223
        %v4225 = vrot.slane %v4049, 3
        %v4226 = vrot.slane %v4051, 3
        %v4227 = vsel %vm4176, %v4225, %v4226
        %v4228 = vrot.slane %v4053, 3
        %v4229 = vrot.slane %v4055, 3
        %v4230 = vsel %vm4176, %v4228, %v4229
        %v4231 = vrot.slane %v4057, 3
        %v4232 = vrot.slane %v4059, 3
        %v4233 = vsel %vm4176, %v4231, %v4232
        %v4234 = vrot.slane %v4061, 3
        %v4235 = vrot.slane %v4063, 3
        %v4236 = vsel %vm4176, %v4234, %v4235
        %v4237 = vrot.slane %v4065, 3
        %v4238 = vrot.slane %v4067, 3
        %v4239 = vsel %vm4176, %v4237, %v4238
        %v4240 = vrot.slane %v4069, 3
        %v4241 = vrot.slane %v4071, 3
        %v4242 = vsel %vm4176, %v4240, %v4241
        %v4243 = vrot.slane %v4073, 3
        %v4244 = vrot.slane %v4075, 3
        %v4245 = vsel %vm4176, %v4243, %v4244
        %v4246 = vrot.slane %v4077, 3
        %v4247 = vrot.slane %v4079, 3
        %v4248 = vsel %vm4176, %v4246, %v4247
        %v4249 = vrot.slane %v4081, 3
        %v4250 = vrot.slane %v4083, 3
        %v4251 = vsel %vm4176, %v4249, %v4250
        %v4252 = vrot.slane %v4085, 3
        %v4253 = vrot.slane %v4087, 3
        %v4254 = vsel %vm4176, %v4252, %v4253
        %v4255 = vrot.slane %v4089, 3
        %v4256 = vrot.slane %v4091, 3
        %v4257 = vsel %vm4176, %v4255, %v4256
        %v4258 = vrot.slane %v4093, 3
        %v4259 = vrot.slane %v4095, 3
        %v4260 = vsel %vm4176, %v4258, %v4259
        %v4261 = vrot.slane %v4097, 3
        %v4262 = vrot.slane %v4099, 3
        %v4263 = vsel %vm4176, %v4261, %v4262
        %v4264 = vrot.slane %v4101, 3
        %v4265 = vrot.slane %v4103, 3
        %v4266 = vsel %vm4176, %v4264, %v4265
        %v4267 = vrot.slane %v4105, 3
        %v4268 = vrot.slane %v4107, 3
        %v4269 = vsel %vm4176, %v4267, %v4268
        %v4270 = vrot.slane %v4109, 3
        %v4271 = vrot.slane %v4111, 3
        %v4272 = vsel %vm4176, %v4270, %v4271
        %4274 = vrot.lane.b32.xlu0 0, 28
        %v4275 = vpop.permute.xlu0 %4274
        %4276 = vrot.lane.b32.xlu0 %v4179, 28
        %v4277 = vpop.permute.xlu0 %4276
        %4278 = vrot.lane.b32.xlu0 %v4182, 28
        %v4279 = vpop.permute.xlu0 %4278
        %4280 = vrot.lane.b32.xlu0 %v4185, 28
        %v4281 = vpop.permute.xlu0 %4280
        %4282 = vrot.lane.b32.xlu0 %v4188, 28
        %v4283 = vpop.permute.xlu0 %4282
        %4284 = vrot.lane.b32.xlu0 %v4191, 28
        %v4285 = vpop.permute.xlu0 %4284
        %4286 = vrot.lane.b32.xlu0 %v4194, 28
        %v4287 = vpop.permute.xlu0 %4286
        %4288 = vrot.lane.b32.xlu0 %v4197, 28
        %v4289 = vpop.permute.xlu0 %4288
        %4290 = vrot.lane.b32.xlu0 %v4200, 28
        %v4291 = vpop.permute.xlu0 %4290
        %4292 = vrot.lane.b32.xlu0 %v4203, 28
        %v4293 = vpop.permute.xlu0 %4292
        %4294 = vrot.lane.b32.xlu0 %v4206, 28
        %v4295 = vpop.permute.xlu0 %4294
        %4296 = vrot.lane.b32.xlu0 %v4209, 28
        %v4297 = vpop.permute.xlu0 %4296
        %4298 = vrot.lane.b32.xlu0 %v4212, 28
        %v4299 = vpop.permute.xlu0 %4298
        %4300 = vrot.lane.b32.xlu0 %v4215, 28
        %v4301 = vpop.permute.xlu0 %4300
        %4302 = vrot.lane.b32.xlu0 %v4218, 28
        %v4303 = vpop.permute.xlu0 %4302
        %4304 = vrot.lane.b32.xlu0 %v4221, 28
        %v4305 = vpop.permute.xlu0 %4304
        %4306 = vrot.lane.b32.xlu0 %v4224, 28
        %v4307 = vpop.permute.xlu0 %4306
        %4308 = vrot.lane.b32.xlu0 %v4227, 28
        %v4309 = vpop.permute.xlu0 %4308
        %4310 = vrot.lane.b32.xlu0 %v4230, 28
        %v4311 = vpop.permute.xlu0 %4310
        %4312 = vrot.lane.b32.xlu0 %v4233, 28
        %v4313 = vpop.permute.xlu0 %4312
        %4314 = vrot.lane.b32.xlu0 %v4236, 28
        %v4315 = vpop.permute.xlu0 %4314
        %4316 = vrot.lane.b32.xlu0 %v4239, 28
        %v4317 = vpop.permute.xlu0 %4316
        %4318 = vrot.lane.b32.xlu0 %v4242, 28
        %v4319 = vpop.permute.xlu0 %4318
        %4320 = vrot.lane.b32.xlu0 %v4245, 28
        %v4321 = vpop.permute.xlu0 %4320
        %4322 = vrot.lane.b32.xlu0 %v4248, 28
        %v4323 = vpop.permute.xlu0 %4322
        %4324 = vrot.lane.b32.xlu0 %v4251, 28
        %v4325 = vpop.permute.xlu0 %4324
        %4326 = vrot.lane.b32.xlu0 %v4254, 28
        %v4327 = vpop.permute.xlu0 %4326
        %4328 = vrot.lane.b32.xlu0 %v4257, 28
        %v4329 = vpop.permute.xlu0 %4328
        %4330 = vrot.lane.b32.xlu0 %v4260, 28
        %v4331 = vpop.permute.xlu0 %4330
        %4332 = vrot.lane.b32.xlu0 %v4263, 28
        %v4333 = vpop.permute.xlu0 %4332
        %4334 = vrot.lane.b32.xlu0 %v4266, 28
        %v4335 = vpop.permute.xlu0 %4334
        %4336 = vrot.lane.b32.xlu0 0, 56
        %v4337 = vpop.permute.xlu0 %4336
        %4338 = vrot.lane.b32.xlu0 %v4179, 56
        %v4339 = vpop.permute.xlu0 %4338
        %4340 = vrot.lane.b32.xlu0 %v4182, 56
        %v4341 = vpop.permute.xlu0 %4340
        %4342 = vrot.lane.b32.xlu0 %v4185, 56
        %v4343 = vpop.permute.xlu0 %4342
        %4344 = vrot.lane.b32.xlu0 %v4188, 56
        %v4345 = vpop.permute.xlu0 %4344
        %4346 = vrot.lane.b32.xlu0 %v4191, 56
        %v4347 = vpop.permute.xlu0 %4346
        %4348 = vrot.lane.b32.xlu0 %v4194, 56
        %v4349 = vpop.permute.xlu0 %4348
        %4350 = vrot.lane.b32.xlu0 %v4197, 56
        %v4351 = vpop.permute.xlu0 %4350
        %4352 = vrot.lane.b32.xlu0 %v4200, 56
        %v4353 = vpop.permute.xlu0 %4352
        %4354 = vrot.lane.b32.xlu0 %v4203, 56
        %v4355 = vpop.permute.xlu0 %4354
        %4356 = vrot.lane.b32.xlu0 %v4206, 56
        %v4357 = vpop.permute.xlu0 %4356
        %4358 = vrot.lane.b32.xlu0 %v4209, 56
        %v4359 = vpop.permute.xlu0 %4358
        %4360 = vrot.lane.b32.xlu0 %v4212, 56
        %v4361 = vpop.permute.xlu0 %4360
        %4362 = vrot.lane.b32.xlu0 %v4215, 56
        %v4363 = vpop.permute.xlu0 %4362
        %4364 = vrot.lane.b32.xlu0 %v4218, 56
        %v4365 = vpop.permute.xlu0 %4364
        %4366 = vrot.lane.b32.xlu0 %v4221, 56
        %v4367 = vpop.permute.xlu0 %4366
        %4368 = vrot.lane.b32.xlu0 %v4224, 56
        %v4369 = vpop.permute.xlu0 %4368
        %4370 = vrot.lane.b32.xlu0 %v4227, 56
        %v4371 = vpop.permute.xlu0 %4370
        %4372 = vrot.lane.b32.xlu0 %v4230, 56
        %v4373 = vpop.permute.xlu0 %4372
        %4374 = vrot.lane.b32.xlu0 %v4233, 56
        %v4375 = vpop.permute.xlu0 %4374
        %4376 = vrot.lane.b32.xlu0 %v4236, 56
        %v4377 = vpop.permute.xlu0 %4376
        %4378 = vrot.lane.b32.xlu0 %v4239, 56
        %v4379 = vpop.permute.xlu0 %4378
        %4380 = vrot.lane.b32.xlu0 %v4242, 56
        %v4381 = vpop.permute.xlu0 %4380
        %4382 = vrot.lane.b32.xlu0 %v4245, 56
        %v4383 = vpop.permute.xlu0 %4382
        %4384 = vrot.lane.b32.xlu0 %v4248, 56
        %v4385 = vpop.permute.xlu0 %4384
        %4386 = vrot.lane.b32.xlu0 %v4251, 56
        %v4387 = vpop.permute.xlu0 %4386
        %4388 = vrot.lane.b32.xlu0 %v4254, 56
        %v4389 = vpop.permute.xlu0 %4388
        %4390 = vrot.lane.b32.xlu0 %v4257, 56
        %v4391 = vpop.permute.xlu0 %4390
        %4392 = vrot.lane.b32.xlu0 %v4260, 56
        %v4393 = vpop.permute.xlu0 %4392
        %4394 = vrot.lane.b32.xlu0 %v4263, 56
        %v4395 = vpop.permute.xlu0 %4394
        %4396 = vrot.lane.b32.xlu0 %v4266, 56
        %v4397 = vpop.permute.xlu0 %4396
        %4398 = vrot.lane.b32.xlu0 %v4269, 56
        %v4399 = vpop.permute.xlu0 %4398
        %4400 = vrot.lane.b32.xlu0 %v4179, 84
        %v4401 = vpop.permute.xlu0 %4400
        %4402 = vrot.lane.b32.xlu0 %v4182, 84
        %v4403 = vpop.permute.xlu0 %4402
        %4404 = vrot.lane.b32.xlu0 %v4185, 84
        %v4405 = vpop.permute.xlu0 %4404
        %4406 = vrot.lane.b32.xlu0 %v4188, 84
        %v4407 = vpop.permute.xlu0 %4406
        %4408 = vrot.lane.b32.xlu0 %v4191, 84
        %v4409 = vpop.permute.xlu0 %4408
        %4410 = vrot.lane.b32.xlu0 %v4194, 84
        %v4411 = vpop.permute.xlu0 %4410
        %4412 = vrot.lane.b32.xlu0 %v4197, 84
        %v4413 = vpop.permute.xlu0 %4412
        %4414 = vrot.lane.b32.xlu0 %v4200, 84
        %v4415 = vpop.permute.xlu0 %4414
        %4416 = vrot.lane.b32.xlu0 %v4203, 84
        %v4417 = vpop.permute.xlu0 %4416
        %4418 = vrot.lane.b32.xlu0 %v4206, 84
        %v4419 = vpop.permute.xlu0 %4418
        %4420 = vrot.lane.b32.xlu0 %v4209, 84
        %v4421 = vpop.permute.xlu0 %4420
        %4422 = vrot.lane.b32.xlu0 %v4212, 84
        %v4423 = vpop.permute.xlu0 %4422
        %4424 = vrot.lane.b32.xlu0 %v4215, 84
        %v4425 = vpop.permute.xlu0 %4424
        %4426 = vrot.lane.b32.xlu0 %v4218, 84
        %v4427 = vpop.permute.xlu0 %4426
        %4428 = vrot.lane.b32.xlu0 %v4221, 84
        %v4429 = vpop.permute.xlu0 %4428
        %4430 = vrot.lane.b32.xlu0 %v4224, 84
        %v4431 = vpop.permute.xlu0 %4430
        %4432 = vrot.lane.b32.xlu0 %v4227, 84
        %v4433 = vpop.permute.xlu0 %4432
        %4434 = vrot.lane.b32.xlu0 %v4230, 84
        %v4435 = vpop.permute.xlu0 %4434
        %4436 = vrot.lane.b32.xlu0 %v4233, 84
        %v4437 = vpop.permute.xlu0 %4436
        %4438 = vrot.lane.b32.xlu0 %v4236, 84
        %v4439 = vpop.permute.xlu0 %4438
        %4440 = vrot.lane.b32.xlu0 %v4239, 84
        %v4441 = vpop.permute.xlu0 %4440
        %4442 = vrot.lane.b32.xlu0 %v4242, 84
        %v4443 = vpop.permute.xlu0 %4442
        %4444 = vrot.lane.b32.xlu0 %v4245, 84
        %v4445 = vpop.permute.xlu0 %4444
        %4446 = vrot.lane.b32.xlu0 %v4248, 84
        %v4447 = vpop.permute.xlu0 %4446
        %4448 = vrot.lane.b32.xlu0 %v4251, 84
        %v4449 = vpop.permute.xlu0 %4448
        %4450 = vrot.lane.b32.xlu0 %v4254, 84
        %v4451 = vpop.permute.xlu0 %4450
        %4452 = vrot.lane.b32.xlu0 %v4257, 84
        %v4453 = vpop.permute.xlu0 %4452
        %4454 = vrot.lane.b32.xlu0 %v4260, 84
        %v4455 = vpop.permute.xlu0 %4454
        %4456 = vrot.lane.b32.xlu0 %v4263, 84
        %v4457 = vpop.permute.xlu0 %4456
        %4458 = vrot.lane.b32.xlu0 %v4266, 84
        %v4459 = vpop.permute.xlu0 %4458
        %4460 = vrot.lane.b32.xlu0 %v4269, 84
        %v4461 = vpop.permute.xlu0 %4460
        %4462 = vrot.lane.b32.xlu0 %v4272, 84
        %v4463 = vpop.permute.xlu0 %4462
        %4464 = vrot.lane.b32.xlu0 %v4182, 112
        %v4465 = vpop.permute.xlu0 %4464
        %4466 = vrot.lane.b32.xlu0 %v4185, 112
        %v4467 = vpop.permute.xlu0 %4466
        %4468 = vrot.lane.b32.xlu0 %v4188, 112
        %v4469 = vpop.permute.xlu0 %4468
        %4470 = vrot.lane.b32.xlu0 %v4191, 112
        %v4471 = vpop.permute.xlu0 %4470
        %4472 = vrot.lane.b32.xlu0 %v4194, 112
        %v4473 = vpop.permute.xlu0 %4472
        %4474 = vrot.lane.b32.xlu0 %v4197, 112
        %v4475 = vpop.permute.xlu0 %4474
        %4476 = vrot.lane.b32.xlu0 %v4200, 112
        %v4477 = vpop.permute.xlu0 %4476
        %4478 = vrot.lane.b32.xlu0 %v4203, 112
        %v4479 = vpop.permute.xlu0 %4478
        %4480 = vrot.lane.b32.xlu0 %v4206, 112
        %v4481 = vpop.permute.xlu0 %4480
        %4482 = vrot.lane.b32.xlu0 %v4209, 112
        %v4483 = vpop.permute.xlu0 %4482
        %4484 = vrot.lane.b32.xlu0 %v4212, 112
        %v4485 = vpop.permute.xlu0 %4484
        %4486 = vrot.lane.b32.xlu0 %v4215, 112
        %v4487 = vpop.permute.xlu0 %4486
        %4488 = vrot.lane.b32.xlu0 %v4218, 112
        %v4489 = vpop.permute.xlu0 %4488
        %4490 = vrot.lane.b32.xlu0 %v4221, 112
        %v4491 = vpop.permute.xlu0 %4490
        %4492 = vrot.lane.b32.xlu0 %v4224, 112
        %v4493 = vpop.permute.xlu0 %4492
        %4494 = vrot.lane.b32.xlu0 %v4227, 112
        %v4495 = vpop.permute.xlu0 %4494
        %4496 = vrot.lane.b32.xlu0 %v4230, 112
        %v4497 = vpop.permute.xlu0 %4496
        %4498 = vrot.lane.b32.xlu0 %v4233, 112
        %v4499 = vpop.permute.xlu0 %4498
        %4500 = vrot.lane.b32.xlu0 %v4236, 112
        %v4501 = vpop.permute.xlu0 %4500
        %4502 = vrot.lane.b32.xlu0 %v4239, 112
        %v4503 = vpop.permute.xlu0 %4502
        %4504 = vrot.lane.b32.xlu0 %v4242, 112
        %v4505 = vpop.permute.xlu0 %4504
        %4506 = vrot.lane.b32.xlu0 %v4245, 112
        %v4507 = vpop.permute.xlu0 %4506
        %4508 = vrot.lane.b32.xlu0 %v4248, 112
        %v4509 = vpop.permute.xlu0 %4508
        %4510 = vrot.lane.b32.xlu0 %v4251, 112
        %v4511 = vpop.permute.xlu0 %4510
        %4512 = vrot.lane.b32.xlu0 %v4254, 112
        %v4513 = vpop.permute.xlu0 %4512
        %4514 = vrot.lane.b32.xlu0 %v4257, 112
        %v4515 = vpop.permute.xlu0 %4514
        %4516 = vrot.lane.b32.xlu0 %v4260, 112
        %v4517 = vpop.permute.xlu0 %4516
        %4518 = vrot.lane.b32.xlu0 %v4263, 112
        %v4519 = vpop.permute.xlu0 %4518
        %4520 = vrot.lane.b32.xlu0 %v4266, 112
        %v4521 = vpop.permute.xlu0 %4520
        %4522 = vrot.lane.b32.xlu0 %v4269, 112
        %v4523 = vpop.permute.xlu0 %4522
        %4524 = vrot.lane.b32.xlu0 %v4272, 112
        %v4525 = vpop.permute.xlu0 %4524
        %4526 = vrot.lane.b32.xlu0 0, 112
        %v4527 = vpop.permute.xlu0 %4526
        %4528 = vrot.lane.b32.xlu0 %v4185, 12
        %v4529 = vpop.permute.xlu0 %4528
        %4530 = vrot.lane.b32.xlu0 %v4188, 12
        %v4531 = vpop.permute.xlu0 %4530
        %4532 = vrot.lane.b32.xlu0 %v4191, 12
        %v4533 = vpop.permute.xlu0 %4532
        %4534 = vrot.lane.b32.xlu0 %v4194, 12
        %v4535 = vpop.permute.xlu0 %4534
        %4536 = vrot.lane.b32.xlu0 %v4197, 12
        %v4537 = vpop.permute.xlu0 %4536
        %4538 = vrot.lane.b32.xlu0 %v4200, 12
        %v4539 = vpop.permute.xlu0 %4538
        %4540 = vrot.lane.b32.xlu0 %v4203, 12
        %v4541 = vpop.permute.xlu0 %4540
        %4542 = vrot.lane.b32.xlu0 %v4206, 12
        %v4543 = vpop.permute.xlu0 %4542
        %4544 = vrot.lane.b32.xlu0 %v4209, 12
        %v4545 = vpop.permute.xlu0 %4544
        %4546 = vrot.lane.b32.xlu0 %v4212, 12
        %v4547 = vpop.permute.xlu0 %4546
        %4548 = vrot.lane.b32.xlu0 %v4215, 12
        %v4549 = vpop.permute.xlu0 %4548
        %4550 = vrot.lane.b32.xlu0 %v4218, 12
        %v4551 = vpop.permute.xlu0 %4550
        %4552 = vrot.lane.b32.xlu0 %v4221, 12
        %v4553 = vpop.permute.xlu0 %4552
        %4554 = vrot.lane.b32.xlu0 %v4224, 12
        %v4555 = vpop.permute.xlu0 %4554
        %4556 = vrot.lane.b32.xlu0 %v4227, 12
        %v4557 = vpop.permute.xlu0 %4556
        %4558 = vrot.lane.b32.xlu0 %v4230, 12
        %v4559 = vpop.permute.xlu0 %4558
        %4560 = vrot.lane.b32.xlu0 %v4233, 12
        %v4561 = vpop.permute.xlu0 %4560
        %4562 = vrot.lane.b32.xlu0 %v4236, 12
        %v4563 = vpop.permute.xlu0 %4562
        %4564 = vrot.lane.b32.xlu0 %v4239, 12
        %v4565 = vpop.permute.xlu0 %4564
        %4566 = vrot.lane.b32.xlu0 %v4242, 12
        %v4567 = vpop.permute.xlu0 %4566
        %4568 = vrot.lane.b32.xlu0 %v4245, 12
        %v4569 = vpop.permute.xlu0 %4568
        %4570 = vrot.lane.b32.xlu0 %v4248, 12
        %v4571 = vpop.permute.xlu0 %4570
        %4572 = vrot.lane.b32.xlu0 %v4251, 12
        %v4573 = vpop.permute.xlu0 %4572
        %4574 = vrot.lane.b32.xlu0 %v4254, 12
        %v4575 = vpop.permute.xlu0 %4574
        %4576 = vrot.lane.b32.xlu0 %v4257, 12
        %v4577 = vpop.permute.xlu0 %4576
        %4578 = vrot.lane.b32.xlu0 %v4260, 12
        %v4579 = vpop.permute.xlu0 %4578
        %4580 = vrot.lane.b32.xlu0 %v4263, 12
        %v4581 = vpop.permute.xlu0 %4580
        %4582 = vrot.lane.b32.xlu0 %v4266, 12
        %v4583 = vpop.permute.xlu0 %4582
        %4584 = vrot.lane.b32.xlu0 %v4269, 12
        %v4585 = vpop.permute.xlu0 %4584
        %4586 = vrot.lane.b32.xlu0 %v4272, 12
        %v4587 = vpop.permute.xlu0 %4586
        %4588 = vrot.lane.b32.xlu0 0, 12
        %v4589 = vpop.permute.xlu0 %4588
        %4590 = vrot.lane.b32.xlu0 %v4188, 40
        %v4591 = vpop.permute.xlu0 %4590
        %4592 = vrot.lane.b32.xlu0 %v4191, 40
        %v4593 = vpop.permute.xlu0 %4592
        %4594 = vrot.lane.b32.xlu0 %v4194, 40
        %v4595 = vpop.permute.xlu0 %4594
        %4596 = vrot.lane.b32.xlu0 %v4197, 40
        %v4597 = vpop.permute.xlu0 %4596
        %4598 = vrot.lane.b32.xlu0 %v4200, 40
        %v4599 = vpop.permute.xlu0 %4598
        %4600 = vrot.lane.b32.xlu0 %v4203, 40
        %v4601 = vpop.permute.xlu0 %4600
        %4602 = vrot.lane.b32.xlu0 %v4206, 40
        %v4603 = vpop.permute.xlu0 %4602
        %4604 = vrot.lane.b32.xlu0 %v4209, 40
        %v4605 = vpop.permute.xlu0 %4604
        %4606 = vrot.lane.b32.xlu0 %v4212, 40
        %v4607 = vpop.permute.xlu0 %4606
        %4608 = vrot.lane.b32.xlu0 %v4215, 40
        %v4609 = vpop.permute.xlu0 %4608
        %4610 = vrot.lane.b32.xlu0 %v4218, 40
        %v4611 = vpop.permute.xlu0 %4610
        %4612 = vrot.lane.b32.xlu0 %v4221, 40
        %v4613 = vpop.permute.xlu0 %4612
        %4614 = vrot.lane.b32.xlu0 %v4224, 40
        %v4615 = vpop.permute.xlu0 %4614
        %4616 = vrot.lane.b32.xlu0 %v4227, 40
        %v4617 = vpop.permute.xlu0 %4616
        %4618 = vrot.lane.b32.xlu0 %v4230, 40
        %v4619 = vpop.permute.xlu0 %4618
        %4620 = vrot.lane.b32.xlu0 %v4233, 40
        %v4621 = vpop.permute.xlu0 %4620
        %4622 = vrot.lane.b32.xlu0 %v4236, 40
        %v4623 = vpop.permute.xlu0 %4622
        %4624 = vrot.lane.b32.xlu0 %v4239, 40
        %v4625 = vpop.permute.xlu0 %4624
        %4626 = vrot.lane.b32.xlu0 %v4242, 40
        %v4627 = vpop.permute.xlu0 %4626
        %4628 = vrot.lane.b32.xlu0 %v4245, 40
        %v4629 = vpop.permute.xlu0 %4628
        %4630 = vrot.lane.b32.xlu0 %v4248, 40
        %v4631 = vpop.permute.xlu0 %4630
        %4632 = vrot.lane.b32.xlu0 %v4251, 40
        %v4633 = vpop.permute.xlu0 %4632
        %4634 = vrot.lane.b32.xlu0 %v4254, 40
        %v4635 = vpop.permute.xlu0 %4634
        %4636 = vrot.lane.b32.xlu0 %v4257, 40
        %v4637 = vpop.permute.xlu0 %4636
        %4638 = vrot.lane.b32.xlu0 %v4260, 40
        %v4639 = vpop.permute.xlu0 %4638
        %4640 = vrot.lane.b32.xlu0 %v4263, 40
        %v4641 = vpop.permute.xlu0 %4640
        %4642 = vrot.lane.b32.xlu0 %v4266, 40
        %v4643 = vpop.permute.xlu0 %4642
        %4644 = vrot.lane.b32.xlu0 %v4269, 40
        %v4645 = vpop.permute.xlu0 %4644
        %4646 = vrot.lane.b32.xlu0 %v4272, 40
        %v4647 = vpop.permute.xlu0 %4646
        %4648 = vrot.lane.b32.xlu0 0, 40
        %v4649 = vpop.permute.xlu0 %4648
        %vm4650 = vcmask 228352
        %v4652 = vsel %vm4650, 0, %v4275
        %v4654 = vsel %vm4650, 0, %v4277
        %v4657 = vsel %vm4650, %v4179, %v4279
        %v4660 = vsel %vm4650, %v4182, %v4281
        %v4663 = vsel %vm4650, %v4185, %v4283
        %v4666 = vsel %vm4650, %v4188, %v4285
        %v4669 = vsel %vm4650, %v4191, %v4287
        %v4672 = vsel %vm4650, %v4194, %v4289
        %v4675 = vsel %vm4650, %v4197, %v4291
        %v4678 = vsel %vm4650, %v4200, %v4293
        %v4681 = vsel %vm4650, %v4203, %v4295
        %v4684 = vsel %vm4650, %v4206, %v4297
        %v4687 = vsel %vm4650, %v4209, %v4299
        %v4690 = vsel %vm4650, %v4212, %v4301
        %v4693 = vsel %vm4650, %v4215, %v4303
        %v4696 = vsel %vm4650, %v4218, %v4305
        %v4699 = vsel %vm4650, %v4221, %v4307
        %v4702 = vsel %vm4650, %v4224, %v4309
        %v4705 = vsel %vm4650, %v4227, %v4311
        %v4708 = vsel %vm4650, %v4230, %v4313
        %v4711 = vsel %vm4650, %v4233, %v4315
        %v4714 = vsel %vm4650, %v4236, %v4317
        %v4717 = vsel %vm4650, %v4239, %v4319
        %v4720 = vsel %vm4650, %v4242, %v4321
        %v4723 = vsel %vm4650, %v4245, %v4323
        %v4726 = vsel %vm4650, %v4248, %v4325
        %v4729 = vsel %vm4650, %v4251, %v4327
        %v4732 = vsel %vm4650, %v4254, %v4329
        %v4735 = vsel %vm4650, %v4257, %v4331
        %v4738 = vsel %vm4650, %v4260, %v4333
        %v4741 = vsel %vm4650, %v4263, %v4335
        %vm4742 = vcmask 457728
        %v4744 = vsel %vm4742, %v4652, %v4337
        %v4746 = vsel %vm4742, %v4652, %v4339
        %v4748 = vsel %vm4742, %v4654, %v4341
        %v4750 = vsel %vm4742, %v4657, %v4343
        %v4752 = vsel %vm4742, %v4660, %v4345
        %v4754 = vsel %vm4742, %v4663, %v4347
        %v4756 = vsel %vm4742, %v4666, %v4349
        %v4758 = vsel %vm4742, %v4669, %v4351
        %v4760 = vsel %vm4742, %v4672, %v4353
        %v4762 = vsel %vm4742, %v4675, %v4355
        %v4764 = vsel %vm4742, %v4678, %v4357
        %v4766 = vsel %vm4742, %v4681, %v4359
        %v4768 = vsel %vm4742, %v4684, %v4361
        %v4770 = vsel %vm4742, %v4687, %v4363
        %v4772 = vsel %vm4742, %v4690, %v4365
        %v4774 = vsel %vm4742, %v4693, %v4367
        %v4776 = vsel %vm4742, %v4696, %v4369
        %v4778 = vsel %vm4742, %v4699, %v4371
        %v4780 = vsel %vm4742, %v4702, %v4373
        %v4782 = vsel %vm4742, %v4705, %v4375
        %v4784 = vsel %vm4742, %v4708, %v4377
        %v4786 = vsel %vm4742, %v4711, %v4379
        %v4788 = vsel %vm4742, %v4714, %v4381
        %v4790 = vsel %vm4742, %v4717, %v4383
        %v4792 = vsel %vm4742, %v4720, %v4385
        %v4794 = vsel %vm4742, %v4723, %v4387
        %v4796 = vsel %vm4742, %v4726, %v4389
        %v4798 = vsel %vm4742, %v4729, %v4391
        %v4800 = vsel %vm4742, %v4732, %v4393
        %v4802 = vsel %vm4742, %v4735, %v4395
        %v4804 = vsel %vm4742, %v4738, %v4397
        %v4806 = vsel %vm4742, %v4741, %v4399
        %vm4807 = vcmask 687104
        %v4809 = vsel %vm4807, %v4744, %v4401
        %v4811 = vsel %vm4807, %v4746, %v4403
        %v4813 = vsel %vm4807, %v4748, %v4405
        %v4815 = vsel %vm4807, %v4750, %v4407
        %v4817 = vsel %vm4807, %v4752, %v4409
        %v4819 = vsel %vm4807, %v4754, %v4411
        %v4821 = vsel %vm4807, %v4756, %v4413
        %v4823 = vsel %vm4807, %v4758, %v4415
        %v4825 = vsel %vm4807, %v4760, %v4417
        %v4827 = vsel %vm4807, %v4762, %v4419
        %v4829 = vsel %vm4807, %v4764, %v4421
        %v4831 = vsel %vm4807, %v4766, %v4423
        %v4833 = vsel %vm4807, %v4768, %v4425
        %v4835 = vsel %vm4807, %v4770, %v4427
        %v4837 = vsel %vm4807, %v4772, %v4429
        %v4839 = vsel %vm4807, %v4774, %v4431
        %v4841 = vsel %vm4807, %v4776, %v4433
        %v4843 = vsel %vm4807, %v4778, %v4435
        %v4845 = vsel %vm4807, %v4780, %v4437
        %v4847 = vsel %vm4807, %v4782, %v4439
        %v4849 = vsel %vm4807, %v4784, %v4441
        %v4851 = vsel %vm4807, %v4786, %v4443
        %v4853 = vsel %vm4807, %v4788, %v4445
        %v4855 = vsel %vm4807, %v4790, %v4447
        %v4857 = vsel %vm4807, %v4792, %v4449
        %v4859 = vsel %vm4807, %v4794, %v4451
        %v4861 = vsel %vm4807, %v4796, %v4453
        %v4863 = vsel %vm4807, %v4798, %v4455
        %v4865 = vsel %vm4807, %v4800, %v4457
        %v4867 = vsel %vm4807, %v4802, %v4459
        %v4869 = vsel %vm4807, %v4804, %v4461
        %v4871 = vsel %vm4807, %v4806, %v4463
        %vm4872 = vcmask 916480
        %v4874 = vsel %vm4872, %v4809, %v4465
        %v4877 = vsel %vm4872, %v4811, %v4467
        %v4880 = vsel %vm4872, %v4813, %v4469
        %v4883 = vsel %vm4872, %v4815, %v4471
        %v4886 = vsel %vm4872, %v4817, %v4473
        %v4889 = vsel %vm4872, %v4819, %v4475
        %v4892 = vsel %vm4872, %v4821, %v4477
        %v4895 = vsel %vm4872, %v4823, %v4479
        %v4898 = vsel %vm4872, %v4825, %v4481
        %v4901 = vsel %vm4872, %v4827, %v4483
        %v4904 = vsel %vm4872, %v4829, %v4485
        %v4907 = vsel %vm4872, %v4831, %v4487
        %v4910 = vsel %vm4872, %v4833, %v4489
        %v4913 = vsel %vm4872, %v4835, %v4491
        %v4916 = vsel %vm4872, %v4837, %v4493
        %v4919 = vsel %vm4872, %v4839, %v4495
        %v4922 = vsel %vm4872, %v4841, %v4497
        %v4925 = vsel %vm4872, %v4843, %v4499
        %v4928 = vsel %vm4872, %v4845, %v4501
        %v4931 = vsel %vm4872, %v4847, %v4503
        %v4934 = vsel %vm4872, %v4849, %v4505
        %v4937 = vsel %vm4872, %v4851, %v4507
        %v4940 = vsel %vm4872, %v4853, %v4509
        %v4943 = vsel %vm4872, %v4855, %v4511
        %v4946 = vsel %vm4872, %v4857, %v4513
        %v4949 = vsel %vm4872, %v4859, %v4515
        %v4952 = vsel %vm4872, %v4861, %v4517
        %v4955 = vsel %vm4872, %v4863, %v4519
        %v4958 = vsel %vm4872, %v4865, %v4521
        %v4961 = vsel %vm4872, %v4867, %v4523
        %v4964 = vsel %vm4872, %v4869, %v4525
        %v4967 = vsel %vm4872, %v4871, %v4527
        %v4970 = vsel %vm3596, %v4465, %v4529
        %v4972 = vsel %vm3596, %v4467, %v4531
        %v4974 = vsel %vm3596, %v4469, %v4533
        %v4976 = vsel %vm3596, %v4471, %v4535
        %v4978 = vsel %vm3596, %v4473, %v4537
        %v4980 = vsel %vm3596, %v4475, %v4539
        %v4982 = vsel %vm3596, %v4477, %v4541
        %v4984 = vsel %vm3596, %v4479, %v4543
        %v4986 = vsel %vm3596, %v4481, %v4545
        %v4988 = vsel %vm3596, %v4483, %v4547
        %v4990 = vsel %vm3596, %v4485, %v4549
        %v4992 = vsel %vm3596, %v4487, %v4551
        %v4994 = vsel %vm3596, %v4489, %v4553
        %v4996 = vsel %vm3596, %v4491, %v4555
        %v4998 = vsel %vm3596, %v4493, %v4557
        %v5000 = vsel %vm3596, %v4495, %v4559
        %v5002 = vsel %vm3596, %v4497, %v4561
        %v5004 = vsel %vm3596, %v4499, %v4563
        %v5006 = vsel %vm3596, %v4501, %v4565
        %v5008 = vsel %vm3596, %v4503, %v4567
        %v5010 = vsel %vm3596, %v4505, %v4569
        %v5012 = vsel %vm3596, %v4507, %v4571
        %v5014 = vsel %vm3596, %v4509, %v4573
        %v5016 = vsel %vm3596, %v4511, %v4575
        %v5018 = vsel %vm3596, %v4513, %v4577
        %v5020 = vsel %vm3596, %v4515, %v4579
        %v5022 = vsel %vm3596, %v4517, %v4581
        %v5024 = vsel %vm3596, %v4519, %v4583
        %v5026 = vsel %vm3596, %v4521, %v4585
        %v5028 = vsel %vm3596, %v4523, %v4587
        %v5030 = vsel %vm3596, %v4525, %v4589
        %v5031 = vsel %vm3596, %v4527, %v4589
        %vm5032 = vcmask 326656
        %v5034 = vsel %vm5032, %v4970, %v4591
        %v5036 = vsel %vm5032, %v4972, %v4593
        %v5038 = vsel %vm5032, %v4974, %v4595
        %v5040 = vsel %vm5032, %v4976, %v4597
        %v5042 = vsel %vm5032, %v4978, %v4599
        %v5044 = vsel %vm5032, %v4980, %v4601
        %v5046 = vsel %vm5032, %v4982, %v4603
        %v5048 = vsel %vm5032, %v4984, %v4605
        %v5050 = vsel %vm5032, %v4986, %v4607
        %v5052 = vsel %vm5032, %v4988, %v4609
        %v5054 = vsel %vm5032, %v4990, %v4611
        %v5056 = vsel %vm5032, %v4992, %v4613
        %v5058 = vsel %vm5032, %v4994, %v4615
        %v5060 = vsel %vm5032, %v4996, %v4617
        %v5062 = vsel %vm5032, %v4998, %v4619
        %v5064 = vsel %vm5032, %v5000, %v4621
        %v5066 = vsel %vm5032, %v5002, %v4623
        %v5068 = vsel %vm5032, %v5004, %v4625
        %v5070 = vsel %vm5032, %v5006, %v4627
        %v5072 = vsel %vm5032, %v5008, %v4629
        %v5074 = vsel %vm5032, %v5010, %v4631
        %v5076 = vsel %vm5032, %v5012, %v4633
        %v5078 = vsel %vm5032, %v5014, %v4635
        %v5080 = vsel %vm5032, %v5016, %v4637
        %v5082 = vsel %vm5032, %v5018, %v4639
        %v5084 = vsel %vm5032, %v5020, %v4641
        %v5086 = vsel %vm5032, %v5022, %v4643
        %v5088 = vsel %vm5032, %v5024, %v4645
        %v5090 = vsel %vm5032, %v5026, %v4647
        %v5092 = vsel %vm5032, %v5028, %v4649
        %v5093 = vsel %vm5032, %v5030, %v4649
        %v5094 = vsel %vm5032, %v5031, %v4649
        %5095 = vrot.lane.b32.xlu0 %v776, 4
        %v5096 = vpop.permute.xlu0 %5095
        %5097 = vrot.lane.b32.xlu0 %v904, 4
        %v5098 = vpop.permute.xlu0 %5097
        %5099 = vrot.lane.b32.xlu0 %v778, 4
        %v5100 = vpop.permute.xlu0 %5099
        %5101 = vrot.lane.b32.xlu0 %v906, 4
        %v5102 = vpop.permute.xlu0 %5101
        %5103 = vrot.lane.b32.xlu0 %v780, 4
        %v5104 = vpop.permute.xlu0 %5103
        %5105 = vrot.lane.b32.xlu0 %v908, 4
        %v5106 = vpop.permute.xlu0 %5105
        %5107 = vrot.lane.b32.xlu0 %v782, 4
        %v5108 = vpop.permute.xlu0 %5107
        %5109 = vrot.lane.b32.xlu0 %v910, 4
        %v5110 = vpop.permute.xlu0 %5109
        %5111 = vrot.lane.b32.xlu0 %v784, 4
        %v5112 = vpop.permute.xlu0 %5111
        %5113 = vrot.lane.b32.xlu0 %v912, 4
        %v5114 = vpop.permute.xlu0 %5113
        %5115 = vrot.lane.b32.xlu0 %v786, 4
        %v5116 = vpop.permute.xlu0 %5115
        %5117 = vrot.lane.b32.xlu0 %v914, 4
        %v5118 = vpop.permute.xlu0 %5117
        %5119 = vrot.lane.b32.xlu0 %v788, 4
        %v5120 = vpop.permute.xlu0 %5119
        %5121 = vrot.lane.b32.xlu0 %v916, 4
        %v5122 = vpop.permute.xlu0 %5121
        %5123 = vrot.lane.b32.xlu0 %v790, 4
        %v5124 = vpop.permute.xlu0 %5123
        %5125 = vrot.lane.b32.xlu0 %v918, 4
        %v5126 = vpop.permute.xlu0 %5125
        %5127 = vrot.lane.b32.xlu0 %v792, 4
        %v5128 = vpop.permute.xlu0 %5127
        %5129 = vrot.lane.b32.xlu0 %v920, 4
        %v5130 = vpop.permute.xlu0 %5129
        %5131 = vrot.lane.b32.xlu0 %v794, 4
        %v5132 = vpop.permute.xlu0 %5131
        %5133 = vrot.lane.b32.xlu0 %v922, 4
        %v5134 = vpop.permute.xlu0 %5133
        %5135 = vrot.lane.b32.xlu0 %v796, 4
        %v5136 = vpop.permute.xlu0 %5135
        %5137 = vrot.lane.b32.xlu0 %v924, 4
        %v5138 = vpop.permute.xlu0 %5137
        %5139 = vrot.lane.b32.xlu0 %v798, 4
        %v5140 = vpop.permute.xlu0 %5139
        %5141 = vrot.lane.b32.xlu0 %v926, 4
        %v5142 = vpop.permute.xlu0 %5141
        %5143 = vrot.lane.b32.xlu0 %v800, 4
        %v5144 = vpop.permute.xlu0 %5143
        %5145 = vrot.lane.b32.xlu0 %v928, 4
        %v5146 = vpop.permute.xlu0 %5145
        %5147 = vrot.lane.b32.xlu0 %v802, 4
        %v5148 = vpop.permute.xlu0 %5147
        %5149 = vrot.lane.b32.xlu0 %v930, 4
        %v5150 = vpop.permute.xlu0 %5149
        %5151 = vrot.lane.b32.xlu0 %v804, 4
        %v5152 = vpop.permute.xlu0 %5151
        %5153 = vrot.lane.b32.xlu0 %v932, 4
        %v5154 = vpop.permute.xlu0 %5153
        %5155 = vrot.lane.b32.xlu0 %v806, 4
        %v5156 = vpop.permute.xlu0 %5155
        %5157 = vrot.lane.b32.xlu0 %v934, 4
        %v5158 = vpop.permute.xlu0 %5157
        %5159 = vrot.lane.b32.xlu0 %v808, 4
        %v5160 = vpop.permute.xlu0 %5159
        %5161 = vrot.lane.b32.xlu0 %v936, 4
        %v5162 = vpop.permute.xlu0 %5161
        %5163 = vrot.lane.b32.xlu0 %v810, 4
        %v5164 = vpop.permute.xlu0 %5163
        %5165 = vrot.lane.b32.xlu0 %v938, 4
        %v5166 = vpop.permute.xlu0 %5165
        %5167 = vrot.lane.b32.xlu0 %v812, 4
        %v5168 = vpop.permute.xlu0 %5167
        %5169 = vrot.lane.b32.xlu0 %v940, 4
        %v5170 = vpop.permute.xlu0 %5169
        %5171 = vrot.lane.b32.xlu0 %v814, 4
        %v5172 = vpop.permute.xlu0 %5171
        %5173 = vrot.lane.b32.xlu0 %v942, 4
        %v5174 = vpop.permute.xlu0 %5173
        %5175 = vrot.lane.b32.xlu0 %v816, 4
        %v5176 = vpop.permute.xlu0 %5175
        %5177 = vrot.lane.b32.xlu0 %v944, 4
        %v5178 = vpop.permute.xlu0 %5177
        %5179 = vrot.lane.b32.xlu0 %v818, 4
        %v5180 = vpop.permute.xlu0 %5179
        %5181 = vrot.lane.b32.xlu0 %v946, 4
        %v5182 = vpop.permute.xlu0 %5181
        %5183 = vrot.lane.b32.xlu0 %v820, 4
        %v5184 = vpop.permute.xlu0 %5183
        %5185 = vrot.lane.b32.xlu0 %v948, 4
        %v5186 = vpop.permute.xlu0 %5185
        %5187 = vrot.lane.b32.xlu0 %v822, 4
        %v5188 = vpop.permute.xlu0 %5187
        %5189 = vrot.lane.b32.xlu0 %v950, 4
        %v5190 = vpop.permute.xlu0 %5189
        %5191 = vrot.lane.b32.xlu0 %v824, 4
        %v5192 = vpop.permute.xlu0 %5191
        %5193 = vrot.lane.b32.xlu0 %v952, 4
        %v5194 = vpop.permute.xlu0 %5193
        %5195 = vrot.lane.b32.xlu0 %v826, 4
        %v5196 = vpop.permute.xlu0 %5195
        %5197 = vrot.lane.b32.xlu0 %v954, 4
        %v5198 = vpop.permute.xlu0 %5197
        %5199 = vrot.lane.b32.xlu0 %v828, 4
        %v5200 = vpop.permute.xlu0 %5199
        %5201 = vrot.lane.b32.xlu0 %v956, 4
        %v5202 = vpop.permute.xlu0 %5201
        %5203 = vrot.lane.b32.xlu0 %v830, 4
        %v5204 = vpop.permute.xlu0 %5203
        %5205 = vrot.lane.b32.xlu0 %v958, 4
        %v5206 = vpop.permute.xlu0 %5205
        %5207 = vrot.lane.b32.xlu0 %v832, 4
        %v5208 = vpop.permute.xlu0 %5207
        %5209 = vrot.lane.b32.xlu0 %v960, 4
        %v5210 = vpop.permute.xlu0 %5209
        %5211 = vrot.lane.b32.xlu0 %v834, 4
        %v5212 = vpop.permute.xlu0 %5211
        %5213 = vrot.lane.b32.xlu0 %v962, 4
        %v5214 = vpop.permute.xlu0 %5213
        %5215 = vrot.lane.b32.xlu0 %v836, 4
        %v5216 = vpop.permute.xlu0 %5215
        %5217 = vrot.lane.b32.xlu0 %v964, 4
        %v5218 = vpop.permute.xlu0 %5217
        %5219 = vrot.lane.b32.xlu0 %v838, 4
        %v5220 = vpop.permute.xlu0 %5219
        %5221 = vrot.lane.b32.xlu0 %v966, 4
        %v5222 = vpop.permute.xlu0 %5221
        %5223 = vrot.lane.b32.xlu0 %v977, 8
        %v5224 = vpop.permute.xlu0 %5223
        %5225 = vrot.lane.b32.xlu0 %v980, 8
        %v5226 = vpop.permute.xlu0 %5225
        %5227 = vrot.lane.b32.xlu0 %v990, 8
        %v5228 = vpop.permute.xlu0 %5227
        %5229 = vrot.lane.b32.xlu0 %v993, 8
        %v5230 = vpop.permute.xlu0 %5229
        %5231 = vrot.lane.b32.xlu0 %v1003, 8
        %v5232 = vpop.permute.xlu0 %5231
        %5233 = vrot.lane.b32.xlu0 %v1006, 8
        %v5234 = vpop.permute.xlu0 %5233
        %5235 = vrot.lane.b32.xlu0 %v1016, 8
        %v5236 = vpop.permute.xlu0 %5235
        %5237 = vrot.lane.b32.xlu0 %v1019, 8
        %v5238 = vpop.permute.xlu0 %5237
        %5239 = vrot.lane.b32.xlu0 %v1029, 8
        %v5240 = vpop.permute.xlu0 %5239
        %5241 = vrot.lane.b32.xlu0 %v1032, 8
        %v5242 = vpop.permute.xlu0 %5241
        %5243 = vrot.lane.b32.xlu0 %v1042, 8
        %v5244 = vpop.permute.xlu0 %5243
        %5245 = vrot.lane.b32.xlu0 %v1045, 8
        %v5246 = vpop.permute.xlu0 %5245
        %5247 = vrot.lane.b32.xlu0 %v1055, 8
        %v5248 = vpop.permute.xlu0 %5247
        %5249 = vrot.lane.b32.xlu0 %v1058, 8
        %v5250 = vpop.permute.xlu0 %5249
        %5251 = vrot.lane.b32.xlu0 %v1068, 8
        %v5252 = vpop.permute.xlu0 %5251
        %5253 = vrot.lane.b32.xlu0 %v1071, 8
        %v5254 = vpop.permute.xlu0 %5253
        %5255 = vrot.lane.b32.xlu0 %v1081, 8
        %v5256 = vpop.permute.xlu0 %5255
        %5257 = vrot.lane.b32.xlu0 %v1084, 8
        %v5258 = vpop.permute.xlu0 %5257
        %5259 = vrot.lane.b32.xlu0 %v1094, 8
        %v5260 = vpop.permute.xlu0 %5259
        %5261 = vrot.lane.b32.xlu0 %v1097, 8
        %v5262 = vpop.permute.xlu0 %5261
        %5263 = vrot.lane.b32.xlu0 %v1107, 8
        %v5264 = vpop.permute.xlu0 %5263
        %5265 = vrot.lane.b32.xlu0 %v1110, 8
        %v5266 = vpop.permute.xlu0 %5265
        %5267 = vrot.lane.b32.xlu0 %v1120, 8
        %v5268 = vpop.permute.xlu0 %5267
        %5269 = vrot.lane.b32.xlu0 %v1123, 8
        %v5270 = vpop.permute.xlu0 %5269
        %5271 = vrot.lane.b32.xlu0 %v1133, 8
        %v5272 = vpop.permute.xlu0 %5271
        %5273 = vrot.lane.b32.xlu0 %v1136, 8
        %v5274 = vpop.permute.xlu0 %5273
        %5275 = vrot.lane.b32.xlu0 %v1146, 8
        %v5276 = vpop.permute.xlu0 %5275
        %5277 = vrot.lane.b32.xlu0 %v1149, 8
        %v5278 = vpop.permute.xlu0 %5277
        %5279 = vrot.lane.b32.xlu0 %v1159, 8
        %v5280 = vpop.permute.xlu0 %5279
        %5281 = vrot.lane.b32.xlu0 %v1162, 8
        %v5282 = vpop.permute.xlu0 %5281
        %5283 = vrot.lane.b32.xlu0 %v1172, 8
        %v5284 = vpop.permute.xlu0 %5283
        %5285 = vrot.lane.b32.xlu0 %v1175, 8
        %v5286 = vpop.permute.xlu0 %5285
        %5287 = vrot.lane.b32.xlu0 %v1185, 8
        %v5288 = vpop.permute.xlu0 %5287
        %5289 = vrot.lane.b32.xlu0 %v1188, 8
        %v5290 = vpop.permute.xlu0 %5289
        %5291 = vrot.lane.b32.xlu0 %v1198, 8
        %v5292 = vpop.permute.xlu0 %5291
        %5293 = vrot.lane.b32.xlu0 %v1201, 8
        %v5294 = vpop.permute.xlu0 %5293
        %5295 = vrot.lane.b32.xlu0 %v1211, 8
        %v5296 = vpop.permute.xlu0 %5295
        %5297 = vrot.lane.b32.xlu0 %v1214, 8
        %v5298 = vpop.permute.xlu0 %5297
        %5299 = vrot.lane.b32.xlu0 %v1224, 8
        %v5300 = vpop.permute.xlu0 %5299
        %5301 = vrot.lane.b32.xlu0 %v1227, 8
        %v5302 = vpop.permute.xlu0 %5301
        %5303 = vrot.lane.b32.xlu0 %v1237, 8
        %v5304 = vpop.permute.xlu0 %5303
        %5305 = vrot.lane.b32.xlu0 %v1240, 8
        %v5306 = vpop.permute.xlu0 %5305
        %5307 = vrot.lane.b32.xlu0 %v1250, 8
        %v5308 = vpop.permute.xlu0 %5307
        %5309 = vrot.lane.b32.xlu0 %v1253, 8
        %v5310 = vpop.permute.xlu0 %5309
        %5311 = vrot.lane.b32.xlu0 %v1263, 8
        %v5312 = vpop.permute.xlu0 %5311
        %5313 = vrot.lane.b32.xlu0 %v1266, 8
        %v5314 = vpop.permute.xlu0 %5313
        %5315 = vrot.lane.b32.xlu0 %v1276, 8
        %v5316 = vpop.permute.xlu0 %5315
        %5317 = vrot.lane.b32.xlu0 %v1279, 8
        %v5318 = vpop.permute.xlu0 %5317
        %5319 = vrot.lane.b32.xlu0 %v1289, 8
        %v5320 = vpop.permute.xlu0 %5319
        %5321 = vrot.lane.b32.xlu0 %v1292, 8
        %v5322 = vpop.permute.xlu0 %5321
        %5323 = vrot.lane.b32.xlu0 %v1302, 8
        %v5324 = vpop.permute.xlu0 %5323
        %5325 = vrot.lane.b32.xlu0 %v1305, 8
        %v5326 = vpop.permute.xlu0 %5325
        %5327 = vrot.lane.b32.xlu0 %v1315, 8
        %v5328 = vpop.permute.xlu0 %5327
        %5329 = vrot.lane.b32.xlu0 %v1318, 8
        %v5330 = vpop.permute.xlu0 %5329
        %5331 = vrot.lane.b32.xlu0 %v1328, 8
        %v5332 = vpop.permute.xlu0 %5331
        %5333 = vrot.lane.b32.xlu0 %v1331, 8
        %v5334 = vpop.permute.xlu0 %5333
        %5335 = vrot.lane.b32.xlu0 %v1341, 8
        %v5336 = vpop.permute.xlu0 %5335
        %5337 = vrot.lane.b32.xlu0 %v1344, 8
        %v5338 = vpop.permute.xlu0 %5337
        %5339 = vrot.lane.b32.xlu0 %v1354, 8
        %v5340 = vpop.permute.xlu0 %5339
        %5341 = vrot.lane.b32.xlu0 %v1357, 8
        %v5342 = vpop.permute.xlu0 %5341
        %5343 = vrot.lane.b32.xlu0 %v1367, 8
        %v5344 = vpop.permute.xlu0 %5343
        %5345 = vrot.lane.b32.xlu0 %v1370, 8
        %v5346 = vpop.permute.xlu0 %5345
        %5347 = vrot.lane.b32.xlu0 %v1380, 8
        %v5348 = vpop.permute.xlu0 %5347
        %5349 = vrot.lane.b32.xlu0 %v1383, 8
        %v5350 = vpop.permute.xlu0 %5349
        %5351 = vrot.lane.b32.xlu0 %v1521, 12
        %v5352 = vpop.permute.xlu0 %5351
        %5353 = vrot.lane.b32.xlu0 %v1524, 12
        %v5354 = vpop.permute.xlu0 %5353
        %5355 = vrot.lane.b32.xlu0 %v1534, 12
        %v5356 = vpop.permute.xlu0 %5355
        %5357 = vrot.lane.b32.xlu0 %v1537, 12
        %v5358 = vpop.permute.xlu0 %5357
        %5359 = vrot.lane.b32.xlu0 %v1547, 12
        %v5360 = vpop.permute.xlu0 %5359
        %5361 = vrot.lane.b32.xlu0 %v1550, 12
        %v5362 = vpop.permute.xlu0 %5361
        %5363 = vrot.lane.b32.xlu0 %v1560, 12
        %v5364 = vpop.permute.xlu0 %5363
        %5365 = vrot.lane.b32.xlu0 %v1563, 12
        %v5366 = vpop.permute.xlu0 %5365
        %5367 = vrot.lane.b32.xlu0 %v1573, 12
        %v5368 = vpop.permute.xlu0 %5367
        %5369 = vrot.lane.b32.xlu0 %v1576, 12
        %v5370 = vpop.permute.xlu0 %5369
        %5371 = vrot.lane.b32.xlu0 %v1586, 12
        %v5372 = vpop.permute.xlu0 %5371
        %5373 = vrot.lane.b32.xlu0 %v1589, 12
        %v5374 = vpop.permute.xlu0 %5373
        %5375 = vrot.lane.b32.xlu0 %v1599, 12
        %v5376 = vpop.permute.xlu0 %5375
        %5377 = vrot.lane.b32.xlu0 %v1602, 12
        %v5378 = vpop.permute.xlu0 %5377
        %5379 = vrot.lane.b32.xlu0 %v1612, 12
        %v5380 = vpop.permute.xlu0 %5379
        %5381 = vrot.lane.b32.xlu0 %v1615, 12
        %v5382 = vpop.permute.xlu0 %5381
        %5383 = vrot.lane.b32.xlu0 %v1625, 12
        %v5384 = vpop.permute.xlu0 %5383
        %5385 = vrot.lane.b32.xlu0 %v1628, 12
        %v5386 = vpop.permute.xlu0 %5385
        %5387 = vrot.lane.b32.xlu0 %v1638, 12
        %v5388 = vpop.permute.xlu0 %5387
        %5389 = vrot.lane.b32.xlu0 %v1641, 12
        %v5390 = vpop.permute.xlu0 %5389
        %5391 = vrot.lane.b32.xlu0 %v1651, 12
        %v5392 = vpop.permute.xlu0 %5391
        %5393 = vrot.lane.b32.xlu0 %v1654, 12
        %v5394 = vpop.permute.xlu0 %5393
        %5395 = vrot.lane.b32.xlu0 %v1664, 12
        %v5396 = vpop.permute.xlu0 %5395
        %5397 = vrot.lane.b32.xlu0 %v1667, 12
        %v5398 = vpop.permute.xlu0 %5397
        %5399 = vrot.lane.b32.xlu0 %v1677, 12
        %v5400 = vpop.permute.xlu0 %5399
        %5401 = vrot.lane.b32.xlu0 %v1680, 12
        %v5402 = vpop.permute.xlu0 %5401
        %5403 = vrot.lane.b32.xlu0 %v1690, 12
        %v5404 = vpop.permute.xlu0 %5403
        %5405 = vrot.lane.b32.xlu0 %v1693, 12
        %v5406 = vpop.permute.xlu0 %5405
        %5407 = vrot.lane.b32.xlu0 %v1703, 12
        %v5408 = vpop.permute.xlu0 %5407
        %5409 = vrot.lane.b32.xlu0 %v1706, 12
        %v5410 = vpop.permute.xlu0 %5409
        %5411 = vrot.lane.b32.xlu0 %v1716, 12
        %v5412 = vpop.permute.xlu0 %5411
        %5413 = vrot.lane.b32.xlu0 %v1719, 12
        %v5414 = vpop.permute.xlu0 %5413
        %5415 = vrot.lane.b32.xlu0 %v1729, 12
        %v5416 = vpop.permute.xlu0 %5415
        %5417 = vrot.lane.b32.xlu0 %v1732, 12
        %v5418 = vpop.permute.xlu0 %5417
        %5419 = vrot.lane.b32.xlu0 %v1742, 12
        %v5420 = vpop.permute.xlu0 %5419
        %5421 = vrot.lane.b32.xlu0 %v1745, 12
        %v5422 = vpop.permute.xlu0 %5421
        %5423 = vrot.lane.b32.xlu0 %v1755, 12
        %v5424 = vpop.permute.xlu0 %5423
        %5425 = vrot.lane.b32.xlu0 %v1758, 12
        %v5426 = vpop.permute.xlu0 %5425
        %5427 = vrot.lane.b32.xlu0 %v1768, 12
        %v5428 = vpop.permute.xlu0 %5427
        %5429 = vrot.lane.b32.xlu0 %v1771, 12
        %v5430 = vpop.permute.xlu0 %5429
        %5431 = vrot.lane.b32.xlu0 %v1781, 12
        %v5432 = vpop.permute.xlu0 %5431
        %5433 = vrot.lane.b32.xlu0 %v1784, 12
        %v5434 = vpop.permute.xlu0 %5433
        %5435 = vrot.lane.b32.xlu0 %v1794, 12
        %v5436 = vpop.permute.xlu0 %5435
        %5437 = vrot.lane.b32.xlu0 %v1797, 12
        %v5438 = vpop.permute.xlu0 %5437
        %5439 = vrot.lane.b32.xlu0 %v1807, 12
        %v5440 = vpop.permute.xlu0 %5439
        %5441 = vrot.lane.b32.xlu0 %v1810, 12
        %v5442 = vpop.permute.xlu0 %5441
        %5443 = vrot.lane.b32.xlu0 %v1820, 12
        %v5444 = vpop.permute.xlu0 %5443
        %5445 = vrot.lane.b32.xlu0 %v1823, 12
        %v5446 = vpop.permute.xlu0 %5445
        %5447 = vrot.lane.b32.xlu0 %v1833, 12
        %v5448 = vpop.permute.xlu0 %5447
        %5449 = vrot.lane.b32.xlu0 %v1836, 12
        %v5450 = vpop.permute.xlu0 %5449
        %5451 = vrot.lane.b32.xlu0 %v1846, 12
        %v5452 = vpop.permute.xlu0 %5451
        %5453 = vrot.lane.b32.xlu0 %v1849, 12
        %v5454 = vpop.permute.xlu0 %5453
        %5455 = vrot.lane.b32.xlu0 %v1859, 12
        %v5456 = vpop.permute.xlu0 %5455
        %5457 = vrot.lane.b32.xlu0 %v1862, 12
        %v5458 = vpop.permute.xlu0 %5457
        %5459 = vrot.lane.b32.xlu0 %v1872, 12
        %v5460 = vpop.permute.xlu0 %5459
        %5461 = vrot.lane.b32.xlu0 %v1875, 12
        %v5462 = vpop.permute.xlu0 %5461
        %5463 = vrot.lane.b32.xlu0 %v1885, 12
        %v5464 = vpop.permute.xlu0 %5463
        %5465 = vrot.lane.b32.xlu0 %v1888, 12
        %v5466 = vpop.permute.xlu0 %5465
        %5467 = vrot.lane.b32.xlu0 %v1898, 12
        %v5468 = vpop.permute.xlu0 %5467
        %5469 = vrot.lane.b32.xlu0 %v1901, 12
        %v5470 = vpop.permute.xlu0 %5469
        %5471 = vrot.lane.b32.xlu0 %v1911, 12
        %v5472 = vpop.permute.xlu0 %5471
        %5473 = vrot.lane.b32.xlu0 %v1914, 12
        %v5474 = vpop.permute.xlu0 %5473
        %5475 = vrot.lane.b32.xlu0 %v1924, 12
        %v5476 = vpop.permute.xlu0 %5475
        %5477 = vrot.lane.b32.xlu0 %v1927, 12
        %v5478 = vpop.permute.xlu0 %5477
        %5479 = vrot.lane.b32.xlu0 %v2123, 16
        %v5480 = vpop.permute.xlu0 %5479
        %5481 = vrot.lane.b32.xlu0 %v2122, 16
        %v5482 = vpop.permute.xlu0 %5481
        %5483 = vrot.lane.b32.xlu0 %v2126, 16
        %v5484 = vpop.permute.xlu0 %5483
        %5485 = vrot.lane.b32.xlu0 %v2125, 16
        %v5486 = vpop.permute.xlu0 %5485
        %5487 = vrot.lane.b32.xlu0 %v2129, 16
        %v5488 = vpop.permute.xlu0 %5487
        %5489 = vrot.lane.b32.xlu0 %v2128, 16
        %v5490 = vpop.permute.xlu0 %5489
        %5491 = vrot.lane.b32.xlu0 %v2132, 16
        %v5492 = vpop.permute.xlu0 %5491
        %5493 = vrot.lane.b32.xlu0 %v2131, 16
        %v5494 = vpop.permute.xlu0 %5493
        %5495 = vrot.lane.b32.xlu0 %v2135, 16
        %v5496 = vpop.permute.xlu0 %5495
        %5497 = vrot.lane.b32.xlu0 %v2134, 16
        %v5498 = vpop.permute.xlu0 %5497
        %5499 = vrot.lane.b32.xlu0 %v2138, 16
        %v5500 = vpop.permute.xlu0 %5499
        %5501 = vrot.lane.b32.xlu0 %v2137, 16
        %v5502 = vpop.permute.xlu0 %5501
        %5503 = vrot.lane.b32.xlu0 %v2141, 16
        %v5504 = vpop.permute.xlu0 %5503
        %5505 = vrot.lane.b32.xlu0 %v2140, 16
        %v5506 = vpop.permute.xlu0 %5505
        %5507 = vrot.lane.b32.xlu0 %v2144, 16
        %v5508 = vpop.permute.xlu0 %5507
        %5509 = vrot.lane.b32.xlu0 %v2143, 16
        %v5510 = vpop.permute.xlu0 %5509
        %5511 = vrot.lane.b32.xlu0 %v2147, 16
        %v5512 = vpop.permute.xlu0 %5511
        %5513 = vrot.lane.b32.xlu0 %v2146, 16
        %v5514 = vpop.permute.xlu0 %5513
        %5515 = vrot.lane.b32.xlu0 %v2150, 16
        %v5516 = vpop.permute.xlu0 %5515
        %5517 = vrot.lane.b32.xlu0 %v2149, 16
        %v5518 = vpop.permute.xlu0 %5517
        %5519 = vrot.lane.b32.xlu0 %v2153, 16
        %v5520 = vpop.permute.xlu0 %5519
        %5521 = vrot.lane.b32.xlu0 %v2152, 16
        %v5522 = vpop.permute.xlu0 %5521
        %5523 = vrot.lane.b32.xlu0 %v2156, 16
        %v5524 = vpop.permute.xlu0 %5523
        %5525 = vrot.lane.b32.xlu0 %v2155, 16
        %v5526 = vpop.permute.xlu0 %5525
        %5527 = vrot.lane.b32.xlu0 %v2159, 16
        %v5528 = vpop.permute.xlu0 %5527
        %5529 = vrot.lane.b32.xlu0 %v2158, 16
        %v5530 = vpop.permute.xlu0 %5529
        %5531 = vrot.lane.b32.xlu0 %v2162, 16
        %v5532 = vpop.permute.xlu0 %5531
        %5533 = vrot.lane.b32.xlu0 %v2161, 16
        %v5534 = vpop.permute.xlu0 %5533
        %5535 = vrot.lane.b32.xlu0 %v2165, 16
        %v5536 = vpop.permute.xlu0 %5535
        %5537 = vrot.lane.b32.xlu0 %v2164, 16
        %v5538 = vpop.permute.xlu0 %5537
        %5539 = vrot.lane.b32.xlu0 %v2168, 16
        %v5540 = vpop.permute.xlu0 %5539
        %5541 = vrot.lane.b32.xlu0 %v2167, 16
        %v5542 = vpop.permute.xlu0 %5541
        %5543 = vrot.lane.b32.xlu0 %v2171, 16
        %v5544 = vpop.permute.xlu0 %5543
        %5545 = vrot.lane.b32.xlu0 %v2170, 16
        %v5546 = vpop.permute.xlu0 %5545
        %5547 = vrot.lane.b32.xlu0 %v2174, 16
        %v5548 = vpop.permute.xlu0 %5547
        %5549 = vrot.lane.b32.xlu0 %v2173, 16
        %v5550 = vpop.permute.xlu0 %5549
        %5551 = vrot.lane.b32.xlu0 %v2177, 16
        %v5552 = vpop.permute.xlu0 %5551
        %5553 = vrot.lane.b32.xlu0 %v2176, 16
        %v5554 = vpop.permute.xlu0 %5553
        %5555 = vrot.lane.b32.xlu0 %v2180, 16
        %v5556 = vpop.permute.xlu0 %5555
        %5557 = vrot.lane.b32.xlu0 %v2179, 16
        %v5558 = vpop.permute.xlu0 %5557
        %5559 = vrot.lane.b32.xlu0 %v2183, 16
        %v5560 = vpop.permute.xlu0 %5559
        %5561 = vrot.lane.b32.xlu0 %v2182, 16
        %v5562 = vpop.permute.xlu0 %5561
        %5563 = vrot.lane.b32.xlu0 %v2186, 16
        %v5564 = vpop.permute.xlu0 %5563
        %5565 = vrot.lane.b32.xlu0 %v2185, 16
        %v5566 = vpop.permute.xlu0 %5565
        %5567 = vrot.lane.b32.xlu0 %v2189, 16
        %v5568 = vpop.permute.xlu0 %5567
        %5569 = vrot.lane.b32.xlu0 %v2188, 16
        %v5570 = vpop.permute.xlu0 %5569
        %5571 = vrot.lane.b32.xlu0 %v2192, 16
        %v5572 = vpop.permute.xlu0 %5571
        %5573 = vrot.lane.b32.xlu0 %v2191, 16
        %v5574 = vpop.permute.xlu0 %5573
        %5575 = vrot.lane.b32.xlu0 %v2195, 16
        %v5576 = vpop.permute.xlu0 %5575
        %5577 = vrot.lane.b32.xlu0 %v2194, 16
        %v5578 = vpop.permute.xlu0 %5577
        %5579 = vrot.lane.b32.xlu0 %v2198, 16
        %v5580 = vpop.permute.xlu0 %5579
        %5581 = vrot.lane.b32.xlu0 %v2197, 16
        %v5582 = vpop.permute.xlu0 %5581
        %5583 = vrot.lane.b32.xlu0 %v2201, 16
        %v5584 = vpop.permute.xlu0 %5583
        %5585 = vrot.lane.b32.xlu0 %v2200, 16
        %v5586 = vpop.permute.xlu0 %5585
        %5587 = vrot.lane.b32.xlu0 %v2204, 16
        %v5588 = vpop.permute.xlu0 %5587
        %5589 = vrot.lane.b32.xlu0 %v2203, 16
        %v5590 = vpop.permute.xlu0 %5589
        %5591 = vrot.lane.b32.xlu0 %v2207, 16
        %v5592 = vpop.permute.xlu0 %5591
        %5593 = vrot.lane.b32.xlu0 %v2206, 16
        %v5594 = vpop.permute.xlu0 %5593
        %5595 = vrot.lane.b32.xlu0 %v2210, 16
        %v5596 = vpop.permute.xlu0 %5595
        %5597 = vrot.lane.b32.xlu0 %v2209, 16
        %v5598 = vpop.permute.xlu0 %5597
        %5599 = vrot.lane.b32.xlu0 %v2213, 16
        %v5600 = vpop.permute.xlu0 %5599
        %5601 = vrot.lane.b32.xlu0 %v2212, 16
        %v5602 = vpop.permute.xlu0 %5601
        %5603 = vrot.lane.b32.xlu0 %v2216, 16
        %v5604 = vpop.permute.xlu0 %5603
        %5605 = vrot.lane.b32.xlu0 %v2215, 16
        %v5606 = vpop.permute.xlu0 %5605
        %5607 = vrot.lane.b32.xlu0 %v2411, 20
        %v5608 = vpop.permute.xlu0 %5607
        %5609 = vrot.lane.b32.xlu0 %v2410, 20
        %v5610 = vpop.permute.xlu0 %5609
        %5611 = vrot.lane.b32.xlu0 %v2414, 20
        %v5612 = vpop.permute.xlu0 %5611
        %5613 = vrot.lane.b32.xlu0 %v2413, 20
        %v5614 = vpop.permute.xlu0 %5613
        %5615 = vrot.lane.b32.xlu0 %v2417, 20
        %v5616 = vpop.permute.xlu0 %5615
        %5617 = vrot.lane.b32.xlu0 %v2416, 20
        %v5618 = vpop.permute.xlu0 %5617
        %5619 = vrot.lane.b32.xlu0 %v2420, 20
        %v5620 = vpop.permute.xlu0 %5619
        %5621 = vrot.lane.b32.xlu0 %v2419, 20
        %v5622 = vpop.permute.xlu0 %5621
        %5623 = vrot.lane.b32.xlu0 %v2423, 20
        %v5624 = vpop.permute.xlu0 %5623
        %5625 = vrot.lane.b32.xlu0 %v2422, 20
        %v5626 = vpop.permute.xlu0 %5625
        %5627 = vrot.lane.b32.xlu0 %v2426, 20
        %v5628 = vpop.permute.xlu0 %5627
        %5629 = vrot.lane.b32.xlu0 %v2425, 20
        %v5630 = vpop.permute.xlu0 %5629
        %5631 = vrot.lane.b32.xlu0 %v2429, 20
        %v5632 = vpop.permute.xlu0 %5631
        %5633 = vrot.lane.b32.xlu0 %v2428, 20
        %v5634 = vpop.permute.xlu0 %5633
        %5635 = vrot.lane.b32.xlu0 %v2432, 20
        %v5636 = vpop.permute.xlu0 %5635
        %5637 = vrot.lane.b32.xlu0 %v2431, 20
        %v5638 = vpop.permute.xlu0 %5637
        %5639 = vrot.lane.b32.xlu0 %v2435, 20
        %v5640 = vpop.permute.xlu0 %5639
        %5641 = vrot.lane.b32.xlu0 %v2434, 20
        %v5642 = vpop.permute.xlu0 %5641
        %5643 = vrot.lane.b32.xlu0 %v2438, 20
        %v5644 = vpop.permute.xlu0 %5643
        %5645 = vrot.lane.b32.xlu0 %v2437, 20
        %v5646 = vpop.permute.xlu0 %5645
        %5647 = vrot.lane.b32.xlu0 %v2441, 20
        %v5648 = vpop.permute.xlu0 %5647
        %5649 = vrot.lane.b32.xlu0 %v2440, 20
        %v5650 = vpop.permute.xlu0 %5649
        %5651 = vrot.lane.b32.xlu0 %v2444, 20
        %v5652 = vpop.permute.xlu0 %5651
        %5653 = vrot.lane.b32.xlu0 %v2443, 20
        %v5654 = vpop.permute.xlu0 %5653
        %5655 = vrot.lane.b32.xlu0 %v2447, 20
        %v5656 = vpop.permute.xlu0 %5655
        %5657 = vrot.lane.b32.xlu0 %v2446, 20
        %v5658 = vpop.permute.xlu0 %5657
        %5659 = vrot.lane.b32.xlu0 %v2450, 20
        %v5660 = vpop.permute.xlu0 %5659
        %5661 = vrot.lane.b32.xlu0 %v2449, 20
        %v5662 = vpop.permute.xlu0 %5661
        %5663 = vrot.lane.b32.xlu0 %v2453, 20
        %v5664 = vpop.permute.xlu0 %5663
        %5665 = vrot.lane.b32.xlu0 %v2452, 20
        %v5666 = vpop.permute.xlu0 %5665
        %5667 = vrot.lane.b32.xlu0 %v2456, 20
        %v5668 = vpop.permute.xlu0 %5667
        %5669 = vrot.lane.b32.xlu0 %v2455, 20
        %v5670 = vpop.permute.xlu0 %5669
        %5671 = vrot.lane.b32.xlu0 %v2459, 20
        %v5672 = vpop.permute.xlu0 %5671
        %5673 = vrot.lane.b32.xlu0 %v2458, 20
        %v5674 = vpop.permute.xlu0 %5673
        %5675 = vrot.lane.b32.xlu0 %v2462, 20
        %v5676 = vpop.permute.xlu0 %5675
        %5677 = vrot.lane.b32.xlu0 %v2461, 20
        %v5678 = vpop.permute.xlu0 %5677
        %5679 = vrot.lane.b32.xlu0 %v2465, 20
        %v5680 = vpop.permute.xlu0 %5679
        %5681 = vrot.lane.b32.xlu0 %v2464, 20
        %v5682 = vpop.permute.xlu0 %5681
        %5683 = vrot.lane.b32.xlu0 %v2468, 20
        %v5684 = vpop.permute.xlu0 %5683
        %5685 = vrot.lane.b32.xlu0 %v2467, 20
        %v5686 = vpop.permute.xlu0 %5685
        %5687 = vrot.lane.b32.xlu0 %v2471, 20
        %v5688 = vpop.permute.xlu0 %5687
        %5689 = vrot.lane.b32.xlu0 %v2470, 20
        %v5690 = vpop.permute.xlu0 %5689
        %5691 = vrot.lane.b32.xlu0 %v2474, 20
        %v5692 = vpop.permute.xlu0 %5691
        %5693 = vrot.lane.b32.xlu0 %v2473, 20
        %v5694 = vpop.permute.xlu0 %5693
        %5695 = vrot.lane.b32.xlu0 %v2477, 20
        %v5696 = vpop.permute.xlu0 %5695
        %5697 = vrot.lane.b32.xlu0 %v2476, 20
        %v5698 = vpop.permute.xlu0 %5697
        %5699 = vrot.lane.b32.xlu0 %v2480, 20
        %v5700 = vpop.permute.xlu0 %5699
        %5701 = vrot.lane.b32.xlu0 %v2479, 20
        %v5702 = vpop.permute.xlu0 %5701
        %5703 = vrot.lane.b32.xlu0 %v2483, 20
        %v5704 = vpop.permute.xlu0 %5703
        %5705 = vrot.lane.b32.xlu0 %v2482, 20
        %v5706 = vpop.permute.xlu0 %5705
        %5707 = vrot.lane.b32.xlu0 %v2486, 20
        %v5708 = vpop.permute.xlu0 %5707
        %5709 = vrot.lane.b32.xlu0 %v2485, 20
        %v5710 = vpop.permute.xlu0 %5709
        %5711 = vrot.lane.b32.xlu0 %v2489, 20
        %v5712 = vpop.permute.xlu0 %5711
        %5713 = vrot.lane.b32.xlu0 %v2488, 20
        %v5714 = vpop.permute.xlu0 %5713
        %5715 = vrot.lane.b32.xlu0 %v2492, 20
        %v5716 = vpop.permute.xlu0 %5715
        %5717 = vrot.lane.b32.xlu0 %v2491, 20
        %v5718 = vpop.permute.xlu0 %5717
        %5719 = vrot.lane.b32.xlu0 %v2495, 20
        %v5720 = vpop.permute.xlu0 %5719
        %5721 = vrot.lane.b32.xlu0 %v2494, 20
        %v5722 = vpop.permute.xlu0 %5721
        %5723 = vrot.lane.b32.xlu0 %v2498, 20
        %v5724 = vpop.permute.xlu0 %5723
        %5725 = vrot.lane.b32.xlu0 %v2497, 20
        %v5726 = vpop.permute.xlu0 %5725
        %5727 = vrot.lane.b32.xlu0 %v2501, 20
        %v5728 = vpop.permute.xlu0 %5727
        %5729 = vrot.lane.b32.xlu0 %v2500, 20
        %v5730 = vpop.permute.xlu0 %5729
        %5731 = vrot.lane.b32.xlu0 %v2504, 20
        %v5732 = vpop.permute.xlu0 %5731
        %5733 = vrot.lane.b32.xlu0 %v2503, 20
        %v5734 = vpop.permute.xlu0 %5733
        %5735 = vrot.lane.b32.xlu0 %v2640, 24
        %v5736 = vpop.permute.xlu0 %5735
        %5737 = vrot.lane.b32.xlu0 %v2639, 24
        %v5738 = vpop.permute.xlu0 %5737
        %5739 = vrot.lane.b32.xlu0 %v2647, 24
        %v5740 = vpop.permute.xlu0 %5739
        %5741 = vrot.lane.b32.xlu0 %v2646, 24
        %v5742 = vpop.permute.xlu0 %5741
        %5743 = vrot.lane.b32.xlu0 %v2654, 24
        %v5744 = vpop.permute.xlu0 %5743
        %5745 = vrot.lane.b32.xlu0 %v2653, 24
        %v5746 = vpop.permute.xlu0 %5745
        %5747 = vrot.lane.b32.xlu0 %v2661, 24
        %v5748 = vpop.permute.xlu0 %5747
        %5749 = vrot.lane.b32.xlu0 %v2660, 24
        %v5750 = vpop.permute.xlu0 %5749
        %5751 = vrot.lane.b32.xlu0 %v2668, 24
        %v5752 = vpop.permute.xlu0 %5751
        %5753 = vrot.lane.b32.xlu0 %v2667, 24
        %v5754 = vpop.permute.xlu0 %5753
        %5755 = vrot.lane.b32.xlu0 %v2675, 24
        %v5756 = vpop.permute.xlu0 %5755
        %5757 = vrot.lane.b32.xlu0 %v2674, 24
        %v5758 = vpop.permute.xlu0 %5757
        %5759 = vrot.lane.b32.xlu0 %v2682, 24
        %v5760 = vpop.permute.xlu0 %5759
        %5761 = vrot.lane.b32.xlu0 %v2681, 24
        %v5762 = vpop.permute.xlu0 %5761
        %5763 = vrot.lane.b32.xlu0 %v2689, 24
        %v5764 = vpop.permute.xlu0 %5763
        %5765 = vrot.lane.b32.xlu0 %v2688, 24
        %v5766 = vpop.permute.xlu0 %5765
        %5767 = vrot.lane.b32.xlu0 %v2696, 24
        %v5768 = vpop.permute.xlu0 %5767
        %5769 = vrot.lane.b32.xlu0 %v2695, 24
        %v5770 = vpop.permute.xlu0 %5769
        %5771 = vrot.lane.b32.xlu0 %v2703, 24
        %v5772 = vpop.permute.xlu0 %5771
        %5773 = vrot.lane.b32.xlu0 %v2702, 24
        %v5774 = vpop.permute.xlu0 %5773
        %5775 = vrot.lane.b32.xlu0 %v2710, 24
        %v5776 = vpop.permute.xlu0 %5775
        %5777 = vrot.lane.b32.xlu0 %v2709, 24
        %v5778 = vpop.permute.xlu0 %5777
        %5779 = vrot.lane.b32.xlu0 %v2717, 24
        %v5780 = vpop.permute.xlu0 %5779
        %5781 = vrot.lane.b32.xlu0 %v2716, 24
        %v5782 = vpop.permute.xlu0 %5781
        %5783 = vrot.lane.b32.xlu0 %v2724, 24
        %v5784 = vpop.permute.xlu0 %5783
        %5785 = vrot.lane.b32.xlu0 %v2723, 24
        %v5786 = vpop.permute.xlu0 %5785
        %5787 = vrot.lane.b32.xlu0 %v2731, 24
        %v5788 = vpop.permute.xlu0 %5787
        %5789 = vrot.lane.b32.xlu0 %v2730, 24
        %v5790 = vpop.permute.xlu0 %5789
        %5791 = vrot.lane.b32.xlu0 %v2738, 24
        %v5792 = vpop.permute.xlu0 %5791
        %5793 = vrot.lane.b32.xlu0 %v2737, 24
        %v5794 = vpop.permute.xlu0 %5793
        %5795 = vrot.lane.b32.xlu0 %v2745, 24
        %v5796 = vpop.permute.xlu0 %5795
        %5797 = vrot.lane.b32.xlu0 %v2744, 24
        %v5798 = vpop.permute.xlu0 %5797
        %5799 = vrot.lane.b32.xlu0 %v2752, 24
        %v5800 = vpop.permute.xlu0 %5799
        %5801 = vrot.lane.b32.xlu0 %v2751, 24
        %v5802 = vpop.permute.xlu0 %5801
        %5803 = vrot.lane.b32.xlu0 %v2759, 24
        %v5804 = vpop.permute.xlu0 %5803
        %5805 = vrot.lane.b32.xlu0 %v2758, 24
        %v5806 = vpop.permute.xlu0 %5805
        %5807 = vrot.lane.b32.xlu0 %v2766, 24
        %v5808 = vpop.permute.xlu0 %5807
        %5809 = vrot.lane.b32.xlu0 %v2765, 24
        %v5810 = vpop.permute.xlu0 %5809
        %5811 = vrot.lane.b32.xlu0 %v2773, 24
        %v5812 = vpop.permute.xlu0 %5811
        %5813 = vrot.lane.b32.xlu0 %v2772, 24
        %v5814 = vpop.permute.xlu0 %5813
        %5815 = vrot.lane.b32.xlu0 %v2780, 24
        %v5816 = vpop.permute.xlu0 %5815
        %5817 = vrot.lane.b32.xlu0 %v2779, 24
        %v5818 = vpop.permute.xlu0 %5817
        %5819 = vrot.lane.b32.xlu0 %v2787, 24
        %v5820 = vpop.permute.xlu0 %5819
        %5821 = vrot.lane.b32.xlu0 %v2786, 24
        %v5822 = vpop.permute.xlu0 %5821
        %5823 = vrot.lane.b32.xlu0 %v2794, 24
        %v5824 = vpop.permute.xlu0 %5823
        %5825 = vrot.lane.b32.xlu0 %v2793, 24
        %v5826 = vpop.permute.xlu0 %5825
        %5827 = vrot.lane.b32.xlu0 %v2801, 24
        %v5828 = vpop.permute.xlu0 %5827
        %5829 = vrot.lane.b32.xlu0 %v2800, 24
        %v5830 = vpop.permute.xlu0 %5829
        %5831 = vrot.lane.b32.xlu0 %v2808, 24
        %v5832 = vpop.permute.xlu0 %5831
        %5833 = vrot.lane.b32.xlu0 %v2807, 24
        %v5834 = vpop.permute.xlu0 %5833
        %5835 = vrot.lane.b32.xlu0 %v2815, 24
        %v5836 = vpop.permute.xlu0 %5835
        %5837 = vrot.lane.b32.xlu0 %v2814, 24
        %v5838 = vpop.permute.xlu0 %5837
        %5839 = vrot.lane.b32.xlu0 %v2822, 24
        %v5840 = vpop.permute.xlu0 %5839
        %5841 = vrot.lane.b32.xlu0 %v2821, 24
        %v5842 = vpop.permute.xlu0 %5841
        %5843 = vrot.lane.b32.xlu0 %v2829, 24
        %v5844 = vpop.permute.xlu0 %5843
        %5845 = vrot.lane.b32.xlu0 %v2828, 24
        %v5846 = vpop.permute.xlu0 %5845
        %5847 = vrot.lane.b32.xlu0 %v2836, 24
        %v5848 = vpop.permute.xlu0 %5847
        %5849 = vrot.lane.b32.xlu0 %v2835, 24
        %v5850 = vpop.permute.xlu0 %5849
        %5851 = vrot.lane.b32.xlu0 %v2843, 24
        %v5852 = vpop.permute.xlu0 %5851
        %5853 = vrot.lane.b32.xlu0 %v2842, 24
        %v5854 = vpop.permute.xlu0 %5853
        %5855 = vrot.lane.b32.xlu0 %v2850, 24
        %v5856 = vpop.permute.xlu0 %5855
        %5857 = vrot.lane.b32.xlu0 %v2849, 24
        %v5858 = vpop.permute.xlu0 %5857
        %5859 = vrot.lane.b32.xlu0 %v2857, 24
        %v5860 = vpop.permute.xlu0 %5859
        %5861 = vrot.lane.b32.xlu0 %v2856, 24
        %v5862 = vpop.permute.xlu0 %5861
        %v5864 = vsel %vm3338, %v712, %v5096
        %v5866 = vsel %vm3338, %v840, %v5098
        %v5868 = vsel %vm3338, %v714, %v5100
        %v5870 = vsel %vm3338, %v842, %v5102
        %v5872 = vsel %vm3338, %v716, %v5104
        %v5874 = vsel %vm3338, %v844, %v5106
        %v5876 = vsel %vm3338, %v718, %v5108
        %v5878 = vsel %vm3338, %v846, %v5110
        %v5880 = vsel %vm3338, %v720, %v5112
        %v5882 = vsel %vm3338, %v848, %v5114
        %v5884 = vsel %vm3338, %v722, %v5116
        %v5886 = vsel %vm3338, %v850, %v5118
        %v5888 = vsel %vm3338, %v724, %v5120
        %v5890 = vsel %vm3338, %v852, %v5122
        %v5892 = vsel %vm3338, %v726, %v5124
        %v5894 = vsel %vm3338, %v854, %v5126
        %v5896 = vsel %vm3338, %v728, %v5128
        %v5898 = vsel %vm3338, %v856, %v5130
        %v5900 = vsel %vm3338, %v730, %v5132
        %v5902 = vsel %vm3338, %v858, %v5134
        %v5904 = vsel %vm3338, %v732, %v5136
        %v5906 = vsel %vm3338, %v860, %v5138
        %v5908 = vsel %vm3338, %v734, %v5140
        %v5910 = vsel %vm3338, %v862, %v5142
        %v5912 = vsel %vm3338, %v736, %v5144
        %v5914 = vsel %vm3338, %v864, %v5146
        %v5916 = vsel %vm3338, %v738, %v5148
        %v5918 = vsel %vm3338, %v866, %v5150
        %v5920 = vsel %vm3338, %v740, %v5152
        %v5922 = vsel %vm3338, %v868, %v5154
        %v5924 = vsel %vm3338, %v742, %v5156
        %v5926 = vsel %vm3338, %v870, %v5158
        %v5928 = vsel %vm3338, %v744, %v5160
        %v5930 = vsel %vm3338, %v872, %v5162
        %v5932 = vsel %vm3338, %v746, %v5164
        %v5934 = vsel %vm3338, %v874, %v5166
        %v5936 = vsel %vm3338, %v748, %v5168
        %v5938 = vsel %vm3338, %v876, %v5170
        %v5940 = vsel %vm3338, %v750, %v5172
        %v5942 = vsel %vm3338, %v878, %v5174
        %v5944 = vsel %vm3338, %v752, %v5176
        %v5946 = vsel %vm3338, %v880, %v5178
        %v5948 = vsel %vm3338, %v754, %v5180
        %v5950 = vsel %vm3338, %v882, %v5182
        %v5952 = vsel %vm3338, %v756, %v5184
        %v5954 = vsel %vm3338, %v884, %v5186
        %v5956 = vsel %vm3338, %v758, %v5188
        %v5958 = vsel %vm3338, %v886, %v5190
        %v5960 = vsel %vm3338, %v760, %v5192
        %v5962 = vsel %vm3338, %v888, %v5194
        %v5964 = vsel %vm3338, %v762, %v5196
        %v5966 = vsel %vm3338, %v890, %v5198
        %v5968 = vsel %vm3338, %v764, %v5200
        %v5970 = vsel %vm3338, %v892, %v5202
        %v5972 = vsel %vm3338, %v766, %v5204
        %v5974 = vsel %vm3338, %v894, %v5206
        %v5976 = vsel %vm3338, %v768, %v5208
        %v5978 = vsel %vm3338, %v896, %v5210
        %v5980 = vsel %vm3338, %v770, %v5212
        %v5982 = vsel %vm3338, %v898, %v5214
        %v5984 = vsel %vm3338, %v772, %v5216
        %v5986 = vsel %vm3338, %v900, %v5218
        %v5988 = vsel %vm3338, %v774, %v5220
        %v5990 = vsel %vm3338, %v902, %v5222
        %v5992 = vsel %vm3467, %v5864, %v5224
        %v5994 = vsel %vm3467, %v5866, %v5226
        %v5996 = vsel %vm3467, %v5868, %v5228
        %v5998 = vsel %vm3467, %v5870, %v5230
        %v6000 = vsel %vm3467, %v5872, %v5232
        %v6002 = vsel %vm3467, %v5874, %v5234
        %v6004 = vsel %vm3467, %v5876, %v5236
        %v6006 = vsel %vm3467, %v5878, %v5238
        %v6008 = vsel %vm3467, %v5880, %v5240
        %v6010 = vsel %vm3467, %v5882, %v5242
        %v6012 = vsel %vm3467, %v5884, %v5244
        %v6014 = vsel %vm3467, %v5886, %v5246
        %v6016 = vsel %vm3467, %v5888, %v5248
        %v6018 = vsel %vm3467, %v5890, %v5250
        %v6020 = vsel %vm3467, %v5892, %v5252
        %v6022 = vsel %vm3467, %v5894, %v5254
        %v6024 = vsel %vm3467, %v5896, %v5256
        %v6026 = vsel %vm3467, %v5898, %v5258
        %v6028 = vsel %vm3467, %v5900, %v5260
        %v6030 = vsel %vm3467, %v5902, %v5262
        %v6032 = vsel %vm3467, %v5904, %v5264
        %v6034 = vsel %vm3467, %v5906, %v5266
        %v6036 = vsel %vm3467, %v5908, %v5268
        %v6038 = vsel %vm3467, %v5910, %v5270
        %v6040 = vsel %vm3467, %v5912, %v5272
        %v6042 = vsel %vm3467, %v5914, %v5274
        %v6044 = vsel %vm3467, %v5916, %v5276
        %v6046 = vsel %vm3467, %v5918, %v5278
        %v6048 = vsel %vm3467, %v5920, %v5280
        %v6050 = vsel %vm3467, %v5922, %v5282
        %v6052 = vsel %vm3467, %v5924, %v5284
        %v6054 = vsel %vm3467, %v5926, %v5286
        %v6056 = vsel %vm3467, %v5928, %v5288
        %v6058 = vsel %vm3467, %v5930, %v5290
        %v6060 = vsel %vm3467, %v5932, %v5292
        %v6062 = vsel %vm3467, %v5934, %v5294
        %v6064 = vsel %vm3467, %v5936, %v5296
        %v6066 = vsel %vm3467, %v5938, %v5298
        %v6068 = vsel %vm3467, %v5940, %v5300
        %v6070 = vsel %vm3467, %v5942, %v5302
        %v6072 = vsel %vm3467, %v5944, %v5304
        %v6074 = vsel %vm3467, %v5946, %v5306
        %v6076 = vsel %vm3467, %v5948, %v5308
        %v6078 = vsel %vm3467, %v5950, %v5310
        %v6080 = vsel %vm3467, %v5952, %v5312
        %v6082 = vsel %vm3467, %v5954, %v5314
        %v6084 = vsel %vm3467, %v5956, %v5316
        %v6086 = vsel %vm3467, %v5958, %v5318
        %v6088 = vsel %vm3467, %v5960, %v5320
        %v6090 = vsel %vm3467, %v5962, %v5322
        %v6092 = vsel %vm3467, %v5964, %v5324
        %v6094 = vsel %vm3467, %v5966, %v5326
        %v6096 = vsel %vm3467, %v5968, %v5328
        %v6098 = vsel %vm3467, %v5970, %v5330
        %v6100 = vsel %vm3467, %v5972, %v5332
        %v6102 = vsel %vm3467, %v5974, %v5334
        %v6104 = vsel %vm3467, %v5976, %v5336
        %v6106 = vsel %vm3467, %v5978, %v5338
        %v6108 = vsel %vm3467, %v5980, %v5340
        %v6110 = vsel %vm3467, %v5982, %v5342
        %v6112 = vsel %vm3467, %v5984, %v5344
        %v6114 = vsel %vm3467, %v5986, %v5346
        %v6116 = vsel %vm3467, %v5988, %v5348
        %v6118 = vsel %vm3467, %v5990, %v5350
        %v6120 = vsel %vm3596, %v5992, %v5352
        %v6122 = vsel %vm3596, %v5994, %v5354
        %v6124 = vsel %vm3596, %v5996, %v5356
        %v6126 = vsel %vm3596, %v5998, %v5358
        %v6128 = vsel %vm3596, %v6000, %v5360
        %v6130 = vsel %vm3596, %v6002, %v5362
        %v6132 = vsel %vm3596, %v6004, %v5364
        %v6134 = vsel %vm3596, %v6006, %v5366
        %v6136 = vsel %vm3596, %v6008, %v5368
        %v6138 = vsel %vm3596, %v6010, %v5370
        %v6140 = vsel %vm3596, %v6012, %v5372
        %v6142 = vsel %vm3596, %v6014, %v5374
        %v6144 = vsel %vm3596, %v6016, %v5376
        %v6146 = vsel %vm3596, %v6018, %v5378
        %v6148 = vsel %vm3596, %v6020, %v5380
        %v6150 = vsel %vm3596, %v6022, %v5382
        %v6152 = vsel %vm3596, %v6024, %v5384
        %v6154 = vsel %vm3596, %v6026, %v5386
        %v6156 = vsel %vm3596, %v6028, %v5388
        %v6158 = vsel %vm3596, %v6030, %v5390
        %v6160 = vsel %vm3596, %v6032, %v5392
        %v6162 = vsel %vm3596, %v6034, %v5394
        %v6164 = vsel %vm3596, %v6036, %v5396
        %v6166 = vsel %vm3596, %v6038, %v5398
        %v6168 = vsel %vm3596, %v6040, %v5400
        %v6170 = vsel %vm3596, %v6042, %v5402
        %v6172 = vsel %vm3596, %v6044, %v5404
        %v6174 = vsel %vm3596, %v6046, %v5406
        %v6176 = vsel %vm3596, %v6048, %v5408
        %v6178 = vsel %vm3596, %v6050, %v5410
        %v6180 = vsel %vm3596, %v6052, %v5412
        %v6182 = vsel %vm3596, %v6054, %v5414
        %v6184 = vsel %vm3596, %v6056, %v5416
        %v6186 = vsel %vm3596, %v6058, %v5418
        %v6188 = vsel %vm3596, %v6060, %v5420
        %v6190 = vsel %vm3596, %v6062, %v5422
        %v6192 = vsel %vm3596, %v6064, %v5424
        %v6194 = vsel %vm3596, %v6066, %v5426
        %v6196 = vsel %vm3596, %v6068, %v5428
        %v6198 = vsel %vm3596, %v6070, %v5430
        %v6200 = vsel %vm3596, %v6072, %v5432
        %v6202 = vsel %vm3596, %v6074, %v5434
        %v6204 = vsel %vm3596, %v6076, %v5436
        %v6206 = vsel %vm3596, %v6078, %v5438
        %v6208 = vsel %vm3596, %v6080, %v5440
        %v6210 = vsel %vm3596, %v6082, %v5442
        %v6212 = vsel %vm3596, %v6084, %v5444
        %v6214 = vsel %vm3596, %v6086, %v5446
        %v6216 = vsel %vm3596, %v6088, %v5448
        %v6218 = vsel %vm3596, %v6090, %v5450
        %v6220 = vsel %vm3596, %v6092, %v5452
        %v6222 = vsel %vm3596, %v6094, %v5454
        %v6224 = vsel %vm3596, %v6096, %v5456
        %v6226 = vsel %vm3596, %v6098, %v5458
        %v6228 = vsel %vm3596, %v6100, %v5460
        %v6230 = vsel %vm3596, %v6102, %v5462
        %v6232 = vsel %vm3596, %v6104, %v5464
        %v6234 = vsel %vm3596, %v6106, %v5466
        %v6236 = vsel %vm3596, %v6108, %v5468
        %v6238 = vsel %vm3596, %v6110, %v5470
        %v6240 = vsel %vm3596, %v6112, %v5472
        %v6242 = vsel %vm3596, %v6114, %v5474
        %v6244 = vsel %vm3596, %v6116, %v5476
        %v6246 = vsel %vm3596, %v6118, %v5478
        %v6248 = vsel %vm3725, %v6120, %v5480
        %v6250 = vsel %vm3725, %v6122, %v5482
        %v6252 = vsel %vm3725, %v6124, %v5484
        %v6254 = vsel %vm3725, %v6126, %v5486
        %v6256 = vsel %vm3725, %v6128, %v5488
        %v6258 = vsel %vm3725, %v6130, %v5490
        %v6260 = vsel %vm3725, %v6132, %v5492
        %v6262 = vsel %vm3725, %v6134, %v5494
        %v6264 = vsel %vm3725, %v6136, %v5496
        %v6266 = vsel %vm3725, %v6138, %v5498
        %v6268 = vsel %vm3725, %v6140, %v5500
        %v6270 = vsel %vm3725, %v6142, %v5502
        %v6272 = vsel %vm3725, %v6144, %v5504
        %v6274 = vsel %vm3725, %v6146, %v5506
        %v6276 = vsel %vm3725, %v6148, %v5508
        %v6278 = vsel %vm3725, %v6150, %v5510
        %v6280 = vsel %vm3725, %v6152, %v5512
        %v6282 = vsel %vm3725, %v6154, %v5514
        %v6284 = vsel %vm3725, %v6156, %v5516
        %v6286 = vsel %vm3725, %v6158, %v5518
        %v6288 = vsel %vm3725, %v6160, %v5520
        %v6290 = vsel %vm3725, %v6162, %v5522
        %v6292 = vsel %vm3725, %v6164, %v5524
        %v6294 = vsel %vm3725, %v6166, %v5526
        %v6296 = vsel %vm3725, %v6168, %v5528
        %v6298 = vsel %vm3725, %v6170, %v5530
        %v6300 = vsel %vm3725, %v6172, %v5532
        %v6302 = vsel %vm3725, %v6174, %v5534
        %v6304 = vsel %vm3725, %v6176, %v5536
        %v6306 = vsel %vm3725, %v6178, %v5538
        %v6308 = vsel %vm3725, %v6180, %v5540
        %v6310 = vsel %vm3725, %v6182, %v5542
        %v6312 = vsel %vm3725, %v6184, %v5544
        %v6314 = vsel %vm3725, %v6186, %v5546
        %v6316 = vsel %vm3725, %v6188, %v5548
        %v6318 = vsel %vm3725, %v6190, %v5550
        %v6320 = vsel %vm3725, %v6192, %v5552
        %v6322 = vsel %vm3725, %v6194, %v5554
        %v6324 = vsel %vm3725, %v6196, %v5556
        %v6326 = vsel %vm3725, %v6198, %v5558
        %v6328 = vsel %vm3725, %v6200, %v5560
        %v6330 = vsel %vm3725, %v6202, %v5562
        %v6332 = vsel %vm3725, %v6204, %v5564
        %v6334 = vsel %vm3725, %v6206, %v5566
        %v6336 = vsel %vm3725, %v6208, %v5568
        %v6338 = vsel %vm3725, %v6210, %v5570
        %v6340 = vsel %vm3725, %v6212, %v5572
        %v6342 = vsel %vm3725, %v6214, %v5574
        %v6344 = vsel %vm3725, %v6216, %v5576
        %v6346 = vsel %vm3725, %v6218, %v5578
        %v6348 = vsel %vm3725, %v6220, %v5580
        %v6350 = vsel %vm3725, %v6222, %v5582
        %v6352 = vsel %vm3725, %v6224, %v5584
        %v6354 = vsel %vm3725, %v6226, %v5586
        %v6356 = vsel %vm3725, %v6228, %v5588
        %v6358 = vsel %vm3725, %v6230, %v5590
        %v6360 = vsel %vm3725, %v6232, %v5592
        %v6362 = vsel %vm3725, %v6234, %v5594
        %v6364 = vsel %vm3725, %v6236, %v5596
        %v6366 = vsel %vm3725, %v6238, %v5598
        %v6368 = vsel %vm3725, %v6240, %v5600
        %v6370 = vsel %vm3725, %v6242, %v5602
        %v6372 = vsel %vm3725, %v6244, %v5604
        %v6374 = vsel %vm3725, %v6246, %v5606
        %v6376 = vsel %vm3854, %v6248, %v5608
        %v6378 = vsel %vm3854, %v6250, %v5610
        %v6380 = vsel %vm3854, %v6252, %v5612
        %v6382 = vsel %vm3854, %v6254, %v5614
        %v6384 = vsel %vm3854, %v6256, %v5616
        %v6386 = vsel %vm3854, %v6258, %v5618
        %v6388 = vsel %vm3854, %v6260, %v5620
        %v6390 = vsel %vm3854, %v6262, %v5622
        %v6392 = vsel %vm3854, %v6264, %v5624
        %v6394 = vsel %vm3854, %v6266, %v5626
        %v6396 = vsel %vm3854, %v6268, %v5628
        %v6398 = vsel %vm3854, %v6270, %v5630
        %v6400 = vsel %vm3854, %v6272, %v5632
        %v6402 = vsel %vm3854, %v6274, %v5634
        %v6404 = vsel %vm3854, %v6276, %v5636
        %v6406 = vsel %vm3854, %v6278, %v5638
        %v6408 = vsel %vm3854, %v6280, %v5640
        %v6410 = vsel %vm3854, %v6282, %v5642
        %v6412 = vsel %vm3854, %v6284, %v5644
        %v6414 = vsel %vm3854, %v6286, %v5646
        %v6416 = vsel %vm3854, %v6288, %v5648
        %v6418 = vsel %vm3854, %v6290, %v5650
        %v6420 = vsel %vm3854, %v6292, %v5652
        %v6422 = vsel %vm3854, %v6294, %v5654
        %v6424 = vsel %vm3854, %v6296, %v5656
        %v6426 = vsel %vm3854, %v6298, %v5658
        %v6428 = vsel %vm3854, %v6300, %v5660
        %v6430 = vsel %vm3854, %v6302, %v5662
        %v6432 = vsel %vm3854, %v6304, %v5664
        %v6434 = vsel %vm3854, %v6306, %v5666
        %v6436 = vsel %vm3854, %v6308, %v5668
        %v6438 = vsel %vm3854, %v6310, %v5670
        %v6440 = vsel %vm3854, %v6312, %v5672
        %v6442 = vsel %vm3854, %v6314, %v5674
        %v6444 = vsel %vm3854, %v6316, %v5676
        %v6446 = vsel %vm3854, %v6318, %v5678
        %v6448 = vsel %vm3854, %v6320, %v5680
        %v6450 = vsel %vm3854, %v6322, %v5682
        %v6452 = vsel %vm3854, %v6324, %v5684
        %v6454 = vsel %vm3854, %v6326, %v5686
        %v6456 = vsel %vm3854, %v6328, %v5688
        %v6458 = vsel %vm3854, %v6330, %v5690
        %v6460 = vsel %vm3854, %v6332, %v5692
        %v6462 = vsel %vm3854, %v6334, %v5694
        %v6464 = vsel %vm3854, %v6336, %v5696
        %v6466 = vsel %vm3854, %v6338, %v5698
        %v6468 = vsel %vm3854, %v6340, %v5700
        %v6470 = vsel %vm3854, %v6342, %v5702
        %v6472 = vsel %vm3854, %v6344, %v5704
        %v6474 = vsel %vm3854, %v6346, %v5706
        %v6476 = vsel %vm3854, %v6348, %v5708
        %v6478 = vsel %vm3854, %v6350, %v5710
        %v6480 = vsel %vm3854, %v6352, %v5712
        %v6482 = vsel %vm3854, %v6354, %v5714
        %v6484 = vsel %vm3854, %v6356, %v5716
        %v6486 = vsel %vm3854, %v6358, %v5718
        %v6488 = vsel %vm3854, %v6360, %v5720
        %v6490 = vsel %vm3854, %v6362, %v5722
        %v6492 = vsel %vm3854, %v6364, %v5724
        %v6494 = vsel %vm3854, %v6366, %v5726
        %v6496 = vsel %vm3854, %v6368, %v5728
        %v6498 = vsel %vm3854, %v6370, %v5730
        %v6500 = vsel %vm3854, %v6372, %v5732
        %v6502 = vsel %vm3854, %v6374, %v5734
        %v6504 = vsel %vm3983, %v6376, %v5736
        %v6506 = vsel %vm3983, %v6378, %v5738
        %v6508 = vsel %vm3983, %v6380, %v5740
        %v6510 = vsel %vm3983, %v6382, %v5742
        %v6512 = vsel %vm3983, %v6384, %v5744
        %v6514 = vsel %vm3983, %v6386, %v5746
        %v6516 = vsel %vm3983, %v6388, %v5748
        %v6518 = vsel %vm3983, %v6390, %v5750
        %v6520 = vsel %vm3983, %v6392, %v5752
        %v6522 = vsel %vm3983, %v6394, %v5754
        %v6524 = vsel %vm3983, %v6396, %v5756
        %v6526 = vsel %vm3983, %v6398, %v5758
        %v6528 = vsel %vm3983, %v6400, %v5760
        %v6530 = vsel %vm3983, %v6402, %v5762
        %v6532 = vsel %vm3983, %v6404, %v5764
        %v6534 = vsel %vm3983, %v6406, %v5766
        %v6536 = vsel %vm3983, %v6408, %v5768
        %v6538 = vsel %vm3983, %v6410, %v5770
        %v6540 = vsel %vm3983, %v6412, %v5772
        %v6542 = vsel %vm3983, %v6414, %v5774
        %v6544 = vsel %vm3983, %v6416, %v5776
        %v6546 = vsel %vm3983, %v6418, %v5778
        %v6548 = vsel %vm3983, %v6420, %v5780
        %v6550 = vsel %vm3983, %v6422, %v5782
        %v6552 = vsel %vm3983, %v6424, %v5784
        %v6554 = vsel %vm3983, %v6426, %v5786
        %v6556 = vsel %vm3983, %v6428, %v5788
        %v6558 = vsel %vm3983, %v6430, %v5790
        %v6560 = vsel %vm3983, %v6432, %v5792
        %v6562 = vsel %vm3983, %v6434, %v5794
        %v6564 = vsel %vm3983, %v6436, %v5796
        %v6566 = vsel %vm3983, %v6438, %v5798
        %v6568 = vsel %vm3983, %v6440, %v5800
        %v6570 = vsel %vm3983, %v6442, %v5802
        %v6572 = vsel %vm3983, %v6444, %v5804
        %v6574 = vsel %vm3983, %v6446, %v5806
        %v6576 = vsel %vm3983, %v6448, %v5808
        %v6578 = vsel %vm3983, %v6450, %v5810
        %v6580 = vsel %vm3983, %v6452, %v5812
        %v6582 = vsel %vm3983, %v6454, %v5814
        %v6584 = vsel %vm3983, %v6456, %v5816
        %v6586 = vsel %vm3983, %v6458, %v5818
        %v6588 = vsel %vm3983, %v6460, %v5820
        %v6590 = vsel %vm3983, %v6462, %v5822
        %v6592 = vsel %vm3983, %v6464, %v5824
        %v6594 = vsel %vm3983, %v6466, %v5826
        %v6596 = vsel %vm3983, %v6468, %v5828
        %v6598 = vsel %vm3983, %v6470, %v5830
        %v6600 = vsel %vm3983, %v6472, %v5832
        %v6602 = vsel %vm3983, %v6474, %v5834
        %v6604 = vsel %vm3983, %v6476, %v5836
        %v6606 = vsel %vm3983, %v6478, %v5838
        %v6608 = vsel %vm3983, %v6480, %v5840
        %v6610 = vsel %vm3983, %v6482, %v5842
        %v6612 = vsel %vm3983, %v6484, %v5844
        %v6614 = vsel %vm3983, %v6486, %v5846
        %v6616 = vsel %vm3983, %v6488, %v5848
        %v6618 = vsel %vm3983, %v6490, %v5850
        %v6620 = vsel %vm3983, %v6492, %v5852
        %v6622 = vsel %vm3983, %v6494, %v5854
        %v6624 = vsel %vm3983, %v6496, %v5856
        %v6626 = vsel %vm3983, %v6498, %v5858
        %v6628 = vsel %vm3983, %v6500, %v5860
        %v6630 = vsel %vm3983, %v6502, %v5862
        %vm6631 = vsmask.f32 4352
        %v6632 = vshrl.u32 %v6504, 16
        %v6634 = vrot.slane %v6632, 3
        %v6635 = vshll.u32 %v6504, 16
        %v6637 = vrot.slane %v6635, 4
        %v6638 = vor.u32 %v6634, %v6637
        %v6639 = vshrl.u32 %v6506, 16
        %v6641 = vrot.slane %v6639, 3
        %v6642 = vshll.u32 %v6506, 16
        %v6644 = vrot.slane %v6642, 4
        %v6645 = vor.u32 %v6641, %v6644
        %v6646 = vsel %vm6631, %v6638, %v6645
        %v6647 = vshrl.u32 %v6508, 16
        %v6649 = vrot.slane %v6647, 3
        %v6650 = vshll.u32 %v6508, 16
        %v6652 = vrot.slane %v6650, 4
        %v6653 = vor.u32 %v6649, %v6652
        %v6654 = vshrl.u32 %v6510, 16
        %v6656 = vrot.slane %v6654, 3
        %v6657 = vshll.u32 %v6510, 16
        %v6659 = vrot.slane %v6657, 4
        %v6660 = vor.u32 %v6656, %v6659
        %v6661 = vsel %vm6631, %v6653, %v6660
        %v6662 = vshrl.u32 %v6512, 16
        %v6664 = vrot.slane %v6662, 3
        %v6665 = vshll.u32 %v6512, 16
        %v6667 = vrot.slane %v6665, 4
        %v6668 = vor.u32 %v6664, %v6667
        %v6669 = vshrl.u32 %v6514, 16
        %v6671 = vrot.slane %v6669, 3
        %v6672 = vshll.u32 %v6514, 16
        %v6674 = vrot.slane %v6672, 4
        %v6675 = vor.u32 %v6671, %v6674
        %v6676 = vsel %vm6631, %v6668, %v6675
        %v6677 = vshrl.u32 %v6516, 16
        %v6679 = vrot.slane %v6677, 3
        %v6680 = vshll.u32 %v6516, 16
        %v6682 = vrot.slane %v6680, 4
        %v6683 = vor.u32 %v6679, %v6682
        %v6684 = vshrl.u32 %v6518, 16
        %v6686 = vrot.slane %v6684, 3
        %v6687 = vshll.u32 %v6518, 16
        %v6689 = vrot.slane %v6687, 4
        %v6690 = vor.u32 %v6686, %v6689
        %v6691 = vsel %vm6631, %v6683, %v6690
        %v6692 = vshrl.u32 %v6520, 16
        %v6694 = vrot.slane %v6692, 3
        %v6695 = vshll.u32 %v6520, 16
        %v6697 = vrot.slane %v6695, 4
        %v6698 = vor.u32 %v6694, %v6697
        %v6699 = vshrl.u32 %v6522, 16
        %v6701 = vrot.slane %v6699, 3
        %v6702 = vshll.u32 %v6522, 16
        %v6704 = vrot.slane %v6702, 4
        %v6705 = vor.u32 %v6701, %v6704
        %v6706 = vsel %vm6631, %v6698, %v6705
        %v6707 = vshrl.u32 %v6524, 16
        %v6709 = vrot.slane %v6707, 3
        %v6710 = vshll.u32 %v6524, 16
        %v6712 = vrot.slane %v6710, 4
        %v6713 = vor.u32 %v6709, %v6712
        %v6714 = vshrl.u32 %v6526, 16
        %v6716 = vrot.slane %v6714, 3
        %v6717 = vshll.u32 %v6526, 16
        %v6719 = vrot.slane %v6717, 4
        %v6720 = vor.u32 %v6716, %v6719
        %v6721 = vsel %vm6631, %v6713, %v6720
        %v6722 = vshrl.u32 %v6528, 16
        %v6724 = vrot.slane %v6722, 3
        %v6725 = vshll.u32 %v6528, 16
        %v6727 = vrot.slane %v6725, 4
        %v6728 = vor.u32 %v6724, %v6727
        %v6729 = vshrl.u32 %v6530, 16
        %v6731 = vrot.slane %v6729, 3
        %v6732 = vshll.u32 %v6530, 16
        %v6734 = vrot.slane %v6732, 4
        %v6735 = vor.u32 %v6731, %v6734
        %v6736 = vsel %vm6631, %v6728, %v6735
        %v6737 = vshrl.u32 %v6532, 16
        %v6739 = vrot.slane %v6737, 3
        %v6740 = vshll.u32 %v6532, 16
        %v6742 = vrot.slane %v6740, 4
        %v6743 = vor.u32 %v6739, %v6742
        %v6744 = vshrl.u32 %v6534, 16
        %v6746 = vrot.slane %v6744, 3
        %v6747 = vshll.u32 %v6534, 16
        %v6749 = vrot.slane %v6747, 4
        %v6750 = vor.u32 %v6746, %v6749
        %v6751 = vsel %vm6631, %v6743, %v6750
        %v6752 = vshrl.u32 %v6536, 16
        %v6754 = vrot.slane %v6752, 3
        %v6755 = vshll.u32 %v6536, 16
        %v6757 = vrot.slane %v6755, 4
        %v6758 = vor.u32 %v6754, %v6757
        %v6759 = vshrl.u32 %v6538, 16
        %v6761 = vrot.slane %v6759, 3
        %v6762 = vshll.u32 %v6538, 16
        %v6764 = vrot.slane %v6762, 4
        %v6765 = vor.u32 %v6761, %v6764
        %v6766 = vsel %vm6631, %v6758, %v6765
        %v6767 = vshrl.u32 %v6540, 16
        %v6769 = vrot.slane %v6767, 3
        %v6770 = vshll.u32 %v6540, 16
        %v6772 = vrot.slane %v6770, 4
        %v6773 = vor.u32 %v6769, %v6772
        %v6774 = vshrl.u32 %v6542, 16
        %v6776 = vrot.slane %v6774, 3
        %v6777 = vshll.u32 %v6542, 16
        %v6779 = vrot.slane %v6777, 4
        %v6780 = vor.u32 %v6776, %v6779
        %v6781 = vsel %vm6631, %v6773, %v6780
        %v6782 = vshrl.u32 %v6544, 16
        %v6784 = vrot.slane %v6782, 3
        %v6785 = vshll.u32 %v6544, 16
        %v6787 = vrot.slane %v6785, 4
        %v6788 = vor.u32 %v6784, %v6787
        %v6789 = vshrl.u32 %v6546, 16
        %v6791 = vrot.slane %v6789, 3
        %v6792 = vshll.u32 %v6546, 16
        %v6794 = vrot.slane %v6792, 4
        %v6795 = vor.u32 %v6791, %v6794
        %v6796 = vsel %vm6631, %v6788, %v6795
        %v6797 = vshrl.u32 %v6548, 16
        %v6799 = vrot.slane %v6797, 3
        %v6800 = vshll.u32 %v6548, 16
        %v6802 = vrot.slane %v6800, 4
        %v6803 = vor.u32 %v6799, %v6802
        %v6804 = vshrl.u32 %v6550, 16
        %v6806 = vrot.slane %v6804, 3
        %v6807 = vshll.u32 %v6550, 16
        %v6809 = vrot.slane %v6807, 4
        %v6810 = vor.u32 %v6806, %v6809
        %v6811 = vsel %vm6631, %v6803, %v6810
        %v6812 = vshrl.u32 %v6552, 16
        %v6814 = vrot.slane %v6812, 3
        %v6815 = vshll.u32 %v6552, 16
        %v6817 = vrot.slane %v6815, 4
        %v6818 = vor.u32 %v6814, %v6817
        %v6819 = vshrl.u32 %v6554, 16
        %v6821 = vrot.slane %v6819, 3
        %v6822 = vshll.u32 %v6554, 16
        %v6824 = vrot.slane %v6822, 4
        %v6825 = vor.u32 %v6821, %v6824
        %v6826 = vsel %vm6631, %v6818, %v6825
        %v6827 = vshrl.u32 %v6556, 16
        %v6829 = vrot.slane %v6827, 3
        %v6830 = vshll.u32 %v6556, 16
        %v6832 = vrot.slane %v6830, 4
        %v6833 = vor.u32 %v6829, %v6832
        %v6834 = vshrl.u32 %v6558, 16
        %v6836 = vrot.slane %v6834, 3
        %v6837 = vshll.u32 %v6558, 16
        %v6839 = vrot.slane %v6837, 4
        %v6840 = vor.u32 %v6836, %v6839
        %v6841 = vsel %vm6631, %v6833, %v6840
        %v6842 = vshrl.u32 %v6560, 16
        %v6844 = vrot.slane %v6842, 3
        %v6845 = vshll.u32 %v6560, 16
        %v6847 = vrot.slane %v6845, 4
        %v6848 = vor.u32 %v6844, %v6847
        %v6849 = vshrl.u32 %v6562, 16
        %v6851 = vrot.slane %v6849, 3
        %v6852 = vshll.u32 %v6562, 16
        %v6854 = vrot.slane %v6852, 4
        %v6855 = vor.u32 %v6851, %v6854
        %v6856 = vsel %vm6631, %v6848, %v6855
        %v6857 = vshrl.u32 %v6564, 16
        %v6859 = vrot.slane %v6857, 3
        %v6860 = vshll.u32 %v6564, 16
        %v6862 = vrot.slane %v6860, 4
        %v6863 = vor.u32 %v6859, %v6862
        %v6864 = vshrl.u32 %v6566, 16
        %v6866 = vrot.slane %v6864, 3
        %v6867 = vshll.u32 %v6566, 16
        %v6869 = vrot.slane %v6867, 4
        %v6870 = vor.u32 %v6866, %v6869
        %v6871 = vsel %vm6631, %v6863, %v6870
        %v6872 = vshrl.u32 %v6568, 16
        %v6874 = vrot.slane %v6872, 3
        %v6875 = vshll.u32 %v6568, 16
        %v6877 = vrot.slane %v6875, 4
        %v6878 = vor.u32 %v6874, %v6877
        %v6879 = vshrl.u32 %v6570, 16
        %v6881 = vrot.slane %v6879, 3
        %v6882 = vshll.u32 %v6570, 16
        %v6884 = vrot.slane %v6882, 4
        %v6885 = vor.u32 %v6881, %v6884
        %v6886 = vsel %vm6631, %v6878, %v6885
        %v6887 = vshrl.u32 %v6572, 16
        %v6889 = vrot.slane %v6887, 3
        %v6890 = vshll.u32 %v6572, 16
        %v6892 = vrot.slane %v6890, 4
        %v6893 = vor.u32 %v6889, %v6892
        %v6894 = vshrl.u32 %v6574, 16
        %v6896 = vrot.slane %v6894, 3
        %v6897 = vshll.u32 %v6574, 16
        %v6899 = vrot.slane %v6897, 4
        %v6900 = vor.u32 %v6896, %v6899
        %v6901 = vsel %vm6631, %v6893, %v6900
        %v6902 = vshrl.u32 %v6576, 16
        %v6904 = vrot.slane %v6902, 3
        %v6905 = vshll.u32 %v6576, 16
        %v6907 = vrot.slane %v6905, 4
        %v6908 = vor.u32 %v6904, %v6907
        %v6909 = vshrl.u32 %v6578, 16
        %v6911 = vrot.slane %v6909, 3
        %v6912 = vshll.u32 %v6578, 16
        %v6914 = vrot.slane %v6912, 4
        %v6915 = vor.u32 %v6911, %v6914
        %v6916 = vsel %vm6631, %v6908, %v6915
        %v6917 = vshrl.u32 %v6580, 16
        %v6919 = vrot.slane %v6917, 3
        %v6920 = vshll.u32 %v6580, 16
        %v6922 = vrot.slane %v6920, 4
        %v6923 = vor.u32 %v6919, %v6922
        %v6924 = vshrl.u32 %v6582, 16
        %v6926 = vrot.slane %v6924, 3
        %v6927 = vshll.u32 %v6582, 16
        %v6929 = vrot.slane %v6927, 4
        %v6930 = vor.u32 %v6926, %v6929
        %v6931 = vsel %vm6631, %v6923, %v6930
        %v6932 = vshrl.u32 %v6584, 16
        %v6934 = vrot.slane %v6932, 3
        %v6935 = vshll.u32 %v6584, 16
        %v6937 = vrot.slane %v6935, 4
        %v6938 = vor.u32 %v6934, %v6937
        %v6939 = vshrl.u32 %v6586, 16
        %v6941 = vrot.slane %v6939, 3
        %v6942 = vshll.u32 %v6586, 16
        %v6944 = vrot.slane %v6942, 4
        %v6945 = vor.u32 %v6941, %v6944
        %v6946 = vsel %vm6631, %v6938, %v6945
        %v6947 = vshrl.u32 %v6588, 16
        %v6949 = vrot.slane %v6947, 3
        %v6950 = vshll.u32 %v6588, 16
        %v6952 = vrot.slane %v6950, 4
        %v6953 = vor.u32 %v6949, %v6952
        %v6954 = vshrl.u32 %v6590, 16
        %v6956 = vrot.slane %v6954, 3
        %v6957 = vshll.u32 %v6590, 16
        %v6959 = vrot.slane %v6957, 4
        %v6960 = vor.u32 %v6956, %v6959
        %v6961 = vsel %vm6631, %v6953, %v6960
        %v6962 = vshrl.u32 %v6592, 16
        %v6964 = vrot.slane %v6962, 3
        %v6965 = vshll.u32 %v6592, 16
        %v6967 = vrot.slane %v6965, 4
        %v6968 = vor.u32 %v6964, %v6967
        %v6969 = vshrl.u32 %v6594, 16
        %v6971 = vrot.slane %v6969, 3
        %v6972 = vshll.u32 %v6594, 16
        %v6974 = vrot.slane %v6972, 4
        %v6975 = vor.u32 %v6971, %v6974
        %v6976 = vsel %vm6631, %v6968, %v6975
        %v6977 = vshrl.u32 %v6596, 16
        %v6979 = vrot.slane %v6977, 3
        %v6980 = vshll.u32 %v6596, 16
        %v6982 = vrot.slane %v6980, 4
        %v6983 = vor.u32 %v6979, %v6982
        %v6984 = vshrl.u32 %v6598, 16
        %v6986 = vrot.slane %v6984, 3
        %v6987 = vshll.u32 %v6598, 16
        %v6989 = vrot.slane %v6987, 4
        %v6990 = vor.u32 %v6986, %v6989
        %v6991 = vsel %vm6631, %v6983, %v6990
        %v6992 = vshrl.u32 %v6600, 16
        %v6994 = vrot.slane %v6992, 3
        %v6995 = vshll.u32 %v6600, 16
        %v6997 = vrot.slane %v6995, 4
        %v6998 = vor.u32 %v6994, %v6997
        %v6999 = vshrl.u32 %v6602, 16
        %v7001 = vrot.slane %v6999, 3
        %v7002 = vshll.u32 %v6602, 16
        %v7004 = vrot.slane %v7002, 4
        %v7005 = vor.u32 %v7001, %v7004
        %v7006 = vsel %vm6631, %v6998, %v7005
        %v7007 = vshrl.u32 %v6604, 16
        %v7009 = vrot.slane %v7007, 3
        %v7010 = vshll.u32 %v6604, 16
        %v7012 = vrot.slane %v7010, 4
        %v7013 = vor.u32 %v7009, %v7012
        %v7014 = vshrl.u32 %v6606, 16
        %v7016 = vrot.slane %v7014, 3
        %v7017 = vshll.u32 %v6606, 16
        %v7019 = vrot.slane %v7017, 4
        %v7020 = vor.u32 %v7016, %v7019
        %v7021 = vsel %vm6631, %v7013, %v7020
        %v7022 = vshrl.u32 %v6608, 16
        %v7024 = vrot.slane %v7022, 3
        %v7025 = vshll.u32 %v6608, 16
        %v7027 = vrot.slane %v7025, 4
        %v7028 = vor.u32 %v7024, %v7027
        %v7029 = vshrl.u32 %v6610, 16
        %v7031 = vrot.slane %v7029, 3
        %v7032 = vshll.u32 %v6610, 16
        %v7034 = vrot.slane %v7032, 4
        %v7035 = vor.u32 %v7031, %v7034
        %v7036 = vsel %vm6631, %v7028, %v7035
        %v7037 = vshrl.u32 %v6612, 16
        %v7039 = vrot.slane %v7037, 3
        %v7040 = vshll.u32 %v6612, 16
        %v7042 = vrot.slane %v7040, 4
        %v7043 = vor.u32 %v7039, %v7042
        %v7044 = vshrl.u32 %v6614, 16
        %v7046 = vrot.slane %v7044, 3
        %v7047 = vshll.u32 %v6614, 16
        %v7049 = vrot.slane %v7047, 4
        %v7050 = vor.u32 %v7046, %v7049
        %v7051 = vsel %vm6631, %v7043, %v7050
        %v7052 = vshrl.u32 %v6616, 16
        %v7054 = vrot.slane %v7052, 3
        %v7055 = vshll.u32 %v6616, 16
        %v7057 = vrot.slane %v7055, 4
        %v7058 = vor.u32 %v7054, %v7057
        %v7059 = vshrl.u32 %v6618, 16
        %v7061 = vrot.slane %v7059, 3
        %v7062 = vshll.u32 %v6618, 16
        %v7064 = vrot.slane %v7062, 4
        %v7065 = vor.u32 %v7061, %v7064
        %v7066 = vsel %vm6631, %v7058, %v7065
        %v7067 = vshrl.u32 %v6620, 16
        %v7069 = vrot.slane %v7067, 3
        %v7070 = vshll.u32 %v6620, 16
        %v7072 = vrot.slane %v7070, 4
        %v7073 = vor.u32 %v7069, %v7072
        %v7074 = vshrl.u32 %v6622, 16
        %v7076 = vrot.slane %v7074, 3
        %v7077 = vshll.u32 %v6622, 16
        %v7079 = vrot.slane %v7077, 4
        %v7080 = vor.u32 %v7076, %v7079
        %v7081 = vsel %vm6631, %v7073, %v7080
        %v7082 = vshrl.u32 %v6624, 16
        %v7084 = vrot.slane %v7082, 3
        %v7085 = vshll.u32 %v6624, 16
        %v7087 = vrot.slane %v7085, 4
        %v7088 = vor.u32 %v7084, %v7087
        %v7089 = vshrl.u32 %v6626, 16
        %v7091 = vrot.slane %v7089, 3
        %v7092 = vshll.u32 %v6626, 16
        %v7094 = vrot.slane %v7092, 4
        %v7095 = vor.u32 %v7091, %v7094
        %v7096 = vsel %vm6631, %v7088, %v7095
        %v7097 = vshrl.u32 %v6628, 16
        %v7099 = vrot.slane %v7097, 3
        %v7100 = vshll.u32 %v6628, 16
        %v7102 = vrot.slane %v7100, 4
        %v7103 = vor.u32 %v7099, %v7102
        %v7104 = vshrl.u32 %v6630, 16
        %v7106 = vrot.slane %v7104, 3
        %v7107 = vshll.u32 %v6630, 16
        %v7109 = vrot.slane %v7107, 4
        %v7110 = vor.u32 %v7106, %v7109
        %v7111 = vsel %vm6631, %v7103, %v7110
        %7112 = vrot.lane.b32.xlu0 %v6646, 28
        %v7113 = vpop.permute.xlu0 %7112
        %7114 = vrot.lane.b32.xlu0 %v6661, 28
        %v7115 = vpop.permute.xlu0 %7114
        %7116 = vrot.lane.b32.xlu0 %v6676, 28
        %v7117 = vpop.permute.xlu0 %7116
        %7118 = vrot.lane.b32.xlu0 %v6691, 28
        %v7119 = vpop.permute.xlu0 %7118
        %7120 = vrot.lane.b32.xlu0 %v6706, 28
        %v7121 = vpop.permute.xlu0 %7120
        %7122 = vrot.lane.b32.xlu0 %v6721, 28
        %v7123 = vpop.permute.xlu0 %7122
        %7124 = vrot.lane.b32.xlu0 %v6736, 28
        %v7125 = vpop.permute.xlu0 %7124
        %7126 = vrot.lane.b32.xlu0 %v6751, 28
        %v7127 = vpop.permute.xlu0 %7126
        %7128 = vrot.lane.b32.xlu0 %v6766, 28
        %v7129 = vpop.permute.xlu0 %7128
        %7130 = vrot.lane.b32.xlu0 %v6781, 28
        %v7131 = vpop.permute.xlu0 %7130
        %7132 = vrot.lane.b32.xlu0 %v6796, 28
        %v7133 = vpop.permute.xlu0 %7132
        %7134 = vrot.lane.b32.xlu0 %v6811, 28
        %v7135 = vpop.permute.xlu0 %7134
        %7136 = vrot.lane.b32.xlu0 %v6826, 28
        %v7137 = vpop.permute.xlu0 %7136
        %7138 = vrot.lane.b32.xlu0 %v6841, 28
        %v7139 = vpop.permute.xlu0 %7138
        %7140 = vrot.lane.b32.xlu0 %v6856, 28
        %v7141 = vpop.permute.xlu0 %7140
        %7142 = vrot.lane.b32.xlu0 %v6871, 28
        %v7143 = vpop.permute.xlu0 %7142
        %7144 = vrot.lane.b32.xlu0 %v6886, 28
        %v7145 = vpop.permute.xlu0 %7144
        %7146 = vrot.lane.b32.xlu0 %v6901, 28
        %v7147 = vpop.permute.xlu0 %7146
        %7148 = vrot.lane.b32.xlu0 %v6916, 28
        %v7149 = vpop.permute.xlu0 %7148
        %7150 = vrot.lane.b32.xlu0 %v6931, 28
        %v7151 = vpop.permute.xlu0 %7150
        %7152 = vrot.lane.b32.xlu0 %v6946, 28
        %v7153 = vpop.permute.xlu0 %7152
        %7154 = vrot.lane.b32.xlu0 %v6961, 28
        %v7155 = vpop.permute.xlu0 %7154
        %7156 = vrot.lane.b32.xlu0 %v6976, 28
        %v7157 = vpop.permute.xlu0 %7156
        %7158 = vrot.lane.b32.xlu0 %v6991, 28
        %v7159 = vpop.permute.xlu0 %7158
        %7160 = vrot.lane.b32.xlu0 %v7006, 28
        %v7161 = vpop.permute.xlu0 %7160
        %7162 = vrot.lane.b32.xlu0 %v7021, 28
        %v7163 = vpop.permute.xlu0 %7162
        %7164 = vrot.lane.b32.xlu0 %v7036, 28
        %v7165 = vpop.permute.xlu0 %7164
        %7166 = vrot.lane.b32.xlu0 %v7051, 28
        %v7167 = vpop.permute.xlu0 %7166
        %7168 = vrot.lane.b32.xlu0 %v7066, 28
        %v7169 = vpop.permute.xlu0 %7168
        %7170 = vrot.lane.b32.xlu0 %v7081, 28
        %v7171 = vpop.permute.xlu0 %7170
        %7172 = vrot.lane.b32.xlu0 %v6646, 56
        %v7173 = vpop.permute.xlu0 %7172
        %7174 = vrot.lane.b32.xlu0 %v6661, 56
        %v7175 = vpop.permute.xlu0 %7174
        %7176 = vrot.lane.b32.xlu0 %v6676, 56
        %v7177 = vpop.permute.xlu0 %7176
        %7178 = vrot.lane.b32.xlu0 %v6691, 56
        %v7179 = vpop.permute.xlu0 %7178
        %7180 = vrot.lane.b32.xlu0 %v6706, 56
        %v7181 = vpop.permute.xlu0 %7180
        %7182 = vrot.lane.b32.xlu0 %v6721, 56
        %v7183 = vpop.permute.xlu0 %7182
        %7184 = vrot.lane.b32.xlu0 %v6736, 56
        %v7185 = vpop.permute.xlu0 %7184
        %7186 = vrot.lane.b32.xlu0 %v6751, 56
        %v7187 = vpop.permute.xlu0 %7186
        %7188 = vrot.lane.b32.xlu0 %v6766, 56
        %v7189 = vpop.permute.xlu0 %7188
        %7190 = vrot.lane.b32.xlu0 %v6781, 56
        %v7191 = vpop.permute.xlu0 %7190
        %7192 = vrot.lane.b32.xlu0 %v6796, 56
        %v7193 = vpop.permute.xlu0 %7192
        %7194 = vrot.lane.b32.xlu0 %v6811, 56
        %v7195 = vpop.permute.xlu0 %7194
        %7196 = vrot.lane.b32.xlu0 %v6826, 56
        %v7197 = vpop.permute.xlu0 %7196
        %7198 = vrot.lane.b32.xlu0 %v6841, 56
        %v7199 = vpop.permute.xlu0 %7198
        %7200 = vrot.lane.b32.xlu0 %v6856, 56
        %v7201 = vpop.permute.xlu0 %7200
        %7202 = vrot.lane.b32.xlu0 %v6871, 56
        %v7203 = vpop.permute.xlu0 %7202
        %7204 = vrot.lane.b32.xlu0 %v6886, 56
        %v7205 = vpop.permute.xlu0 %7204
        %7206 = vrot.lane.b32.xlu0 %v6901, 56
        %v7207 = vpop.permute.xlu0 %7206
        %7208 = vrot.lane.b32.xlu0 %v6916, 56
        %v7209 = vpop.permute.xlu0 %7208
        %7210 = vrot.lane.b32.xlu0 %v6931, 56
        %v7211 = vpop.permute.xlu0 %7210
        %7212 = vrot.lane.b32.xlu0 %v6946, 56
        %v7213 = vpop.permute.xlu0 %7212
        %7214 = vrot.lane.b32.xlu0 %v6961, 56
        %v7215 = vpop.permute.xlu0 %7214
        %7216 = vrot.lane.b32.xlu0 %v6976, 56
        %v7217 = vpop.permute.xlu0 %7216
        %7218 = vrot.lane.b32.xlu0 %v6991, 56
        %v7219 = vpop.permute.xlu0 %7218
        %7220 = vrot.lane.b32.xlu0 %v7006, 56
        %v7221 = vpop.permute.xlu0 %7220
        %7222 = vrot.lane.b32.xlu0 %v7021, 56
        %v7223 = vpop.permute.xlu0 %7222
        %7224 = vrot.lane.b32.xlu0 %v7036, 56
        %v7225 = vpop.permute.xlu0 %7224
        %7226 = vrot.lane.b32.xlu0 %v7051, 56
        %v7227 = vpop.permute.xlu0 %7226
        %7228 = vrot.lane.b32.xlu0 %v7066, 56
        %v7229 = vpop.permute.xlu0 %7228
        %7230 = vrot.lane.b32.xlu0 %v7081, 56
        %v7231 = vpop.permute.xlu0 %7230
        %7232 = vrot.lane.b32.xlu0 %v7096, 56
        %v7233 = vpop.permute.xlu0 %7232
        %7234 = vrot.lane.b32.xlu0 %v6646, 84
        %v7235 = vpop.permute.xlu0 %7234
        %7236 = vrot.lane.b32.xlu0 %v6661, 84
        %v7237 = vpop.permute.xlu0 %7236
        %7238 = vrot.lane.b32.xlu0 %v6676, 84
        %v7239 = vpop.permute.xlu0 %7238
        %7240 = vrot.lane.b32.xlu0 %v6691, 84
        %v7241 = vpop.permute.xlu0 %7240
        %7242 = vrot.lane.b32.xlu0 %v6706, 84
        %v7243 = vpop.permute.xlu0 %7242
        %7244 = vrot.lane.b32.xlu0 %v6721, 84
        %v7245 = vpop.permute.xlu0 %7244
        %7246 = vrot.lane.b32.xlu0 %v6736, 84
        %v7247 = vpop.permute.xlu0 %7246
        %7248 = vrot.lane.b32.xlu0 %v6751, 84
        %v7249 = vpop.permute.xlu0 %7248
        %7250 = vrot.lane.b32.xlu0 %v6766, 84
        %v7251 = vpop.permute.xlu0 %7250
        %7252 = vrot.lane.b32.xlu0 %v6781, 84
        %v7253 = vpop.permute.xlu0 %7252
        %7254 = vrot.lane.b32.xlu0 %v6796, 84
        %v7255 = vpop.permute.xlu0 %7254
        %7256 = vrot.lane.b32.xlu0 %v6811, 84
        %v7257 = vpop.permute.xlu0 %7256
        %7258 = vrot.lane.b32.xlu0 %v6826, 84
        %v7259 = vpop.permute.xlu0 %7258
        %7260 = vrot.lane.b32.xlu0 %v6841, 84
        %v7261 = vpop.permute.xlu0 %7260
        %7262 = vrot.lane.b32.xlu0 %v6856, 84
        %v7263 = vpop.permute.xlu0 %7262
        %7264 = vrot.lane.b32.xlu0 %v6871, 84
        %v7265 = vpop.permute.xlu0 %7264
        %7266 = vrot.lane.b32.xlu0 %v6886, 84
        %v7267 = vpop.permute.xlu0 %7266
        %7268 = vrot.lane.b32.xlu0 %v6901, 84
        %v7269 = vpop.permute.xlu0 %7268
        %7270 = vrot.lane.b32.xlu0 %v6916, 84
        %v7271 = vpop.permute.xlu0 %7270
        %7272 = vrot.lane.b32.xlu0 %v6931, 84
        %v7273 = vpop.permute.xlu0 %7272
        %7274 = vrot.lane.b32.xlu0 %v6946, 84
        %v7275 = vpop.permute.xlu0 %7274
        %7276 = vrot.lane.b32.xlu0 %v6961, 84
        %v7277 = vpop.permute.xlu0 %7276
        %7278 = vrot.lane.b32.xlu0 %v6976, 84
        %v7279 = vpop.permute.xlu0 %7278
        %7280 = vrot.lane.b32.xlu0 %v6991, 84
        %v7281 = vpop.permute.xlu0 %7280
        %7282 = vrot.lane.b32.xlu0 %v7006, 84
        %v7283 = vpop.permute.xlu0 %7282
        %7284 = vrot.lane.b32.xlu0 %v7021, 84
        %v7285 = vpop.permute.xlu0 %7284
        %7286 = vrot.lane.b32.xlu0 %v7036, 84
        %v7287 = vpop.permute.xlu0 %7286
        %7288 = vrot.lane.b32.xlu0 %v7051, 84
        %v7289 = vpop.permute.xlu0 %7288
        %7290 = vrot.lane.b32.xlu0 %v7066, 84
        %v7291 = vpop.permute.xlu0 %7290
        %7292 = vrot.lane.b32.xlu0 %v7081, 84
        %v7293 = vpop.permute.xlu0 %7292
        %7294 = vrot.lane.b32.xlu0 %v7096, 84
        %v7295 = vpop.permute.xlu0 %7294
        %7296 = vrot.lane.b32.xlu0 %v7111, 84
        %v7297 = vpop.permute.xlu0 %7296
        %7298 = vrot.lane.b32.xlu0 %v6661, 112
        %v7299 = vpop.permute.xlu0 %7298
        %7300 = vrot.lane.b32.xlu0 %v6676, 112
        %v7301 = vpop.permute.xlu0 %7300
        %7302 = vrot.lane.b32.xlu0 %v6691, 112
        %v7303 = vpop.permute.xlu0 %7302
        %7304 = vrot.lane.b32.xlu0 %v6706, 112
        %v7305 = vpop.permute.xlu0 %7304
        %7306 = vrot.lane.b32.xlu0 %v6721, 112
        %v7307 = vpop.permute.xlu0 %7306
        %7308 = vrot.lane.b32.xlu0 %v6736, 112
        %v7309 = vpop.permute.xlu0 %7308
        %7310 = vrot.lane.b32.xlu0 %v6751, 112
        %v7311 = vpop.permute.xlu0 %7310
        %7312 = vrot.lane.b32.xlu0 %v6766, 112
        %v7313 = vpop.permute.xlu0 %7312
        %7314 = vrot.lane.b32.xlu0 %v6781, 112
        %v7315 = vpop.permute.xlu0 %7314
        %7316 = vrot.lane.b32.xlu0 %v6796, 112
        %v7317 = vpop.permute.xlu0 %7316
        %7318 = vrot.lane.b32.xlu0 %v6811, 112
        %v7319 = vpop.permute.xlu0 %7318
        %7320 = vrot.lane.b32.xlu0 %v6826, 112
        %v7321 = vpop.permute.xlu0 %7320
        %7322 = vrot.lane.b32.xlu0 %v6841, 112
        %v7323 = vpop.permute.xlu0 %7322
        %7324 = vrot.lane.b32.xlu0 %v6856, 112
        %v7325 = vpop.permute.xlu0 %7324
        %7326 = vrot.lane.b32.xlu0 %v6871, 112
        %v7327 = vpop.permute.xlu0 %7326
        %7328 = vrot.lane.b32.xlu0 %v6886, 112
        %v7329 = vpop.permute.xlu0 %7328
        %7330 = vrot.lane.b32.xlu0 %v6901, 112
        %v7331 = vpop.permute.xlu0 %7330
        %7332 = vrot.lane.b32.xlu0 %v6916, 112
        %v7333 = vpop.permute.xlu0 %7332
        %7334 = vrot.lane.b32.xlu0 %v6931, 112
        %v7335 = vpop.permute.xlu0 %7334
        %7336 = vrot.lane.b32.xlu0 %v6946, 112
        %v7337 = vpop.permute.xlu0 %7336
        %7338 = vrot.lane.b32.xlu0 %v6961, 112
        %v7339 = vpop.permute.xlu0 %7338
        %7340 = vrot.lane.b32.xlu0 %v6976, 112
        %v7341 = vpop.permute.xlu0 %7340
        %7342 = vrot.lane.b32.xlu0 %v6991, 112
        %v7343 = vpop.permute.xlu0 %7342
        %7344 = vrot.lane.b32.xlu0 %v7006, 112
        %v7345 = vpop.permute.xlu0 %7344
        %7346 = vrot.lane.b32.xlu0 %v7021, 112
        %v7347 = vpop.permute.xlu0 %7346
        %7348 = vrot.lane.b32.xlu0 %v7036, 112
        %v7349 = vpop.permute.xlu0 %7348
        %7350 = vrot.lane.b32.xlu0 %v7051, 112
        %v7351 = vpop.permute.xlu0 %7350
        %7352 = vrot.lane.b32.xlu0 %v7066, 112
        %v7353 = vpop.permute.xlu0 %7352
        %7354 = vrot.lane.b32.xlu0 %v7081, 112
        %v7355 = vpop.permute.xlu0 %7354
        %7356 = vrot.lane.b32.xlu0 %v7096, 112
        %v7357 = vpop.permute.xlu0 %7356
        %7358 = vrot.lane.b32.xlu0 %v7111, 112
        %v7359 = vpop.permute.xlu0 %7358
        %7360 = vrot.lane.b32.xlu0 %v6676, 12
        %v7361 = vpop.permute.xlu0 %7360
        %7362 = vrot.lane.b32.xlu0 %v6691, 12
        %v7363 = vpop.permute.xlu0 %7362
        %7364 = vrot.lane.b32.xlu0 %v6706, 12
        %v7365 = vpop.permute.xlu0 %7364
        %7366 = vrot.lane.b32.xlu0 %v6721, 12
        %v7367 = vpop.permute.xlu0 %7366
        %7368 = vrot.lane.b32.xlu0 %v6736, 12
        %v7369 = vpop.permute.xlu0 %7368
        %7370 = vrot.lane.b32.xlu0 %v6751, 12
        %v7371 = vpop.permute.xlu0 %7370
        %7372 = vrot.lane.b32.xlu0 %v6766, 12
        %v7373 = vpop.permute.xlu0 %7372
        %7374 = vrot.lane.b32.xlu0 %v6781, 12
        %v7375 = vpop.permute.xlu0 %7374
        %7376 = vrot.lane.b32.xlu0 %v6796, 12
        %v7377 = vpop.permute.xlu0 %7376
        %7378 = vrot.lane.b32.xlu0 %v6811, 12
        %v7379 = vpop.permute.xlu0 %7378
        %7380 = vrot.lane.b32.xlu0 %v6826, 12
        %v7381 = vpop.permute.xlu0 %7380
        %7382 = vrot.lane.b32.xlu0 %v6841, 12
        %v7383 = vpop.permute.xlu0 %7382
        %7384 = vrot.lane.b32.xlu0 %v6856, 12
        %v7385 = vpop.permute.xlu0 %7384
        %7386 = vrot.lane.b32.xlu0 %v6871, 12
        %v7387 = vpop.permute.xlu0 %7386
        %7388 = vrot.lane.b32.xlu0 %v6886, 12
        %v7389 = vpop.permute.xlu0 %7388
        %7390 = vrot.lane.b32.xlu0 %v6901, 12
        %v7391 = vpop.permute.xlu0 %7390
        %7392 = vrot.lane.b32.xlu0 %v6916, 12
        %v7393 = vpop.permute.xlu0 %7392
        %7394 = vrot.lane.b32.xlu0 %v6931, 12
        %v7395 = vpop.permute.xlu0 %7394
        %7396 = vrot.lane.b32.xlu0 %v6946, 12
        %v7397 = vpop.permute.xlu0 %7396
        %7398 = vrot.lane.b32.xlu0 %v6961, 12
        %v7399 = vpop.permute.xlu0 %7398
        %7400 = vrot.lane.b32.xlu0 %v6976, 12
        %v7401 = vpop.permute.xlu0 %7400
        %7402 = vrot.lane.b32.xlu0 %v6991, 12
        %v7403 = vpop.permute.xlu0 %7402
        %7404 = vrot.lane.b32.xlu0 %v7006, 12
        %v7405 = vpop.permute.xlu0 %7404
        %7406 = vrot.lane.b32.xlu0 %v7021, 12
        %v7407 = vpop.permute.xlu0 %7406
        %7408 = vrot.lane.b32.xlu0 %v7036, 12
        %v7409 = vpop.permute.xlu0 %7408
        %7410 = vrot.lane.b32.xlu0 %v7051, 12
        %v7411 = vpop.permute.xlu0 %7410
        %7412 = vrot.lane.b32.xlu0 %v7066, 12
        %v7413 = vpop.permute.xlu0 %7412
        %7414 = vrot.lane.b32.xlu0 %v7081, 12
        %v7415 = vpop.permute.xlu0 %7414
        %7416 = vrot.lane.b32.xlu0 %v7096, 12
        %v7417 = vpop.permute.xlu0 %7416
        %7418 = vrot.lane.b32.xlu0 %v7111, 12
        %v7419 = vpop.permute.xlu0 %7418
        %7420 = vrot.lane.b32.xlu0 %v6691, 40
        %v7421 = vpop.permute.xlu0 %7420
        %7422 = vrot.lane.b32.xlu0 %v6706, 40
        %v7423 = vpop.permute.xlu0 %7422
        %7424 = vrot.lane.b32.xlu0 %v6721, 40
        %v7425 = vpop.permute.xlu0 %7424
        %7426 = vrot.lane.b32.xlu0 %v6736, 40
        %v7427 = vpop.permute.xlu0 %7426
        %7428 = vrot.lane.b32.xlu0 %v6751, 40
        %v7429 = vpop.permute.xlu0 %7428
        %7430 = vrot.lane.b32.xlu0 %v6766, 40
        %v7431 = vpop.permute.xlu0 %7430
        %7432 = vrot.lane.b32.xlu0 %v6781, 40
        %v7433 = vpop.permute.xlu0 %7432
        %7434 = vrot.lane.b32.xlu0 %v6796, 40
        %v7435 = vpop.permute.xlu0 %7434
        %7436 = vrot.lane.b32.xlu0 %v6811, 40
        %v7437 = vpop.permute.xlu0 %7436
        %7438 = vrot.lane.b32.xlu0 %v6826, 40
        %v7439 = vpop.permute.xlu0 %7438
        %7440 = vrot.lane.b32.xlu0 %v6841, 40
        %v7441 = vpop.permute.xlu0 %7440
        %7442 = vrot.lane.b32.xlu0 %v6856, 40
        %v7443 = vpop.permute.xlu0 %7442
        %7444 = vrot.lane.b32.xlu0 %v6871, 40
        %v7445 = vpop.permute.xlu0 %7444
        %7446 = vrot.lane.b32.xlu0 %v6886, 40
        %v7447 = vpop.permute.xlu0 %7446
        %7448 = vrot.lane.b32.xlu0 %v6901, 40
        %v7449 = vpop.permute.xlu0 %7448
        %7450 = vrot.lane.b32.xlu0 %v6916, 40
        %v7451 = vpop.permute.xlu0 %7450
        %7452 = vrot.lane.b32.xlu0 %v6931, 40
        %v7453 = vpop.permute.xlu0 %7452
        %7454 = vrot.lane.b32.xlu0 %v6946, 40
        %v7455 = vpop.permute.xlu0 %7454
        %7456 = vrot.lane.b32.xlu0 %v6961, 40
        %v7457 = vpop.permute.xlu0 %7456
        %7458 = vrot.lane.b32.xlu0 %v6976, 40
        %v7459 = vpop.permute.xlu0 %7458
        %7460 = vrot.lane.b32.xlu0 %v6991, 40
        %v7461 = vpop.permute.xlu0 %7460
        %7462 = vrot.lane.b32.xlu0 %v7006, 40
        %v7463 = vpop.permute.xlu0 %7462
        %7464 = vrot.lane.b32.xlu0 %v7021, 40
        %v7465 = vpop.permute.xlu0 %7464
        %7466 = vrot.lane.b32.xlu0 %v7036, 40
        %v7467 = vpop.permute.xlu0 %7466
        %7468 = vrot.lane.b32.xlu0 %v7051, 40
        %v7469 = vpop.permute.xlu0 %7468
        %7470 = vrot.lane.b32.xlu0 %v7066, 40
        %v7471 = vpop.permute.xlu0 %7470
        %7472 = vrot.lane.b32.xlu0 %v7081, 40
        %v7473 = vpop.permute.xlu0 %7472
        %7474 = vrot.lane.b32.xlu0 %v7096, 40
        %v7475 = vpop.permute.xlu0 %7474
        %7476 = vrot.lane.b32.xlu0 %v7111, 40
        %v7477 = vpop.permute.xlu0 %7476
        %v7479 = vsel %vm4650, 0, %v7113
        %v7482 = vsel %vm4650, %v6646, %v7115
        %v7485 = vsel %vm4650, %v6661, %v7117
        %v7488 = vsel %vm4650, %v6676, %v7119
        %v7491 = vsel %vm4650, %v6691, %v7121
        %v7494 = vsel %vm4650, %v6706, %v7123
        %v7497 = vsel %vm4650, %v6721, %v7125
        %v7500 = vsel %vm4650, %v6736, %v7127
        %v7503 = vsel %vm4650, %v6751, %v7129
        %v7506 = vsel %vm4650, %v6766, %v7131
        %v7509 = vsel %vm4650, %v6781, %v7133
        %v7512 = vsel %vm4650, %v6796, %v7135
        %v7515 = vsel %vm4650, %v6811, %v7137
        %v7518 = vsel %vm4650, %v6826, %v7139
        %v7521 = vsel %vm4650, %v6841, %v7141
        %v7524 = vsel %vm4650, %v6856, %v7143
        %v7527 = vsel %vm4650, %v6871, %v7145
        %v7530 = vsel %vm4650, %v6886, %v7147
        %v7533 = vsel %vm4650, %v6901, %v7149
        %v7536 = vsel %vm4650, %v6916, %v7151
        %v7539 = vsel %vm4650, %v6931, %v7153
        %v7542 = vsel %vm4650, %v6946, %v7155
        %v7545 = vsel %vm4650, %v6961, %v7157
        %v7548 = vsel %vm4650, %v6976, %v7159
        %v7551 = vsel %vm4650, %v6991, %v7161
        %v7554 = vsel %vm4650, %v7006, %v7163
        %v7557 = vsel %vm4650, %v7021, %v7165
        %v7560 = vsel %vm4650, %v7036, %v7167
        %v7563 = vsel %vm4650, %v7051, %v7169
        %v7566 = vsel %vm4650, %v7066, %v7171
        %v7568 = vsel %vm4742, %v4652, %v7173
        %v7570 = vsel %vm4742, %v7479, %v7175
        %v7572 = vsel %vm4742, %v7482, %v7177
        %v7574 = vsel %vm4742, %v7485, %v7179
        %v7576 = vsel %vm4742, %v7488, %v7181
        %v7578 = vsel %vm4742, %v7491, %v7183
        %v7580 = vsel %vm4742, %v7494, %v7185
        %v7582 = vsel %vm4742, %v7497, %v7187
        %v7584 = vsel %vm4742, %v7500, %v7189
        %v7586 = vsel %vm4742, %v7503, %v7191
        %v7588 = vsel %vm4742, %v7506, %v7193
        %v7590 = vsel %vm4742, %v7509, %v7195
        %v7592 = vsel %vm4742, %v7512, %v7197
        %v7594 = vsel %vm4742, %v7515, %v7199
        %v7596 = vsel %vm4742, %v7518, %v7201
        %v7598 = vsel %vm4742, %v7521, %v7203
        %v7600 = vsel %vm4742, %v7524, %v7205
        %v7602 = vsel %vm4742, %v7527, %v7207
        %v7604 = vsel %vm4742, %v7530, %v7209
        %v7606 = vsel %vm4742, %v7533, %v7211
        %v7608 = vsel %vm4742, %v7536, %v7213
        %v7610 = vsel %vm4742, %v7539, %v7215
        %v7612 = vsel %vm4742, %v7542, %v7217
        %v7614 = vsel %vm4742, %v7545, %v7219
        %v7616 = vsel %vm4742, %v7548, %v7221
        %v7618 = vsel %vm4742, %v7551, %v7223
        %v7620 = vsel %vm4742, %v7554, %v7225
        %v7622 = vsel %vm4742, %v7557, %v7227
        %v7624 = vsel %vm4742, %v7560, %v7229
        %v7626 = vsel %vm4742, %v7563, %v7231
        %v7628 = vsel %vm4742, %v7566, %v7233
        %v7630 = vsel %vm4807, %v4744, %v7235
        %v7632 = vsel %vm4807, %v7568, %v7237
        %v7634 = vsel %vm4807, %v7570, %v7239
        %v7636 = vsel %vm4807, %v7572, %v7241
        %v7638 = vsel %vm4807, %v7574, %v7243
        %v7640 = vsel %vm4807, %v7576, %v7245
        %v7642 = vsel %vm4807, %v7578, %v7247
        %v7644 = vsel %vm4807, %v7580, %v7249
        %v7646 = vsel %vm4807, %v7582, %v7251
        %v7648 = vsel %vm4807, %v7584, %v7253
        %v7650 = vsel %vm4807, %v7586, %v7255
        %v7652 = vsel %vm4807, %v7588, %v7257
        %v7654 = vsel %vm4807, %v7590, %v7259
        %v7656 = vsel %vm4807, %v7592, %v7261
        %v7658 = vsel %vm4807, %v7594, %v7263
        %v7660 = vsel %vm4807, %v7596, %v7265
        %v7662 = vsel %vm4807, %v7598, %v7267
        %v7664 = vsel %vm4807, %v7600, %v7269
        %v7666 = vsel %vm4807, %v7602, %v7271
        %v7668 = vsel %vm4807, %v7604, %v7273
        %v7670 = vsel %vm4807, %v7606, %v7275
        %v7672 = vsel %vm4807, %v7608, %v7277
        %v7674 = vsel %vm4807, %v7610, %v7279
        %v7676 = vsel %vm4807, %v7612, %v7281
        %v7678 = vsel %vm4807, %v7614, %v7283
        %v7680 = vsel %vm4807, %v7616, %v7285
        %v7682 = vsel %vm4807, %v7618, %v7287
        %v7684 = vsel %vm4807, %v7620, %v7289
        %v7686 = vsel %vm4807, %v7622, %v7291
        %v7688 = vsel %vm4807, %v7624, %v7293
        %v7690 = vsel %vm4807, %v7626, %v7295
        %v7692 = vsel %vm4807, %v7628, %v7297
        %v7694 = vsel %vm4872, %v7630, %v7299
        %v7697 = vsel %vm4872, %v7632, %v7301
        %v7700 = vsel %vm4872, %v7634, %v7303
        %v7703 = vsel %vm4872, %v7636, %v7305
        %v7706 = vsel %vm4872, %v7638, %v7307
        %v7709 = vsel %vm4872, %v7640, %v7309
        %v7712 = vsel %vm4872, %v7642, %v7311
        %v7715 = vsel %vm4872, %v7644, %v7313
        %v7718 = vsel %vm4872, %v7646, %v7315
        %v7721 = vsel %vm4872, %v7648, %v7317
        %v7724 = vsel %vm4872, %v7650, %v7319
        %v7727 = vsel %vm4872, %v7652, %v7321
        %v7730 = vsel %vm4872, %v7654, %v7323
        %v7733 = vsel %vm4872, %v7656, %v7325
        %v7736 = vsel %vm4872, %v7658, %v7327
        %v7739 = vsel %vm4872, %v7660, %v7329
        %v7742 = vsel %vm4872, %v7662, %v7331
        %v7745 = vsel %vm4872, %v7664, %v7333
        %v7748 = vsel %vm4872, %v7666, %v7335
        %v7751 = vsel %vm4872, %v7668, %v7337
        %v7754 = vsel %vm4872, %v7670, %v7339
        %v7757 = vsel %vm4872, %v7672, %v7341
        %v7760 = vsel %vm4872, %v7674, %v7343
        %v7763 = vsel %vm4872, %v7676, %v7345
        %v7766 = vsel %vm4872, %v7678, %v7347
        %v7769 = vsel %vm4872, %v7680, %v7349
        %v7772 = vsel %vm4872, %v7682, %v7351
        %v7775 = vsel %vm4872, %v7684, %v7353
        %v7778 = vsel %vm4872, %v7686, %v7355
        %v7781 = vsel %vm4872, %v7688, %v7357
        %v7784 = vsel %vm4872, %v7690, %v7359
        %v7786 = vsel %vm4872, %v7692, %v4527
        %v7789 = vsel %vm3596, %v7299, %v7361
        %v7791 = vsel %vm3596, %v7301, %v7363
        %v7793 = vsel %vm3596, %v7303, %v7365
        %v7795 = vsel %vm3596, %v7305, %v7367
        %v7797 = vsel %vm3596, %v7307, %v7369
        %v7799 = vsel %vm3596, %v7309, %v7371
        %v7801 = vsel %vm3596, %v7311, %v7373
        %v7803 = vsel %vm3596, %v7313, %v7375
        %v7805 = vsel %vm3596, %v7315, %v7377
        %v7807 = vsel %vm3596, %v7317, %v7379
        %v7809 = vsel %vm3596, %v7319, %v7381
        %v7811 = vsel %vm3596, %v7321, %v7383
        %v7813 = vsel %vm3596, %v7323, %v7385
        %v7815 = vsel %vm3596, %v7325, %v7387
        %v7817 = vsel %vm3596, %v7327, %v7389
        %v7819 = vsel %vm3596, %v7329, %v7391
        %v7821 = vsel %vm3596, %v7331, %v7393
        %v7823 = vsel %vm3596, %v7333, %v7395
        %v7825 = vsel %vm3596, %v7335, %v7397
        %v7827 = vsel %vm3596, %v7337, %v7399
        %v7829 = vsel %vm3596, %v7339, %v7401
        %v7831 = vsel %vm3596, %v7341, %v7403
        %v7833 = vsel %vm3596, %v7343, %v7405
        %v7835 = vsel %vm3596, %v7345, %v7407
        %v7837 = vsel %vm3596, %v7347, %v7409
        %v7839 = vsel %vm3596, %v7349, %v7411
        %v7841 = vsel %vm3596, %v7351, %v7413
        %v7843 = vsel %vm3596, %v7353, %v7415
        %v7845 = vsel %vm3596, %v7355, %v7417
        %v7847 = vsel %vm3596, %v7357, %v7419
        %v7848 = vsel %vm3596, %v7359, %v4589
        %v7850 = vsel %vm5032, %v7789, %v7421
        %v7852 = vsel %vm5032, %v7791, %v7423
        %v7854 = vsel %vm5032, %v7793, %v7425
        %v7856 = vsel %vm5032, %v7795, %v7427
        %v7858 = vsel %vm5032, %v7797, %v7429
        %v7860 = vsel %vm5032, %v7799, %v7431
        %v7862 = vsel %vm5032, %v7801, %v7433
        %v7864 = vsel %vm5032, %v7803, %v7435
        %v7866 = vsel %vm5032, %v7805, %v7437
        %v7868 = vsel %vm5032, %v7807, %v7439
        %v7870 = vsel %vm5032, %v7809, %v7441
        %v7872 = vsel %vm5032, %v7811, %v7443
        %v7874 = vsel %vm5032, %v7813, %v7445
        %v7876 = vsel %vm5032, %v7815, %v7447
        %v7878 = vsel %vm5032, %v7817, %v7449
        %v7880 = vsel %vm5032, %v7819, %v7451
        %v7882 = vsel %vm5032, %v7821, %v7453
        %v7884 = vsel %vm5032, %v7823, %v7455
        %v7886 = vsel %vm5032, %v7825, %v7457
        %v7888 = vsel %vm5032, %v7827, %v7459
        %v7890 = vsel %vm5032, %v7829, %v7461
        %v7892 = vsel %vm5032, %v7831, %v7463
        %v7894 = vsel %vm5032, %v7833, %v7465
        %v7896 = vsel %vm5032, %v7835, %v7467
        %v7898 = vsel %vm5032, %v7837, %v7469
        %v7900 = vsel %vm5032, %v7839, %v7471
        %v7902 = vsel %vm5032, %v7841, %v7473
        %v7904 = vsel %vm5032, %v7843, %v7475
        %v7906 = vsel %vm5032, %v7845, %v7477
        %v7907 = vsel %vm5032, %v7847, %v4649
        %v7908 = vsel %vm5032, %v7848, %v4649
        %v7909 = vld [vmem:[%s1] sm:$0xf]
        %v7910 = vld [vmem:[%s1 + $0x4] sm:$0xf]
        %v7911 = vld [vmem:[%s1 + $0x8] sm:$0xf]
        %v7912 = vld [vmem:[%s1 + $0xc] sm:$0xf]
        %v7913 = vld [vmem:[%s1 + $0x10] sm:$0xf]
        %v7914 = vld [vmem:[%s1 + $0x14] sm:$0xf]
        %v7915 = vld [vmem:[%s1 + $0x18] sm:$0xf]
        %v7916 = vld [vmem:[%s1 + $0x1c] sm:$0xf]
        %v7917 = vld [vmem:[%s1 + $0x20] sm:$0xf]
        %v7918 = vld [vmem:[%s1 + $0x24] sm:$0xf]
        %v7919 = vld [vmem:[%s1 + $0x28] sm:$0xf]
        %v7920 = vld [vmem:[%s1 + $0x2c] sm:$0xf]
        %v7921 = vld [vmem:[%s1 + $0x30] sm:$0xf]
        %v7922 = vld [vmem:[%s1 + $0x34] sm:$0xf]
        %v7923 = vld [vmem:[%s1 + $0x38] sm:$0xf]
        %v7924 = vld [vmem:[%s1 + $0x3c] sm:$0xf]
        %v7925 = vld [vmem:[%s1 + $0x40] sm:$0xf]
        %v7926 = vld [vmem:[%s1 + $0x44] sm:$0xf]
        %v7927 = vld [vmem:[%s1 + $0x48] sm:$0xf]
        %v7928 = vld [vmem:[%s1 + $0x4c] sm:$0xf]
        %v7929 = vld [vmem:[%s1 + $0x50] sm:$0xf]
        %v7930 = vld [vmem:[%s1 + $0x54] sm:$0xf]
        %v7931 = vld [vmem:[%s1 + $0x58] sm:$0xf]
        %v7932 = vld [vmem:[%s1 + $0x5c] sm:$0xf]
        %v7933 = vld [vmem:[%s1 + $0x60] sm:$0x3]
        %v7959 = vunpack.c.l.b16 %v7909
        %v7960 = vunpack.c.l.b16 %v7910
        %v7961 = vunpack.c.l.b16 %v7911
        %v7962 = vunpack.c.l.b16 %v7912
        %v7963 = vunpack.c.l.b16 %v7913
        %v7964 = vunpack.c.l.b16 %v7914
        %v7965 = vunpack.c.l.b16 %v7915
        %v7966 = vunpack.c.l.b16 %v7916
        %v7967 = vunpack.c.l.b16 %v7917
        %v7968 = vunpack.c.l.b16 %v7918
        %v7969 = vunpack.c.l.b16 %v7919
        %v7970 = vunpack.c.l.b16 %v7920
        %v7971 = vunpack.c.l.b16 %v7921
        %v7972 = vunpack.c.l.b16 %v7922
        %v7973 = vunpack.c.l.b16 %v7923
        %v7974 = vunpack.c.l.b16 %v7924
        %v7975 = vunpack.c.l.b16 %v7925
        %v7976 = vunpack.c.l.b16 %v7926
        %v7977 = vunpack.c.l.b16 %v7927
        %v7978 = vunpack.c.l.b16 %v7928
        %v7979 = vunpack.c.l.b16 %v7929
        %v7980 = vunpack.c.l.b16 %v7930
        %v7981 = vunpack.c.l.b16 %v7931
        %v7982 = vunpack.c.l.b16 %v7932
        %v7983 = vunpack.c.l.b16 %v7933
        %v7984 = vpack.c.b16 %v7960, %v7959
        %v7985 = vpack.c.b16 %v7962, %v7961
        %v7986 = vpack.c.b16 %v7964, %v7963
        %v7987 = vpack.c.b16 %v7966, %v7965
        %v7988 = vpack.c.b16 %v7968, %v7967
        %v7989 = vpack.c.b16 %v7970, %v7969
        %v7990 = vpack.c.b16 %v7972, %v7971
        %v7991 = vpack.c.b16 %v7974, %v7973
        %v7992 = vpack.c.b16 %v7976, %v7975
        %v7993 = vpack.c.b16 %v7978, %v7977
        %v7994 = vpack.c.b16 %v7980, %v7979
        %v7995 = vpack.c.b16 %v7982, %v7981
        %v7996 = vpack.c.b16 %v7983, %v7983
        %vm8009 = vcmask 556032
        %v8010 = vsel %vm8009, %v5034, 0
        %v8012 = vsel %vm8009, %v5036, 0
        %v8014 = vsel %vm8009, %v5038, 0
        %v8016 = vsel %vm8009, %v5040, 0
        %v8018 = vsel %vm8009, %v5042, 0
        %v8020 = vsel %vm8009, %v5044, 0
        %v8022 = vsel %vm8009, %v5046, 0
        %v8024 = vsel %vm8009, %v5048, 0
        %v8026 = vsel %vm8009, %v5050, 0
        %v8028 = vsel %vm8009, %v5052, 0
        %v8030 = vsel %vm8009, %v5054, 0
        %v8032 = vsel %vm8009, %v5056, 0
        %v8034 = vsel %vm8009, %v5058, 0
        %v8036 = vsel %vm8009, %v5060, 0
        %v8038 = vsel %vm8009, %v5062, 0
        %v8040 = vsel %vm8009, %v5064, 0
        %v8042 = vsel %vm8009, %v5066, 0
        %v8044 = vsel %vm8009, %v5068, 0
        %v8046 = vsel %vm8009, %v5070, 0
        %v8048 = vsel %vm8009, %v5072, 0
        %v8050 = vsel %vm8009, %v5074, 0
        %v8052 = vsel %vm8009, %v5076, 0
        %v8054 = vsel %vm8009, %v5078, 0
        %v8056 = vsel %vm8009, %v5080, 0
        %v8058 = vsel %vm8009, %v5082, 0
        %v8060 = vsel %vm8009, %v5084, 0
        %v8062 = vsel %vm8009, %v5086, 0
        %v8064 = vsel %vm8009, %v5088, 0
        %v8066 = vsel %vm8009, %v5090, 0
        %v8068 = vsel %vm8009, %v5092, 0
        %v8070 = vsel %vm8009, %v5093, 0
        %v8072 = vsel %vm8009, %v5094, 0
        %v8074 = vsel %vm8009, %v7850, 0
        %v8076 = vsel %vm8009, %v7852, 0
        %v8078 = vsel %vm8009, %v7854, 0
        %v8080 = vsel %vm8009, %v7856, 0
        %v8082 = vsel %vm8009, %v7858, 0
        %v8084 = vsel %vm8009, %v7860, 0
        %v8086 = vsel %vm8009, %v7862, 0
        %v8088 = vsel %vm8009, %v7864, 0
        %v8090 = vsel %vm8009, %v7866, 0
        %v8092 = vsel %vm8009, %v7868, 0
        %v8094 = vsel %vm8009, %v7870, 0
        %v8096 = vsel %vm8009, %v7872, 0
        %v8098 = vsel %vm8009, %v7874, 0
        %v8100 = vsel %vm8009, %v7876, 0
        %v8102 = vsel %vm8009, %v7878, 0
        %v8104 = vsel %vm8009, %v7880, 0
        %v8106 = vsel %vm8009, %v7882, 0
        %v8108 = vsel %vm8009, %v7884, 0
        %v8110 = vsel %vm8009, %v7886, 0
        %v8112 = vsel %vm8009, %v7888, 0
        %v8114 = vsel %vm8009, %v7890, 0
        %v8116 = vsel %vm8009, %v7892, 0
        %v8118 = vsel %vm8009, %v7894, 0
        %v8120 = vsel %vm8009, %v7896, 0
        %v8122 = vsel %vm8009, %v7898, 0
        %v8124 = vsel %vm8009, %v7900, 0
        %v8126 = vsel %vm8009, %v7902, 0
        %v8128 = vsel %vm8009, %v7904, 0
        %v8130 = vsel %vm8009, %v7906, 0
        %v8132 = vsel %vm8009, %v7907, 0
        %v8134 = vsel %vm8009, %v7908, 0
        %vm8136 = vcmask 1041408
        %v8138 = vsel %vm8136, %v7996, 0
        %8140 = vmatprep.subr.bf16.mxu0 0
        %8141 = vmatpush1.bf16.msra.mxu0 %v7984
        %8142 = vmatprep.subr.bf16.mxu0 0
        %8143 = vmatpush1.bf16.msra.mxu0 %v7985
        %8144 = vmatprep.subr.bf16.mxu0 0
        %8145 = vmatpush1.bf16.msra.mxu0 %v7986
        %8146 = vmatprep.subr.bf16.mxu0 0
        %8147 = vmatpush1.bf16.msra.mxu0 %v7987
        %8148 = vmatprep.subr.bf16.mxu0 0
        %8149 = vmatpush1.bf16.msra.mxu0 %v7988
        %8150 = vmatprep.subr.bf16.mxu0 0
        %8151 = vmatpush1.bf16.msra.mxu0 %v7989
        %8152 = vmatprep.subr.bf16.mxu0 0
        %8153 = vmatpush1.bf16.msra.mxu0 %v7990
        %8154 = vmatprep.subr.bf16.mxu0 0
        %8155 = vmatpush1.bf16.msra.mxu0 %v7991
        %8156 = vmatprep.subr.bf16.mxu0 0
        %8157 = vmatpush1.bf16.msra.mxu0 %v7992
        %8158 = vmatprep.subr.bf16.mxu0 0
        %8159 = vmatpush1.bf16.msra.mxu0 %v7993
        %8160 = vmatprep.subr.bf16.mxu0 0
        %8161 = vmatpush1.bf16.msra.mxu0 %v7994
        %8162 = vmatprep.subr.bf16.mxu0 0
        %8163 = vmatpush1.bf16.msra.mxu0 %v7995
        %8164 = vmatprep.subr.bf16.mxu0 0
        %8165 = vmatpush1.bf16.msra.mxu0 %v8138
        %8166 = vmatprep.subr.bf16.mxu0 0
        %8167 = vmatpush1.bf16.msra.mxu0 0
        %8168 = vmatprep.subr.bf16.mxu0 0
        %8169 = vmatpush1.bf16.msra.mxu0 0
        %8170 = vmatprep.subr.bf16.mxu0 0
        %8171 = vmatpush1.bf16.msra.mxu0 0
        %8172 = vmatprep.mubr.bf16.mxu0 %v8010
        %8173 = vmatmul.mubr.bf16.gmra.mrb[0].mxu0 %v4874
        %v8174 = vpop.f32.mrb[0].mxu0
        %v8175 = vadd.f32 0.0, %v8174
        %v8176 = vpop.f32.mrb[0].mxu0
        %v8177 = vpop.f32.mrb[0].mxu0
        %v8178 = vadd.f32 0.0, %v8177
        %v8179 = vpop.f32.mrb[0].mxu0
        %8180 = vmatprep.mubr.bf16.mxu0 %v8012
        %8181 = vmatmul.mubr.bf16.gmra.mrb[0].mxu0 %v4877
        %v8182 = vpop.f32.mrb[0].mxu0
        %v8183 = vadd.f32 0.0, %v8182
        %v8184 = vpop.f32.mrb[0].mxu0
        %v8185 = vpop.f32.mrb[0].mxu0
        %v8186 = vadd.f32 0.0, %v8185
        %v8187 = vpop.f32.mrb[0].mxu0
        %8188 = vmatprep.mubr.bf16.mxu0 %v8014
        %8189 = vmatmul.mubr.bf16.gmra.mrb[0].mxu0 %v4880
        %v8190 = vpop.f32.mrb[0].mxu0
        %v8191 = vadd.f32 0.0, %v8190
        %v8192 = vpop.f32.mrb[0].mxu0
        %v8193 = vpop.f32.mrb[0].mxu0
        %v8194 = vadd.f32 0.0, %v8193
        %v8195 = vpop.f32.mrb[0].mxu0
        %8196 = vmatprep.mubr.bf16.mxu0 %v8016
        %8197 = vmatmul.mubr.bf16.gmra.mrb[0].mxu0 %v4883
        %v8198 = vpop.f32.mrb[0].mxu0
        %v8199 = vadd.f32 0.0, %v8198
        %v8200 = vpop.f32.mrb[0].mxu0
        %v8201 = vpop.f32.mrb[0].mxu0
        %v8202 = vadd.f32 0.0, %v8201
        %v8203 = vpop.f32.mrb[0].mxu0
        %8204 = vmatprep.mubr.bf16.mxu0 %v8018
        %8205 = vmatmul.mubr.bf16.gmra.mrb[0].mxu0 %v4886
        %v8206 = vpop.f32.mrb[0].mxu0
        %v8207 = vadd.f32 0.0, %v8206
        %v8208 = vpop.f32.mrb[0].mxu0
        %v8209 = vpop.f32.mrb[0].mxu0
        %v8210 = vadd.f32 0.0, %v8209
        %v8211 = vpop.f32.mrb[0].mxu0
        %8212 = vmatprep.mubr.bf16.mxu0 %v8020
        %8213 = vmatmul.mubr.bf16.gmra.mrb[0].mxu0 %v4889
        %v8214 = vpop.f32.mrb[0].mxu0
        %v8215 = vadd.f32 0.0, %v8214
        %v8216 = vpop.f32.mrb[0].mxu0
        %v8217 = vpop.f32.mrb[0].mxu0
        %v8218 = vadd.f32 0.0, %v8217
        %v8219 = vpop.f32.mrb[0].mxu0
        %8220 = vmatprep.mubr.bf16.mxu0 %v8022
        %8221 = vmatmul.mubr.bf16.gmra.mrb[0].mxu0 %v4892
        %v8222 = vpop.f32.mrb[0].mxu0
        %v8223 = vadd.f32 0.0, %v8222
        %v8224 = vpop.f32.mrb[0].mxu0
        %v8225 = vpop.f32.mrb[0].mxu0
        %v8226 = vadd.f32 0.0, %v8225
        %v8227 = vpop.f32.mrb[0].mxu0
        %8228 = vmatprep.mubr.bf16.mxu0 %v8024
        %8229 = vmatmul.mubr.bf16.gmra.mrb[0].mxu0 %v4895
        %v8230 = vpop.f32.mrb[0].mxu0
        %v8231 = vadd.f32 0.0, %v8230
        %v8232 = vpop.f32.mrb[0].mxu0
        %v8233 = vpop.f32.mrb[0].mxu0
        %v8234 = vadd.f32 0.0, %v8233
        %v8235 = vpop.f32.mrb[0].mxu0
        %8236 = vmatprep.mubr.bf16.mxu0 %v8026
        %8237 = vmatmul.mubr.bf16.gmra.mrb[0].mxu0 %v4898
        %v8238 = vpop.f32.mrb[0].mxu0
        %v8239 = vadd.f32 0.0, %v8238
        %v8240 = vpop.f32.mrb[0].mxu0
        %v8241 = vpop.f32.mrb[0].mxu0
        %v8242 = vadd.f32 0.0, %v8241
        %v8243 = vpop.f32.mrb[0].mxu0
        %8244 = vmatprep.mubr.bf16.mxu0 %v8028
        %8245 = vmatmul.mubr.bf16.gmra.mrb[0].mxu0 %v4901
        %v8246 = vpop.f32.mrb[0].mxu0
        %v8247 = vadd.f32 0.0, %v8246
        %v8248 = vpop.f32.mrb[0].mxu0
        %v8249 = vpop.f32.mrb[0].mxu0
        %v8250 = vadd.f32 0.0, %v8249
        %v8251 = vpop.f32.mrb[0].mxu0
        %8252 = vmatprep.mubr.bf16.mxu0 %v8030
        %8253 = vmatmul.mubr.bf16.gmra.mrb[0].mxu0 %v4904
        %v8254 = vpop.f32.mrb[0].mxu0
        %v8255 = vadd.f32 0.0, %v8254
        %v8256 = vpop.f32.mrb[0].mxu0
        %v8257 = vpop.f32.mrb[0].mxu0
        %v8258 = vadd.f32 0.0, %v8257
        %v8259 = vpop.f32.mrb[0].mxu0
        %8260 = vmatprep.mubr.bf16.mxu0 %v8032
        %8261 = vmatmul.mubr.bf16.gmra.mrb[0].mxu0 %v4907
        %v8262 = vpop.f32.mrb[0].mxu0
        %v8263 = vadd.f32 0.0, %v8262
        %v8264 = vpop.f32.mrb[0].mxu0
        %v8265 = vpop.f32.mrb[0].mxu0
        %v8266 = vadd.f32 0.0, %v8265
        %v8267 = vpop.f32.mrb[0].mxu0
        %8268 = vmatprep.mubr.bf16.mxu0 %v8034
        %8269 = vmatmul.mubr.bf16.gmra.mrb[0].mxu0 %v4910
        %v8270 = vpop.f32.mrb[0].mxu0
        %v8271 = vadd.f32 0.0, %v8270
        %v8272 = vpop.f32.mrb[0].mxu0
        %v8273 = vpop.f32.mrb[0].mxu0
        %v8274 = vadd.f32 0.0, %v8273
        %v8275 = vpop.f32.mrb[0].mxu0
        %8276 = vmatprep.mubr.bf16.mxu0 %v8036
        %8277 = vmatmul.mubr.bf16.gmra.mrb[0].mxu0 %v4913
        %v8278 = vpop.f32.mrb[0].mxu0
        %v8279 = vadd.f32 0.0, %v8278
        %v8280 = vpop.f32.mrb[0].mxu0
        %v8281 = vpop.f32.mrb[0].mxu0
        %v8282 = vadd.f32 0.0, %v8281
        %v8283 = vpop.f32.mrb[0].mxu0
        %8284 = vmatprep.mubr.bf16.mxu0 %v8038
        %8285 = vmatmul.mubr.bf16.gmra.mrb[0].mxu0 %v4916
        %v8286 = vpop.f32.mrb[0].mxu0
        %v8287 = vadd.f32 0.0, %v8286
        %v8288 = vpop.f32.mrb[0].mxu0
        %v8289 = vpop.f32.mrb[0].mxu0
        %v8290 = vadd.f32 0.0, %v8289
        %v8291 = vpop.f32.mrb[0].mxu0
        %8292 = vmatprep.mubr.bf16.mxu0 %v8040
        %8293 = vmatmul.mubr.bf16.gmra.mrb[0].mxu0 %v4919
        %v8294 = vpop.f32.mrb[0].mxu0
        %v8295 = vadd.f32 0.0, %v8294
        %v8296 = vpop.f32.mrb[0].mxu0
        %v8297 = vpop.f32.mrb[0].mxu0
        %v8298 = vadd.f32 0.0, %v8297
        %v8299 = vpop.f32.mrb[0].mxu0
        %8300 = vmatprep.mubr.bf16.mxu0 %v8042
        %8301 = vmatmul.mubr.bf16.gmra.mrb[0].mxu0 %v4922
        %v8302 = vpop.f32.mrb[0].mxu0
        %v8303 = vadd.f32 0.0, %v8302
        %v8304 = vpop.f32.mrb[0].mxu0
        %v8305 = vpop.f32.mrb[0].mxu0
        %v8306 = vadd.f32 0.0, %v8305
        %v8307 = vpop.f32.mrb[0].mxu0
        %8308 = vmatprep.mubr.bf16.mxu0 %v8044
        %8309 = vmatmul.mubr.bf16.gmra.mrb[0].mxu0 %v4925
        %v8310 = vpop.f32.mrb[0].mxu0
        %v8311 = vadd.f32 0.0, %v8310
        %v8312 = vpop.f32.mrb[0].mxu0
        %v8313 = vpop.f32.mrb[0].mxu0
        %v8314 = vadd.f32 0.0, %v8313
        %v8315 = vpop.f32.mrb[0].mxu0
        %8316 = vmatprep.mubr.bf16.mxu0 %v8046
        %8317 = vmatmul.mubr.bf16.gmra.mrb[0].mxu0 %v4928
        %v8318 = vpop.f32.mrb[0].mxu0
        %v8319 = vadd.f32 0.0, %v8318
        %v8320 = vpop.f32.mrb[0].mxu0
        %v8321 = vpop.f32.mrb[0].mxu0
        %v8322 = vadd.f32 0.0, %v8321
        %v8323 = vpop.f32.mrb[0].mxu0
        %8324 = vmatprep.mubr.bf16.mxu0 %v8048
        %8325 = vmatmul.mubr.bf16.gmra.mrb[0].mxu0 %v4931
        %v8326 = vpop.f32.mrb[0].mxu0
        %v8327 = vadd.f32 0.0, %v8326
        %v8328 = vpop.f32.mrb[0].mxu0
        %v8329 = vpop.f32.mrb[0].mxu0
        %v8330 = vadd.f32 0.0, %v8329
        %v8331 = vpop.f32.mrb[0].mxu0
        %8332 = vmatprep.mubr.bf16.mxu0 %v8050
        %8333 = vmatmul.mubr.bf16.gmra.mrb[0].mxu0 %v4934
        %v8334 = vpop.f32.mrb[0].mxu0
        %v8335 = vadd.f32 0.0, %v8334
        %v8336 = vpop.f32.mrb[0].mxu0
        %v8337 = vpop.f32.mrb[0].mxu0
        %v8338 = vadd.f32 0.0, %v8337
        %v8339 = vpop.f32.mrb[0].mxu0
        %8340 = vmatprep.mubr.bf16.mxu0 %v8052
        %8341 = vmatmul.mubr.bf16.gmra.mrb[0].mxu0 %v4937
        %v8342 = vpop.f32.mrb[0].mxu0
        %v8343 = vadd.f32 0.0, %v8342
        %v8344 = vpop.f32.mrb[0].mxu0
        %v8345 = vpop.f32.mrb[0].mxu0
        %v8346 = vadd.f32 0.0, %v8345
        %v8347 = vpop.f32.mrb[0].mxu0
        %8348 = vmatprep.mubr.bf16.mxu0 %v8054
        %8349 = vmatmul.mubr.bf16.gmra.mrb[0].mxu0 %v4940
        %v8350 = vpop.f32.mrb[0].mxu0
        %v8351 = vadd.f32 0.0, %v8350
        %v8352 = vpop.f32.mrb[0].mxu0
        %v8353 = vpop.f32.mrb[0].mxu0
        %v8354 = vadd.f32 0.0, %v8353
        %v8355 = vpop.f32.mrb[0].mxu0
        %8356 = vmatprep.mubr.bf16.mxu0 %v8056
        %8357 = vmatmul.mubr.bf16.gmra.mrb[0].mxu0 %v4943
        %v8358 = vpop.f32.mrb[0].mxu0
        %v8359 = vadd.f32 0.0, %v8358
        %v8360 = vpop.f32.mrb[0].mxu0
        %v8361 = vpop.f32.mrb[0].mxu0
        %v8362 = vadd.f32 0.0, %v8361
        %v8363 = vpop.f32.mrb[0].mxu0
        %8364 = vmatprep.mubr.bf16.mxu0 %v8058
        %8365 = vmatmul.mubr.bf16.gmra.mrb[0].mxu0 %v4946
        %v8366 = vpop.f32.mrb[0].mxu0
        %v8367 = vadd.f32 0.0, %v8366
        %v8368 = vpop.f32.mrb[0].mxu0
        %v8369 = vpop.f32.mrb[0].mxu0
        %v8370 = vadd.f32 0.0, %v8369
        %v8371 = vpop.f32.mrb[0].mxu0
        %8372 = vmatprep.mubr.bf16.mxu0 %v8060
        %8373 = vmatmul.mubr.bf16.gmra.mrb[0].mxu0 %v4949
        %v8374 = vpop.f32.mrb[0].mxu0
        %v8375 = vadd.f32 0.0, %v8374
        %v8376 = vpop.f32.mrb[0].mxu0
        %v8377 = vpop.f32.mrb[0].mxu0
        %v8378 = vadd.f32 0.0, %v8377
        %v8379 = vpop.f32.mrb[0].mxu0
        %8380 = vmatprep.mubr.bf16.mxu0 %v8062
        %8381 = vmatmul.mubr.bf16.gmra.mrb[0].mxu0 %v4952
        %v8382 = vpop.f32.mrb[0].mxu0
        %v8383 = vadd.f32 0.0, %v8382
        %v8384 = vpop.f32.mrb[0].mxu0
        %v8385 = vpop.f32.mrb[0].mxu0
        %v8386 = vadd.f32 0.0, %v8385
        %v8387 = vpop.f32.mrb[0].mxu0
        %8388 = vmatprep.mubr.bf16.mxu0 %v8064
        %8389 = vmatmul.mubr.bf16.gmra.mrb[0].mxu0 %v4955
        %v8390 = vpop.f32.mrb[0].mxu0
        %v8391 = vadd.f32 0.0, %v8390
        %v8392 = vpop.f32.mrb[0].mxu0
        %v8393 = vpop.f32.mrb[0].mxu0
        %v8394 = vadd.f32 0.0, %v8393
        %v8395 = vpop.f32.mrb[0].mxu0
        %8396 = vmatprep.mubr.bf16.mxu0 %v8066
        %8397 = vmatmul.mubr.bf16.gmra.mrb[0].mxu0 %v4958
        %v8398 = vpop.f32.mrb[0].mxu0
        %v8399 = vadd.f32 0.0, %v8398
        %v8400 = vpop.f32.mrb[0].mxu0
        %v8401 = vpop.f32.mrb[0].mxu0
        %v8402 = vadd.f32 0.0, %v8401
        %v8403 = vpop.f32.mrb[0].mxu0
        %8404 = vmatprep.mubr.bf16.mxu0 %v8068
        %8405 = vmatmul.mubr.bf16.gmra.mrb[0].mxu0 %v4961
        %v8406 = vpop.f32.mrb[0].mxu0
        %v8407 = vadd.f32 0.0, %v8406
        %v8408 = vpop.f32.mrb[0].mxu0
        %v8409 = vpop.f32.mrb[0].mxu0
        %v8410 = vadd.f32 0.0, %v8409
        %v8411 = vpop.f32.mrb[0].mxu0
        %8412 = vmatprep.mubr.bf16.mxu0 %v8070
        %8413 = vmatmul.mubr.bf16.gmra.mrb[0].mxu0 %v4964
        %v8414 = vpop.f32.mrb[0].mxu0
        %v8415 = vadd.f32 0.0, %v8414
        %v8416 = vpop.f32.mrb[0].mxu0
        %v8417 = vpop.f32.mrb[0].mxu0
        %v8418 = vadd.f32 0.0, %v8417
        %v8419 = vpop.f32.mrb[0].mxu0
        %8420 = vmatprep.mubr.bf16.mxu0 %v8072
        %8421 = vmatmul.mubr.bf16.gmra.mrb[0].mxu0 %v4967
        %v8422 = vpop.f32.mrb[0].mxu0
        %v8423 = vadd.f32 0.0, %v8422
        %v8424 = vpop.f32.mrb[0].mxu0
        %v8425 = vpop.f32.mrb[0].mxu0
        %v8426 = vadd.f32 0.0, %v8425
        %v8427 = vpop.f32.mrb[0].mxu0
        %8428 = vmatprep.mubr.bf16.mxu0 %v8074
        %8429 = vmatmul.mubr.bf16.gmra.mrb[0].mxu0 %v7694
        %v8430 = vpop.f32.mrb[0].mxu0
        %v8431 = vadd.f32 0.0, %v8430
        %v8432 = vpop.f32.mrb[0].mxu0
        %v8433 = vpop.f32.mrb[0].mxu0
        %v8434 = vadd.f32 0.0, %v8433
        %v8435 = vpop.f32.mrb[0].mxu0
        %8436 = vmatprep.mubr.bf16.mxu0 %v8076
        %8437 = vmatmul.mubr.bf16.gmra.mrb[0].mxu0 %v7697
        %v8438 = vpop.f32.mrb[0].mxu0
        %v8439 = vadd.f32 0.0, %v8438
        %v8440 = vpop.f32.mrb[0].mxu0
        %v8441 = vpop.f32.mrb[0].mxu0
        %v8442 = vadd.f32 0.0, %v8441
        %v8443 = vpop.f32.mrb[0].mxu0
        %8444 = vmatprep.mubr.bf16.mxu0 %v8078
        %8445 = vmatmul.mubr.bf16.gmra.mrb[0].mxu0 %v7700
        %v8446 = vpop.f32.mrb[0].mxu0
        %v8447 = vadd.f32 0.0, %v8446
        %v8448 = vpop.f32.mrb[0].mxu0
        %v8449 = vpop.f32.mrb[0].mxu0
        %v8450 = vadd.f32 0.0, %v8449
        %v8451 = vpop.f32.mrb[0].mxu0
        %8452 = vmatprep.mubr.bf16.mxu0 %v8080
        %8453 = vmatmul.mubr.bf16.gmra.mrb[0].mxu0 %v7703
        %v8454 = vpop.f32.mrb[0].mxu0
        %v8455 = vadd.f32 0.0, %v8454
        %v8456 = vpop.f32.mrb[0].mxu0
        %v8457 = vpop.f32.mrb[0].mxu0
        %v8458 = vadd.f32 0.0, %v8457
        %v8459 = vpop.f32.mrb[0].mxu0
        %8460 = vmatprep.mubr.bf16.mxu0 %v8082
        %8461 = vmatmul.mubr.bf16.gmra.mrb[0].mxu0 %v7706
        %v8462 = vpop.f32.mrb[0].mxu0
        %v8463 = vadd.f32 0.0, %v8462
        %v8464 = vpop.f32.mrb[0].mxu0
        %v8465 = vpop.f32.mrb[0].mxu0
        %v8466 = vadd.f32 0.0, %v8465
        %v8467 = vpop.f32.mrb[0].mxu0
        %8468 = vmatprep.mubr.bf16.mxu0 %v8084
        %8469 = vmatmul.mubr.bf16.gmra.mrb[0].mxu0 %v7709
        %v8470 = vpop.f32.mrb[0].mxu0
        %v8471 = vadd.f32 0.0, %v8470
        %v8472 = vpop.f32.mrb[0].mxu0
        %v8473 = vpop.f32.mrb[0].mxu0
        %v8474 = vadd.f32 0.0, %v8473
        %v8475 = vpop.f32.mrb[0].mxu0
        %8476 = vmatprep.mubr.bf16.mxu0 %v8086
        %8477 = vmatmul.mubr.bf16.gmra.mrb[0].mxu0 %v7712
        %v8478 = vpop.f32.mrb[0].mxu0
        %v8479 = vadd.f32 0.0, %v8478
        %v8480 = vpop.f32.mrb[0].mxu0
        %v8481 = vpop.f32.mrb[0].mxu0
        %v8482 = vadd.f32 0.0, %v8481
        %v8483 = vpop.f32.mrb[0].mxu0
        %8484 = vmatprep.mubr.bf16.mxu0 %v8088
        %8485 = vmatmul.mubr.bf16.gmra.mrb[0].mxu0 %v7715
        %v8486 = vpop.f32.mrb[0].mxu0
        %v8487 = vadd.f32 0.0, %v8486
        %v8488 = vpop.f32.mrb[0].mxu0
        %v8489 = vpop.f32.mrb[0].mxu0
        %v8490 = vadd.f32 0.0, %v8489
        %v8491 = vpop.f32.mrb[0].mxu0
        %8492 = vmatprep.mubr.bf16.mxu0 %v8090
        %8493 = vmatmul.mubr.bf16.gmra.mrb[0].mxu0 %v7718
        %v8494 = vpop.f32.mrb[0].mxu0
        %v8495 = vadd.f32 0.0, %v8494
        %v8496 = vpop.f32.mrb[0].mxu0
        %v8497 = vpop.f32.mrb[0].mxu0
        %v8498 = vadd.f32 0.0, %v8497
        %v8499 = vpop.f32.mrb[0].mxu0
        %8500 = vmatprep.mubr.bf16.mxu0 %v8092
        %8501 = vmatmul.mubr.bf16.gmra.mrb[0].mxu0 %v7721
        %v8502 = vpop.f32.mrb[0].mxu0
        %v8503 = vadd.f32 0.0, %v8502
        %v8504 = vpop.f32.mrb[0].mxu0
        %v8505 = vpop.f32.mrb[0].mxu0
        %v8506 = vadd.f32 0.0, %v8505
        %v8507 = vpop.f32.mrb[0].mxu0
        %8508 = vmatprep.mubr.bf16.mxu0 %v8094
        %8509 = vmatmul.mubr.bf16.gmra.mrb[0].mxu0 %v7724
        %v8510 = vpop.f32.mrb[0].mxu0
        %v8511 = vadd.f32 0.0, %v8510
        %v8512 = vpop.f32.mrb[0].mxu0
        %v8513 = vpop.f32.mrb[0].mxu0
        %v8514 = vadd.f32 0.0, %v8513
        %v8515 = vpop.f32.mrb[0].mxu0
        %8516 = vmatprep.mubr.bf16.mxu0 %v8096
        %8517 = vmatmul.mubr.bf16.gmra.mrb[0].mxu0 %v7727
        %v8518 = vpop.f32.mrb[0].mxu0
        %v8519 = vadd.f32 0.0, %v8518
        %v8520 = vpop.f32.mrb[0].mxu0
        %v8521 = vpop.f32.mrb[0].mxu0
        %v8522 = vadd.f32 0.0, %v8521
        %v8523 = vpop.f32.mrb[0].mxu0
        %8524 = vmatprep.mubr.bf16.mxu0 %v8098
        %8525 = vmatmul.mubr.bf16.gmra.mrb[0].mxu0 %v7730
        %v8526 = vpop.f32.mrb[0].mxu0
        %v8527 = vadd.f32 0.0, %v8526
        %v8528 = vpop.f32.mrb[0].mxu0
        %v8529 = vpop.f32.mrb[0].mxu0
        %v8530 = vadd.f32 0.0, %v8529
        %v8531 = vpop.f32.mrb[0].mxu0
        %8532 = vmatprep.mubr.bf16.mxu0 %v8100
        %8533 = vmatmul.mubr.bf16.gmra.mrb[0].mxu0 %v7733
        %v8534 = vpop.f32.mrb[0].mxu0
        %v8535 = vadd.f32 0.0, %v8534
        %v8536 = vpop.f32.mrb[0].mxu0
        %v8537 = vpop.f32.mrb[0].mxu0
        %v8538 = vadd.f32 0.0, %v8537
        %v8539 = vpop.f32.mrb[0].mxu0
        %8540 = vmatprep.mubr.bf16.mxu0 %v8102
        %8541 = vmatmul.mubr.bf16.gmra.mrb[0].mxu0 %v7736
        %v8542 = vpop.f32.mrb[0].mxu0
        %v8543 = vadd.f32 0.0, %v8542
        %v8544 = vpop.f32.mrb[0].mxu0
        %v8545 = vpop.f32.mrb[0].mxu0
        %v8546 = vadd.f32 0.0, %v8545
        %v8547 = vpop.f32.mrb[0].mxu0
        %8548 = vmatprep.mubr.bf16.mxu0 %v8104
        %8549 = vmatmul.mubr.bf16.gmra.mrb[0].mxu0 %v7739
        %v8550 = vpop.f32.mrb[0].mxu0
        %v8551 = vadd.f32 0.0, %v8550
        %v8552 = vpop.f32.mrb[0].mxu0
        %v8553 = vpop.f32.mrb[0].mxu0
        %v8554 = vadd.f32 0.0, %v8553
        %v8555 = vpop.f32.mrb[0].mxu0
        %8556 = vmatprep.mubr.bf16.mxu0 %v8106
        %8557 = vmatmul.mubr.bf16.gmra.mrb[0].mxu0 %v7742
        %v8558 = vpop.f32.mrb[0].mxu0
        %v8559 = vadd.f32 0.0, %v8558
        %v8560 = vpop.f32.mrb[0].mxu0
        %v8561 = vpop.f32.mrb[0].mxu0
        %v8562 = vadd.f32 0.0, %v8561
        %v8563 = vpop.f32.mrb[0].mxu0
        %8564 = vmatprep.mubr.bf16.mxu0 %v8108
        %8565 = vmatmul.mubr.bf16.gmra.mrb[0].mxu0 %v7745
        %v8566 = vpop.f32.mrb[0].mxu0
        %v8567 = vadd.f32 0.0, %v8566
        %v8568 = vpop.f32.mrb[0].mxu0
        %v8569 = vpop.f32.mrb[0].mxu0
        %v8570 = vadd.f32 0.0, %v8569
        %v8571 = vpop.f32.mrb[0].mxu0
        %8572 = vmatprep.mubr.bf16.mxu0 %v8110
        %8573 = vmatmul.mubr.bf16.gmra.mrb[0].mxu0 %v7748
        %v8574 = vpop.f32.mrb[0].mxu0
        %v8575 = vadd.f32 0.0, %v8574
        %v8576 = vpop.f32.mrb[0].mxu0
        %v8577 = vpop.f32.mrb[0].mxu0
        %v8578 = vadd.f32 0.0, %v8577
        %v8579 = vpop.f32.mrb[0].mxu0
        %8580 = vmatprep.mubr.bf16.mxu0 %v8112
        %8581 = vmatmul.mubr.bf16.gmra.mrb[0].mxu0 %v7751
        %v8582 = vpop.f32.mrb[0].mxu0
        %v8583 = vadd.f32 0.0, %v8582
        %v8584 = vpop.f32.mrb[0].mxu0
        %v8585 = vpop.f32.mrb[0].mxu0
        %v8586 = vadd.f32 0.0, %v8585
        %v8587 = vpop.f32.mrb[0].mxu0
        %8588 = vmatprep.mubr.bf16.mxu0 %v8114
        %8589 = vmatmul.mubr.bf16.gmra.mrb[0].mxu0 %v7754
        %v8590 = vpop.f32.mrb[0].mxu0
        %v8591 = vadd.f32 0.0, %v8590
        %v8592 = vpop.f32.mrb[0].mxu0
        %v8593 = vpop.f32.mrb[0].mxu0
        %v8594 = vadd.f32 0.0, %v8593
        %v8595 = vpop.f32.mrb[0].mxu0
        %8596 = vmatprep.mubr.bf16.mxu0 %v8116
        %8597 = vmatmul.mubr.bf16.gmra.mrb[0].mxu0 %v7757
        %v8598 = vpop.f32.mrb[0].mxu0
        %v8599 = vadd.f32 0.0, %v8598
        %v8600 = vpop.f32.mrb[0].mxu0
        %v8601 = vpop.f32.mrb[0].mxu0
        %v8602 = vadd.f32 0.0, %v8601
        %v8603 = vpop.f32.mrb[0].mxu0
        %8604 = vmatprep.mubr.bf16.mxu0 %v8118
        %8605 = vmatmul.mubr.bf16.gmra.mrb[0].mxu0 %v7760
        %v8606 = vpop.f32.mrb[0].mxu0
        %v8607 = vadd.f32 0.0, %v8606
        %v8608 = vpop.f32.mrb[0].mxu0
        %v8609 = vpop.f32.mrb[0].mxu0
        %v8610 = vadd.f32 0.0, %v8609
        %v8611 = vpop.f32.mrb[0].mxu0
        %8612 = vmatprep.mubr.bf16.mxu0 %v8120
        %8613 = vmatmul.mubr.bf16.gmra.mrb[0].mxu0 %v7763
        %v8614 = vpop.f32.mrb[0].mxu0
        %v8615 = vadd.f32 0.0, %v8614
        %v8616 = vpop.f32.mrb[0].mxu0
        %v8617 = vpop.f32.mrb[0].mxu0
        %v8618 = vadd.f32 0.0, %v8617
        %v8619 = vpop.f32.mrb[0].mxu0
        %8620 = vmatprep.mubr.bf16.mxu0 %v8122
        %8621 = vmatmul.mubr.bf16.gmra.mrb[0].mxu0 %v7766
        %v8622 = vpop.f32.mrb[0].mxu0
        %v8623 = vadd.f32 0.0, %v8622
        %v8624 = vpop.f32.mrb[0].mxu0
        %v8625 = vpop.f32.mrb[0].mxu0
        %v8626 = vadd.f32 0.0, %v8625
        %v8627 = vpop.f32.mrb[0].mxu0
        %8628 = vmatprep.mubr.bf16.mxu0 %v8124
        %8629 = vmatmul.mubr.bf16.gmra.mrb[0].mxu0 %v7769
        %v8630 = vpop.f32.mrb[0].mxu0
        %v8631 = vadd.f32 0.0, %v8630
        %v8632 = vpop.f32.mrb[0].mxu0
        %v8633 = vpop.f32.mrb[0].mxu0
        %v8634 = vadd.f32 0.0, %v8633
        %v8635 = vpop.f32.mrb[0].mxu0
        %8636 = vmatprep.mubr.bf16.mxu0 %v8126
        %8637 = vmatmul.mubr.bf16.gmra.mrb[0].mxu0 %v7772
        %v8638 = vpop.f32.mrb[0].mxu0
        %v8639 = vadd.f32 0.0, %v8638
        %v8640 = vpop.f32.mrb[0].mxu0
        %v8641 = vpop.f32.mrb[0].mxu0
        %v8642 = vadd.f32 0.0, %v8641
        %v8643 = vpop.f32.mrb[0].mxu0
        %8644 = vmatprep.mubr.bf16.mxu0 %v8128
        %8645 = vmatmul.mubr.bf16.gmra.mrb[0].mxu0 %v7775
        %v8646 = vpop.f32.mrb[0].mxu0
        %v8647 = vadd.f32 0.0, %v8646
        %v8648 = vpop.f32.mrb[0].mxu0
        %v8649 = vpop.f32.mrb[0].mxu0
        %v8650 = vadd.f32 0.0, %v8649
        %v8651 = vpop.f32.mrb[0].mxu0
        %8652 = vmatprep.mubr.bf16.mxu0 %v8130
        %8653 = vmatmul.mubr.bf16.gmra.mrb[0].mxu0 %v7778
        %v8654 = vpop.f32.mrb[0].mxu0
        %v8655 = vadd.f32 0.0, %v8654
        %v8656 = vpop.f32.mrb[0].mxu0
        %v8657 = vpop.f32.mrb[0].mxu0
        %v8658 = vadd.f32 0.0, %v8657
        %v8659 = vpop.f32.mrb[0].mxu0
        %8660 = vmatprep.mubr.bf16.mxu0 %v8132
        %8661 = vmatmul.mubr.bf16.gmra.mrb[0].mxu0 %v7781
        %v8662 = vpop.f32.mrb[0].mxu0
        %v8663 = vadd.f32 0.0, %v8662
        %v8664 = vpop.f32.mrb[0].mxu0
        %v8665 = vpop.f32.mrb[0].mxu0
        %v8666 = vadd.f32 0.0, %v8665
        %v8667 = vpop.f32.mrb[0].mxu0
        %8668 = vmatprep.mubr.bf16.mxu0 %v8134
        %8669 = vmatmul.mubr.bf16.gmra.mrb[0].mxu0 %v7784
        %v8670 = vpop.f32.mrb[0].mxu0
        %v8671 = vadd.f32 0.0, %v8670
        %v8672 = vpop.f32.mrb[0].mxu0
        %v8673 = vpop.f32.mrb[0].mxu0
        %v8674 = vadd.f32 0.0, %v8673
        %v8675 = vpop.f32.mrb[0].mxu0
        %8676 = vmatprep.mubr.bf16.mxu0 %v8072
        %8677 = vmatmul.mubr.bf16.gmra.mrb[0].mxu0 %v7786
        %v8678 = vpop.f32.mrb[0].mxu0
        %v8679 = vadd.f32 0.0, %v8678
        %v8680 = vpop.f32.mrb[0].mxu0
        %v8681 = vpop.f32.mrb[0].mxu0
        %v8682 = vadd.f32 0.0, %v8681
        %v8683 = vpop.f32.mrb[0].mxu0
        %8684 = vdwg.mxu0
        %v8685 = vld [vmem:[%s2] sm:$0x1]
        %v8686 = vld [vmem:[%s3] sm:$0x1]
        %v8688 = vlaneseq
        %v8689 = vshrl.u32 %v8688, 7
        %v8690 = vsub.s32 0, %v8689
        %v8691 = vrot.slane %v8685, %v8690
        %v8693 = vmul.f32 %v8175, %v8691
        %v8694 = vmul.f32 %v8178, %v8691
        %v8695 = vmul.f32 %v8183, %v8691
        %v8696 = vmul.f32 %v8186, %v8691
        %v8697 = vmul.f32 %v8191, %v8691
        %v8698 = vmul.f32 %v8194, %v8691
        %v8699 = vmul.f32 %v8199, %v8691
        %v8700 = vmul.f32 %v8202, %v8691
        %v8701 = vmul.f32 %v8207, %v8691
        %v8702 = vmul.f32 %v8210, %v8691
        %v8703 = vmul.f32 %v8215, %v8691
        %v8704 = vmul.f32 %v8218, %v8691
        %v8705 = vmul.f32 %v8223, %v8691
        %v8706 = vmul.f32 %v8226, %v8691
        %v8707 = vmul.f32 %v8231, %v8691
        %v8708 = vmul.f32 %v8234, %v8691
        %v8709 = vmul.f32 %v8239, %v8691
        %v8710 = vmul.f32 %v8242, %v8691
        %v8711 = vmul.f32 %v8247, %v8691
        %v8712 = vmul.f32 %v8250, %v8691
        %v8713 = vmul.f32 %v8255, %v8691
        %v8714 = vmul.f32 %v8258, %v8691
        %v8715 = vmul.f32 %v8263, %v8691
        %v8716 = vmul.f32 %v8266, %v8691
        %v8717 = vmul.f32 %v8271, %v8691
        %v8718 = vmul.f32 %v8274, %v8691
        %v8719 = vmul.f32 %v8279, %v8691
        %v8720 = vmul.f32 %v8282, %v8691
        %v8721 = vmul.f32 %v8287, %v8691
        %v8722 = vmul.f32 %v8290, %v8691
        %v8723 = vmul.f32 %v8295, %v8691
        %v8724 = vmul.f32 %v8298, %v8691
        %v8725 = vmul.f32 %v8303, %v8691
        %v8726 = vmul.f32 %v8306, %v8691
        %v8727 = vmul.f32 %v8311, %v8691
        %v8728 = vmul.f32 %v8314, %v8691
        %v8729 = vmul.f32 %v8319, %v8691
        %v8730 = vmul.f32 %v8322, %v8691
        %v8731 = vmul.f32 %v8327, %v8691
        %v8732 = vmul.f32 %v8330, %v8691
        %v8733 = vmul.f32 %v8335, %v8691
        %v8734 = vmul.f32 %v8338, %v8691
        %v8735 = vmul.f32 %v8343, %v8691
        %v8736 = vmul.f32 %v8346, %v8691
        %v8737 = vmul.f32 %v8351, %v8691
        %v8738 = vmul.f32 %v8354, %v8691
        %v8739 = vmul.f32 %v8359, %v8691
        %v8740 = vmul.f32 %v8362, %v8691
        %v8741 = vmul.f32 %v8367, %v8691
        %v8742 = vmul.f32 %v8370, %v8691
        %v8743 = vmul.f32 %v8375, %v8691
        %v8744 = vmul.f32 %v8378, %v8691
        %v8745 = vmul.f32 %v8383, %v8691
        %v8746 = vmul.f32 %v8386, %v8691
        %v8747 = vmul.f32 %v8391, %v8691
        %v8748 = vmul.f32 %v8394, %v8691
        %v8749 = vmul.f32 %v8399, %v8691
        %v8750 = vmul.f32 %v8402, %v8691
        %v8751 = vmul.f32 %v8407, %v8691
        %v8752 = vmul.f32 %v8410, %v8691
        %v8753 = vmul.f32 %v8415, %v8691
        %v8754 = vmul.f32 %v8418, %v8691
        %v8755 = vmul.f32 %v8423, %v8691
        %v8756 = vmul.f32 %v8426, %v8691
        %v8758 = vlaneseq
        %v8759 = vshrl.u32 %v8758, 7
        %v8760 = vsub.s32 0, %v8759
        %v8761 = vrot.slane %v8686, %v8760
        %v8763 = vadd.f32 %v8693, %v8761
        %v8764 = vadd.f32 %v8694, %v8761
        %v8765 = vadd.f32 %v8695, %v8761
        %v8766 = vadd.f32 %v8696, %v8761
        %v8767 = vadd.f32 %v8697, %v8761
        %v8768 = vadd.f32 %v8698, %v8761
        %v8769 = vadd.f32 %v8699, %v8761
        %v8770 = vadd.f32 %v8700, %v8761
        %v8771 = vadd.f32 %v8701, %v8761
        %v8772 = vadd.f32 %v8702, %v8761
        %v8773 = vadd.f32 %v8703, %v8761
        %v8774 = vadd.f32 %v8704, %v8761
        %v8775 = vadd.f32 %v8705, %v8761
        %v8776 = vadd.f32 %v8706, %v8761
        %v8777 = vadd.f32 %v8707, %v8761
        %v8778 = vadd.f32 %v8708, %v8761
        %v8779 = vadd.f32 %v8709, %v8761
        %v8780 = vadd.f32 %v8710, %v8761
        %v8781 = vadd.f32 %v8711, %v8761
        %v8782 = vadd.f32 %v8712, %v8761
        %v8783 = vadd.f32 %v8713, %v8761
        %v8784 = vadd.f32 %v8714, %v8761
        %v8785 = vadd.f32 %v8715, %v8761
        %v8786 = vadd.f32 %v8716, %v8761
        %v8787 = vadd.f32 %v8717, %v8761
        %v8788 = vadd.f32 %v8718, %v8761
        %v8789 = vadd.f32 %v8719, %v8761
        %v8790 = vadd.f32 %v8720, %v8761
        %v8791 = vadd.f32 %v8721, %v8761
        %v8792 = vadd.f32 %v8722, %v8761
        %v8793 = vadd.f32 %v8723, %v8761
        %v8794 = vadd.f32 %v8724, %v8761
        %v8795 = vadd.f32 %v8725, %v8761
        %v8796 = vadd.f32 %v8726, %v8761
        %v8797 = vadd.f32 %v8727, %v8761
        %v8798 = vadd.f32 %v8728, %v8761
        %v8799 = vadd.f32 %v8729, %v8761
        %v8800 = vadd.f32 %v8730, %v8761
        %v8801 = vadd.f32 %v8731, %v8761
        %v8802 = vadd.f32 %v8732, %v8761
        %v8803 = vadd.f32 %v8733, %v8761
        %v8804 = vadd.f32 %v8734, %v8761
        %v8805 = vadd.f32 %v8735, %v8761
        %v8806 = vadd.f32 %v8736, %v8761
        %v8807 = vadd.f32 %v8737, %v8761
        %v8808 = vadd.f32 %v8738, %v8761
        %v8809 = vadd.f32 %v8739, %v8761
        %v8810 = vadd.f32 %v8740, %v8761
        %v8811 = vadd.f32 %v8741, %v8761
        %v8812 = vadd.f32 %v8742, %v8761
        %v8813 = vadd.f32 %v8743, %v8761
        %v8814 = vadd.f32 %v8744, %v8761
        %v8815 = vadd.f32 %v8745, %v8761
        %v8816 = vadd.f32 %v8746, %v8761
        %v8817 = vadd.f32 %v8747, %v8761
        %v8818 = vadd.f32 %v8748, %v8761
        %v8819 = vadd.f32 %v8749, %v8761
        %v8820 = vadd.f32 %v8750, %v8761
        %v8821 = vadd.f32 %v8751, %v8761
        %v8822 = vadd.f32 %v8752, %v8761
        %v8823 = vadd.f32 %v8753, %v8761
        %v8824 = vadd.f32 %v8754, %v8761
        %v8825 = vadd.f32 %v8755, %v8761
        %v8826 = vadd.f32 %v8756, %v8761
        %v8827 = vmul.f32 %v8431, %v8691
        %v8828 = vmul.f32 %v8434, %v8691
        %v8829 = vmul.f32 %v8439, %v8691
        %v8830 = vmul.f32 %v8442, %v8691
        %v8831 = vmul.f32 %v8447, %v8691
        %v8832 = vmul.f32 %v8450, %v8691
        %v8833 = vmul.f32 %v8455, %v8691
        %v8834 = vmul.f32 %v8458, %v8691
        %v8835 = vmul.f32 %v8463, %v8691
        %v8836 = vmul.f32 %v8466, %v8691
        %v8837 = vmul.f32 %v8471, %v8691
        %v8838 = vmul.f32 %v8474, %v8691
        %v8839 = vmul.f32 %v8479, %v8691
        %v8840 = vmul.f32 %v8482, %v8691
        %v8841 = vmul.f32 %v8487, %v8691
        %v8842 = vmul.f32 %v8490, %v8691
        %v8843 = vmul.f32 %v8495, %v8691
        %v8844 = vmul.f32 %v8498, %v8691
        %v8845 = vmul.f32 %v8503, %v8691
        %v8846 = vmul.f32 %v8506, %v8691
        %v8847 = vmul.f32 %v8511, %v8691
        %v8848 = vmul.f32 %v8514, %v8691
        %v8849 = vmul.f32 %v8519, %v8691
        %v8850 = vmul.f32 %v8522, %v8691
        %v8851 = vmul.f32 %v8527, %v8691
        %v8852 = vmul.f32 %v8530, %v8691
        %v8853 = vmul.f32 %v8535, %v8691
        %v8854 = vmul.f32 %v8538, %v8691
        %v8855 = vmul.f32 %v8543, %v8691
        %v8856 = vmul.f32 %v8546, %v8691
        %v8857 = vmul.f32 %v8551, %v8691
        %v8858 = vmul.f32 %v8554, %v8691
        %v8859 = vmul.f32 %v8559, %v8691
        %v8860 = vmul.f32 %v8562, %v8691
        %v8861 = vmul.f32 %v8567, %v8691
        %v8862 = vmul.f32 %v8570, %v8691
        %v8863 = vmul.f32 %v8575, %v8691
        %v8864 = vmul.f32 %v8578, %v8691
        %v8865 = vmul.f32 %v8583, %v8691
        %v8866 = vmul.f32 %v8586, %v8691
        %v8867 = vmul.f32 %v8591, %v8691
        %v8868 = vmul.f32 %v8594, %v8691
        %v8869 = vmul.f32 %v8599, %v8691
        %v8870 = vmul.f32 %v8602, %v8691
        %v8871 = vmul.f32 %v8607, %v8691
        %v8872 = vmul.f32 %v8610, %v8691
        %v8873 = vmul.f32 %v8615, %v8691
        %v8874 = vmul.f32 %v8618, %v8691
        %v8875 = vmul.f32 %v8623, %v8691
        %v8876 = vmul.f32 %v8626, %v8691
        %v8877 = vmul.f32 %v8631, %v8691
        %v8878 = vmul.f32 %v8634, %v8691
        %v8879 = vmul.f32 %v8639, %v8691
        %v8880 = vmul.f32 %v8642, %v8691
        %v8881 = vmul.f32 %v8647, %v8691
        %v8882 = vmul.f32 %v8650, %v8691
        %v8883 = vmul.f32 %v8655, %v8691
        %v8884 = vmul.f32 %v8658, %v8691
        %v8885 = vmul.f32 %v8663, %v8691
        %v8886 = vmul.f32 %v8666, %v8691
        %v8887 = vmul.f32 %v8671, %v8691
        %v8888 = vmul.f32 %v8674, %v8691
        %v8889 = vmul.f32 %v8679, %v8691
        %v8890 = vmul.f32 %v8682, %v8691
        %v8891 = vadd.f32 %v8827, %v8761
        %v8892 = vadd.f32 %v8828, %v8761
        %v8893 = vadd.f32 %v8829, %v8761
        %v8894 = vadd.f32 %v8830, %v8761
        %v8895 = vadd.f32 %v8831, %v8761
        %v8896 = vadd.f32 %v8832, %v8761
        %v8897 = vadd.f32 %v8833, %v8761
        %v8898 = vadd.f32 %v8834, %v8761
        %v8899 = vadd.f32 %v8835, %v8761
        %v8900 = vadd.f32 %v8836, %v8761
        %v8901 = vadd.f32 %v8837, %v8761
        %v8902 = vadd.f32 %v8838, %v8761
        %v8903 = vadd.f32 %v8839, %v8761
        %v8904 = vadd.f32 %v8840, %v8761
        %v8905 = vadd.f32 %v8841, %v8761
        %v8906 = vadd.f32 %v8842, %v8761
        %v8907 = vadd.f32 %v8843, %v8761
        %v8908 = vadd.f32 %v8844, %v8761
        %v8909 = vadd.f32 %v8845, %v8761
        %v8910 = vadd.f32 %v8846, %v8761
        %v8911 = vadd.f32 %v8847, %v8761
        %v8912 = vadd.f32 %v8848, %v8761
        %v8913 = vadd.f32 %v8849, %v8761
        %v8914 = vadd.f32 %v8850, %v8761
        %v8915 = vadd.f32 %v8851, %v8761
        %v8916 = vadd.f32 %v8852, %v8761
        %v8917 = vadd.f32 %v8853, %v8761
        %v8918 = vadd.f32 %v8854, %v8761
        %v8919 = vadd.f32 %v8855, %v8761
        %v8920 = vadd.f32 %v8856, %v8761
        %v8921 = vadd.f32 %v8857, %v8761
        %v8922 = vadd.f32 %v8858, %v8761
        %v8923 = vadd.f32 %v8859, %v8761
        %v8924 = vadd.f32 %v8860, %v8761
        %v8925 = vadd.f32 %v8861, %v8761
        %v8926 = vadd.f32 %v8862, %v8761
        %v8927 = vadd.f32 %v8863, %v8761
        %v8928 = vadd.f32 %v8864, %v8761
        %v8929 = vadd.f32 %v8865, %v8761
        %v8930 = vadd.f32 %v8866, %v8761
        %v8931 = vadd.f32 %v8867, %v8761
        %v8932 = vadd.f32 %v8868, %v8761
        %v8933 = vadd.f32 %v8869, %v8761
        %v8934 = vadd.f32 %v8870, %v8761
        %v8935 = vadd.f32 %v8871, %v8761
        %v8936 = vadd.f32 %v8872, %v8761
        %v8937 = vadd.f32 %v8873, %v8761
        %v8938 = vadd.f32 %v8874, %v8761
        %v8939 = vadd.f32 %v8875, %v8761
        %v8940 = vadd.f32 %v8876, %v8761
        %v8941 = vadd.f32 %v8877, %v8761
        %v8942 = vadd.f32 %v8878, %v8761
        %v8943 = vadd.f32 %v8879, %v8761
        %v8944 = vadd.f32 %v8880, %v8761
        %v8945 = vadd.f32 %v8881, %v8761
        %v8946 = vadd.f32 %v8882, %v8761
        %v8947 = vadd.f32 %v8883, %v8761
        %v8948 = vadd.f32 %v8884, %v8761
        %v8949 = vadd.f32 %v8885, %v8761
        %v8950 = vadd.f32 %v8886, %v8761
        %v8951 = vadd.f32 %v8887, %v8761
        %v8952 = vadd.f32 %v8888, %v8761
        %v8953 = vadd.f32 %v8889, %v8761
        %v8954 = vadd.f32 %v8890, %v8761
        %v8955 = vmax.f32 %v8763, %v8891
        %v8956 = vmax.f32 %v8764, %v8892
        %v8957 = vmax.f32 %v8765, %v8893
        %v8958 = vmax.f32 %v8766, %v8894
        %v8959 = vmax.f32 %v8767, %v8895
        %v8960 = vmax.f32 %v8768, %v8896
        %v8961 = vmax.f32 %v8769, %v8897
        %v8962 = vmax.f32 %v8770, %v8898
        %v8963 = vmax.f32 %v8771, %v8899
        %v8964 = vmax.f32 %v8772, %v8900
        %v8965 = vmax.f32 %v8773, %v8901
        %v8966 = vmax.f32 %v8774, %v8902
        %v8967 = vmax.f32 %v8775, %v8903
        %v8968 = vmax.f32 %v8776, %v8904
        %v8969 = vmax.f32 %v8777, %v8905
        %v8970 = vmax.f32 %v8778, %v8906
        %v8971 = vmax.f32 %v8779, %v8907
        %v8972 = vmax.f32 %v8780, %v8908
        %v8973 = vmax.f32 %v8781, %v8909
        %v8974 = vmax.f32 %v8782, %v8910
        %v8975 = vmax.f32 %v8783, %v8911
        %v8976 = vmax.f32 %v8784, %v8912
        %v8977 = vmax.f32 %v8785, %v8913
        %v8978 = vmax.f32 %v8786, %v8914
        %v8979 = vmax.f32 %v8787, %v8915
        %v8980 = vmax.f32 %v8788, %v8916
        %v8981 = vmax.f32 %v8789, %v8917
        %v8982 = vmax.f32 %v8790, %v8918
        %v8983 = vmax.f32 %v8791, %v8919
        %v8984 = vmax.f32 %v8792, %v8920
        %v8985 = vmax.f32 %v8793, %v8921
        %v8986 = vmax.f32 %v8794, %v8922
        %v8987 = vmax.f32 %v8795, %v8923
        %v8988 = vmax.f32 %v8796, %v8924
        %v8989 = vmax.f32 %v8797, %v8925
        %v8990 = vmax.f32 %v8798, %v8926
        %v8991 = vmax.f32 %v8799, %v8927
        %v8992 = vmax.f32 %v8800, %v8928
        %v8993 = vmax.f32 %v8801, %v8929
        %v8994 = vmax.f32 %v8802, %v8930
        %v8995 = vmax.f32 %v8803, %v8931
        %v8996 = vmax.f32 %v8804, %v8932
        %v8997 = vmax.f32 %v8805, %v8933
        %v8998 = vmax.f32 %v8806, %v8934
        %v8999 = vmax.f32 %v8807, %v8935
        %v9000 = vmax.f32 %v8808, %v8936
        %v9001 = vmax.f32 %v8809, %v8937
        %v9002 = vmax.f32 %v8810, %v8938
        %v9003 = vmax.f32 %v8811, %v8939
        %v9004 = vmax.f32 %v8812, %v8940
        %v9005 = vmax.f32 %v8813, %v8941
        %v9006 = vmax.f32 %v8814, %v8942
        %v9007 = vmax.f32 %v8815, %v8943
        %v9008 = vmax.f32 %v8816, %v8944
        %v9009 = vmax.f32 %v8817, %v8945
        %v9010 = vmax.f32 %v8818, %v8946
        %v9011 = vmax.f32 %v8819, %v8947
        %v9012 = vmax.f32 %v8820, %v8948
        %v9013 = vmax.f32 %v8821, %v8949
        %v9014 = vmax.f32 %v8822, %v8950
        %v9015 = vmax.f32 %v8823, %v8951
        %v9016 = vmax.f32 %v8824, %v8952
        %v9017 = vmax.f32 %v8825, %v8953
        %v9018 = vmax.f32 %v8826, %v8954
        %v9019 = vmax.f32 %v8955, %v8957
        %v9020 = vmax.f32 %v8956, %v8958
        %v9021 = vmax.f32 %v8959, %v8961
        %v9022 = vmax.f32 %v8960, %v8962
        %v9023 = vmax.f32 %v8963, %v8965
        %v9024 = vmax.f32 %v8964, %v8966
        %v9025 = vmax.f32 %v8967, %v8969
        %v9026 = vmax.f32 %v8968, %v8970
        %v9027 = vmax.f32 %v8971, %v8973
        %v9028 = vmax.f32 %v8972, %v8974
        %v9029 = vmax.f32 %v8975, %v8977
        %v9030 = vmax.f32 %v8976, %v8978
        %v9031 = vmax.f32 %v8979, %v8981
        %v9032 = vmax.f32 %v8980, %v8982
        %v9033 = vmax.f32 %v8983, %v8985
        %v9034 = vmax.f32 %v8984, %v8986
        %v9035 = vmax.f32 %v8987, %v8989
        %v9036 = vmax.f32 %v8988, %v8990
        %v9037 = vmax.f32 %v8991, %v8993
        %v9038 = vmax.f32 %v8992, %v8994
        %v9039 = vmax.f32 %v8995, %v8997
        %v9040 = vmax.f32 %v8996, %v8998
        %v9041 = vmax.f32 %v8999, %v9001
        %v9042 = vmax.f32 %v9000, %v9002
        %v9043 = vmax.f32 %v9003, %v9005
        %v9044 = vmax.f32 %v9004, %v9006
        %v9045 = vmax.f32 %v9007, %v9009
        %v9046 = vmax.f32 %v9008, %v9010
        %v9047 = vmax.f32 %v9011, %v9013
        %v9048 = vmax.f32 %v9012, %v9014
        %v9049 = vmax.f32 %v9015, %v9017
        %v9050 = vmax.f32 %v9016, %v9018
        %v9051 = vmax.f32 %v9019, 0.0
        %v9052 = vmax.f32 %v9020, 0.0
        %v9053 = vmax.f32 %v9021, 0.0
        %v9054 = vmax.f32 %v9022, 0.0
        %v9055 = vmax.f32 %v9023, 0.0
        %v9056 = vmax.f32 %v9024, 0.0
        %v9057 = vmax.f32 %v9025, 0.0
        %v9058 = vmax.f32 %v9026, 0.0
        %v9059 = vmax.f32 %v9027, 0.0
        %v9060 = vmax.f32 %v9028, 0.0
        %v9061 = vmax.f32 %v9029, 0.0
        %v9062 = vmax.f32 %v9030, 0.0
        %v9063 = vmax.f32 %v9031, 0.0
        %v9064 = vmax.f32 %v9032, 0.0
        %v9065 = vmax.f32 %v9033, 0.0
        %v9066 = vmax.f32 %v9034, 0.0
        %v9067 = vmax.f32 %v9035, 0.0
        %v9068 = vmax.f32 %v9036, 0.0
        %v9069 = vmax.f32 %v9037, 0.0
        %v9070 = vmax.f32 %v9038, 0.0
        %v9071 = vmax.f32 %v9039, 0.0
        %v9072 = vmax.f32 %v9040, 0.0
        %v9073 = vmax.f32 %v9041, 0.0
        %v9074 = vmax.f32 %v9042, 0.0
        %v9075 = vmax.f32 %v9043, 0.0
        %v9076 = vmax.f32 %v9044, 0.0
        %v9077 = vmax.f32 %v9045, 0.0
        %v9078 = vmax.f32 %v9046, 0.0
        %v9079 = vmax.f32 %v9047, 0.0
        %v9080 = vmax.f32 %v9048, 0.0
        %v9081 = vmax.f32 %v9049, 0.0
        %v9082 = vmax.f32 %v9050, 0.0
        %vm9083 = vcmask 523264
        %9084 = vst.msk [vmem:[%s190] sm:$0xff] %vm9083, %v9051
        %9085 = vst.msk [vmem:[%s190 + $0x8] sm:$0xff] %vm9083, %v9052
        %9086 = vst.msk [vmem:[%s190 + $0x10] sm:$0xff] %vm9083, %v9053
        %9087 = vst.msk [vmem:[%s190 + $0x18] sm:$0xff] %vm9083, %v9054
        %9088 = vst.msk [vmem:[%s190 + $0x20] sm:$0xff] %vm9083, %v9055
        %9089 = vst.msk [vmem:[%s190 + $0x28] sm:$0xff] %vm9083, %v9056
        %9090 = vst.msk [vmem:[%s190 + $0x30] sm:$0xff] %vm9083, %v9057
        %9091 = vst.msk [vmem:[%s190 + $0x38] sm:$0xff] %vm9083, %v9058
        %9092 = vst.msk [vmem:[%s190 + $0x40] sm:$0xff] %vm9083, %v9059
        %9093 = vst.msk [vmem:[%s190 + $0x48] sm:$0xff] %vm9083, %v9060
        %9094 = vst.msk [vmem:[%s190 + $0x50] sm:$0xff] %vm9083, %v9061
        %9095 = vst.msk [vmem:[%s190 + $0x58] sm:$0xff] %vm9083, %v9062
        %9096 = vst.msk [vmem:[%s190 + $0x60] sm:$0xff] %vm9083, %v9063
        %9097 = vst.msk [vmem:[%s190 + $0x68] sm:$0xff] %vm9083, %v9064
        %9098 = vst.msk [vmem:[%s190 + $0x70] sm:$0xff] %vm9083, %v9065
        %9099 = vst.msk [vmem:[%s190 + $0x78] sm:$0xff] %vm9083, %v9066
        %9100 = vst.msk [vmem:[%s190 + $0x80] sm:$0xff] %vm9083, %v9067
        %9101 = vst.msk [vmem:[%s190 + $0x88] sm:$0xff] %vm9083, %v9068
        %9102 = vst.msk [vmem:[%s190 + $0x90] sm:$0xff] %vm9083, %v9069
        %9103 = vst.msk [vmem:[%s190 + $0x98] sm:$0xff] %vm9083, %v9070
        %9104 = vst.msk [vmem:[%s190 + $0xa0] sm:$0xff] %vm9083, %v9071
        %9105 = vst.msk [vmem:[%s190 + $0xa8] sm:$0xff] %vm9083, %v9072
        %9106 = vst.msk [vmem:[%s190 + $0xb0] sm:$0xff] %vm9083, %v9073
        %9107 = vst.msk [vmem:[%s190 + $0xb8] sm:$0xff] %vm9083, %v9074
        %9108 = vst.msk [vmem:[%s190 + $0xc0] sm:$0xff] %vm9083, %v9075
        %9109 = vst.msk [vmem:[%s190 + $0xc8] sm:$0xff] %vm9083, %v9076
        %9110 = vst.msk [vmem:[%s190 + $0xd0] sm:$0xff] %vm9083, %v9077
        %9111 = vst.msk [vmem:[%s190 + $0xd8] sm:$0xff] %vm9083, %v9078
        %9112 = vst.msk [vmem:[%s190 + $0xe0] sm:$0xff] %vm9083, %v9079
        %9113 = vst.msk [vmem:[%s190 + $0xe8] sm:$0xff] %vm9083, %v9080
        %9114 = vst.msk [vmem:[%s190 + $0xf0] sm:$0xff] %vm9083, %v9081
        %9115 = vst.msk [vmem:[%s190 + $0xf8] sm:$0xff] %vm9083, %v9082
        %s9116 = sand.u32 %s115, 1
        %s9117 = scalar_lea.sflag [#allocation3], %s9116
        %s9118 = sand.u32 %s115, 1
        %s9119 = smul.addr %s9118, 256
        %s9120 = scalar_lea.vmem [#allocation2], %s9119
        // Predicated region
        $region37: #{_lambda_.1} parent=35 // pred_check
          %p9121 = pneg %p125
        $region38: #{_lambda_.1} parent=35 // pred_check_branch
          %9123 = sbr.rel (%p9121) target = $region40
        $region39: #{_lambda_.1} parent=35 // pred_region
          %s9125 = ssub.s32 4096, 4096
          %9126 = vsyncadd %s9117, %s9125
          %s9127 = smul.addr %s18, 32
          %s9128 = smul.addr %s9127, 128
          %s9129 = scalar_lea.hbm %s4, %s9128
          %s9130 = sshll.u32 %s9120, 4
          %s9131 = int_to_ptr.vmem [resolvable:$true] %s9130
          %9136 = dma.vmem_to_hbm [thread:$0]  %s9131, 4096, %s9129, %s9117, 128, 128, 8
        $region40: #{_lambda_.1} parent=35 // pred_fallthru
          _
      $region36: #{_lambda_.1} parent=5 // pred_fallthru
        _
      %p9137 = scmp.le.s32.totalorder 2, %s13
      // Predicated region
      $region41: #{_lambda_.1} parent=5 // pred_check
        %p9138 = pneg %p9137
      $region42: #{_lambda_.1} parent=5 // pred_check_branch
        %9140 = sbr.rel (%p9138) target = $region44
      $region43: #{_lambda_.1} parent=5 // pred_region
        %s9141 = ssub.s32 %s13, 2
        // Predicated region
        $region45: #{_lambda_.1} parent=43 // pred_check
          %p9142 = pneg %p131
        $region46: #{_lambda_.1} parent=43 // pred_check_branch
          %9144 = sbr.rel (%p9142) target = $region48
        $region47: #{_lambda_.1} parent=43 // pred_region
          %s9145 = sand.u32 %s116, 1
          %s9146 = scalar_lea.sflag [#allocation3], %s9145
          %s9147 = sand.u32 %s116, 1
          %s9148 = smul.addr %s9147, 256
          %s9149 = scalar_lea.vmem [#allocation2], %s9148
          %9150 = dma.done %s9146, 4096
        $region48: #{_lambda_.1} parent=43 // pred_fallthru
          _
      $region44: #{_lambda_.1} parent=5 // pred_fallthru
        _
    $region6: #{_lambda_.1} parent=1 // loop_footer
      %s17 = sadd.s32 1, %s13
    $region7: #{_lambda_.1} parent=1 // loop_footer_branch
      %12 = sbr.rel target = $region3
    $region8: #{_lambda_.1} parent=1 // loop_exit
      _
    %9151 = vsyncpa [#allocation3], 1
    %s9152 = scalar_lea.sflag [#allocation3], 1
    %9153 = vsyncpa %s9152, 1

</llo_original>
